<compile_context>
chip_gen: v7x
topology: tpu7x:2x2x1
jax: 0.10.0
libtpu: 0.0.40
codegen_flags: <defaults>
</compile_context>

<pallas_src>
import jax
import jax.numpy as jnp
from jax import lax
from jax.experimental import pallas as pl
from jax.experimental.pallas import tpu as pltpu

KERNELS = (3, 5)          # same default as the PyTorch module
M = len(KERNELS)          # number of branches (softmax is over this axis)
BN_EPS = 1e-5


# ---------------------------------------------------------------------------
# Fused kernel: dwconv(K=3) + dwconv(K=5) + BN + ReLU + GAP + fc1 + fc2
#               + softmax over branches + weighted combine, per batch element.
# All spatial/channel data uses the lane-folded (D, H, W*Cout) layout.
# ---------------------------------------------------------------------------
def _make_fused_kernel(D, H, W, C, WC, dh):
    K_A, K_B = KERNELS
    p_max = max(KERNELS) // 2
    inv_dhw = 1.0 / float(D * H * W)

    def kernel(x_ref, wA_ref, bA_ref, wB_ref, bB_ref,
               w1_ref, b1_ref, w2_ref, b2_ref, v_ref, xw_ref):
        # x_ref : (1, Dp, Hp, Wp*C)  padded, channel-replicated, lane-folded
        # wA/wB : (K^3, W*C) BN-folded depthwise taps (tiled over W)
        # bA/bB : (1, W*C)
        # w1    : (W*C, dh)  b1 : (1, dh)          (fc1, W-fold absorbed)
        # w2    : (dh, M*W*C)  b2 : (1, M*W*C)     (fc2, both branches fused)
        # v_ref : (1, D, H, W*C)
        # xw_ref: VMEM scratch (Dp, Hp, W*C) — single reusable kw-shifted copy

        def branch(K, w_ref, b_ref):
            off = p_max - K // 2                     # 0 for K=5, 1 for K=3
            acc = [jnp.zeros((D, H, WC), jnp.float32) for _ in range(2)]
            for kw in range(K):
                s = (off + kw) * C
                # One lane-shifted copy per kw, written into a single reused
                # VMEM scratch so only one shifted copy is ever live.
                xw_ref[...] = x_ref[0, :, :, s:s + WC]
                for kh in range(K):
                    # Hoist the sublane (kh) shift out of the kd loop; the kd
                    # slices below are leading-dim picks of a register value.
                    xs = xw_ref[:, off + kh:off + kh + H, :]      # (Dp, H, WC)
                    for kd in range(K):
                        idx = (kd * K + kh) * K + kw
                        wv = w_ref[idx]                           # (WC,) lanes
                        acc[kd % 2] = acc[kd % 2] + wv * xs[off + kd:off + kd + D]
            return jnp.maximum(acc[0] + acc[1] + b_ref[...], 0.0)  # (D, H, WC)

        out1 = branch(K_A, wA_ref, bA_ref)
        out2 = branch(K_B, wB_ref, bB_ref)

        # Global average pool of U = out1 + out2 without materializing U.
        s1 = jnp.sum(jnp.sum(out1, axis=0), axis=0, keepdims=True)   # (1, WC)
        s2 = jnp.sum(jnp.sum(out2, axis=0), axis=0, keepdims=True)
        sl = (s1 + s2) * inv_dhw                                     # (1, WC)

        # fc1 (the sum over the folded W copies happens inside the dot since
        # w1 rows are tiled over W in the wrapper), then fused fc2.
        z = jnp.dot(sl, w1_ref[...],
                    preferred_element_type=jnp.float32) + b1_ref[...]
        z = jnp.maximum(z, 0.0)                                      # (1, dh)
        lg = jnp.dot(z, w2_ref[...],
                     preferred_element_type=jnp.float32) + b2_ref[...]  # (1, M*WC)
        l1 = lg[:, :WC]
        l2 = lg[:, WC:]

        # Softmax over the M=2 branches (per channel, already lane-folded).
        mx = jnp.maximum(l1, l2)
        e1 = jnp.exp(l1 - mx)
        e2 = jnp.exp(l2 - mx)
        inv_den = 1.0 / (e1 + e2)
        a1 = e1 * inv_den                                            # (1, WC)
        a2 = e2 * inv_den

        v_ref[0] = a1 * out1 + a2 * out2                             # (D, H, WC)

    return kernel


# ---------------------------------------------------------------------------
# Full SKM3d forward (wrapper: layout fold, padding, channel replication,
# BN folding, FC weight folding; one pallas_call).
# ---------------------------------------------------------------------------
def skm3d_forward(x, params):
    B, Cin, D, H, W = x.shape
    Cout = params["conv0_w"].shape[0]
    assert Cout % Cin == 0, "groups=Cin requires Cout % Cin == 0"
    mult = Cout // Cin
    dh = params["fc1_w"].shape[0]
    p = max(KERNELS) // 2
    Dp, Hp, Wp = D + 2 * p, H + 2 * p, W + 2 * p
    WC = W * Cout
    WpC = Wp * Cout
    f32 = jnp.float32

    # Channel-last, replicate channels so lane c holds the input channel that
    # feeds output channel c (c // mult), pad once with the larger halo, then
    # fold (W, C) onto the lane axis.
    x_cl = jnp.transpose(x, (0, 2, 3, 4, 1))                        # (B,D,H,W,Cin)
    x_cl = jnp.repeat(x_cl, mult, axis=-1)                          # (B,D,H,W,Cout)
    xp = jnp.pad(x_cl, ((0, 0), (p, p), (p, p), (p, p), (0, 0)))    # (B,Dp,Hp,Wp,C)
    xp = xp.reshape(B, Dp, Hp, WpC).astype(f32)                     # (B,Dp,Hp,Wp*C)

    taps, biases = [], []
    for i, K in enumerate(KERNELS):
        w = params[f"conv{i}_w"][:, 0]                              # (Cout,K,K,K)
        scale = params[f"bn{i}_g"] / jnp.sqrt(params[f"bn{i}_v"] + BN_EPS)
        w_eff = (w * scale[:, None, None, None]).reshape(Cout, K ** 3).T  # (K^3,C)
        b_eff = scale * (params[f"conv{i}_b"] - params[f"bn{i}_m"]) + params[f"bn{i}_b"]
        taps.append(jnp.tile(w_eff, (1, W)).astype(f32))            # (K^3, W*C)
        biases.append(jnp.tile(b_eff[None, :], (1, W)).astype(f32))  # (1, W*C)

    # fc1 weight folded so the dot also sums over the W copies; fc2 fused
    # across both branches and tiled to the lane-folded layout.
    w1f = jnp.tile(params["fc1_w"].T, (W, 1)).astype(f32)           # (W*C, dh)
    b1 = params["fc1_b"][None, :].astype(f32)                       # (1, dh)
    w2 = params["fc2_w"].astype(f32)                                # (M*C, dh)
    w2f = jnp.concatenate(
        [jnp.tile(w2[i * Cout:(i + 1) * Cout].T, (1, W)) for i in range(M)],
        axis=1)                                                     # (dh, M*W*C)
    b2 = params["fc2_b"].astype(f32)
    b2f = jnp.concatenate(
        [jnp.tile(b2[None, i * Cout:(i + 1) * Cout], (1, W)) for i in range(M)],
        axis=1)                                                     # (1, M*W*C)

    K3, K5 = KERNELS[0] ** 3, KERNELS[1] ** 3
    flops = (2.0 * (K3 + K5) * B * D * H * W * Cout
             + 2.0 * B * (WC * dh + dh * M * WC))
    bytes_accessed = 4 * (xp.size + B * D * H * WC
                          + taps[0].size + taps[1].size + w1f.size + w2f.size)

    v = pl.pallas_call(
        _make_fused_kernel(D, H, W, Cout, WC, dh),
        grid=(B,),
        in_specs=[
            pl.BlockSpec((1, Dp, Hp, WpC), lambda b: (b, 0, 0, 0)),
            pl.BlockSpec((K3, WC), lambda b: (0, 0)),
            pl.BlockSpec((1, WC), lambda b: (0, 0)),
            pl.BlockSpec((K5, WC), lambda b: (0, 0)),
            pl.BlockSpec((1, WC), lambda b: (0, 0)),
            pl.BlockSpec((WC, dh), lambda b: (0, 0)),
            pl.BlockSpec((1, dh), lambda b: (0, 0)),
            pl.BlockSpec((dh, M * WC), lambda b: (0, 0)),
            pl.BlockSpec((1, M * WC), lambda b: (0, 0)),
        ],
        out_specs=pl.BlockSpec((1, D, H, WC), lambda b: (b, 0, 0, 0)),
        out_shape=jax.ShapeDtypeStruct((B, D, H, WC), f32),
        scratch_shapes=[pltpu.VMEM((Dp, Hp, WC), f32)],
        compiler_params=pltpu.CompilerParams(
            dimension_semantics=("parallel",),
            vmem_limit_bytes=32 * 1024 * 1024),
        cost_estimate=pl.CostEstimate(
            flops=int(flops),
            transcendentals=int(M * B * WC),
            bytes_accessed=int(bytes_accessed)),
    )(xp, taps[0], biases[0], taps[1], biases[1], w1f, b1, w2f, b2f)

    v = v.reshape(B, D, H, W, Cout)
    return jnp.transpose(v, (0, 4, 1, 2, 3))                        # NCDHW


# ---------------------------------------------------------------------------
# Pure-JAX reference (mirrors the PyTorch forward, eval-mode BN)
# ---------------------------------------------------------------------------
def skm3d_reference(x, params):
    B, Cin, D, H, W = x.shape
    Cout = params["conv0_w"].shape[0]
    outs = []
    for i, K in enumerate(KERNELS):
        w = params[f"conv{i}_w"]                       # (Cout, 1, K, K, K)
        y = lax.conv_general_dilated(
            x, w, window_strides=(1, 1, 1),
            padding=[(K // 2, K // 2)] * 3,
            dimension_numbers=("NCDHW", "OIDHW", "NCDHW"),
            feature_group_count=Cin,
            precision=lax.Precision.HIGHEST)
        y = y + params[f"conv{i}_b"][None, :, None, None, None]
        scale = params[f"bn{i}_g"] / jnp.sqrt(params[f"bn{i}_v"] + BN_EPS)
        y = (scale[None, :, None, None, None]
             * (y - params[f"bn{i}_m"][None, :, None, None, None])
             + params[f"bn{i}_b"][None, :, None, None, None])
        outs.append(jnp.maximum(y, 0.0))
    U = outs[0] + outs[1]
    s = jnp.mean(U, axis=(2, 3, 4))
    z = jnp.maximum(
        jnp.dot(s, params["fc1_w"].T, precision=lax.Precision.HIGHEST)
        + params["fc1_b"], 0.0)
    ab = (jnp.dot(z, params["fc2_w"].T, precision=lax.Precision.HIGHEST)
          + params["fc2_b"])
    ab = jax.nn.softmax(ab.reshape(B, M, Cout), axis=1)
    return sum(outs[i] * ab[:, i][:, :, None, None, None] for i in range(M))


if __name__ == "__main__":
    B, Cin, Cout = 2, 4, 8                 # groups=Cin => Cout multiple of Cin
    D = H = W = 8
    reduction_rate = 16
    eff_d = int(max(Cout / reduction_rate, 32))        # = 32

    key = jax.random.PRNGKey(0)
    ks = jax.random.split(key, 20)
    params = {}
    for i, K in enumerate(KERNELS):
        params[f"conv{i}_w"] = 0.2 * jax.random.normal(
            ks[4 * i + 0], (Cout, 1, K, K, K), jnp.float32)
        params[f"conv{i}_b"] = 0.1 * jax.random.normal(
            ks[4 * i + 1], (Cout,), jnp.float32)
        params[f"bn{i}_g"] = 0.8 + 0.4 * jax.random.uniform(
            ks[4 * i + 2], (Cout,), jnp.float32)
        params[f"bn{i}_b"] = 0.1 * jax.random.normal(
            ks[4 * i + 3], (Cout,), jnp.float32)
        params[f"bn{i}_m"] = 0.05 * jax.random.normal(
            ks[8 + i], (Cout,), jnp.float32)
        params[f"bn{i}_v"] = 0.5 + jax.random.uniform(
            ks[10 + i], (Cout,), jnp.float32)
    params["fc1_w"] = 0.3 * jax.random.normal(ks[12], (eff_d, Cout), jnp.float32)
    params["fc1_b"] = 0.1 * jax.random.normal(ks[13], (eff_d,), jnp.float32)
    params["fc2_w"] = 0.3 * jax.random.normal(ks[14], (M * Cout, eff_d), jnp.float32)
    params["fc2_b"] = 0.1 * jax.random.normal(ks[15], (M * Cout,), jnp.float32)

    x = jax.random.normal(ks[16], (B, Cin, D, H, W), jnp.float32)

    v = skm3d_forward(x, params)
    v = jax.block_until_ready(v)

    ref = skm3d_reference(x, params)
    assert v.shape == (B, Cout, D, H, W), v.shape
    if not jnp.allclose(v, ref, rtol=2e-3, atol=2e-4):
        raise AssertionError(
            f"mismatch vs reference, max abs err = {jnp.max(jnp.abs(v - ref))}")
    print("KERNEL_OK")
</pallas_src>

<mosaic_0001>
module attributes {stable_mosaic.version = 11 : i64} {
  func.func @kernel(%arg0: i32, %arg1: memref<1x12x12x96xf32, #tpu.memory_space<vmem>>, %arg2: memref<27x64xf32, #tpu.memory_space<vmem>>, %arg3: memref<1x64xf32, #tpu.memory_space<vmem>>, %arg4: memref<125x64xf32, #tpu.memory_space<vmem>>, %arg5: memref<1x64xf32, #tpu.memory_space<vmem>>, %arg6: memref<64x32xf32, #tpu.memory_space<vmem>>, %arg7: memref<1x32xf32, #tpu.memory_space<vmem>>, %arg8: memref<32x128xf32, #tpu.memory_space<vmem>>, %arg9: memref<1x128xf32, #tpu.memory_space<vmem>>, %arg10: memref<1x8x8x64xf32, #tpu.memory_space<vmem>>, %arg11: memref<12x12x64xf32, #tpu.memory_space<vmem>>) attributes {dimension_semantics = [#tpu.dimension_semantics<parallel>], iteration_bounds = array<i64: 2>, scalar_prefetch = 0 : i64, scratch_operands = 1 : i64, tpu.core_type = #tpu.core_type<tc>, window_params = [{transform_indices = @transform_0, window_bounds = array<i64: 1, 12, 12, 96>}, {pipeline_mode = #tpu.pipeline_mode<synchronous>, transform_indices = @transform_1, window_bounds = array<i64: 27, 64>}, {pipeline_mode = #tpu.pipeline_mode<synchronous>, transform_indices = @transform_2, window_bounds = array<i64: 1, 64>}, {pipeline_mode = #tpu.pipeline_mode<synchronous>, transform_indices = @transform_3, window_bounds = array<i64: 125, 64>}, {pipeline_mode = #tpu.pipeline_mode<synchronous>, transform_indices = @transform_4, window_bounds = array<i64: 1, 64>}, {pipeline_mode = #tpu.pipeline_mode<synchronous>, transform_indices = @transform_5, window_bounds = array<i64: 64, 32>}, {pipeline_mode = #tpu.pipeline_mode<synchronous>, transform_indices = @transform_6, window_bounds = array<i64: 1, 32>}, {pipeline_mode = #tpu.pipeline_mode<synchronous>, transform_indices = @transform_7, window_bounds = array<i64: 32, 128>}, {pipeline_mode = #tpu.pipeline_mode<synchronous>, transform_indices = @transform_8, window_bounds = array<i64: 1, 128>}, {transform_indices = @transform_9, window_bounds = array<i64: 1, 8, 8, 64>}]} {
    %cst = arith.constant 0.000000e+00 : f32
    %0 = vector.broadcast %cst : f32 to vector<8x8x64xf32>
    %cst_0 = arith.constant 0.000000e+00 : f32
    %1 = vector.broadcast %cst_0 : f32 to vector<8x8x64xf32>
    %c0 = arith.constant 0 : index
    %c0_1 = arith.constant 0 : index
    %c0_2 = arith.constant 0 : index
    %c8 = arith.constant 8 : index
    %2 = vector.load %arg1[%c0, %c0_1, %c0_2, %c8] : memref<1x12x12x96xf32, #tpu.memory_space<vmem>>, vector<1x12x12x64xf32>
    %3 = vector.shape_cast %2 : vector<1x12x12x64xf32> to vector<12x12x64xf32>
    %c0_3 = arith.constant 0 : index
    %c0_4 = arith.constant 0 : index
    %c0_5 = arith.constant 0 : index
    %4 = vector.load %arg11[%c0_3, %c0_4, %c0_5] : memref<12x12x64xf32, #tpu.memory_space<vmem>>, vector<12x12x64xf32>
    tpu.vector_store %arg11[%c0_3, %c0_4, %c0_5], %3 {strides = array<i32>} : memref<12x12x64xf32, #tpu.memory_space<vmem>>, vector<12x12x64xf32>,
    %c0_6 = arith.constant 0 : index
    %c1 = arith.constant 1 : index
    %c0_7 = arith.constant 0 : index
    %5 = vector.load %arg11[%c0_6, %c1, %c0_7] : memref<12x12x64xf32, #tpu.memory_space<vmem>>, vector<12x8x64xf32>
    %c0_8 = arith.constant 0 : index
    %c0_9 = arith.constant 0 : index
    %6 = vector.load %arg2[%c0_8, %c0_9] : memref<27x64xf32, #tpu.memory_space<vmem>>, vector<1x64xf32>
    %7 = vector.shape_cast %6 : vector<1x64xf32> to vector<64xf32>
    %8 = vector.extract_strided_slice %5 {offsets = [1, 0, 0], sizes = [8, 8, 64], strides = [1, 1, 1]} : vector<12x8x64xf32> to vector<8x8x64xf32>
    %9 = vector.shape_cast %7 : vector<64xf32> to vector<1x1x64xf32>
    %10 = vector.broadcast %9 : vector<1x1x64xf32> to vector<8x8x64xf32>
    %11 = arith.mulf %10, %8 : vector<8x8x64xf32>
    %12 = arith.addf %0, %11 : vector<8x8x64xf32>
    %c9 = arith.constant 9 : index
    %c0_10 = arith.constant 0 : index
    %13 = vector.load %arg2[%c9, %c0_10] : memref<27x64xf32, #tpu.memory_space<vmem>>, vector<1x64xf32>
    %14 = vector.shape_cast %13 : vector<1x64xf32> to vector<64xf32>
    %15 = vector.extract_strided_slice %5 {offsets = [2, 0, 0], sizes = [8, 8, 64], strides = [1, 1, 1]} : vector<12x8x64xf32> to vector<8x8x64xf32>
    %16 = vector.shape_cast %14 : vector<64xf32> to vector<1x1x64xf32>
    %17 = vector.broadcast %16 : vector<1x1x64xf32> to vector<8x8x64xf32>
    %18 = arith.mulf %17, %15 : vector<8x8x64xf32>
    %19 = arith.addf %1, %18 : vector<8x8x64xf32>
    %c18 = arith.constant 18 : index
    %c0_11 = arith.constant 0 : index
    %20 = vector.load %arg2[%c18, %c0_11] : memref<27x64xf32, #tpu.memory_space<vmem>>, vector<1x64xf32>
    %21 = vector.shape_cast %20 : vector<1x64xf32> to vector<64xf32>
    %22 = vector.extract_strided_slice %5 {offsets = [3, 0, 0], sizes = [8, 8, 64], strides = [1, 1, 1]} : vector<12x8x64xf32> to vector<8x8x64xf32>
    %23 = vector.shape_cast %21 : vector<64xf32> to vector<1x1x64xf32>
    %24 = vector.broadcast %23 : vector<1x1x64xf32> to vector<8x8x64xf32>
    %25 = arith.mulf %24, %22 : vector<8x8x64xf32>
    %26 = arith.addf %12, %25 : vector<8x8x64xf32>
    %c0_12 = arith.constant 0 : index
    %c2 = arith.constant 2 : index
    %c0_13 = arith.constant 0 : index
    %27 = vector.load %arg11[%c0_12, %c2, %c0_13] : memref<12x12x64xf32, #tpu.memory_space<vmem>>, vector<12x8x64xf32>
    %c3 = arith.constant 3 : index
    %c0_14 = arith.constant 0 : index
    %28 = vector.load %arg2[%c3, %c0_14] : memref<27x64xf32, #tpu.memory_space<vmem>>, vector<1x64xf32>
    %29 = vector.shape_cast %28 : vector<1x64xf32> to vector<64xf32>
    %30 = vector.extract_strided_slice %27 {offsets = [1, 0, 0], sizes = [8, 8, 64], strides = [1, 1, 1]} : vector<12x8x64xf32> to vector<8x8x64xf32>
    %31 = vector.shape_cast %29 : vector<64xf32> to vector<1x1x64xf32>
    %32 = vector.broadcast %31 : vector<1x1x64xf32> to vector<8x8x64xf32>
    %33 = arith.mulf %32, %30 : vector<8x8x64xf32>
    %34 = arith.addf %26, %33 : vector<8x8x64xf32>
    %c12 = arith.constant 12 : index
    %c0_15 = arith.constant 0 : index
    %35 = vector.load %arg2[%c12, %c0_15] : memref<27x64xf32, #tpu.memory_space<vmem>>, vector<1x64xf32>
    %36 = vector.shape_cast %35 : vector<1x64xf32> to vector<64xf32>
    %37 = vector.extract_strided_slice %27 {offsets = [2, 0, 0], sizes = [8, 8, 64], strides = [1, 1, 1]} : vector<12x8x64xf32> to vector<8x8x64xf32>
    %38 = vector.shape_cast %36 : vector<64xf32> to vector<1x1x64xf32>
    %39 = vector.broadcast %38 : vector<1x1x64xf32> to vector<8x8x64xf32>
    %40 = arith.mulf %39, %37 : vector<8x8x64xf32>
    %41 = arith.addf %19, %40 : vector<8x8x64xf32>
    %c21 = arith.constant 21 : index
    %c0_16 = arith.constant 0 : index
    %42 = vector.load %arg2[%c21, %c0_16] : memref<27x64xf32, #tpu.memory_space<vmem>>, vector<1x64xf32>
    %43 = vector.shape_cast %42 : vector<1x64xf32> to vector<64xf32>
    %44 = vector.extract_strided_slice %27 {offsets = [3, 0, 0], sizes = [8, 8, 64], strides = [1, 1, 1]} : vector<12x8x64xf32> to vector<8x8x64xf32>
    %45 = vector.shape_cast %43 : vector<64xf32> to vector<1x1x64xf32>
    %46 = vector.broadcast %45 : vector<1x1x64xf32> to vector<8x8x64xf32>
    %47 = arith.mulf %46, %44 : vector<8x8x64xf32>
    %48 = arith.addf %34, %47 : vector<8x8x64xf32>
    %c0_17 = arith.constant 0 : index
    %c3_18 = arith.constant 3 : index
    %c0_19 = arith.constant 0 : index
    %49 = vector.load %arg11[%c0_17, %c3_18, %c0_19] : memref<12x12x64xf32, #tpu.memory_space<vmem>>, vector<12x8x64xf32>
    %c6 = arith.constant 6 : index
    %c0_20 = arith.constant 0 : index
    %50 = vector.load %arg2[%c6, %c0_20] : memref<27x64xf32, #tpu.memory_space<vmem>>, vector<1x64xf32>
    %51 = vector.shape_cast %50 : vector<1x64xf32> to vector<64xf32>
    %52 = vector.extract_strided_slice %49 {offsets = [1, 0, 0], sizes = [8, 8, 64], strides = [1, 1, 1]} : vector<12x8x64xf32> to vector<8x8x64xf32>
    %53 = vector.shape_cast %51 : vector<64xf32> to vector<1x1x64xf32>
    %54 = vector.broadcast %53 : vector<1x1x64xf32> to vector<8x8x64xf32>
    %55 = arith.mulf %54, %52 : vector<8x8x64xf32>
    %56 = arith.addf %48, %55 : vector<8x8x64xf32>
    %c15 = arith.constant 15 : index
    %c0_21 = arith.constant 0 : index
    %57 = vector.load %arg2[%c15, %c0_21] : memref<27x64xf32, #tpu.memory_space<vmem>>, vector<1x64xf32>
    %58 = vector.shape_cast %57 : vector<1x64xf32> to vector<64xf32>
    %59 = vector.extract_strided_slice %49 {offsets = [2, 0, 0], sizes = [8, 8, 64], strides = [1, 1, 1]} : vector<12x8x64xf32> to vector<8x8x64xf32>
    %60 = vector.shape_cast %58 : vector<64xf32> to vector<1x1x64xf32>
    %61 = vector.broadcast %60 : vector<1x1x64xf32> to vector<8x8x64xf32>
    %62 = arith.mulf %61, %59 : vector<8x8x64xf32>
    %63 = arith.addf %41, %62 : vector<8x8x64xf32>
    %c24 = arith.constant 24 : index
    %c0_22 = arith.constant 0 : index
    %64 = vector.load %arg2[%c24, %c0_22] : memref<27x64xf32, #tpu.memory_space<vmem>>, vector<1x64xf32>
    %65 = vector.shape_cast %64 : vector<1x64xf32> to vector<64xf32>
    %66 = vector.extract_strided_slice %49 {offsets = [3, 0, 0], sizes = [8, 8, 64], strides = [1, 1, 1]} : vector<12x8x64xf32> to vector<8x8x64xf32>
    %67 = vector.shape_cast %65 : vector<64xf32> to vector<1x1x64xf32>
    %68 = vector.broadcast %67 : vector<1x1x64xf32> to vector<8x8x64xf32>
    %69 = arith.mulf %68, %66 : vector<8x8x64xf32>
    %70 = arith.addf %56, %69 : vector<8x8x64xf32>
    %c0_23 = arith.constant 0 : index
    %c0_24 = arith.constant 0 : index
    %c0_25 = arith.constant 0 : index
    %c16 = arith.constant 16 : index
    %71 = vector.load %arg1[%c0_23, %c0_24, %c0_25, %c16] : memref<1x12x12x96xf32, #tpu.memory_space<vmem>>, vector<1x12x12x64xf32>
    %72 = vector.shape_cast %71 : vector<1x12x12x64xf32> to vector<12x12x64xf32>
    %c0_26 = arith.constant 0 : index
    %c0_27 = arith.constant 0 : index
    %c0_28 = arith.constant 0 : index
    %73 = vector.load %arg11[%c0_26, %c0_27, %c0_28] : memref<12x12x64xf32, #tpu.memory_space<vmem>>, vector<12x12x64xf32>
    tpu.vector_store %arg11[%c0_26, %c0_27, %c0_28], %72 {strides = array<i32>} : memref<12x12x64xf32, #tpu.memory_space<vmem>>, vector<12x12x64xf32>,
    %c0_29 = arith.constant 0 : index
    %c1_30 = arith.constant 1 : index
    %c0_31 = arith.constant 0 : index
    %74 = vector.load %arg11[%c0_29, %c1_30, %c0_31] : memref<12x12x64xf32, #tpu.memory_space<vmem>>, vector<12x8x64xf32>
    %c1_32 = arith.constant 1 : index
    %c0_33 = arith.constant 0 : index
    %75 = vector.load %arg2[%c1_32, %c0_33] : memref<27x64xf32, #tpu.memory_space<vmem>>, vector<1x64xf32>
    %76 = vector.shape_cast %75 : vector<1x64xf32> to vector<64xf32>
    %77 = vector.extract_strided_slice %74 {offsets = [1, 0, 0], sizes = [8, 8, 64], strides = [1, 1, 1]} : vector<12x8x64xf32> to vector<8x8x64xf32>
    %78 = vector.shape_cast %76 : vector<64xf32> to vector<1x1x64xf32>
    %79 = vector.broadcast %78 : vector<1x1x64xf32> to vector<8x8x64xf32>
    %80 = arith.mulf %79, %77 : vector<8x8x64xf32>
    %81 = arith.addf %70, %80 : vector<8x8x64xf32>
    %c10 = arith.constant 10 : index
    %c0_34 = arith.constant 0 : index
    %82 = vector.load %arg2[%c10, %c0_34] : memref<27x64xf32, #tpu.memory_space<vmem>>, vector<1x64xf32>
    %83 = vector.shape_cast %82 : vector<1x64xf32> to vector<64xf32>
    %84 = vector.extract_strided_slice %74 {offsets = [2, 0, 0], sizes = [8, 8, 64], strides = [1, 1, 1]} : vector<12x8x64xf32> to vector<8x8x64xf32>
    %85 = vector.shape_cast %83 : vector<64xf32> to vector<1x1x64xf32>
    %86 = vector.broadcast %85 : vector<1x1x64xf32> to vector<8x8x64xf32>
    %87 = arith.mulf %86, %84 : vector<8x8x64xf32>
    %88 = arith.addf %63, %87 : vector<8x8x64xf32>
    %c19 = arith.constant 19 : index
    %c0_35 = arith.constant 0 : index
    %89 = vector.load %arg2[%c19, %c0_35] : memref<27x64xf32, #tpu.memory_space<vmem>>, vector<1x64xf32>
    %90 = vector.shape_cast %89 : vector<1x64xf32> to vector<64xf32>
    %91 = vector.extract_strided_slice %74 {offsets = [3, 0, 0], sizes = [8, 8, 64], strides = [1, 1, 1]} : vector<12x8x64xf32> to vector<8x8x64xf32>
    %92 = vector.shape_cast %90 : vector<64xf32> to vector<1x1x64xf32>
    %93 = vector.broadcast %92 : vector<1x1x64xf32> to vector<8x8x64xf32>
    %94 = arith.mulf %93, %91 : vector<8x8x64xf32>
    %95 = arith.addf %81, %94 : vector<8x8x64xf32>
    %c0_36 = arith.constant 0 : index
    %c2_37 = arith.constant 2 : index
    %c0_38 = arith.constant 0 : index
    %96 = vector.load %arg11[%c0_36, %c2_37, %c0_38] : memref<12x12x64xf32, #tpu.memory_space<vmem>>, vector<12x8x64xf32>
    %c4 = arith.constant 4 : index
    %c0_39 = arith.constant 0 : index
    %97 = vector.load %arg2[%c4, %c0_39] : memref<27x64xf32, #tpu.memory_space<vmem>>, vector<1x64xf32>
    %98 = vector.shape_cast %97 : vector<1x64xf32> to vector<64xf32>
    %99 = vector.extract_strided_slice %96 {offsets = [1, 0, 0], sizes = [8, 8, 64], strides = [1, 1, 1]} : vector<12x8x64xf32> to vector<8x8x64xf32>
    %100 = vector.shape_cast %98 : vector<64xf32> to vector<1x1x64xf32>
    %101 = vector.broadcast %100 : vector<1x1x64xf32> to vector<8x8x64xf32>
    %102 = arith.mulf %101, %99 : vector<8x8x64xf32>
    %103 = arith.addf %95, %102 : vector<8x8x64xf32>
    %c13 = arith.constant 13 : index
    %c0_40 = arith.constant 0 : index
    %104 = vector.load %arg2[%c13, %c0_40] : memref<27x64xf32, #tpu.memory_space<vmem>>, vector<1x64xf32>
    %105 = vector.shape_cast %104 : vector<1x64xf32> to vector<64xf32>
    %106 = vector.extract_strided_slice %96 {offsets = [2, 0, 0], sizes = [8, 8, 64], strides = [1, 1, 1]} : vector<12x8x64xf32> to vector<8x8x64xf32>
    %107 = vector.shape_cast %105 : vector<64xf32> to vector<1x1x64xf32>
    %108 = vector.broadcast %107 : vector<1x1x64xf32> to vector<8x8x64xf32>
    %109 = arith.mulf %108, %106 : vector<8x8x64xf32>
    %110 = arith.addf %88, %109 : vector<8x8x64xf32>
    %c22 = arith.constant 22 : index
    %c0_41 = arith.constant 0 : index
    %111 = vector.load %arg2[%c22, %c0_41] : memref<27x64xf32, #tpu.memory_space<vmem>>, vector<1x64xf32>
    %112 = vector.shape_cast %111 : vector<1x64xf32> to vector<64xf32>
    %113 = vector.extract_strided_slice %96 {offsets = [3, 0, 0], sizes = [8, 8, 64], strides = [1, 1, 1]} : vector<12x8x64xf32> to vector<8x8x64xf32>
    %114 = vector.shape_cast %112 : vector<64xf32> to vector<1x1x64xf32>
    %115 = vector.broadcast %114 : vector<1x1x64xf32> to vector<8x8x64xf32>
    %116 = arith.mulf %115, %113 : vector<8x8x64xf32>
    %117 = arith.addf %103, %116 : vector<8x8x64xf32>
    %c0_42 = arith.constant 0 : index
    %c3_43 = arith.constant 3 : index
    %c0_44 = arith.constant 0 : index
    %118 = vector.load %arg11[%c0_42, %c3_43, %c0_44] : memref<12x12x64xf32, #tpu.memory_space<vmem>>, vector<12x8x64xf32>
    %c7 = arith.constant 7 : index
    %c0_45 = arith.constant 0 : index
    %119 = vector.load %arg2[%c7, %c0_45] : memref<27x64xf32, #tpu.memory_space<vmem>>, vector<1x64xf32>
    %120 = vector.shape_cast %119 : vector<1x64xf32> to vector<64xf32>
    %121 = vector.extract_strided_slice %118 {offsets = [1, 0, 0], sizes = [8, 8, 64], strides = [1, 1, 1]} : vector<12x8x64xf32> to vector<8x8x64xf32>
    %122 = vector.shape_cast %120 : vector<64xf32> to vector<1x1x64xf32>
    %123 = vector.broadcast %122 : vector<1x1x64xf32> to vector<8x8x64xf32>
    %124 = arith.mulf %123, %121 : vector<8x8x64xf32>
    %125 = arith.addf %117, %124 : vector<8x8x64xf32>
    %c16_46 = arith.constant 16 : index
    %c0_47 = arith.constant 0 : index
    %126 = vector.load %arg2[%c16_46, %c0_47] : memref<27x64xf32, #tpu.memory_space<vmem>>, vector<1x64xf32>
    %127 = vector.shape_cast %126 : vector<1x64xf32> to vector<64xf32>
    %128 = vector.extract_strided_slice %118 {offsets = [2, 0, 0], sizes = [8, 8, 64], strides = [1, 1, 1]} : vector<12x8x64xf32> to vector<8x8x64xf32>
    %129 = vector.shape_cast %127 : vector<64xf32> to vector<1x1x64xf32>
    %130 = vector.broadcast %129 : vector<1x1x64xf32> to vector<8x8x64xf32>
    %131 = arith.mulf %130, %128 : vector<8x8x64xf32>
    %132 = arith.addf %110, %131 : vector<8x8x64xf32>
    %c25 = arith.constant 25 : index
    %c0_48 = arith.constant 0 : index
    %133 = vector.load %arg2[%c25, %c0_48] : memref<27x64xf32, #tpu.memory_space<vmem>>, vector<1x64xf32>
    %134 = vector.shape_cast %133 : vector<1x64xf32> to vector<64xf32>
    %135 = vector.extract_strided_slice %118 {offsets = [3, 0, 0], sizes = [8, 8, 64], strides = [1, 1, 1]} : vector<12x8x64xf32> to vector<8x8x64xf32>
    %136 = vector.shape_cast %134 : vector<64xf32> to vector<1x1x64xf32>
    %137 = vector.broadcast %136 : vector<1x1x64xf32> to vector<8x8x64xf32>
    %138 = arith.mulf %137, %135 : vector<8x8x64xf32>
    %139 = arith.addf %125, %138 : vector<8x8x64xf32>
    %c0_49 = arith.constant 0 : index
    %c0_50 = arith.constant 0 : index
    %c0_51 = arith.constant 0 : index
    %c24_52 = arith.constant 24 : index
    %140 = vector.load %arg1[%c0_49, %c0_50, %c0_51, %c24_52] : memref<1x12x12x96xf32, #tpu.memory_space<vmem>>, vector<1x12x12x64xf32>
    %141 = vector.shape_cast %140 : vector<1x12x12x64xf32> to vector<12x12x64xf32>
    %c0_53 = arith.constant 0 : index
    %c0_54 = arith.constant 0 : index
    %c0_55 = arith.constant 0 : index
    %142 = vector.load %arg11[%c0_53, %c0_54, %c0_55] : memref<12x12x64xf32, #tpu.memory_space<vmem>>, vector<12x12x64xf32>
    tpu.vector_store %arg11[%c0_53, %c0_54, %c0_55], %141 {strides = array<i32>} : memref<12x12x64xf32, #tpu.memory_space<vmem>>, vector<12x12x64xf32>,
    %c0_56 = arith.constant 0 : index
    %c1_57 = arith.constant 1 : index
    %c0_58 = arith.constant 0 : index
    %143 = vector.load %arg11[%c0_56, %c1_57, %c0_58] : memref<12x12x64xf32, #tpu.memory_space<vmem>>, vector<12x8x64xf32>
    %c2_59 = arith.constant 2 : index
    %c0_60 = arith.constant 0 : index
    %144 = vector.load %arg2[%c2_59, %c0_60] : memref<27x64xf32, #tpu.memory_space<vmem>>, vector<1x64xf32>
    %145 = vector.shape_cast %144 : vector<1x64xf32> to vector<64xf32>
    %146 = vector.extract_strided_slice %143 {offsets = [1, 0, 0], sizes = [8, 8, 64], strides = [1, 1, 1]} : vector<12x8x64xf32> to vector<8x8x64xf32>
    %147 = vector.shape_cast %145 : vector<64xf32> to vector<1x1x64xf32>
    %148 = vector.broadcast %147 : vector<1x1x64xf32> to vector<8x8x64xf32>
    %149 = arith.mulf %148, %146 : vector<8x8x64xf32>
    %150 = arith.addf %139, %149 : vector<8x8x64xf32>
    %c11 = arith.constant 11 : index
    %c0_61 = arith.constant 0 : index
    %151 = vector.load %arg2[%c11, %c0_61] : memref<27x64xf32, #tpu.memory_space<vmem>>, vector<1x64xf32>
    %152 = vector.shape_cast %151 : vector<1x64xf32> to vector<64xf32>
    %153 = vector.extract_strided_slice %143 {offsets = [2, 0, 0], sizes = [8, 8, 64], strides = [1, 1, 1]} : vector<12x8x64xf32> to vector<8x8x64xf32>
    %154 = vector.shape_cast %152 : vector<64xf32> to vector<1x1x64xf32>
    %155 = vector.broadcast %154 : vector<1x1x64xf32> to vector<8x8x64xf32>
    %156 = arith.mulf %155, %153 : vector<8x8x64xf32>
    %157 = arith.addf %132, %156 : vector<8x8x64xf32>
    %c20 = arith.constant 20 : index
    %c0_62 = arith.constant 0 : index
    %158 = vector.load %arg2[%c20, %c0_62] : memref<27x64xf32, #tpu.memory_space<vmem>>, vector<1x64xf32>
    %159 = vector.shape_cast %158 : vector<1x64xf32> to vector<64xf32>
    %160 = vector.extract_strided_slice %143 {offsets = [3, 0, 0], sizes = [8, 8, 64], strides = [1, 1, 1]} : vector<12x8x64xf32> to vector<8x8x64xf32>
    %161 = vector.shape_cast %159 : vector<64xf32> to vector<1x1x64xf32>
    %162 = vector.broadcast %161 : vector<1x1x64xf32> to vector<8x8x64xf32>
    %163 = arith.mulf %162, %160 : vector<8x8x64xf32>
    %164 = arith.addf %150, %163 : vector<8x8x64xf32>
    %c0_63 = arith.constant 0 : index
    %c2_64 = arith.constant 2 : index
    %c0_65 = arith.constant 0 : index
    %165 = vector.load %arg11[%c0_63, %c2_64, %c0_65] : memref<12x12x64xf32, #tpu.memory_space<vmem>>, vector<12x8x64xf32>
    %c5 = arith.constant 5 : index
    %c0_66 = arith.constant 0 : index
    %166 = vector.load %arg2[%c5, %c0_66] : memref<27x64xf32, #tpu.memory_space<vmem>>, vector<1x64xf32>
    %167 = vector.shape_cast %166 : vector<1x64xf32> to vector<64xf32>
    %168 = vector.extract_strided_slice %165 {offsets = [1, 0, 0], sizes = [8, 8, 64], strides = [1, 1, 1]} : vector<12x8x64xf32> to vector<8x8x64xf32>
    %169 = vector.shape_cast %167 : vector<64xf32> to vector<1x1x64xf32>
    %170 = vector.broadcast %169 : vector<1x1x64xf32> to vector<8x8x64xf32>
    %171 = arith.mulf %170, %168 : vector<8x8x64xf32>
    %172 = arith.addf %164, %171 : vector<8x8x64xf32>
    %c14 = arith.constant 14 : index
    %c0_67 = arith.constant 0 : index
    %173 = vector.load %arg2[%c14, %c0_67] : memref<27x64xf32, #tpu.memory_space<vmem>>, vector<1x64xf32>
    %174 = vector.shape_cast %173 : vector<1x64xf32> to vector<64xf32>
    %175 = vector.extract_strided_slice %165 {offsets = [2, 0, 0], sizes = [8, 8, 64], strides = [1, 1, 1]} : vector<12x8x64xf32> to vector<8x8x64xf32>
    %176 = vector.shape_cast %174 : vector<64xf32> to vector<1x1x64xf32>
    %177 = vector.broadcast %176 : vector<1x1x64xf32> to vector<8x8x64xf32>
    %178 = arith.mulf %177, %175 : vector<8x8x64xf32>
    %179 = arith.addf %157, %178 : vector<8x8x64xf32>
    %c23 = arith.constant 23 : index
    %c0_68 = arith.constant 0 : index
    %180 = vector.load %arg2[%c23, %c0_68] : memref<27x64xf32, #tpu.memory_space<vmem>>, vector<1x64xf32>
    %181 = vector.shape_cast %180 : vector<1x64xf32> to vector<64xf32>
    %182 = vector.extract_strided_slice %165 {offsets = [3, 0, 0], sizes = [8, 8, 64], strides = [1, 1, 1]} : vector<12x8x64xf32> to vector<8x8x64xf32>
    %183 = vector.shape_cast %181 : vector<64xf32> to vector<1x1x64xf32>
    %184 = vector.broadcast %183 : vector<1x1x64xf32> to vector<8x8x64xf32>
    %185 = arith.mulf %184, %182 : vector<8x8x64xf32>
    %186 = arith.addf %172, %185 : vector<8x8x64xf32>
    %c0_69 = arith.constant 0 : index
    %c3_70 = arith.constant 3 : index
    %c0_71 = arith.constant 0 : index
    %187 = vector.load %arg11[%c0_69, %c3_70, %c0_71] : memref<12x12x64xf32, #tpu.memory_space<vmem>>, vector<12x8x64xf32>
    %c8_72 = arith.constant 8 : index
    %c0_73 = arith.constant 0 : index
    %188 = vector.load %arg2[%c8_72, %c0_73] : memref<27x64xf32, #tpu.memory_space<vmem>>, vector<1x64xf32>
    %189 = vector.shape_cast %188 : vector<1x64xf32> to vector<64xf32>
    %190 = vector.extract_strided_slice %187 {offsets = [1, 0, 0], sizes = [8, 8, 64], strides = [1, 1, 1]} : vector<12x8x64xf32> to vector<8x8x64xf32>
    %191 = vector.shape_cast %189 : vector<64xf32> to vector<1x1x64xf32>
    %192 = vector.broadcast %191 : vector<1x1x64xf32> to vector<8x8x64xf32>
    %193 = arith.mulf %192, %190 : vector<8x8x64xf32>
    %194 = arith.addf %186, %193 : vector<8x8x64xf32>
    %c17 = arith.constant 17 : index
    %c0_74 = arith.constant 0 : index
    %195 = vector.load %arg2[%c17, %c0_74] : memref<27x64xf32, #tpu.memory_space<vmem>>, vector<1x64xf32>
    %196 = vector.shape_cast %195 : vector<1x64xf32> to vector<64xf32>
    %197 = vector.extract_strided_slice %187 {offsets = [2, 0, 0], sizes = [8, 8, 64], strides = [1, 1, 1]} : vector<12x8x64xf32> to vector<8x8x64xf32>
    %198 = vector.shape_cast %196 : vector<64xf32> to vector<1x1x64xf32>
    %199 = vector.broadcast %198 : vector<1x1x64xf32> to vector<8x8x64xf32>
    %200 = arith.mulf %199, %197 : vector<8x8x64xf32>
    %201 = arith.addf %179, %200 : vector<8x8x64xf32>
    %c26 = arith.constant 26 : index
    %c0_75 = arith.constant 0 : index
    %202 = vector.load %arg2[%c26, %c0_75] : memref<27x64xf32, #tpu.memory_space<vmem>>, vector<1x64xf32>
    %203 = vector.shape_cast %202 : vector<1x64xf32> to vector<64xf32>
    %204 = vector.extract_strided_slice %187 {offsets = [3, 0, 0], sizes = [8, 8, 64], strides = [1, 1, 1]} : vector<12x8x64xf32> to vector<8x8x64xf32>
    %205 = vector.shape_cast %203 : vector<64xf32> to vector<1x1x64xf32>
    %206 = vector.broadcast %205 : vector<1x1x64xf32> to vector<8x8x64xf32>
    %207 = arith.mulf %206, %204 : vector<8x8x64xf32>
    %208 = arith.addf %194, %207 : vector<8x8x64xf32>
    %209 = arith.addf %208, %201 : vector<8x8x64xf32>
    %c0_76 = arith.constant 0 : index
    %c0_77 = arith.constant 0 : index
    %210 = vector.load %arg3[%c0_76, %c0_77] : memref<1x64xf32, #tpu.memory_space<vmem>>, vector<1x64xf32>
    %211 = vector.shape_cast %210 : vector<1x64xf32> to vector<1x1x64xf32>
    %212 = vector.broadcast %211 : vector<1x1x64xf32> to vector<8x8x64xf32>
    %213 = arith.addf %209, %212 : vector<8x8x64xf32>
    %cst_78 = arith.constant 0.000000e+00 : f32
    %214 = vector.broadcast %cst_78 : f32 to vector<8x8x64xf32>
    %215 = arith.maximumf %213, %214 : vector<8x8x64xf32>
    %cst_79 = arith.constant 0.000000e+00 : f32
    %216 = vector.broadcast %cst_79 : f32 to vector<8x8x64xf32>
    %cst_80 = arith.constant 0.000000e+00 : f32
    %217 = vector.broadcast %cst_80 : f32 to vector<8x8x64xf32>
    %c0_81 = arith.constant 0 : index
    %c0_82 = arith.constant 0 : index
    %c0_83 = arith.constant 0 : index
    %c0_84 = arith.constant 0 : index
    %218 = vector.load %arg1[%c0_81, %c0_82, %c0_83, %c0_84] : memref<1x12x12x96xf32, #tpu.memory_space<vmem>>, vector<1x12x12x64xf32>
    %219 = vector.shape_cast %218 : vector<1x12x12x64xf32> to vector<12x12x64xf32>
    %c0_85 = arith.constant 0 : index
    %c0_86 = arith.constant 0 : index
    %c0_87 = arith.constant 0 : index
    %220 = vector.load %arg11[%c0_85, %c0_86, %c0_87] : memref<12x12x64xf32, #tpu.memory_space<vmem>>, vector<12x12x64xf32>
    tpu.vector_store %arg11[%c0_85, %c0_86, %c0_87], %219 {strides = array<i32>} : memref<12x12x64xf32, #tpu.memory_space<vmem>>, vector<12x12x64xf32>,
    %c0_88 = arith.constant 0 : index
    %c0_89 = arith.constant 0 : index
    %c0_90 = arith.constant 0 : index
    %221 = vector.load %arg11[%c0_88, %c0_89, %c0_90] : memref<12x12x64xf32, #tpu.memory_space<vmem>>, vector<12x8x64xf32>
    %c0_91 = arith.constant 0 : index
    %c0_92 = arith.constant 0 : index
    %222 = vector.load %arg4[%c0_91, %c0_92] : memref<125x64xf32, #tpu.memory_space<vmem>>, vector<1x64xf32>
    %223 = vector.shape_cast %222 : vector<1x64xf32> to vector<64xf32>
    %224 = vector.extract_strided_slice %221 {offsets = [0, 0, 0], sizes = [8, 8, 64], strides = [1, 1, 1]} : vector<12x8x64xf32> to vector<8x8x64xf32>
    %225 = vector.shape_cast %223 : vector<64xf32> to vector<1x1x64xf32>
    %226 = vector.broadcast %225 : vector<1x1x64xf32> to vector<8x8x64xf32>
    %227 = arith.mulf %226, %224 : vector<8x8x64xf32>
    %228 = arith.addf %216, %227 : vector<8x8x64xf32>
    %c25_93 = arith.constant 25 : index
    %c0_94 = arith.constant 0 : index
    %229 = vector.load %arg4[%c25_93, %c0_94] : memref<125x64xf32, #tpu.memory_space<vmem>>, vector<1x64xf32>
    %230 = vector.shape_cast %229 : vector<1x64xf32> to vector<64xf32>
    %231 = vector.extract_strided_slice %221 {offsets = [1, 0, 0], sizes = [8, 8, 64], strides = [1, 1, 1]} : vector<12x8x64xf32> to vector<8x8x64xf32>
    %232 = vector.shape_cast %230 : vector<64xf32> to vector<1x1x64xf32>
    %233 = vector.broadcast %232 : vector<1x1x64xf32> to vector<8x8x64xf32>
    %234 = arith.mulf %233, %231 : vector<8x8x64xf32>
    %235 = arith.addf %217, %234 : vector<8x8x64xf32>
    %c50 = arith.constant 50 : index
    %c0_95 = arith.constant 0 : index
    %236 = vector.load %arg4[%c50, %c0_95] : memref<125x64xf32, #tpu.memory_space<vmem>>, vector<1x64xf32>
    %237 = vector.shape_cast %236 : vector<1x64xf32> to vector<64xf32>
    %238 = vector.extract_strided_slice %221 {offsets = [2, 0, 0], sizes = [8, 8, 64], strides = [1, 1, 1]} : vector<12x8x64xf32> to vector<8x8x64xf32>
    %239 = vector.shape_cast %237 : vector<64xf32> to vector<1x1x64xf32>
    %240 = vector.broadcast %239 : vector<1x1x64xf32> to vector<8x8x64xf32>
    %241 = arith.mulf %240, %238 : vector<8x8x64xf32>
    %242 = arith.addf %228, %241 : vector<8x8x64xf32>
    %c75 = arith.constant 75 : index
    %c0_96 = arith.constant 0 : index
    %243 = vector.load %arg4[%c75, %c0_96] : memref<125x64xf32, #tpu.memory_space<vmem>>, vector<1x64xf32>
    %244 = vector.shape_cast %243 : vector<1x64xf32> to vector<64xf32>
    %245 = vector.extract_strided_slice %221 {offsets = [3, 0, 0], sizes = [8, 8, 64], strides = [1, 1, 1]} : vector<12x8x64xf32> to vector<8x8x64xf32>
    %246 = vector.shape_cast %244 : vector<64xf32> to vector<1x1x64xf32>
    %247 = vector.broadcast %246 : vector<1x1x64xf32> to vector<8x8x64xf32>
    %248 = arith.mulf %247, %245 : vector<8x8x64xf32>
    %249 = arith.addf %235, %248 : vector<8x8x64xf32>
    %c100 = arith.constant 100 : index
    %c0_97 = arith.constant 0 : index
    %250 = vector.load %arg4[%c100, %c0_97] : memref<125x64xf32, #tpu.memory_space<vmem>>, vector<1x64xf32>
    %251 = vector.shape_cast %250 : vector<1x64xf32> to vector<64xf32>
    %252 = vector.extract_strided_slice %221 {offsets = [4, 0, 0], sizes = [8, 8, 64], strides = [1, 1, 1]} : vector<12x8x64xf32> to vector<8x8x64xf32>
    %253 = vector.shape_cast %251 : vector<64xf32> to vector<1x1x64xf32>
    %254 = vector.broadcast %253 : vector<1x1x64xf32> to vector<8x8x64xf32>
    %255 = arith.mulf %254, %252 : vector<8x8x64xf32>
    %256 = arith.addf %242, %255 : vector<8x8x64xf32>
    %c0_98 = arith.constant 0 : index
    %c1_99 = arith.constant 1 : index
    %c0_100 = arith.constant 0 : index
    %257 = vector.load %arg11[%c0_98, %c1_99, %c0_100] : memref<12x12x64xf32, #tpu.memory_space<vmem>>, vector<12x8x64xf32>
    %c5_101 = arith.constant 5 : index
    %c0_102 = arith.constant 0 : index
    %258 = vector.load %arg4[%c5_101, %c0_102] : memref<125x64xf32, #tpu.memory_space<vmem>>, vector<1x64xf32>
    %259 = vector.shape_cast %258 : vector<1x64xf32> to vector<64xf32>
    %260 = vector.extract_strided_slice %257 {offsets = [0, 0, 0], sizes = [8, 8, 64], strides = [1, 1, 1]} : vector<12x8x64xf32> to vector<8x8x64xf32>
    %261 = vector.shape_cast %259 : vector<64xf32> to vector<1x1x64xf32>
    %262 = vector.broadcast %261 : vector<1x1x64xf32> to vector<8x8x64xf32>
    %263 = arith.mulf %262, %260 : vector<8x8x64xf32>
    %264 = arith.addf %256, %263 : vector<8x8x64xf32>
    %c30 = arith.constant 30 : index
    %c0_103 = arith.constant 0 : index
    %265 = vector.load %arg4[%c30, %c0_103] : memref<125x64xf32, #tpu.memory_space<vmem>>, vector<1x64xf32>
    %266 = vector.shape_cast %265 : vector<1x64xf32> to vector<64xf32>
    %267 = vector.extract_strided_slice %257 {offsets = [1, 0, 0], sizes = [8, 8, 64], strides = [1, 1, 1]} : vector<12x8x64xf32> to vector<8x8x64xf32>
    %268 = vector.shape_cast %266 : vector<64xf32> to vector<1x1x64xf32>
    %269 = vector.broadcast %268 : vector<1x1x64xf32> to vector<8x8x64xf32>
    %270 = arith.mulf %269, %267 : vector<8x8x64xf32>
    %271 = arith.addf %249, %270 : vector<8x8x64xf32>
    %c55 = arith.constant 55 : index
    %c0_104 = arith.constant 0 : index
    %272 = vector.load %arg4[%c55, %c0_104] : memref<125x64xf32, #tpu.memory_space<vmem>>, vector<1x64xf32>
    %273 = vector.shape_cast %272 : vector<1x64xf32> to vector<64xf32>
    %274 = vector.extract_strided_slice %257 {offsets = [2, 0, 0], sizes = [8, 8, 64], strides = [1, 1, 1]} : vector<12x8x64xf32> to vector<8x8x64xf32>
    %275 = vector.shape_cast %273 : vector<64xf32> to vector<1x1x64xf32>
    %276 = vector.broadcast %275 : vector<1x1x64xf32> to vector<8x8x64xf32>
    %277 = arith.mulf %276, %274 : vector<8x8x64xf32>
    %278 = arith.addf %264, %277 : vector<8x8x64xf32>
    %c80 = arith.constant 80 : index
    %c0_105 = arith.constant 0 : index
    %279 = vector.load %arg4[%c80, %c0_105] : memref<125x64xf32, #tpu.memory_space<vmem>>, vector<1x64xf32>
    %280 = vector.shape_cast %279 : vector<1x64xf32> to vector<64xf32>
    %281 = vector.extract_strided_slice %257 {offsets = [3, 0, 0], sizes = [8, 8, 64], strides = [1, 1, 1]} : vector<12x8x64xf32> to vector<8x8x64xf32>
    %282 = vector.shape_cast %280 : vector<64xf32> to vector<1x1x64xf32>
    %283 = vector.broadcast %282 : vector<1x1x64xf32> to vector<8x8x64xf32>
    %284 = arith.mulf %283, %281 : vector<8x8x64xf32>
    %285 = arith.addf %271, %284 : vector<8x8x64xf32>
    %c105 = arith.constant 105 : index
    %c0_106 = arith.constant 0 : index
    %286 = vector.load %arg4[%c105, %c0_106] : memref<125x64xf32, #tpu.memory_space<vmem>>, vector<1x64xf32>
    %287 = vector.shape_cast %286 : vector<1x64xf32> to vector<64xf32>
    %288 = vector.extract_strided_slice %257 {offsets = [4, 0, 0], sizes = [8, 8, 64], strides = [1, 1, 1]} : vector<12x8x64xf32> to vector<8x8x64xf32>
    %289 = vector.shape_cast %287 : vector<64xf32> to vector<1x1x64xf32>
    %290 = vector.broadcast %289 : vector<1x1x64xf32> to vector<8x8x64xf32>
    %291 = arith.mulf %290, %288 : vector<8x8x64xf32>
    %292 = arith.addf %278, %291 : vector<8x8x64xf32>
    %c0_107 = arith.constant 0 : index
    %c2_108 = arith.constant 2 : index
    %c0_109 = arith.constant 0 : index
    %293 = vector.load %arg11[%c0_107, %c2_108, %c0_109] : memref<12x12x64xf32, #tpu.memory_space<vmem>>, vector<12x8x64xf32>
    %c10_110 = arith.constant 10 : index
    %c0_111 = arith.constant 0 : index
    %294 = vector.load %arg4[%c10_110, %c0_111] : memref<125x64xf32, #tpu.memory_space<vmem>>, vector<1x64xf32>
    %295 = vector.shape_cast %294 : vector<1x64xf32> to vector<64xf32>
    %296 = vector.extract_strided_slice %293 {offsets = [0, 0, 0], sizes = [8, 8, 64], strides = [1, 1, 1]} : vector<12x8x64xf32> to vector<8x8x64xf32>
    %297 = vector.shape_cast %295 : vector<64xf32> to vector<1x1x64xf32>
    %298 = vector.broadcast %297 : vector<1x1x64xf32> to vector<8x8x64xf32>
    %299 = arith.mulf %298, %296 : vector<8x8x64xf32>
    %300 = arith.addf %292, %299 : vector<8x8x64xf32>
    %c35 = arith.constant 35 : index
    %c0_112 = arith.constant 0 : index
    %301 = vector.load %arg4[%c35, %c0_112] : memref<125x64xf32, #tpu.memory_space<vmem>>, vector<1x64xf32>
    %302 = vector.shape_cast %301 : vector<1x64xf32> to vector<64xf32>
    %303 = vector.extract_strided_slice %293 {offsets = [1, 0, 0], sizes = [8, 8, 64], strides = [1, 1, 1]} : vector<12x8x64xf32> to vector<8x8x64xf32>
    %304 = vector.shape_cast %302 : vector<64xf32> to vector<1x1x64xf32>
    %305 = vector.broadcast %304 : vector<1x1x64xf32> to vector<8x8x64xf32>
    %306 = arith.mulf %305, %303 : vector<8x8x64xf32>
    %307 = arith.addf %285, %306 : vector<8x8x64xf32>
    %c60 = arith.constant 60 : index
    %c0_113 = arith.constant 0 : index
    %308 = vector.load %arg4[%c60, %c0_113] : memref<125x64xf32, #tpu.memory_space<vmem>>, vector<1x64xf32>
    %309 = vector.shape_cast %308 : vector<1x64xf32> to vector<64xf32>
    %310 = vector.extract_strided_slice %293 {offsets = [2, 0, 0], sizes = [8, 8, 64], strides = [1, 1, 1]} : vector<12x8x64xf32> to vector<8x8x64xf32>
    %311 = vector.shape_cast %309 : vector<64xf32> to vector<1x1x64xf32>
    %312 = vector.broadcast %311 : vector<1x1x64xf32> to vector<8x8x64xf32>
    %313 = arith.mulf %312, %310 : vector<8x8x64xf32>
    %314 = arith.addf %300, %313 : vector<8x8x64xf32>
    %c85 = arith.constant 85 : index
    %c0_114 = arith.constant 0 : index
    %315 = vector.load %arg4[%c85, %c0_114] : memref<125x64xf32, #tpu.memory_space<vmem>>, vector<1x64xf32>
    %316 = vector.shape_cast %315 : vector<1x64xf32> to vector<64xf32>
    %317 = vector.extract_strided_slice %293 {offsets = [3, 0, 0], sizes = [8, 8, 64], strides = [1, 1, 1]} : vector<12x8x64xf32> to vector<8x8x64xf32>
    %318 = vector.shape_cast %316 : vector<64xf32> to vector<1x1x64xf32>
    %319 = vector.broadcast %318 : vector<1x1x64xf32> to vector<8x8x64xf32>
    %320 = arith.mulf %319, %317 : vector<8x8x64xf32>
    %321 = arith.addf %307, %320 : vector<8x8x64xf32>
    %c110 = arith.constant 110 : index
    %c0_115 = arith.constant 0 : index
    %322 = vector.load %arg4[%c110, %c0_115] : memref<125x64xf32, #tpu.memory_space<vmem>>, vector<1x64xf32>
    %323 = vector.shape_cast %322 : vector<1x64xf32> to vector<64xf32>
    %324 = vector.extract_strided_slice %293 {offsets = [4, 0, 0], sizes = [8, 8, 64], strides = [1, 1, 1]} : vector<12x8x64xf32> to vector<8x8x64xf32>
    %325 = vector.shape_cast %323 : vector<64xf32> to vector<1x1x64xf32>
    %326 = vector.broadcast %325 : vector<1x1x64xf32> to vector<8x8x64xf32>
    %327 = arith.mulf %326, %324 : vector<8x8x64xf32>
    %328 = arith.addf %314, %327 : vector<8x8x64xf32>
    %c0_116 = arith.constant 0 : index
    %c3_117 = arith.constant 3 : index
    %c0_118 = arith.constant 0 : index
    %329 = vector.load %arg11[%c0_116, %c3_117, %c0_118] : memref<12x12x64xf32, #tpu.memory_space<vmem>>, vector<12x8x64xf32>
    %c15_119 = arith.constant 15 : index
    %c0_120 = arith.constant 0 : index
    %330 = vector.load %arg4[%c15_119, %c0_120] : memref<125x64xf32, #tpu.memory_space<vmem>>, vector<1x64xf32>
    %331 = vector.shape_cast %330 : vector<1x64xf32> to vector<64xf32>
    %332 = vector.extract_strided_slice %329 {offsets = [0, 0, 0], sizes = [8, 8, 64], strides = [1, 1, 1]} : vector<12x8x64xf32> to vector<8x8x64xf32>
    %333 = vector.shape_cast %331 : vector<64xf32> to vector<1x1x64xf32>
    %334 = vector.broadcast %333 : vector<1x1x64xf32> to vector<8x8x64xf32>
    %335 = arith.mulf %334, %332 : vector<8x8x64xf32>
    %336 = arith.addf %328, %335 : vector<8x8x64xf32>
    %c40 = arith.constant 40 : index
    %c0_121 = arith.constant 0 : index
    %337 = vector.load %arg4[%c40, %c0_121] : memref<125x64xf32, #tpu.memory_space<vmem>>, vector<1x64xf32>
    %338 = vector.shape_cast %337 : vector<1x64xf32> to vector<64xf32>
    %339 = vector.extract_strided_slice %329 {offsets = [1, 0, 0], sizes = [8, 8, 64], strides = [1, 1, 1]} : vector<12x8x64xf32> to vector<8x8x64xf32>
    %340 = vector.shape_cast %338 : vector<64xf32> to vector<1x1x64xf32>
    %341 = vector.broadcast %340 : vector<1x1x64xf32> to vector<8x8x64xf32>
    %342 = arith.mulf %341, %339 : vector<8x8x64xf32>
    %343 = arith.addf %321, %342 : vector<8x8x64xf32>
    %c65 = arith.constant 65 : index
    %c0_122 = arith.constant 0 : index
    %344 = vector.load %arg4[%c65, %c0_122] : memref<125x64xf32, #tpu.memory_space<vmem>>, vector<1x64xf32>
    %345 = vector.shape_cast %344 : vector<1x64xf32> to vector<64xf32>
    %346 = vector.extract_strided_slice %329 {offsets = [2, 0, 0], sizes = [8, 8, 64], strides = [1, 1, 1]} : vector<12x8x64xf32> to vector<8x8x64xf32>
    %347 = vector.shape_cast %345 : vector<64xf32> to vector<1x1x64xf32>
    %348 = vector.broadcast %347 : vector<1x1x64xf32> to vector<8x8x64xf32>
    %349 = arith.mulf %348, %346 : vector<8x8x64xf32>
    %350 = arith.addf %336, %349 : vector<8x8x64xf32>
    %c90 = arith.constant 90 : index
    %c0_123 = arith.constant 0 : index
    %351 = vector.load %arg4[%c90, %c0_123] : memref<125x64xf32, #tpu.memory_space<vmem>>, vector<1x64xf32>
    %352 = vector.shape_cast %351 : vector<1x64xf32> to vector<64xf32>
    %353 = vector.extract_strided_slice %329 {offsets = [3, 0, 0], sizes = [8, 8, 64], strides = [1, 1, 1]} : vector<12x8x64xf32> to vector<8x8x64xf32>
    %354 = vector.shape_cast %352 : vector<64xf32> to vector<1x1x64xf32>
    %355 = vector.broadcast %354 : vector<1x1x64xf32> to vector<8x8x64xf32>
    %356 = arith.mulf %355, %353 : vector<8x8x64xf32>
    %357 = arith.addf %343, %356 : vector<8x8x64xf32>
    %c115 = arith.constant 115 : index
    %c0_124 = arith.constant 0 : index
    %358 = vector.load %arg4[%c115, %c0_124] : memref<125x64xf32, #tpu.memory_space<vmem>>, vector<1x64xf32>
    %359 = vector.shape_cast %358 : vector<1x64xf32> to vector<64xf32>
    %360 = vector.extract_strided_slice %329 {offsets = [4, 0, 0], sizes = [8, 8, 64], strides = [1, 1, 1]} : vector<12x8x64xf32> to vector<8x8x64xf32>
    %361 = vector.shape_cast %359 : vector<64xf32> to vector<1x1x64xf32>
    %362 = vector.broadcast %361 : vector<1x1x64xf32> to vector<8x8x64xf32>
    %363 = arith.mulf %362, %360 : vector<8x8x64xf32>
    %364 = arith.addf %350, %363 : vector<8x8x64xf32>
    %c0_125 = arith.constant 0 : index
    %c4_126 = arith.constant 4 : index
    %c0_127 = arith.constant 0 : index
    %365 = vector.load %arg11[%c0_125, %c4_126, %c0_127] : memref<12x12x64xf32, #tpu.memory_space<vmem>>, vector<12x8x64xf32>
    %c20_128 = arith.constant 20 : index
    %c0_129 = arith.constant 0 : index
    %366 = vector.load %arg4[%c20_128, %c0_129] : memref<125x64xf32, #tpu.memory_space<vmem>>, vector<1x64xf32>
    %367 = vector.shape_cast %366 : vector<1x64xf32> to vector<64xf32>
    %368 = vector.extract_strided_slice %365 {offsets = [0, 0, 0], sizes = [8, 8, 64], strides = [1, 1, 1]} : vector<12x8x64xf32> to vector<8x8x64xf32>
    %369 = vector.shape_cast %367 : vector<64xf32> to vector<1x1x64xf32>
    %370 = vector.broadcast %369 : vector<1x1x64xf32> to vector<8x8x64xf32>
    %371 = arith.mulf %370, %368 : vector<8x8x64xf32>
    %372 = arith.addf %364, %371 : vector<8x8x64xf32>
    %c45 = arith.constant 45 : index
    %c0_130 = arith.constant 0 : index
    %373 = vector.load %arg4[%c45, %c0_130] : memref<125x64xf32, #tpu.memory_space<vmem>>, vector<1x64xf32>
    %374 = vector.shape_cast %373 : vector<1x64xf32> to vector<64xf32>
    %375 = vector.extract_strided_slice %365 {offsets = [1, 0, 0], sizes = [8, 8, 64], strides = [1, 1, 1]} : vector<12x8x64xf32> to vector<8x8x64xf32>
    %376 = vector.shape_cast %374 : vector<64xf32> to vector<1x1x64xf32>
    %377 = vector.broadcast %376 : vector<1x1x64xf32> to vector<8x8x64xf32>
    %378 = arith.mulf %377, %375 : vector<8x8x64xf32>
    %379 = arith.addf %357, %378 : vector<8x8x64xf32>
    %c70 = arith.constant 70 : index
    %c0_131 = arith.constant 0 : index
    %380 = vector.load %arg4[%c70, %c0_131] : memref<125x64xf32, #tpu.memory_space<vmem>>, vector<1x64xf32>
    %381 = vector.shape_cast %380 : vector<1x64xf32> to vector<64xf32>
    %382 = vector.extract_strided_slice %365 {offsets = [2, 0, 0], sizes = [8, 8, 64], strides = [1, 1, 1]} : vector<12x8x64xf32> to vector<8x8x64xf32>
    %383 = vector.shape_cast %381 : vector<64xf32> to vector<1x1x64xf32>
    %384 = vector.broadcast %383 : vector<1x1x64xf32> to vector<8x8x64xf32>
    %385 = arith.mulf %384, %382 : vector<8x8x64xf32>
    %386 = arith.addf %372, %385 : vector<8x8x64xf32>
    %c95 = arith.constant 95 : index
    %c0_132 = arith.constant 0 : index
    %387 = vector.load %arg4[%c95, %c0_132] : memref<125x64xf32, #tpu.memory_space<vmem>>, vector<1x64xf32>
    %388 = vector.shape_cast %387 : vector<1x64xf32> to vector<64xf32>
    %389 = vector.extract_strided_slice %365 {offsets = [3, 0, 0], sizes = [8, 8, 64], strides = [1, 1, 1]} : vector<12x8x64xf32> to vector<8x8x64xf32>
    %390 = vector.shape_cast %388 : vector<64xf32> to vector<1x1x64xf32>
    %391 = vector.broadcast %390 : vector<1x1x64xf32> to vector<8x8x64xf32>
    %392 = arith.mulf %391, %389 : vector<8x8x64xf32>
    %393 = arith.addf %379, %392 : vector<8x8x64xf32>
    %c120 = arith.constant 120 : index
    %c0_133 = arith.constant 0 : index
    %394 = vector.load %arg4[%c120, %c0_133] : memref<125x64xf32, #tpu.memory_space<vmem>>, vector<1x64xf32>
    %395 = vector.shape_cast %394 : vector<1x64xf32> to vector<64xf32>
    %396 = vector.extract_strided_slice %365 {offsets = [4, 0, 0], sizes = [8, 8, 64], strides = [1, 1, 1]} : vector<12x8x64xf32> to vector<8x8x64xf32>
    %397 = vector.shape_cast %395 : vector<64xf32> to vector<1x1x64xf32>
    %398 = vector.broadcast %397 : vector<1x1x64xf32> to vector<8x8x64xf32>
    %399 = arith.mulf %398, %396 : vector<8x8x64xf32>
    %400 = arith.addf %386, %399 : vector<8x8x64xf32>
    %c0_134 = arith.constant 0 : index
    %c0_135 = arith.constant 0 : index
    %c0_136 = arith.constant 0 : index
    %c8_137 = arith.constant 8 : index
    %401 = vector.load %arg1[%c0_134, %c0_135, %c0_136, %c8_137] : memref<1x12x12x96xf32, #tpu.memory_space<vmem>>, vector<1x12x12x64xf32>
    %402 = vector.shape_cast %401 : vector<1x12x12x64xf32> to vector<12x12x64xf32>
    %c0_138 = arith.constant 0 : index
    %c0_139 = arith.constant 0 : index
    %c0_140 = arith.constant 0 : index
    %403 = vector.load %arg11[%c0_138, %c0_139, %c0_140] : memref<12x12x64xf32, #tpu.memory_space<vmem>>, vector<12x12x64xf32>
    tpu.vector_store %arg11[%c0_138, %c0_139, %c0_140], %402 {strides = array<i32>} : memref<12x12x64xf32, #tpu.memory_space<vmem>>, vector<12x12x64xf32>,
    %c0_141 = arith.constant 0 : index
    %c0_142 = arith.constant 0 : index
    %c0_143 = arith.constant 0 : index
    %404 = vector.load %arg11[%c0_141, %c0_142, %c0_143] : memref<12x12x64xf32, #tpu.memory_space<vmem>>, vector<12x8x64xf32>
    %c1_144 = arith.constant 1 : index
    %c0_145 = arith.constant 0 : index
    %405 = vector.load %arg4[%c1_144, %c0_145] : memref<125x64xf32, #tpu.memory_space<vmem>>, vector<1x64xf32>
    %406 = vector.shape_cast %405 : vector<1x64xf32> to vector<64xf32>
    %407 = vector.extract_strided_slice %404 {offsets = [0, 0, 0], sizes = [8, 8, 64], strides = [1, 1, 1]} : vector<12x8x64xf32> to vector<8x8x64xf32>
    %408 = vector.shape_cast %406 : vector<64xf32> to vector<1x1x64xf32>
    %409 = vector.broadcast %408 : vector<1x1x64xf32> to vector<8x8x64xf32>
    %410 = arith.mulf %409, %407 : vector<8x8x64xf32>
    %411 = arith.addf %400, %410 : vector<8x8x64xf32>
    %c26_146 = arith.constant 26 : index
    %c0_147 = arith.constant 0 : index
    %412 = vector.load %arg4[%c26_146, %c0_147] : memref<125x64xf32, #tpu.memory_space<vmem>>, vector<1x64xf32>
    %413 = vector.shape_cast %412 : vector<1x64xf32> to vector<64xf32>
    %414 = vector.extract_strided_slice %404 {offsets = [1, 0, 0], sizes = [8, 8, 64], strides = [1, 1, 1]} : vector<12x8x64xf32> to vector<8x8x64xf32>
    %415 = vector.shape_cast %413 : vector<64xf32> to vector<1x1x64xf32>
    %416 = vector.broadcast %415 : vector<1x1x64xf32> to vector<8x8x64xf32>
    %417 = arith.mulf %416, %414 : vector<8x8x64xf32>
    %418 = arith.addf %393, %417 : vector<8x8x64xf32>
    %c51 = arith.constant 51 : index
    %c0_148 = arith.constant 0 : index
    %419 = vector.load %arg4[%c51, %c0_148] : memref<125x64xf32, #tpu.memory_space<vmem>>, vector<1x64xf32>
    %420 = vector.shape_cast %419 : vector<1x64xf32> to vector<64xf32>
    %421 = vector.extract_strided_slice %404 {offsets = [2, 0, 0], sizes = [8, 8, 64], strides = [1, 1, 1]} : vector<12x8x64xf32> to vector<8x8x64xf32>
    %422 = vector.shape_cast %420 : vector<64xf32> to vector<1x1x64xf32>
    %423 = vector.broadcast %422 : vector<1x1x64xf32> to vector<8x8x64xf32>
    %424 = arith.mulf %423, %421 : vector<8x8x64xf32>
    %425 = arith.addf %411, %424 : vector<8x8x64xf32>
    %c76 = arith.constant 76 : index
    %c0_149 = arith.constant 0 : index
    %426 = vector.load %arg4[%c76, %c0_149] : memref<125x64xf32, #tpu.memory_space<vmem>>, vector<1x64xf32>
    %427 = vector.shape_cast %426 : vector<1x64xf32> to vector<64xf32>
    %428 = vector.extract_strided_slice %404 {offsets = [3, 0, 0], sizes = [8, 8, 64], strides = [1, 1, 1]} : vector<12x8x64xf32> to vector<8x8x64xf32>
    %429 = vector.shape_cast %427 : vector<64xf32> to vector<1x1x64xf32>
    %430 = vector.broadcast %429 : vector<1x1x64xf32> to vector<8x8x64xf32>
    %431 = arith.mulf %430, %428 : vector<8x8x64xf32>
    %432 = arith.addf %418, %431 : vector<8x8x64xf32>
    %c101 = arith.constant 101 : index
    %c0_150 = arith.constant 0 : index
    %433 = vector.load %arg4[%c101, %c0_150] : memref<125x64xf32, #tpu.memory_space<vmem>>, vector<1x64xf32>
    %434 = vector.shape_cast %433 : vector<1x64xf32> to vector<64xf32>
    %435 = vector.extract_strided_slice %404 {offsets = [4, 0, 0], sizes = [8, 8, 64], strides = [1, 1, 1]} : vector<12x8x64xf32> to vector<8x8x64xf32>
    %436 = vector.shape_cast %434 : vector<64xf32> to vector<1x1x64xf32>
    %437 = vector.broadcast %436 : vector<1x1x64xf32> to vector<8x8x64xf32>
    %438 = arith.mulf %437, %435 : vector<8x8x64xf32>
    %439 = arith.addf %425, %438 : vector<8x8x64xf32>
    %c0_151 = arith.constant 0 : index
    %c1_152 = arith.constant 1 : index
    %c0_153 = arith.constant 0 : index
    %440 = vector.load %arg11[%c0_151, %c1_152, %c0_153] : memref<12x12x64xf32, #tpu.memory_space<vmem>>, vector<12x8x64xf32>
    %c6_154 = arith.constant 6 : index
    %c0_155 = arith.constant 0 : index
    %441 = vector.load %arg4[%c6_154, %c0_155] : memref<125x64xf32, #tpu.memory_space<vmem>>, vector<1x64xf32>
    %442 = vector.shape_cast %441 : vector<1x64xf32> to vector<64xf32>
    %443 = vector.extract_strided_slice %440 {offsets = [0, 0, 0], sizes = [8, 8, 64], strides = [1, 1, 1]} : vector<12x8x64xf32> to vector<8x8x64xf32>
    %444 = vector.shape_cast %442 : vector<64xf32> to vector<1x1x64xf32>
    %445 = vector.broadcast %444 : vector<1x1x64xf32> to vector<8x8x64xf32>
    %446 = arith.mulf %445, %443 : vector<8x8x64xf32>
    %447 = arith.addf %439, %446 : vector<8x8x64xf32>
    %c31 = arith.constant 31 : index
    %c0_156 = arith.constant 0 : index
    %448 = vector.load %arg4[%c31, %c0_156] : memref<125x64xf32, #tpu.memory_space<vmem>>, vector<1x64xf32>
    %449 = vector.shape_cast %448 : vector<1x64xf32> to vector<64xf32>
    %450 = vector.extract_strided_slice %440 {offsets = [1, 0, 0], sizes = [8, 8, 64], strides = [1, 1, 1]} : vector<12x8x64xf32> to vector<8x8x64xf32>
    %451 = vector.shape_cast %449 : vector<64xf32> to vector<1x1x64xf32>
    %452 = vector.broadcast %451 : vector<1x1x64xf32> to vector<8x8x64xf32>
    %453 = arith.mulf %452, %450 : vector<8x8x64xf32>
    %454 = arith.addf %432, %453 : vector<8x8x64xf32>
    %c56 = arith.constant 56 : index
    %c0_157 = arith.constant 0 : index
    %455 = vector.load %arg4[%c56, %c0_157] : memref<125x64xf32, #tpu.memory_space<vmem>>, vector<1x64xf32>
    %456 = vector.shape_cast %455 : vector<1x64xf32> to vector<64xf32>
    %457 = vector.extract_strided_slice %440 {offsets = [2, 0, 0], sizes = [8, 8, 64], strides = [1, 1, 1]} : vector<12x8x64xf32> to vector<8x8x64xf32>
    %458 = vector.shape_cast %456 : vector<64xf32> to vector<1x1x64xf32>
    %459 = vector.broadcast %458 : vector<1x1x64xf32> to vector<8x8x64xf32>
    %460 = arith.mulf %459, %457 : vector<8x8x64xf32>
    %461 = arith.addf %447, %460 : vector<8x8x64xf32>
    %c81 = arith.constant 81 : index
    %c0_158 = arith.constant 0 : index
    %462 = vector.load %arg4[%c81, %c0_158] : memref<125x64xf32, #tpu.memory_space<vmem>>, vector<1x64xf32>
    %463 = vector.shape_cast %462 : vector<1x64xf32> to vector<64xf32>
    %464 = vector.extract_strided_slice %440 {offsets = [3, 0, 0], sizes = [8, 8, 64], strides = [1, 1, 1]} : vector<12x8x64xf32> to vector<8x8x64xf32>
    %465 = vector.shape_cast %463 : vector<64xf32> to vector<1x1x64xf32>
    %466 = vector.broadcast %465 : vector<1x1x64xf32> to vector<8x8x64xf32>
    %467 = arith.mulf %466, %464 : vector<8x8x64xf32>
    %468 = arith.addf %454, %467 : vector<8x8x64xf32>
    %c106 = arith.constant 106 : index
    %c0_159 = arith.constant 0 : index
    %469 = vector.load %arg4[%c106, %c0_159] : memref<125x64xf32, #tpu.memory_space<vmem>>, vector<1x64xf32>
    %470 = vector.shape_cast %469 : vector<1x64xf32> to vector<64xf32>
    %471 = vector.extract_strided_slice %440 {offsets = [4, 0, 0], sizes = [8, 8, 64], strides = [1, 1, 1]} : vector<12x8x64xf32> to vector<8x8x64xf32>
    %472 = vector.shape_cast %470 : vector<64xf32> to vector<1x1x64xf32>
    %473 = vector.broadcast %472 : vector<1x1x64xf32> to vector<8x8x64xf32>
    %474 = arith.mulf %473, %471 : vector<8x8x64xf32>
    %475 = arith.addf %461, %474 : vector<8x8x64xf32>
    %c0_160 = arith.constant 0 : index
    %c2_161 = arith.constant 2 : index
    %c0_162 = arith.constant 0 : index
    %476 = vector.load %arg11[%c0_160, %c2_161, %c0_162] : memref<12x12x64xf32, #tpu.memory_space<vmem>>, vector<12x8x64xf32>
    %c11_163 = arith.constant 11 : index
    %c0_164 = arith.constant 0 : index
    %477 = vector.load %arg4[%c11_163, %c0_164] : memref<125x64xf32, #tpu.memory_space<vmem>>, vector<1x64xf32>
    %478 = vector.shape_cast %477 : vector<1x64xf32> to vector<64xf32>
    %479 = vector.extract_strided_slice %476 {offsets = [0, 0, 0], sizes = [8, 8, 64], strides = [1, 1, 1]} : vector<12x8x64xf32> to vector<8x8x64xf32>
    %480 = vector.shape_cast %478 : vector<64xf32> to vector<1x1x64xf32>
    %481 = vector.broadcast %480 : vector<1x1x64xf32> to vector<8x8x64xf32>
    %482 = arith.mulf %481, %479 : vector<8x8x64xf32>
    %483 = arith.addf %475, %482 : vector<8x8x64xf32>
    %c36 = arith.constant 36 : index
    %c0_165 = arith.constant 0 : index
    %484 = vector.load %arg4[%c36, %c0_165] : memref<125x64xf32, #tpu.memory_space<vmem>>, vector<1x64xf32>
    %485 = vector.shape_cast %484 : vector<1x64xf32> to vector<64xf32>
    %486 = vector.extract_strided_slice %476 {offsets = [1, 0, 0], sizes = [8, 8, 64], strides = [1, 1, 1]} : vector<12x8x64xf32> to vector<8x8x64xf32>
    %487 = vector.shape_cast %485 : vector<64xf32> to vector<1x1x64xf32>
    %488 = vector.broadcast %487 : vector<1x1x64xf32> to vector<8x8x64xf32>
    %489 = arith.mulf %488, %486 : vector<8x8x64xf32>
    %490 = arith.addf %468, %489 : vector<8x8x64xf32>
    %c61 = arith.constant 61 : index
    %c0_166 = arith.constant 0 : index
    %491 = vector.load %arg4[%c61, %c0_166] : memref<125x64xf32, #tpu.memory_space<vmem>>, vector<1x64xf32>
    %492 = vector.shape_cast %491 : vector<1x64xf32> to vector<64xf32>
    %493 = vector.extract_strided_slice %476 {offsets = [2, 0, 0], sizes = [8, 8, 64], strides = [1, 1, 1]} : vector<12x8x64xf32> to vector<8x8x64xf32>
    %494 = vector.shape_cast %492 : vector<64xf32> to vector<1x1x64xf32>
    %495 = vector.broadcast %494 : vector<1x1x64xf32> to vector<8x8x64xf32>
    %496 = arith.mulf %495, %493 : vector<8x8x64xf32>
    %497 = arith.addf %483, %496 : vector<8x8x64xf32>
    %c86 = arith.constant 86 : index
    %c0_167 = arith.constant 0 : index
    %498 = vector.load %arg4[%c86, %c0_167] : memref<125x64xf32, #tpu.memory_space<vmem>>, vector<1x64xf32>
    %499 = vector.shape_cast %498 : vector<1x64xf32> to vector<64xf32>
    %500 = vector.extract_strided_slice %476 {offsets = [3, 0, 0], sizes = [8, 8, 64], strides = [1, 1, 1]} : vector<12x8x64xf32> to vector<8x8x64xf32>
    %501 = vector.shape_cast %499 : vector<64xf32> to vector<1x1x64xf32>
    %502 = vector.broadcast %501 : vector<1x1x64xf32> to vector<8x8x64xf32>
    %503 = arith.mulf %502, %500 : vector<8x8x64xf32>
    %504 = arith.addf %490, %503 : vector<8x8x64xf32>
    %c111 = arith.constant 111 : index
    %c0_168 = arith.constant 0 : index
    %505 = vector.load %arg4[%c111, %c0_168] : memref<125x64xf32, #tpu.memory_space<vmem>>, vector<1x64xf32>
    %506 = vector.shape_cast %505 : vector<1x64xf32> to vector<64xf32>
    %507 = vector.extract_strided_slice %476 {offsets = [4, 0, 0], sizes = [8, 8, 64], strides = [1, 1, 1]} : vector<12x8x64xf32> to vector<8x8x64xf32>
    %508 = vector.shape_cast %506 : vector<64xf32> to vector<1x1x64xf32>
    %509 = vector.broadcast %508 : vector<1x1x64xf32> to vector<8x8x64xf32>
    %510 = arith.mulf %509, %507 : vector<8x8x64xf32>
    %511 = arith.addf %497, %510 : vector<8x8x64xf32>
    %c0_169 = arith.constant 0 : index
    %c3_170 = arith.constant 3 : index
    %c0_171 = arith.constant 0 : index
    %512 = vector.load %arg11[%c0_169, %c3_170, %c0_171] : memref<12x12x64xf32, #tpu.memory_space<vmem>>, vector<12x8x64xf32>
    %c16_172 = arith.constant 16 : index
    %c0_173 = arith.constant 0 : index
    %513 = vector.load %arg4[%c16_172, %c0_173] : memref<125x64xf32, #tpu.memory_space<vmem>>, vector<1x64xf32>
    %514 = vector.shape_cast %513 : vector<1x64xf32> to vector<64xf32>
    %515 = vector.extract_strided_slice %512 {offsets = [0, 0, 0], sizes = [8, 8, 64], strides = [1, 1, 1]} : vector<12x8x64xf32> to vector<8x8x64xf32>
    %516 = vector.shape_cast %514 : vector<64xf32> to vector<1x1x64xf32>
    %517 = vector.broadcast %516 : vector<1x1x64xf32> to vector<8x8x64xf32>
    %518 = arith.mulf %517, %515 : vector<8x8x64xf32>
    %519 = arith.addf %511, %518 : vector<8x8x64xf32>
    %c41 = arith.constant 41 : index
    %c0_174 = arith.constant 0 : index
    %520 = vector.load %arg4[%c41, %c0_174] : memref<125x64xf32, #tpu.memory_space<vmem>>, vector<1x64xf32>
    %521 = vector.shape_cast %520 : vector<1x64xf32> to vector<64xf32>
    %522 = vector.extract_strided_slice %512 {offsets = [1, 0, 0], sizes = [8, 8, 64], strides = [1, 1, 1]} : vector<12x8x64xf32> to vector<8x8x64xf32>
    %523 = vector.shape_cast %521 : vector<64xf32> to vector<1x1x64xf32>
    %524 = vector.broadcast %523 : vector<1x1x64xf32> to vector<8x8x64xf32>
    %525 = arith.mulf %524, %522 : vector<8x8x64xf32>
    %526 = arith.addf %504, %525 : vector<8x8x64xf32>
    %c66 = arith.constant 66 : index
    %c0_175 = arith.constant 0 : index
    %527 = vector.load %arg4[%c66, %c0_175] : memref<125x64xf32, #tpu.memory_space<vmem>>, vector<1x64xf32>
    %528 = vector.shape_cast %527 : vector<1x64xf32> to vector<64xf32>
    %529 = vector.extract_strided_slice %512 {offsets = [2, 0, 0], sizes = [8, 8, 64], strides = [1, 1, 1]} : vector<12x8x64xf32> to vector<8x8x64xf32>
    %530 = vector.shape_cast %528 : vector<64xf32> to vector<1x1x64xf32>
    %531 = vector.broadcast %530 : vector<1x1x64xf32> to vector<8x8x64xf32>
    %532 = arith.mulf %531, %529 : vector<8x8x64xf32>
    %533 = arith.addf %519, %532 : vector<8x8x64xf32>
    %c91 = arith.constant 91 : index
    %c0_176 = arith.constant 0 : index
    %534 = vector.load %arg4[%c91, %c0_176] : memref<125x64xf32, #tpu.memory_space<vmem>>, vector<1x64xf32>
    %535 = vector.shape_cast %534 : vector<1x64xf32> to vector<64xf32>
    %536 = vector.extract_strided_slice %512 {offsets = [3, 0, 0], sizes = [8, 8, 64], strides = [1, 1, 1]} : vector<12x8x64xf32> to vector<8x8x64xf32>
    %537 = vector.shape_cast %535 : vector<64xf32> to vector<1x1x64xf32>
    %538 = vector.broadcast %537 : vector<1x1x64xf32> to vector<8x8x64xf32>
    %539 = arith.mulf %538, %536 : vector<8x8x64xf32>
    %540 = arith.addf %526, %539 : vector<8x8x64xf32>
    %c116 = arith.constant 116 : index
    %c0_177 = arith.constant 0 : index
    %541 = vector.load %arg4[%c116, %c0_177] : memref<125x64xf32, #tpu.memory_space<vmem>>, vector<1x64xf32>
    %542 = vector.shape_cast %541 : vector<1x64xf32> to vector<64xf32>
    %543 = vector.extract_strided_slice %512 {offsets = [4, 0, 0], sizes = [8, 8, 64], strides = [1, 1, 1]} : vector<12x8x64xf32> to vector<8x8x64xf32>
    %544 = vector.shape_cast %542 : vector<64xf32> to vector<1x1x64xf32>
    %545 = vector.broadcast %544 : vector<1x1x64xf32> to vector<8x8x64xf32>
    %546 = arith.mulf %545, %543 : vector<8x8x64xf32>
    %547 = arith.addf %533, %546 : vector<8x8x64xf32>
    %c0_178 = arith.constant 0 : index
    %c4_179 = arith.constant 4 : index
    %c0_180 = arith.constant 0 : index
    %548 = vector.load %arg11[%c0_178, %c4_179, %c0_180] : memref<12x12x64xf32, #tpu.memory_space<vmem>>, vector<12x8x64xf32>
    %c21_181 = arith.constant 21 : index
    %c0_182 = arith.constant 0 : index
    %549 = vector.load %arg4[%c21_181, %c0_182] : memref<125x64xf32, #tpu.memory_space<vmem>>, vector<1x64xf32>
    %550 = vector.shape_cast %549 : vector<1x64xf32> to vector<64xf32>
    %551 = vector.extract_strided_slice %548 {offsets = [0, 0, 0], sizes = [8, 8, 64], strides = [1, 1, 1]} : vector<12x8x64xf32> to vector<8x8x64xf32>
    %552 = vector.shape_cast %550 : vector<64xf32> to vector<1x1x64xf32>
    %553 = vector.broadcast %552 : vector<1x1x64xf32> to vector<8x8x64xf32>
    %554 = arith.mulf %553, %551 : vector<8x8x64xf32>
    %555 = arith.addf %547, %554 : vector<8x8x64xf32>
    %c46 = arith.constant 46 : index
    %c0_183 = arith.constant 0 : index
    %556 = vector.load %arg4[%c46, %c0_183] : memref<125x64xf32, #tpu.memory_space<vmem>>, vector<1x64xf32>
    %557 = vector.shape_cast %556 : vector<1x64xf32> to vector<64xf32>
    %558 = vector.extract_strided_slice %548 {offsets = [1, 0, 0], sizes = [8, 8, 64], strides = [1, 1, 1]} : vector<12x8x64xf32> to vector<8x8x64xf32>
    %559 = vector.shape_cast %557 : vector<64xf32> to vector<1x1x64xf32>
    %560 = vector.broadcast %559 : vector<1x1x64xf32> to vector<8x8x64xf32>
    %561 = arith.mulf %560, %558 : vector<8x8x64xf32>
    %562 = arith.addf %540, %561 : vector<8x8x64xf32>
    %c71 = arith.constant 71 : index
    %c0_184 = arith.constant 0 : index
    %563 = vector.load %arg4[%c71, %c0_184] : memref<125x64xf32, #tpu.memory_space<vmem>>, vector<1x64xf32>
    %564 = vector.shape_cast %563 : vector<1x64xf32> to vector<64xf32>
    %565 = vector.extract_strided_slice %548 {offsets = [2, 0, 0], sizes = [8, 8, 64], strides = [1, 1, 1]} : vector<12x8x64xf32> to vector<8x8x64xf32>
    %566 = vector.shape_cast %564 : vector<64xf32> to vector<1x1x64xf32>
    %567 = vector.broadcast %566 : vector<1x1x64xf32> to vector<8x8x64xf32>
    %568 = arith.mulf %567, %565 : vector<8x8x64xf32>
    %569 = arith.addf %555, %568 : vector<8x8x64xf32>
    %c96 = arith.constant 96 : index
    %c0_185 = arith.constant 0 : index
    %570 = vector.load %arg4[%c96, %c0_185] : memref<125x64xf32, #tpu.memory_space<vmem>>, vector<1x64xf32>
    %571 = vector.shape_cast %570 : vector<1x64xf32> to vector<64xf32>
    %572 = vector.extract_strided_slice %548 {offsets = [3, 0, 0], sizes = [8, 8, 64], strides = [1, 1, 1]} : vector<12x8x64xf32> to vector<8x8x64xf32>
    %573 = vector.shape_cast %571 : vector<64xf32> to vector<1x1x64xf32>
    %574 = vector.broadcast %573 : vector<1x1x64xf32> to vector<8x8x64xf32>
    %575 = arith.mulf %574, %572 : vector<8x8x64xf32>
    %576 = arith.addf %562, %575 : vector<8x8x64xf32>
    %c121 = arith.constant 121 : index
    %c0_186 = arith.constant 0 : index
    %577 = vector.load %arg4[%c121, %c0_186] : memref<125x64xf32, #tpu.memory_space<vmem>>, vector<1x64xf32>
    %578 = vector.shape_cast %577 : vector<1x64xf32> to vector<64xf32>
    %579 = vector.extract_strided_slice %548 {offsets = [4, 0, 0], sizes = [8, 8, 64], strides = [1, 1, 1]} : vector<12x8x64xf32> to vector<8x8x64xf32>
    %580 = vector.shape_cast %578 : vector<64xf32> to vector<1x1x64xf32>
    %581 = vector.broadcast %580 : vector<1x1x64xf32> to vector<8x8x64xf32>
    %582 = arith.mulf %581, %579 : vector<8x8x64xf32>
    %583 = arith.addf %569, %582 : vector<8x8x64xf32>
    %c0_187 = arith.constant 0 : index
    %c0_188 = arith.constant 0 : index
    %c0_189 = arith.constant 0 : index
    %c16_190 = arith.constant 16 : index
    %584 = vector.load %arg1[%c0_187, %c0_188, %c0_189, %c16_190] : memref<1x12x12x96xf32, #tpu.memory_space<vmem>>, vector<1x12x12x64xf32>
    %585 = vector.shape_cast %584 : vector<1x12x12x64xf32> to vector<12x12x64xf32>
    %c0_191 = arith.constant 0 : index
    %c0_192 = arith.constant 0 : index
    %c0_193 = arith.constant 0 : index
    %586 = vector.load %arg11[%c0_191, %c0_192, %c0_193] : memref<12x12x64xf32, #tpu.memory_space<vmem>>, vector<12x12x64xf32>
    tpu.vector_store %arg11[%c0_191, %c0_192, %c0_193], %585 {strides = array<i32>} : memref<12x12x64xf32, #tpu.memory_space<vmem>>, vector<12x12x64xf32>,
    %c0_194 = arith.constant 0 : index
    %c0_195 = arith.constant 0 : index
    %c0_196 = arith.constant 0 : index
    %587 = vector.load %arg11[%c0_194, %c0_195, %c0_196] : memref<12x12x64xf32, #tpu.memory_space<vmem>>, vector<12x8x64xf32>
    %c2_197 = arith.constant 2 : index
    %c0_198 = arith.constant 0 : index
    %588 = vector.load %arg4[%c2_197, %c0_198] : memref<125x64xf32, #tpu.memory_space<vmem>>, vector<1x64xf32>
    %589 = vector.shape_cast %588 : vector<1x64xf32> to vector<64xf32>
    %590 = vector.extract_strided_slice %587 {offsets = [0, 0, 0], sizes = [8, 8, 64], strides = [1, 1, 1]} : vector<12x8x64xf32> to vector<8x8x64xf32>
    %591 = vector.shape_cast %589 : vector<64xf32> to vector<1x1x64xf32>
    %592 = vector.broadcast %591 : vector<1x1x64xf32> to vector<8x8x64xf32>
    %593 = arith.mulf %592, %590 : vector<8x8x64xf32>
    %594 = arith.addf %583, %593 : vector<8x8x64xf32>
    %c27 = arith.constant 27 : index
    %c0_199 = arith.constant 0 : index
    %595 = vector.load %arg4[%c27, %c0_199] : memref<125x64xf32, #tpu.memory_space<vmem>>, vector<1x64xf32>
    %596 = vector.shape_cast %595 : vector<1x64xf32> to vector<64xf32>
    %597 = vector.extract_strided_slice %587 {offsets = [1, 0, 0], sizes = [8, 8, 64], strides = [1, 1, 1]} : vector<12x8x64xf32> to vector<8x8x64xf32>
    %598 = vector.shape_cast %596 : vector<64xf32> to vector<1x1x64xf32>
    %599 = vector.broadcast %598 : vector<1x1x64xf32> to vector<8x8x64xf32>
    %600 = arith.mulf %599, %597 : vector<8x8x64xf32>
    %601 = arith.addf %576, %600 : vector<8x8x64xf32>
    %c52 = arith.constant 52 : index
    %c0_200 = arith.constant 0 : index
    %602 = vector.load %arg4[%c52, %c0_200] : memref<125x64xf32, #tpu.memory_space<vmem>>, vector<1x64xf32>
    %603 = vector.shape_cast %602 : vector<1x64xf32> to vector<64xf32>
    %604 = vector.extract_strided_slice %587 {offsets = [2, 0, 0], sizes = [8, 8, 64], strides = [1, 1, 1]} : vector<12x8x64xf32> to vector<8x8x64xf32>
    %605 = vector.shape_cast %603 : vector<64xf32> to vector<1x1x64xf32>
    %606 = vector.broadcast %605 : vector<1x1x64xf32> to vector<8x8x64xf32>
    %607 = arith.mulf %606, %604 : vector<8x8x64xf32>
    %608 = arith.addf %594, %607 : vector<8x8x64xf32>
    %c77 = arith.constant 77 : index
    %c0_201 = arith.constant 0 : index
    %609 = vector.load %arg4[%c77, %c0_201] : memref<125x64xf32, #tpu.memory_space<vmem>>, vector<1x64xf32>
    %610 = vector.shape_cast %609 : vector<1x64xf32> to vector<64xf32>
    %611 = vector.extract_strided_slice %587 {offsets = [3, 0, 0], sizes = [8, 8, 64], strides = [1, 1, 1]} : vector<12x8x64xf32> to vector<8x8x64xf32>
    %612 = vector.shape_cast %610 : vector<64xf32> to vector<1x1x64xf32>
    %613 = vector.broadcast %612 : vector<1x1x64xf32> to vector<8x8x64xf32>
    %614 = arith.mulf %613, %611 : vector<8x8x64xf32>
    %615 = arith.addf %601, %614 : vector<8x8x64xf32>
    %c102 = arith.constant 102 : index
    %c0_202 = arith.constant 0 : index
    %616 = vector.load %arg4[%c102, %c0_202] : memref<125x64xf32, #tpu.memory_space<vmem>>, vector<1x64xf32>
    %617 = vector.shape_cast %616 : vector<1x64xf32> to vector<64xf32>
    %618 = vector.extract_strided_slice %587 {offsets = [4, 0, 0], sizes = [8, 8, 64], strides = [1, 1, 1]} : vector<12x8x64xf32> to vector<8x8x64xf32>
    %619 = vector.shape_cast %617 : vector<64xf32> to vector<1x1x64xf32>
    %620 = vector.broadcast %619 : vector<1x1x64xf32> to vector<8x8x64xf32>
    %621 = arith.mulf %620, %618 : vector<8x8x64xf32>
    %622 = arith.addf %608, %621 : vector<8x8x64xf32>
    %c0_203 = arith.constant 0 : index
    %c1_204 = arith.constant 1 : index
    %c0_205 = arith.constant 0 : index
    %623 = vector.load %arg11[%c0_203, %c1_204, %c0_205] : memref<12x12x64xf32, #tpu.memory_space<vmem>>, vector<12x8x64xf32>
    %c7_206 = arith.constant 7 : index
    %c0_207 = arith.constant 0 : index
    %624 = vector.load %arg4[%c7_206, %c0_207] : memref<125x64xf32, #tpu.memory_space<vmem>>, vector<1x64xf32>
    %625 = vector.shape_cast %624 : vector<1x64xf32> to vector<64xf32>
    %626 = vector.extract_strided_slice %623 {offsets = [0, 0, 0], sizes = [8, 8, 64], strides = [1, 1, 1]} : vector<12x8x64xf32> to vector<8x8x64xf32>
    %627 = vector.shape_cast %625 : vector<64xf32> to vector<1x1x64xf32>
    %628 = vector.broadcast %627 : vector<1x1x64xf32> to vector<8x8x64xf32>
    %629 = arith.mulf %628, %626 : vector<8x8x64xf32>
    %630 = arith.addf %622, %629 : vector<8x8x64xf32>
    %c32 = arith.constant 32 : index
    %c0_208 = arith.constant 0 : index
    %631 = vector.load %arg4[%c32, %c0_208] : memref<125x64xf32, #tpu.memory_space<vmem>>, vector<1x64xf32>
    %632 = vector.shape_cast %631 : vector<1x64xf32> to vector<64xf32>
    %633 = vector.extract_strided_slice %623 {offsets = [1, 0, 0], sizes = [8, 8, 64], strides = [1, 1, 1]} : vector<12x8x64xf32> to vector<8x8x64xf32>
    %634 = vector.shape_cast %632 : vector<64xf32> to vector<1x1x64xf32>
    %635 = vector.broadcast %634 : vector<1x1x64xf32> to vector<8x8x64xf32>
    %636 = arith.mulf %635, %633 : vector<8x8x64xf32>
    %637 = arith.addf %615, %636 : vector<8x8x64xf32>
    %c57 = arith.constant 57 : index
    %c0_209 = arith.constant 0 : index
    %638 = vector.load %arg4[%c57, %c0_209] : memref<125x64xf32, #tpu.memory_space<vmem>>, vector<1x64xf32>
    %639 = vector.shape_cast %638 : vector<1x64xf32> to vector<64xf32>
    %640 = vector.extract_strided_slice %623 {offsets = [2, 0, 0], sizes = [8, 8, 64], strides = [1, 1, 1]} : vector<12x8x64xf32> to vector<8x8x64xf32>
    %641 = vector.shape_cast %639 : vector<64xf32> to vector<1x1x64xf32>
    %642 = vector.broadcast %641 : vector<1x1x64xf32> to vector<8x8x64xf32>
    %643 = arith.mulf %642, %640 : vector<8x8x64xf32>
    %644 = arith.addf %630, %643 : vector<8x8x64xf32>
    %c82 = arith.constant 82 : index
    %c0_210 = arith.constant 0 : index
    %645 = vector.load %arg4[%c82, %c0_210] : memref<125x64xf32, #tpu.memory_space<vmem>>, vector<1x64xf32>
    %646 = vector.shape_cast %645 : vector<1x64xf32> to vector<64xf32>
    %647 = vector.extract_strided_slice %623 {offsets = [3, 0, 0], sizes = [8, 8, 64], strides = [1, 1, 1]} : vector<12x8x64xf32> to vector<8x8x64xf32>
    %648 = vector.shape_cast %646 : vector<64xf32> to vector<1x1x64xf32>
    %649 = vector.broadcast %648 : vector<1x1x64xf32> to vector<8x8x64xf32>
    %650 = arith.mulf %649, %647 : vector<8x8x64xf32>
    %651 = arith.addf %637, %650 : vector<8x8x64xf32>
    %c107 = arith.constant 107 : index
    %c0_211 = arith.constant 0 : index
    %652 = vector.load %arg4[%c107, %c0_211] : memref<125x64xf32, #tpu.memory_space<vmem>>, vector<1x64xf32>
    %653 = vector.shape_cast %652 : vector<1x64xf32> to vector<64xf32>
    %654 = vector.extract_strided_slice %623 {offsets = [4, 0, 0], sizes = [8, 8, 64], strides = [1, 1, 1]} : vector<12x8x64xf32> to vector<8x8x64xf32>
    %655 = vector.shape_cast %653 : vector<64xf32> to vector<1x1x64xf32>
    %656 = vector.broadcast %655 : vector<1x1x64xf32> to vector<8x8x64xf32>
    %657 = arith.mulf %656, %654 : vector<8x8x64xf32>
    %658 = arith.addf %644, %657 : vector<8x8x64xf32>
    %c0_212 = arith.constant 0 : index
    %c2_213 = arith.constant 2 : index
    %c0_214 = arith.constant 0 : index
    %659 = vector.load %arg11[%c0_212, %c2_213, %c0_214] : memref<12x12x64xf32, #tpu.memory_space<vmem>>, vector<12x8x64xf32>
    %c12_215 = arith.constant 12 : index
    %c0_216 = arith.constant 0 : index
    %660 = vector.load %arg4[%c12_215, %c0_216] : memref<125x64xf32, #tpu.memory_space<vmem>>, vector<1x64xf32>
    %661 = vector.shape_cast %660 : vector<1x64xf32> to vector<64xf32>
    %662 = vector.extract_strided_slice %659 {offsets = [0, 0, 0], sizes = [8, 8, 64], strides = [1, 1, 1]} : vector<12x8x64xf32> to vector<8x8x64xf32>
    %663 = vector.shape_cast %661 : vector<64xf32> to vector<1x1x64xf32>
    %664 = vector.broadcast %663 : vector<1x1x64xf32> to vector<8x8x64xf32>
    %665 = arith.mulf %664, %662 : vector<8x8x64xf32>
    %666 = arith.addf %658, %665 : vector<8x8x64xf32>
    %c37 = arith.constant 37 : index
    %c0_217 = arith.constant 0 : index
    %667 = vector.load %arg4[%c37, %c0_217] : memref<125x64xf32, #tpu.memory_space<vmem>>, vector<1x64xf32>
    %668 = vector.shape_cast %667 : vector<1x64xf32> to vector<64xf32>
    %669 = vector.extract_strided_slice %659 {offsets = [1, 0, 0], sizes = [8, 8, 64], strides = [1, 1, 1]} : vector<12x8x64xf32> to vector<8x8x64xf32>
    %670 = vector.shape_cast %668 : vector<64xf32> to vector<1x1x64xf32>
    %671 = vector.broadcast %670 : vector<1x1x64xf32> to vector<8x8x64xf32>
    %672 = arith.mulf %671, %669 : vector<8x8x64xf32>
    %673 = arith.addf %651, %672 : vector<8x8x64xf32>
    %c62 = arith.constant 62 : index
    %c0_218 = arith.constant 0 : index
    %674 = vector.load %arg4[%c62, %c0_218] : memref<125x64xf32, #tpu.memory_space<vmem>>, vector<1x64xf32>
    %675 = vector.shape_cast %674 : vector<1x64xf32> to vector<64xf32>
    %676 = vector.extract_strided_slice %659 {offsets = [2, 0, 0], sizes = [8, 8, 64], strides = [1, 1, 1]} : vector<12x8x64xf32> to vector<8x8x64xf32>
    %677 = vector.shape_cast %675 : vector<64xf32> to vector<1x1x64xf32>
    %678 = vector.broadcast %677 : vector<1x1x64xf32> to vector<8x8x64xf32>
    %679 = arith.mulf %678, %676 : vector<8x8x64xf32>
    %680 = arith.addf %666, %679 : vector<8x8x64xf32>
    %c87 = arith.constant 87 : index
    %c0_219 = arith.constant 0 : index
    %681 = vector.load %arg4[%c87, %c0_219] : memref<125x64xf32, #tpu.memory_space<vmem>>, vector<1x64xf32>
    %682 = vector.shape_cast %681 : vector<1x64xf32> to vector<64xf32>
    %683 = vector.extract_strided_slice %659 {offsets = [3, 0, 0], sizes = [8, 8, 64], strides = [1, 1, 1]} : vector<12x8x64xf32> to vector<8x8x64xf32>
    %684 = vector.shape_cast %682 : vector<64xf32> to vector<1x1x64xf32>
    %685 = vector.broadcast %684 : vector<1x1x64xf32> to vector<8x8x64xf32>
    %686 = arith.mulf %685, %683 : vector<8x8x64xf32>
    %687 = arith.addf %673, %686 : vector<8x8x64xf32>
    %c112 = arith.constant 112 : index
    %c0_220 = arith.constant 0 : index
    %688 = vector.load %arg4[%c112, %c0_220] : memref<125x64xf32, #tpu.memory_space<vmem>>, vector<1x64xf32>
    %689 = vector.shape_cast %688 : vector<1x64xf32> to vector<64xf32>
    %690 = vector.extract_strided_slice %659 {offsets = [4, 0, 0], sizes = [8, 8, 64], strides = [1, 1, 1]} : vector<12x8x64xf32> to vector<8x8x64xf32>
    %691 = vector.shape_cast %689 : vector<64xf32> to vector<1x1x64xf32>
    %692 = vector.broadcast %691 : vector<1x1x64xf32> to vector<8x8x64xf32>
    %693 = arith.mulf %692, %690 : vector<8x8x64xf32>
    %694 = arith.addf %680, %693 : vector<8x8x64xf32>
    %c0_221 = arith.constant 0 : index
    %c3_222 = arith.constant 3 : index
    %c0_223 = arith.constant 0 : index
    %695 = vector.load %arg11[%c0_221, %c3_222, %c0_223] : memref<12x12x64xf32, #tpu.memory_space<vmem>>, vector<12x8x64xf32>
    %c17_224 = arith.constant 17 : index
    %c0_225 = arith.constant 0 : index
    %696 = vector.load %arg4[%c17_224, %c0_225] : memref<125x64xf32, #tpu.memory_space<vmem>>, vector<1x64xf32>
    %697 = vector.shape_cast %696 : vector<1x64xf32> to vector<64xf32>
    %698 = vector.extract_strided_slice %695 {offsets = [0, 0, 0], sizes = [8, 8, 64], strides = [1, 1, 1]} : vector<12x8x64xf32> to vector<8x8x64xf32>
    %699 = vector.shape_cast %697 : vector<64xf32> to vector<1x1x64xf32>
    %700 = vector.broadcast %699 : vector<1x1x64xf32> to vector<8x8x64xf32>
    %701 = arith.mulf %700, %698 : vector<8x8x64xf32>
    %702 = arith.addf %694, %701 : vector<8x8x64xf32>
    %c42 = arith.constant 42 : index
    %c0_226 = arith.constant 0 : index
    %703 = vector.load %arg4[%c42, %c0_226] : memref<125x64xf32, #tpu.memory_space<vmem>>, vector<1x64xf32>
    %704 = vector.shape_cast %703 : vector<1x64xf32> to vector<64xf32>
    %705 = vector.extract_strided_slice %695 {offsets = [1, 0, 0], sizes = [8, 8, 64], strides = [1, 1, 1]} : vector<12x8x64xf32> to vector<8x8x64xf32>
    %706 = vector.shape_cast %704 : vector<64xf32> to vector<1x1x64xf32>
    %707 = vector.broadcast %706 : vector<1x1x64xf32> to vector<8x8x64xf32>
    %708 = arith.mulf %707, %705 : vector<8x8x64xf32>
    %709 = arith.addf %687, %708 : vector<8x8x64xf32>
    %c67 = arith.constant 67 : index
    %c0_227 = arith.constant 0 : index
    %710 = vector.load %arg4[%c67, %c0_227] : memref<125x64xf32, #tpu.memory_space<vmem>>, vector<1x64xf32>
    %711 = vector.shape_cast %710 : vector<1x64xf32> to vector<64xf32>
    %712 = vector.extract_strided_slice %695 {offsets = [2, 0, 0], sizes = [8, 8, 64], strides = [1, 1, 1]} : vector<12x8x64xf32> to vector<8x8x64xf32>
    %713 = vector.shape_cast %711 : vector<64xf32> to vector<1x1x64xf32>
    %714 = vector.broadcast %713 : vector<1x1x64xf32> to vector<8x8x64xf32>
    %715 = arith.mulf %714, %712 : vector<8x8x64xf32>
    %716 = arith.addf %702, %715 : vector<8x8x64xf32>
    %c92 = arith.constant 92 : index
    %c0_228 = arith.constant 0 : index
    %717 = vector.load %arg4[%c92, %c0_228] : memref<125x64xf32, #tpu.memory_space<vmem>>, vector<1x64xf32>
    %718 = vector.shape_cast %717 : vector<1x64xf32> to vector<64xf32>
    %719 = vector.extract_strided_slice %695 {offsets = [3, 0, 0], sizes = [8, 8, 64], strides = [1, 1, 1]} : vector<12x8x64xf32> to vector<8x8x64xf32>
    %720 = vector.shape_cast %718 : vector<64xf32> to vector<1x1x64xf32>
    %721 = vector.broadcast %720 : vector<1x1x64xf32> to vector<8x8x64xf32>
    %722 = arith.mulf %721, %719 : vector<8x8x64xf32>
    %723 = arith.addf %709, %722 : vector<8x8x64xf32>
    %c117 = arith.constant 117 : index
    %c0_229 = arith.constant 0 : index
    %724 = vector.load %arg4[%c117, %c0_229] : memref<125x64xf32, #tpu.memory_space<vmem>>, vector<1x64xf32>
    %725 = vector.shape_cast %724 : vector<1x64xf32> to vector<64xf32>
    %726 = vector.extract_strided_slice %695 {offsets = [4, 0, 0], sizes = [8, 8, 64], strides = [1, 1, 1]} : vector<12x8x64xf32> to vector<8x8x64xf32>
    %727 = vector.shape_cast %725 : vector<64xf32> to vector<1x1x64xf32>
    %728 = vector.broadcast %727 : vector<1x1x64xf32> to vector<8x8x64xf32>
    %729 = arith.mulf %728, %726 : vector<8x8x64xf32>
    %730 = arith.addf %716, %729 : vector<8x8x64xf32>
    %c0_230 = arith.constant 0 : index
    %c4_231 = arith.constant 4 : index
    %c0_232 = arith.constant 0 : index
    %731 = vector.load %arg11[%c0_230, %c4_231, %c0_232] : memref<12x12x64xf32, #tpu.memory_space<vmem>>, vector<12x8x64xf32>
    %c22_233 = arith.constant 22 : index
    %c0_234 = arith.constant 0 : index
    %732 = vector.load %arg4[%c22_233, %c0_234] : memref<125x64xf32, #tpu.memory_space<vmem>>, vector<1x64xf32>
    %733 = vector.shape_cast %732 : vector<1x64xf32> to vector<64xf32>
    %734 = vector.extract_strided_slice %731 {offsets = [0, 0, 0], sizes = [8, 8, 64], strides = [1, 1, 1]} : vector<12x8x64xf32> to vector<8x8x64xf32>
    %735 = vector.shape_cast %733 : vector<64xf32> to vector<1x1x64xf32>
    %736 = vector.broadcast %735 : vector<1x1x64xf32> to vector<8x8x64xf32>
    %737 = arith.mulf %736, %734 : vector<8x8x64xf32>
    %738 = arith.addf %730, %737 : vector<8x8x64xf32>
    %c47 = arith.constant 47 : index
    %c0_235 = arith.constant 0 : index
    %739 = vector.load %arg4[%c47, %c0_235] : memref<125x64xf32, #tpu.memory_space<vmem>>, vector<1x64xf32>
    %740 = vector.shape_cast %739 : vector<1x64xf32> to vector<64xf32>
    %741 = vector.extract_strided_slice %731 {offsets = [1, 0, 0], sizes = [8, 8, 64], strides = [1, 1, 1]} : vector<12x8x64xf32> to vector<8x8x64xf32>
    %742 = vector.shape_cast %740 : vector<64xf32> to vector<1x1x64xf32>
    %743 = vector.broadcast %742 : vector<1x1x64xf32> to vector<8x8x64xf32>
    %744 = arith.mulf %743, %741 : vector<8x8x64xf32>
    %745 = arith.addf %723, %744 : vector<8x8x64xf32>
    %c72 = arith.constant 72 : index
    %c0_236 = arith.constant 0 : index
    %746 = vector.load %arg4[%c72, %c0_236] : memref<125x64xf32, #tpu.memory_space<vmem>>, vector<1x64xf32>
    %747 = vector.shape_cast %746 : vector<1x64xf32> to vector<64xf32>
    %748 = vector.extract_strided_slice %731 {offsets = [2, 0, 0], sizes = [8, 8, 64], strides = [1, 1, 1]} : vector<12x8x64xf32> to vector<8x8x64xf32>
    %749 = vector.shape_cast %747 : vector<64xf32> to vector<1x1x64xf32>
    %750 = vector.broadcast %749 : vector<1x1x64xf32> to vector<8x8x64xf32>
    %751 = arith.mulf %750, %748 : vector<8x8x64xf32>
    %752 = arith.addf %738, %751 : vector<8x8x64xf32>
    %c97 = arith.constant 97 : index
    %c0_237 = arith.constant 0 : index
    %753 = vector.load %arg4[%c97, %c0_237] : memref<125x64xf32, #tpu.memory_space<vmem>>, vector<1x64xf32>
    %754 = vector.shape_cast %753 : vector<1x64xf32> to vector<64xf32>
    %755 = vector.extract_strided_slice %731 {offsets = [3, 0, 0], sizes = [8, 8, 64], strides = [1, 1, 1]} : vector<12x8x64xf32> to vector<8x8x64xf32>
    %756 = vector.shape_cast %754 : vector<64xf32> to vector<1x1x64xf32>
    %757 = vector.broadcast %756 : vector<1x1x64xf32> to vector<8x8x64xf32>
    %758 = arith.mulf %757, %755 : vector<8x8x64xf32>
    %759 = arith.addf %745, %758 : vector<8x8x64xf32>
    %c122 = arith.constant 122 : index
    %c0_238 = arith.constant 0 : index
    %760 = vector.load %arg4[%c122, %c0_238] : memref<125x64xf32, #tpu.memory_space<vmem>>, vector<1x64xf32>
    %761 = vector.shape_cast %760 : vector<1x64xf32> to vector<64xf32>
    %762 = vector.extract_strided_slice %731 {offsets = [4, 0, 0], sizes = [8, 8, 64], strides = [1, 1, 1]} : vector<12x8x64xf32> to vector<8x8x64xf32>
    %763 = vector.shape_cast %761 : vector<64xf32> to vector<1x1x64xf32>
    %764 = vector.broadcast %763 : vector<1x1x64xf32> to vector<8x8x64xf32>
    %765 = arith.mulf %764, %762 : vector<8x8x64xf32>
    %766 = arith.addf %752, %765 : vector<8x8x64xf32>
    %c0_239 = arith.constant 0 : index
    %c0_240 = arith.constant 0 : index
    %c0_241 = arith.constant 0 : index
    %c24_242 = arith.constant 24 : index
    %767 = vector.load %arg1[%c0_239, %c0_240, %c0_241, %c24_242] : memref<1x12x12x96xf32, #tpu.memory_space<vmem>>, vector<1x12x12x64xf32>
    %768 = vector.shape_cast %767 : vector<1x12x12x64xf32> to vector<12x12x64xf32>
    %c0_243 = arith.constant 0 : index
    %c0_244 = arith.constant 0 : index
    %c0_245 = arith.constant 0 : index
    %769 = vector.load %arg11[%c0_243, %c0_244, %c0_245] : memref<12x12x64xf32, #tpu.memory_space<vmem>>, vector<12x12x64xf32>
    tpu.vector_store %arg11[%c0_243, %c0_244, %c0_245], %768 {strides = array<i32>} : memref<12x12x64xf32, #tpu.memory_space<vmem>>, vector<12x12x64xf32>,
    %c0_246 = arith.constant 0 : index
    %c0_247 = arith.constant 0 : index
    %c0_248 = arith.constant 0 : index
    %770 = vector.load %arg11[%c0_246, %c0_247, %c0_248] : memref<12x12x64xf32, #tpu.memory_space<vmem>>, vector<12x8x64xf32>
    %c3_249 = arith.constant 3 : index
    %c0_250 = arith.constant 0 : index
    %771 = vector.load %arg4[%c3_249, %c0_250] : memref<125x64xf32, #tpu.memory_space<vmem>>, vector<1x64xf32>
    %772 = vector.shape_cast %771 : vector<1x64xf32> to vector<64xf32>
    %773 = vector.extract_strided_slice %770 {offsets = [0, 0, 0], sizes = [8, 8, 64], strides = [1, 1, 1]} : vector<12x8x64xf32> to vector<8x8x64xf32>
    %774 = vector.shape_cast %772 : vector<64xf32> to vector<1x1x64xf32>
    %775 = vector.broadcast %774 : vector<1x1x64xf32> to vector<8x8x64xf32>
    %776 = arith.mulf %775, %773 : vector<8x8x64xf32>
    %777 = arith.addf %766, %776 : vector<8x8x64xf32>
    %c28 = arith.constant 28 : index
    %c0_251 = arith.constant 0 : index
    %778 = vector.load %arg4[%c28, %c0_251] : memref<125x64xf32, #tpu.memory_space<vmem>>, vector<1x64xf32>
    %779 = vector.shape_cast %778 : vector<1x64xf32> to vector<64xf32>
    %780 = vector.extract_strided_slice %770 {offsets = [1, 0, 0], sizes = [8, 8, 64], strides = [1, 1, 1]} : vector<12x8x64xf32> to vector<8x8x64xf32>
    %781 = vector.shape_cast %779 : vector<64xf32> to vector<1x1x64xf32>
    %782 = vector.broadcast %781 : vector<1x1x64xf32> to vector<8x8x64xf32>
    %783 = arith.mulf %782, %780 : vector<8x8x64xf32>
    %784 = arith.addf %759, %783 : vector<8x8x64xf32>
    %c53 = arith.constant 53 : index
    %c0_252 = arith.constant 0 : index
    %785 = vector.load %arg4[%c53, %c0_252] : memref<125x64xf32, #tpu.memory_space<vmem>>, vector<1x64xf32>
    %786 = vector.shape_cast %785 : vector<1x64xf32> to vector<64xf32>
    %787 = vector.extract_strided_slice %770 {offsets = [2, 0, 0], sizes = [8, 8, 64], strides = [1, 1, 1]} : vector<12x8x64xf32> to vector<8x8x64xf32>
    %788 = vector.shape_cast %786 : vector<64xf32> to vector<1x1x64xf32>
    %789 = vector.broadcast %788 : vector<1x1x64xf32> to vector<8x8x64xf32>
    %790 = arith.mulf %789, %787 : vector<8x8x64xf32>
    %791 = arith.addf %777, %790 : vector<8x8x64xf32>
    %c78 = arith.constant 78 : index
    %c0_253 = arith.constant 0 : index
    %792 = vector.load %arg4[%c78, %c0_253] : memref<125x64xf32, #tpu.memory_space<vmem>>, vector<1x64xf32>
    %793 = vector.shape_cast %792 : vector<1x64xf32> to vector<64xf32>
    %794 = vector.extract_strided_slice %770 {offsets = [3, 0, 0], sizes = [8, 8, 64], strides = [1, 1, 1]} : vector<12x8x64xf32> to vector<8x8x64xf32>
    %795 = vector.shape_cast %793 : vector<64xf32> to vector<1x1x64xf32>
    %796 = vector.broadcast %795 : vector<1x1x64xf32> to vector<8x8x64xf32>
    %797 = arith.mulf %796, %794 : vector<8x8x64xf32>
    %798 = arith.addf %784, %797 : vector<8x8x64xf32>
    %c103 = arith.constant 103 : index
    %c0_254 = arith.constant 0 : index
    %799 = vector.load %arg4[%c103, %c0_254] : memref<125x64xf32, #tpu.memory_space<vmem>>, vector<1x64xf32>
    %800 = vector.shape_cast %799 : vector<1x64xf32> to vector<64xf32>
    %801 = vector.extract_strided_slice %770 {offsets = [4, 0, 0], sizes = [8, 8, 64], strides = [1, 1, 1]} : vector<12x8x64xf32> to vector<8x8x64xf32>
    %802 = vector.shape_cast %800 : vector<64xf32> to vector<1x1x64xf32>
    %803 = vector.broadcast %802 : vector<1x1x64xf32> to vector<8x8x64xf32>
    %804 = arith.mulf %803, %801 : vector<8x8x64xf32>
    %805 = arith.addf %791, %804 : vector<8x8x64xf32>
    %c0_255 = arith.constant 0 : index
    %c1_256 = arith.constant 1 : index
    %c0_257 = arith.constant 0 : index
    %806 = vector.load %arg11[%c0_255, %c1_256, %c0_257] : memref<12x12x64xf32, #tpu.memory_space<vmem>>, vector<12x8x64xf32>
    %c8_258 = arith.constant 8 : index
    %c0_259 = arith.constant 0 : index
    %807 = vector.load %arg4[%c8_258, %c0_259] : memref<125x64xf32, #tpu.memory_space<vmem>>, vector<1x64xf32>
    %808 = vector.shape_cast %807 : vector<1x64xf32> to vector<64xf32>
    %809 = vector.extract_strided_slice %806 {offsets = [0, 0, 0], sizes = [8, 8, 64], strides = [1, 1, 1]} : vector<12x8x64xf32> to vector<8x8x64xf32>
    %810 = vector.shape_cast %808 : vector<64xf32> to vector<1x1x64xf32>
    %811 = vector.broadcast %810 : vector<1x1x64xf32> to vector<8x8x64xf32>
    %812 = arith.mulf %811, %809 : vector<8x8x64xf32>
    %813 = arith.addf %805, %812 : vector<8x8x64xf32>
    %c33 = arith.constant 33 : index
    %c0_260 = arith.constant 0 : index
    %814 = vector.load %arg4[%c33, %c0_260] : memref<125x64xf32, #tpu.memory_space<vmem>>, vector<1x64xf32>
    %815 = vector.shape_cast %814 : vector<1x64xf32> to vector<64xf32>
    %816 = vector.extract_strided_slice %806 {offsets = [1, 0, 0], sizes = [8, 8, 64], strides = [1, 1, 1]} : vector<12x8x64xf32> to vector<8x8x64xf32>
    %817 = vector.shape_cast %815 : vector<64xf32> to vector<1x1x64xf32>
    %818 = vector.broadcast %817 : vector<1x1x64xf32> to vector<8x8x64xf32>
    %819 = arith.mulf %818, %816 : vector<8x8x64xf32>
    %820 = arith.addf %798, %819 : vector<8x8x64xf32>
    %c58 = arith.constant 58 : index
    %c0_261 = arith.constant 0 : index
    %821 = vector.load %arg4[%c58, %c0_261] : memref<125x64xf32, #tpu.memory_space<vmem>>, vector<1x64xf32>
    %822 = vector.shape_cast %821 : vector<1x64xf32> to vector<64xf32>
    %823 = vector.extract_strided_slice %806 {offsets = [2, 0, 0], sizes = [8, 8, 64], strides = [1, 1, 1]} : vector<12x8x64xf32> to vector<8x8x64xf32>
    %824 = vector.shape_cast %822 : vector<64xf32> to vector<1x1x64xf32>
    %825 = vector.broadcast %824 : vector<1x1x64xf32> to vector<8x8x64xf32>
    %826 = arith.mulf %825, %823 : vector<8x8x64xf32>
    %827 = arith.addf %813, %826 : vector<8x8x64xf32>
    %c83 = arith.constant 83 : index
    %c0_262 = arith.constant 0 : index
    %828 = vector.load %arg4[%c83, %c0_262] : memref<125x64xf32, #tpu.memory_space<vmem>>, vector<1x64xf32>
    %829 = vector.shape_cast %828 : vector<1x64xf32> to vector<64xf32>
    %830 = vector.extract_strided_slice %806 {offsets = [3, 0, 0], sizes = [8, 8, 64], strides = [1, 1, 1]} : vector<12x8x64xf32> to vector<8x8x64xf32>
    %831 = vector.shape_cast %829 : vector<64xf32> to vector<1x1x64xf32>
    %832 = vector.broadcast %831 : vector<1x1x64xf32> to vector<8x8x64xf32>
    %833 = arith.mulf %832, %830 : vector<8x8x64xf32>
    %834 = arith.addf %820, %833 : vector<8x8x64xf32>
    %c108 = arith.constant 108 : index
    %c0_263 = arith.constant 0 : index
    %835 = vector.load %arg4[%c108, %c0_263] : memref<125x64xf32, #tpu.memory_space<vmem>>, vector<1x64xf32>
    %836 = vector.shape_cast %835 : vector<1x64xf32> to vector<64xf32>
    %837 = vector.extract_strided_slice %806 {offsets = [4, 0, 0], sizes = [8, 8, 64], strides = [1, 1, 1]} : vector<12x8x64xf32> to vector<8x8x64xf32>
    %838 = vector.shape_cast %836 : vector<64xf32> to vector<1x1x64xf32>
    %839 = vector.broadcast %838 : vector<1x1x64xf32> to vector<8x8x64xf32>
    %840 = arith.mulf %839, %837 : vector<8x8x64xf32>
    %841 = arith.addf %827, %840 : vector<8x8x64xf32>
    %c0_264 = arith.constant 0 : index
    %c2_265 = arith.constant 2 : index
    %c0_266 = arith.constant 0 : index
    %842 = vector.load %arg11[%c0_264, %c2_265, %c0_266] : memref<12x12x64xf32, #tpu.memory_space<vmem>>, vector<12x8x64xf32>
    %c13_267 = arith.constant 13 : index
    %c0_268 = arith.constant 0 : index
    %843 = vector.load %arg4[%c13_267, %c0_268] : memref<125x64xf32, #tpu.memory_space<vmem>>, vector<1x64xf32>
    %844 = vector.shape_cast %843 : vector<1x64xf32> to vector<64xf32>
    %845 = vector.extract_strided_slice %842 {offsets = [0, 0, 0], sizes = [8, 8, 64], strides = [1, 1, 1]} : vector<12x8x64xf32> to vector<8x8x64xf32>
    %846 = vector.shape_cast %844 : vector<64xf32> to vector<1x1x64xf32>
    %847 = vector.broadcast %846 : vector<1x1x64xf32> to vector<8x8x64xf32>
    %848 = arith.mulf %847, %845 : vector<8x8x64xf32>
    %849 = arith.addf %841, %848 : vector<8x8x64xf32>
    %c38 = arith.constant 38 : index
    %c0_269 = arith.constant 0 : index
    %850 = vector.load %arg4[%c38, %c0_269] : memref<125x64xf32, #tpu.memory_space<vmem>>, vector<1x64xf32>
    %851 = vector.shape_cast %850 : vector<1x64xf32> to vector<64xf32>
    %852 = vector.extract_strided_slice %842 {offsets = [1, 0, 0], sizes = [8, 8, 64], strides = [1, 1, 1]} : vector<12x8x64xf32> to vector<8x8x64xf32>
    %853 = vector.shape_cast %851 : vector<64xf32> to vector<1x1x64xf32>
    %854 = vector.broadcast %853 : vector<1x1x64xf32> to vector<8x8x64xf32>
    %855 = arith.mulf %854, %852 : vector<8x8x64xf32>
    %856 = arith.addf %834, %855 : vector<8x8x64xf32>
    %c63 = arith.constant 63 : index
    %c0_270 = arith.constant 0 : index
    %857 = vector.load %arg4[%c63, %c0_270] : memref<125x64xf32, #tpu.memory_space<vmem>>, vector<1x64xf32>
    %858 = vector.shape_cast %857 : vector<1x64xf32> to vector<64xf32>
    %859 = vector.extract_strided_slice %842 {offsets = [2, 0, 0], sizes = [8, 8, 64], strides = [1, 1, 1]} : vector<12x8x64xf32> to vector<8x8x64xf32>
    %860 = vector.shape_cast %858 : vector<64xf32> to vector<1x1x64xf32>
    %861 = vector.broadcast %860 : vector<1x1x64xf32> to vector<8x8x64xf32>
    %862 = arith.mulf %861, %859 : vector<8x8x64xf32>
    %863 = arith.addf %849, %862 : vector<8x8x64xf32>
    %c88 = arith.constant 88 : index
    %c0_271 = arith.constant 0 : index
    %864 = vector.load %arg4[%c88, %c0_271] : memref<125x64xf32, #tpu.memory_space<vmem>>, vector<1x64xf32>
    %865 = vector.shape_cast %864 : vector<1x64xf32> to vector<64xf32>
    %866 = vector.extract_strided_slice %842 {offsets = [3, 0, 0], sizes = [8, 8, 64], strides = [1, 1, 1]} : vector<12x8x64xf32> to vector<8x8x64xf32>
    %867 = vector.shape_cast %865 : vector<64xf32> to vector<1x1x64xf32>
    %868 = vector.broadcast %867 : vector<1x1x64xf32> to vector<8x8x64xf32>
    %869 = arith.mulf %868, %866 : vector<8x8x64xf32>
    %870 = arith.addf %856, %869 : vector<8x8x64xf32>
    %c113 = arith.constant 113 : index
    %c0_272 = arith.constant 0 : index
    %871 = vector.load %arg4[%c113, %c0_272] : memref<125x64xf32, #tpu.memory_space<vmem>>, vector<1x64xf32>
    %872 = vector.shape_cast %871 : vector<1x64xf32> to vector<64xf32>
    %873 = vector.extract_strided_slice %842 {offsets = [4, 0, 0], sizes = [8, 8, 64], strides = [1, 1, 1]} : vector<12x8x64xf32> to vector<8x8x64xf32>
    %874 = vector.shape_cast %872 : vector<64xf32> to vector<1x1x64xf32>
    %875 = vector.broadcast %874 : vector<1x1x64xf32> to vector<8x8x64xf32>
    %876 = arith.mulf %875, %873 : vector<8x8x64xf32>
    %877 = arith.addf %863, %876 : vector<8x8x64xf32>
    %c0_273 = arith.constant 0 : index
    %c3_274 = arith.constant 3 : index
    %c0_275 = arith.constant 0 : index
    %878 = vector.load %arg11[%c0_273, %c3_274, %c0_275] : memref<12x12x64xf32, #tpu.memory_space<vmem>>, vector<12x8x64xf32>
    %c18_276 = arith.constant 18 : index
    %c0_277 = arith.constant 0 : index
    %879 = vector.load %arg4[%c18_276, %c0_277] : memref<125x64xf32, #tpu.memory_space<vmem>>, vector<1x64xf32>
    %880 = vector.shape_cast %879 : vector<1x64xf32> to vector<64xf32>
    %881 = vector.extract_strided_slice %878 {offsets = [0, 0, 0], sizes = [8, 8, 64], strides = [1, 1, 1]} : vector<12x8x64xf32> to vector<8x8x64xf32>
    %882 = vector.shape_cast %880 : vector<64xf32> to vector<1x1x64xf32>
    %883 = vector.broadcast %882 : vector<1x1x64xf32> to vector<8x8x64xf32>
    %884 = arith.mulf %883, %881 : vector<8x8x64xf32>
    %885 = arith.addf %877, %884 : vector<8x8x64xf32>
    %c43 = arith.constant 43 : index
    %c0_278 = arith.constant 0 : index
    %886 = vector.load %arg4[%c43, %c0_278] : memref<125x64xf32, #tpu.memory_space<vmem>>, vector<1x64xf32>
    %887 = vector.shape_cast %886 : vector<1x64xf32> to vector<64xf32>
    %888 = vector.extract_strided_slice %878 {offsets = [1, 0, 0], sizes = [8, 8, 64], strides = [1, 1, 1]} : vector<12x8x64xf32> to vector<8x8x64xf32>
    %889 = vector.shape_cast %887 : vector<64xf32> to vector<1x1x64xf32>
    %890 = vector.broadcast %889 : vector<1x1x64xf32> to vector<8x8x64xf32>
    %891 = arith.mulf %890, %888 : vector<8x8x64xf32>
    %892 = arith.addf %870, %891 : vector<8x8x64xf32>
    %c68 = arith.constant 68 : index
    %c0_279 = arith.constant 0 : index
    %893 = vector.load %arg4[%c68, %c0_279] : memref<125x64xf32, #tpu.memory_space<vmem>>, vector<1x64xf32>
    %894 = vector.shape_cast %893 : vector<1x64xf32> to vector<64xf32>
    %895 = vector.extract_strided_slice %878 {offsets = [2, 0, 0], sizes = [8, 8, 64], strides = [1, 1, 1]} : vector<12x8x64xf32> to vector<8x8x64xf32>
    %896 = vector.shape_cast %894 : vector<64xf32> to vector<1x1x64xf32>
    %897 = vector.broadcast %896 : vector<1x1x64xf32> to vector<8x8x64xf32>
    %898 = arith.mulf %897, %895 : vector<8x8x64xf32>
    %899 = arith.addf %885, %898 : vector<8x8x64xf32>
    %c93 = arith.constant 93 : index
    %c0_280 = arith.constant 0 : index
    %900 = vector.load %arg4[%c93, %c0_280] : memref<125x64xf32, #tpu.memory_space<vmem>>, vector<1x64xf32>
    %901 = vector.shape_cast %900 : vector<1x64xf32> to vector<64xf32>
    %902 = vector.extract_strided_slice %878 {offsets = [3, 0, 0], sizes = [8, 8, 64], strides = [1, 1, 1]} : vector<12x8x64xf32> to vector<8x8x64xf32>
    %903 = vector.shape_cast %901 : vector<64xf32> to vector<1x1x64xf32>
    %904 = vector.broadcast %903 : vector<1x1x64xf32> to vector<8x8x64xf32>
    %905 = arith.mulf %904, %902 : vector<8x8x64xf32>
    %906 = arith.addf %892, %905 : vector<8x8x64xf32>
    %c118 = arith.constant 118 : index
    %c0_281 = arith.constant 0 : index
    %907 = vector.load %arg4[%c118, %c0_281] : memref<125x64xf32, #tpu.memory_space<vmem>>, vector<1x64xf32>
    %908 = vector.shape_cast %907 : vector<1x64xf32> to vector<64xf32>
    %909 = vector.extract_strided_slice %878 {offsets = [4, 0, 0], sizes = [8, 8, 64], strides = [1, 1, 1]} : vector<12x8x64xf32> to vector<8x8x64xf32>
    %910 = vector.shape_cast %908 : vector<64xf32> to vector<1x1x64xf32>
    %911 = vector.broadcast %910 : vector<1x1x64xf32> to vector<8x8x64xf32>
    %912 = arith.mulf %911, %909 : vector<8x8x64xf32>
    %913 = arith.addf %899, %912 : vector<8x8x64xf32>
    %c0_282 = arith.constant 0 : index
    %c4_283 = arith.constant 4 : index
    %c0_284 = arith.constant 0 : index
    %914 = vector.load %arg11[%c0_282, %c4_283, %c0_284] : memref<12x12x64xf32, #tpu.memory_space<vmem>>, vector<12x8x64xf32>
    %c23_285 = arith.constant 23 : index
    %c0_286 = arith.constant 0 : index
    %915 = vector.load %arg4[%c23_285, %c0_286] : memref<125x64xf32, #tpu.memory_space<vmem>>, vector<1x64xf32>
    %916 = vector.shape_cast %915 : vector<1x64xf32> to vector<64xf32>
    %917 = vector.extract_strided_slice %914 {offsets = [0, 0, 0], sizes = [8, 8, 64], strides = [1, 1, 1]} : vector<12x8x64xf32> to vector<8x8x64xf32>
    %918 = vector.shape_cast %916 : vector<64xf32> to vector<1x1x64xf32>
    %919 = vector.broadcast %918 : vector<1x1x64xf32> to vector<8x8x64xf32>
    %920 = arith.mulf %919, %917 : vector<8x8x64xf32>
    %921 = arith.addf %913, %920 : vector<8x8x64xf32>
    %c48 = arith.constant 48 : index
    %c0_287 = arith.constant 0 : index
    %922 = vector.load %arg4[%c48, %c0_287] : memref<125x64xf32, #tpu.memory_space<vmem>>, vector<1x64xf32>
    %923 = vector.shape_cast %922 : vector<1x64xf32> to vector<64xf32>
    %924 = vector.extract_strided_slice %914 {offsets = [1, 0, 0], sizes = [8, 8, 64], strides = [1, 1, 1]} : vector<12x8x64xf32> to vector<8x8x64xf32>
    %925 = vector.shape_cast %923 : vector<64xf32> to vector<1x1x64xf32>
    %926 = vector.broadcast %925 : vector<1x1x64xf32> to vector<8x8x64xf32>
    %927 = arith.mulf %926, %924 : vector<8x8x64xf32>
    %928 = arith.addf %906, %927 : vector<8x8x64xf32>
    %c73 = arith.constant 73 : index
    %c0_288 = arith.constant 0 : index
    %929 = vector.load %arg4[%c73, %c0_288] : memref<125x64xf32, #tpu.memory_space<vmem>>, vector<1x64xf32>
    %930 = vector.shape_cast %929 : vector<1x64xf32> to vector<64xf32>
    %931 = vector.extract_strided_slice %914 {offsets = [2, 0, 0], sizes = [8, 8, 64], strides = [1, 1, 1]} : vector<12x8x64xf32> to vector<8x8x64xf32>
    %932 = vector.shape_cast %930 : vector<64xf32> to vector<1x1x64xf32>
    %933 = vector.broadcast %932 : vector<1x1x64xf32> to vector<8x8x64xf32>
    %934 = arith.mulf %933, %931 : vector<8x8x64xf32>
    %935 = arith.addf %921, %934 : vector<8x8x64xf32>
    %c98 = arith.constant 98 : index
    %c0_289 = arith.constant 0 : index
    %936 = vector.load %arg4[%c98, %c0_289] : memref<125x64xf32, #tpu.memory_space<vmem>>, vector<1x64xf32>
    %937 = vector.shape_cast %936 : vector<1x64xf32> to vector<64xf32>
    %938 = vector.extract_strided_slice %914 {offsets = [3, 0, 0], sizes = [8, 8, 64], strides = [1, 1, 1]} : vector<12x8x64xf32> to vector<8x8x64xf32>
    %939 = vector.shape_cast %937 : vector<64xf32> to vector<1x1x64xf32>
    %940 = vector.broadcast %939 : vector<1x1x64xf32> to vector<8x8x64xf32>
    %941 = arith.mulf %940, %938 : vector<8x8x64xf32>
    %942 = arith.addf %928, %941 : vector<8x8x64xf32>
    %c123 = arith.constant 123 : index
    %c0_290 = arith.constant 0 : index
    %943 = vector.load %arg4[%c123, %c0_290] : memref<125x64xf32, #tpu.memory_space<vmem>>, vector<1x64xf32>
    %944 = vector.shape_cast %943 : vector<1x64xf32> to vector<64xf32>
    %945 = vector.extract_strided_slice %914 {offsets = [4, 0, 0], sizes = [8, 8, 64], strides = [1, 1, 1]} : vector<12x8x64xf32> to vector<8x8x64xf32>
    %946 = vector.shape_cast %944 : vector<64xf32> to vector<1x1x64xf32>
    %947 = vector.broadcast %946 : vector<1x1x64xf32> to vector<8x8x64xf32>
    %948 = arith.mulf %947, %945 : vector<8x8x64xf32>
    %949 = arith.addf %935, %948 : vector<8x8x64xf32>
    %c0_291 = arith.constant 0 : index
    %c0_292 = arith.constant 0 : index
    %c0_293 = arith.constant 0 : index
    %c32_294 = arith.constant 32 : index
    %950 = vector.load %arg1[%c0_291, %c0_292, %c0_293, %c32_294] : memref<1x12x12x96xf32, #tpu.memory_space<vmem>>, vector<1x12x12x64xf32>
    %951 = vector.shape_cast %950 : vector<1x12x12x64xf32> to vector<12x12x64xf32>
    %c0_295 = arith.constant 0 : index
    %c0_296 = arith.constant 0 : index
    %c0_297 = arith.constant 0 : index
    %952 = vector.load %arg11[%c0_295, %c0_296, %c0_297] : memref<12x12x64xf32, #tpu.memory_space<vmem>>, vector<12x12x64xf32>
    tpu.vector_store %arg11[%c0_295, %c0_296, %c0_297], %951 {strides = array<i32>} : memref<12x12x64xf32, #tpu.memory_space<vmem>>, vector<12x12x64xf32>,
    %c0_298 = arith.constant 0 : index
    %c0_299 = arith.constant 0 : index
    %c0_300 = arith.constant 0 : index
    %953 = vector.load %arg11[%c0_298, %c0_299, %c0_300] : memref<12x12x64xf32, #tpu.memory_space<vmem>>, vector<12x8x64xf32>
    %c4_301 = arith.constant 4 : index
    %c0_302 = arith.constant 0 : index
    %954 = vector.load %arg4[%c4_301, %c0_302] : memref<125x64xf32, #tpu.memory_space<vmem>>, vector<1x64xf32>
    %955 = vector.shape_cast %954 : vector<1x64xf32> to vector<64xf32>
    %956 = vector.extract_strided_slice %953 {offsets = [0, 0, 0], sizes = [8, 8, 64], strides = [1, 1, 1]} : vector<12x8x64xf32> to vector<8x8x64xf32>
    %957 = vector.shape_cast %955 : vector<64xf32> to vector<1x1x64xf32>
    %958 = vector.broadcast %957 : vector<1x1x64xf32> to vector<8x8x64xf32>
    %959 = arith.mulf %958, %956 : vector<8x8x64xf32>
    %960 = arith.addf %949, %959 : vector<8x8x64xf32>
    %c29 = arith.constant 29 : index
    %c0_303 = arith.constant 0 : index
    %961 = vector.load %arg4[%c29, %c0_303] : memref<125x64xf32, #tpu.memory_space<vmem>>, vector<1x64xf32>
    %962 = vector.shape_cast %961 : vector<1x64xf32> to vector<64xf32>
    %963 = vector.extract_strided_slice %953 {offsets = [1, 0, 0], sizes = [8, 8, 64], strides = [1, 1, 1]} : vector<12x8x64xf32> to vector<8x8x64xf32>
    %964 = vector.shape_cast %962 : vector<64xf32> to vector<1x1x64xf32>
    %965 = vector.broadcast %964 : vector<1x1x64xf32> to vector<8x8x64xf32>
    %966 = arith.mulf %965, %963 : vector<8x8x64xf32>
    %967 = arith.addf %942, %966 : vector<8x8x64xf32>
    %c54 = arith.constant 54 : index
    %c0_304 = arith.constant 0 : index
    %968 = vector.load %arg4[%c54, %c0_304] : memref<125x64xf32, #tpu.memory_space<vmem>>, vector<1x64xf32>
    %969 = vector.shape_cast %968 : vector<1x64xf32> to vector<64xf32>
    %970 = vector.extract_strided_slice %953 {offsets = [2, 0, 0], sizes = [8, 8, 64], strides = [1, 1, 1]} : vector<12x8x64xf32> to vector<8x8x64xf32>
    %971 = vector.shape_cast %969 : vector<64xf32> to vector<1x1x64xf32>
    %972 = vector.broadcast %971 : vector<1x1x64xf32> to vector<8x8x64xf32>
    %973 = arith.mulf %972, %970 : vector<8x8x64xf32>
    %974 = arith.addf %960, %973 : vector<8x8x64xf32>
    %c79 = arith.constant 79 : index
    %c0_305 = arith.constant 0 : index
    %975 = vector.load %arg4[%c79, %c0_305] : memref<125x64xf32, #tpu.memory_space<vmem>>, vector<1x64xf32>
    %976 = vector.shape_cast %975 : vector<1x64xf32> to vector<64xf32>
    %977 = vector.extract_strided_slice %953 {offsets = [3, 0, 0], sizes = [8, 8, 64], strides = [1, 1, 1]} : vector<12x8x64xf32> to vector<8x8x64xf32>
    %978 = vector.shape_cast %976 : vector<64xf32> to vector<1x1x64xf32>
    %979 = vector.broadcast %978 : vector<1x1x64xf32> to vector<8x8x64xf32>
    %980 = arith.mulf %979, %977 : vector<8x8x64xf32>
    %981 = arith.addf %967, %980 : vector<8x8x64xf32>
    %c104 = arith.constant 104 : index
    %c0_306 = arith.constant 0 : index
    %982 = vector.load %arg4[%c104, %c0_306] : memref<125x64xf32, #tpu.memory_space<vmem>>, vector<1x64xf32>
    %983 = vector.shape_cast %982 : vector<1x64xf32> to vector<64xf32>
    %984 = vector.extract_strided_slice %953 {offsets = [4, 0, 0], sizes = [8, 8, 64], strides = [1, 1, 1]} : vector<12x8x64xf32> to vector<8x8x64xf32>
    %985 = vector.shape_cast %983 : vector<64xf32> to vector<1x1x64xf32>
    %986 = vector.broadcast %985 : vector<1x1x64xf32> to vector<8x8x64xf32>
    %987 = arith.mulf %986, %984 : vector<8x8x64xf32>
    %988 = arith.addf %974, %987 : vector<8x8x64xf32>
    %c0_307 = arith.constant 0 : index
    %c1_308 = arith.constant 1 : index
    %c0_309 = arith.constant 0 : index
    %989 = vector.load %arg11[%c0_307, %c1_308, %c0_309] : memref<12x12x64xf32, #tpu.memory_space<vmem>>, vector<12x8x64xf32>
    %c9_310 = arith.constant 9 : index
    %c0_311 = arith.constant 0 : index
    %990 = vector.load %arg4[%c9_310, %c0_311] : memref<125x64xf32, #tpu.memory_space<vmem>>, vector<1x64xf32>
    %991 = vector.shape_cast %990 : vector<1x64xf32> to vector<64xf32>
    %992 = vector.extract_strided_slice %989 {offsets = [0, 0, 0], sizes = [8, 8, 64], strides = [1, 1, 1]} : vector<12x8x64xf32> to vector<8x8x64xf32>
    %993 = vector.shape_cast %991 : vector<64xf32> to vector<1x1x64xf32>
    %994 = vector.broadcast %993 : vector<1x1x64xf32> to vector<8x8x64xf32>
    %995 = arith.mulf %994, %992 : vector<8x8x64xf32>
    %996 = arith.addf %988, %995 : vector<8x8x64xf32>
    %c34 = arith.constant 34 : index
    %c0_312 = arith.constant 0 : index
    %997 = vector.load %arg4[%c34, %c0_312] : memref<125x64xf32, #tpu.memory_space<vmem>>, vector<1x64xf32>
    %998 = vector.shape_cast %997 : vector<1x64xf32> to vector<64xf32>
    %999 = vector.extract_strided_slice %989 {offsets = [1, 0, 0], sizes = [8, 8, 64], strides = [1, 1, 1]} : vector<12x8x64xf32> to vector<8x8x64xf32>
    %1000 = vector.shape_cast %998 : vector<64xf32> to vector<1x1x64xf32>
    %1001 = vector.broadcast %1000 : vector<1x1x64xf32> to vector<8x8x64xf32>
    %1002 = arith.mulf %1001, %999 : vector<8x8x64xf32>
    %1003 = arith.addf %981, %1002 : vector<8x8x64xf32>
    %c59 = arith.constant 59 : index
    %c0_313 = arith.constant 0 : index
    %1004 = vector.load %arg4[%c59, %c0_313] : memref<125x64xf32, #tpu.memory_space<vmem>>, vector<1x64xf32>
    %1005 = vector.shape_cast %1004 : vector<1x64xf32> to vector<64xf32>
    %1006 = vector.extract_strided_slice %989 {offsets = [2, 0, 0], sizes = [8, 8, 64], strides = [1, 1, 1]} : vector<12x8x64xf32> to vector<8x8x64xf32>
    %1007 = vector.shape_cast %1005 : vector<64xf32> to vector<1x1x64xf32>
    %1008 = vector.broadcast %1007 : vector<1x1x64xf32> to vector<8x8x64xf32>
    %1009 = arith.mulf %1008, %1006 : vector<8x8x64xf32>
    %1010 = arith.addf %996, %1009 : vector<8x8x64xf32>
    %c84 = arith.constant 84 : index
    %c0_314 = arith.constant 0 : index
    %1011 = vector.load %arg4[%c84, %c0_314] : memref<125x64xf32, #tpu.memory_space<vmem>>, vector<1x64xf32>
    %1012 = vector.shape_cast %1011 : vector<1x64xf32> to vector<64xf32>
    %1013 = vector.extract_strided_slice %989 {offsets = [3, 0, 0], sizes = [8, 8, 64], strides = [1, 1, 1]} : vector<12x8x64xf32> to vector<8x8x64xf32>
    %1014 = vector.shape_cast %1012 : vector<64xf32> to vector<1x1x64xf32>
    %1015 = vector.broadcast %1014 : vector<1x1x64xf32> to vector<8x8x64xf32>
    %1016 = arith.mulf %1015, %1013 : vector<8x8x64xf32>
    %1017 = arith.addf %1003, %1016 : vector<8x8x64xf32>
    %c109 = arith.constant 109 : index
    %c0_315 = arith.constant 0 : index
    %1018 = vector.load %arg4[%c109, %c0_315] : memref<125x64xf32, #tpu.memory_space<vmem>>, vector<1x64xf32>
    %1019 = vector.shape_cast %1018 : vector<1x64xf32> to vector<64xf32>
    %1020 = vector.extract_strided_slice %989 {offsets = [4, 0, 0], sizes = [8, 8, 64], strides = [1, 1, 1]} : vector<12x8x64xf32> to vector<8x8x64xf32>
    %1021 = vector.shape_cast %1019 : vector<64xf32> to vector<1x1x64xf32>
    %1022 = vector.broadcast %1021 : vector<1x1x64xf32> to vector<8x8x64xf32>
    %1023 = arith.mulf %1022, %1020 : vector<8x8x64xf32>
    %1024 = arith.addf %1010, %1023 : vector<8x8x64xf32>
    %c0_316 = arith.constant 0 : index
    %c2_317 = arith.constant 2 : index
    %c0_318 = arith.constant 0 : index
    %1025 = vector.load %arg11[%c0_316, %c2_317, %c0_318] : memref<12x12x64xf32, #tpu.memory_space<vmem>>, vector<12x8x64xf32>
    %c14_319 = arith.constant 14 : index
    %c0_320 = arith.constant 0 : index
    %1026 = vector.load %arg4[%c14_319, %c0_320] : memref<125x64xf32, #tpu.memory_space<vmem>>, vector<1x64xf32>
    %1027 = vector.shape_cast %1026 : vector<1x64xf32> to vector<64xf32>
    %1028 = vector.extract_strided_slice %1025 {offsets = [0, 0, 0], sizes = [8, 8, 64], strides = [1, 1, 1]} : vector<12x8x64xf32> to vector<8x8x64xf32>
    %1029 = vector.shape_cast %1027 : vector<64xf32> to vector<1x1x64xf32>
    %1030 = vector.broadcast %1029 : vector<1x1x64xf32> to vector<8x8x64xf32>
    %1031 = arith.mulf %1030, %1028 : vector<8x8x64xf32>
    %1032 = arith.addf %1024, %1031 : vector<8x8x64xf32>
    %c39 = arith.constant 39 : index
    %c0_321 = arith.constant 0 : index
    %1033 = vector.load %arg4[%c39, %c0_321] : memref<125x64xf32, #tpu.memory_space<vmem>>, vector<1x64xf32>
    %1034 = vector.shape_cast %1033 : vector<1x64xf32> to vector<64xf32>
    %1035 = vector.extract_strided_slice %1025 {offsets = [1, 0, 0], sizes = [8, 8, 64], strides = [1, 1, 1]} : vector<12x8x64xf32> to vector<8x8x64xf32>
    %1036 = vector.shape_cast %1034 : vector<64xf32> to vector<1x1x64xf32>
    %1037 = vector.broadcast %1036 : vector<1x1x64xf32> to vector<8x8x64xf32>
    %1038 = arith.mulf %1037, %1035 : vector<8x8x64xf32>
    %1039 = arith.addf %1017, %1038 : vector<8x8x64xf32>
    %c64 = arith.constant 64 : index
    %c0_322 = arith.constant 0 : index
    %1040 = vector.load %arg4[%c64, %c0_322] : memref<125x64xf32, #tpu.memory_space<vmem>>, vector<1x64xf32>
    %1041 = vector.shape_cast %1040 : vector<1x64xf32> to vector<64xf32>
    %1042 = vector.extract_strided_slice %1025 {offsets = [2, 0, 0], sizes = [8, 8, 64], strides = [1, 1, 1]} : vector<12x8x64xf32> to vector<8x8x64xf32>
    %1043 = vector.shape_cast %1041 : vector<64xf32> to vector<1x1x64xf32>
    %1044 = vector.broadcast %1043 : vector<1x1x64xf32> to vector<8x8x64xf32>
    %1045 = arith.mulf %1044, %1042 : vector<8x8x64xf32>
    %1046 = arith.addf %1032, %1045 : vector<8x8x64xf32>
    %c89 = arith.constant 89 : index
    %c0_323 = arith.constant 0 : index
    %1047 = vector.load %arg4[%c89, %c0_323] : memref<125x64xf32, #tpu.memory_space<vmem>>, vector<1x64xf32>
    %1048 = vector.shape_cast %1047 : vector<1x64xf32> to vector<64xf32>
    %1049 = vector.extract_strided_slice %1025 {offsets = [3, 0, 0], sizes = [8, 8, 64], strides = [1, 1, 1]} : vector<12x8x64xf32> to vector<8x8x64xf32>
    %1050 = vector.shape_cast %1048 : vector<64xf32> to vector<1x1x64xf32>
    %1051 = vector.broadcast %1050 : vector<1x1x64xf32> to vector<8x8x64xf32>
    %1052 = arith.mulf %1051, %1049 : vector<8x8x64xf32>
    %1053 = arith.addf %1039, %1052 : vector<8x8x64xf32>
    %c114 = arith.constant 114 : index
    %c0_324 = arith.constant 0 : index
    %1054 = vector.load %arg4[%c114, %c0_324] : memref<125x64xf32, #tpu.memory_space<vmem>>, vector<1x64xf32>
    %1055 = vector.shape_cast %1054 : vector<1x64xf32> to vector<64xf32>
    %1056 = vector.extract_strided_slice %1025 {offsets = [4, 0, 0], sizes = [8, 8, 64], strides = [1, 1, 1]} : vector<12x8x64xf32> to vector<8x8x64xf32>
    %1057 = vector.shape_cast %1055 : vector<64xf32> to vector<1x1x64xf32>
    %1058 = vector.broadcast %1057 : vector<1x1x64xf32> to vector<8x8x64xf32>
    %1059 = arith.mulf %1058, %1056 : vector<8x8x64xf32>
    %1060 = arith.addf %1046, %1059 : vector<8x8x64xf32>
    %c0_325 = arith.constant 0 : index
    %c3_326 = arith.constant 3 : index
    %c0_327 = arith.constant 0 : index
    %1061 = vector.load %arg11[%c0_325, %c3_326, %c0_327] : memref<12x12x64xf32, #tpu.memory_space<vmem>>, vector<12x8x64xf32>
    %c19_328 = arith.constant 19 : index
    %c0_329 = arith.constant 0 : index
    %1062 = vector.load %arg4[%c19_328, %c0_329] : memref<125x64xf32, #tpu.memory_space<vmem>>, vector<1x64xf32>
    %1063 = vector.shape_cast %1062 : vector<1x64xf32> to vector<64xf32>
    %1064 = vector.extract_strided_slice %1061 {offsets = [0, 0, 0], sizes = [8, 8, 64], strides = [1, 1, 1]} : vector<12x8x64xf32> to vector<8x8x64xf32>
    %1065 = vector.shape_cast %1063 : vector<64xf32> to vector<1x1x64xf32>
    %1066 = vector.broadcast %1065 : vector<1x1x64xf32> to vector<8x8x64xf32>
    %1067 = arith.mulf %1066, %1064 : vector<8x8x64xf32>
    %1068 = arith.addf %1060, %1067 : vector<8x8x64xf32>
    %c44 = arith.constant 44 : index
    %c0_330 = arith.constant 0 : index
    %1069 = vector.load %arg4[%c44, %c0_330] : memref<125x64xf32, #tpu.memory_space<vmem>>, vector<1x64xf32>
    %1070 = vector.shape_cast %1069 : vector<1x64xf32> to vector<64xf32>
    %1071 = vector.extract_strided_slice %1061 {offsets = [1, 0, 0], sizes = [8, 8, 64], strides = [1, 1, 1]} : vector<12x8x64xf32> to vector<8x8x64xf32>
    %1072 = vector.shape_cast %1070 : vector<64xf32> to vector<1x1x64xf32>
    %1073 = vector.broadcast %1072 : vector<1x1x64xf32> to vector<8x8x64xf32>
    %1074 = arith.mulf %1073, %1071 : vector<8x8x64xf32>
    %1075 = arith.addf %1053, %1074 : vector<8x8x64xf32>
    %c69 = arith.constant 69 : index
    %c0_331 = arith.constant 0 : index
    %1076 = vector.load %arg4[%c69, %c0_331] : memref<125x64xf32, #tpu.memory_space<vmem>>, vector<1x64xf32>
    %1077 = vector.shape_cast %1076 : vector<1x64xf32> to vector<64xf32>
    %1078 = vector.extract_strided_slice %1061 {offsets = [2, 0, 0], sizes = [8, 8, 64], strides = [1, 1, 1]} : vector<12x8x64xf32> to vector<8x8x64xf32>
    %1079 = vector.shape_cast %1077 : vector<64xf32> to vector<1x1x64xf32>
    %1080 = vector.broadcast %1079 : vector<1x1x64xf32> to vector<8x8x64xf32>
    %1081 = arith.mulf %1080, %1078 : vector<8x8x64xf32>
    %1082 = arith.addf %1068, %1081 : vector<8x8x64xf32>
    %c94 = arith.constant 94 : index
    %c0_332 = arith.constant 0 : index
    %1083 = vector.load %arg4[%c94, %c0_332] : memref<125x64xf32, #tpu.memory_space<vmem>>, vector<1x64xf32>
    %1084 = vector.shape_cast %1083 : vector<1x64xf32> to vector<64xf32>
    %1085 = vector.extract_strided_slice %1061 {offsets = [3, 0, 0], sizes = [8, 8, 64], strides = [1, 1, 1]} : vector<12x8x64xf32> to vector<8x8x64xf32>
    %1086 = vector.shape_cast %1084 : vector<64xf32> to vector<1x1x64xf32>
    %1087 = vector.broadcast %1086 : vector<1x1x64xf32> to vector<8x8x64xf32>
    %1088 = arith.mulf %1087, %1085 : vector<8x8x64xf32>
    %1089 = arith.addf %1075, %1088 : vector<8x8x64xf32>
    %c119 = arith.constant 119 : index
    %c0_333 = arith.constant 0 : index
    %1090 = vector.load %arg4[%c119, %c0_333] : memref<125x64xf32, #tpu.memory_space<vmem>>, vector<1x64xf32>
    %1091 = vector.shape_cast %1090 : vector<1x64xf32> to vector<64xf32>
    %1092 = vector.extract_strided_slice %1061 {offsets = [4, 0, 0], sizes = [8, 8, 64], strides = [1, 1, 1]} : vector<12x8x64xf32> to vector<8x8x64xf32>
    %1093 = vector.shape_cast %1091 : vector<64xf32> to vector<1x1x64xf32>
    %1094 = vector.broadcast %1093 : vector<1x1x64xf32> to vector<8x8x64xf32>
    %1095 = arith.mulf %1094, %1092 : vector<8x8x64xf32>
    %1096 = arith.addf %1082, %1095 : vector<8x8x64xf32>
    %c0_334 = arith.constant 0 : index
    %c4_335 = arith.constant 4 : index
    %c0_336 = arith.constant 0 : index
    %1097 = vector.load %arg11[%c0_334, %c4_335, %c0_336] : memref<12x12x64xf32, #tpu.memory_space<vmem>>, vector<12x8x64xf32>
    %c24_337 = arith.constant 24 : index
    %c0_338 = arith.constant 0 : index
    %1098 = vector.load %arg4[%c24_337, %c0_338] : memref<125x64xf32, #tpu.memory_space<vmem>>, vector<1x64xf32>
    %1099 = vector.shape_cast %1098 : vector<1x64xf32> to vector<64xf32>
    %1100 = vector.extract_strided_slice %1097 {offsets = [0, 0, 0], sizes = [8, 8, 64], strides = [1, 1, 1]} : vector<12x8x64xf32> to vector<8x8x64xf32>
    %1101 = vector.shape_cast %1099 : vector<64xf32> to vector<1x1x64xf32>
    %1102 = vector.broadcast %1101 : vector<1x1x64xf32> to vector<8x8x64xf32>
    %1103 = arith.mulf %1102, %1100 : vector<8x8x64xf32>
    %1104 = arith.addf %1096, %1103 : vector<8x8x64xf32>
    %c49 = arith.constant 49 : index
    %c0_339 = arith.constant 0 : index
    %1105 = vector.load %arg4[%c49, %c0_339] : memref<125x64xf32, #tpu.memory_space<vmem>>, vector<1x64xf32>
    %1106 = vector.shape_cast %1105 : vector<1x64xf32> to vector<64xf32>
    %1107 = vector.extract_strided_slice %1097 {offsets = [1, 0, 0], sizes = [8, 8, 64], strides = [1, 1, 1]} : vector<12x8x64xf32> to vector<8x8x64xf32>
    %1108 = vector.shape_cast %1106 : vector<64xf32> to vector<1x1x64xf32>
    %1109 = vector.broadcast %1108 : vector<1x1x64xf32> to vector<8x8x64xf32>
    %1110 = arith.mulf %1109, %1107 : vector<8x8x64xf32>
    %1111 = arith.addf %1089, %1110 : vector<8x8x64xf32>
    %c74 = arith.constant 74 : index
    %c0_340 = arith.constant 0 : index
    %1112 = vector.load %arg4[%c74, %c0_340] : memref<125x64xf32, #tpu.memory_space<vmem>>, vector<1x64xf32>
    %1113 = vector.shape_cast %1112 : vector<1x64xf32> to vector<64xf32>
    %1114 = vector.extract_strided_slice %1097 {offsets = [2, 0, 0], sizes = [8, 8, 64], strides = [1, 1, 1]} : vector<12x8x64xf32> to vector<8x8x64xf32>
    %1115 = vector.shape_cast %1113 : vector<64xf32> to vector<1x1x64xf32>
    %1116 = vector.broadcast %1115 : vector<1x1x64xf32> to vector<8x8x64xf32>
    %1117 = arith.mulf %1116, %1114 : vector<8x8x64xf32>
    %1118 = arith.addf %1104, %1117 : vector<8x8x64xf32>
    %c99 = arith.constant 99 : index
    %c0_341 = arith.constant 0 : index
    %1119 = vector.load %arg4[%c99, %c0_341] : memref<125x64xf32, #tpu.memory_space<vmem>>, vector<1x64xf32>
    %1120 = vector.shape_cast %1119 : vector<1x64xf32> to vector<64xf32>
    %1121 = vector.extract_strided_slice %1097 {offsets = [3, 0, 0], sizes = [8, 8, 64], strides = [1, 1, 1]} : vector<12x8x64xf32> to vector<8x8x64xf32>
    %1122 = vector.shape_cast %1120 : vector<64xf32> to vector<1x1x64xf32>
    %1123 = vector.broadcast %1122 : vector<1x1x64xf32> to vector<8x8x64xf32>
    %1124 = arith.mulf %1123, %1121 : vector<8x8x64xf32>
    %1125 = arith.addf %1111, %1124 : vector<8x8x64xf32>
    %c124 = arith.constant 124 : index
    %c0_342 = arith.constant 0 : index
    %1126 = vector.load %arg4[%c124, %c0_342] : memref<125x64xf32, #tpu.memory_space<vmem>>, vector<1x64xf32>
    %1127 = vector.shape_cast %1126 : vector<1x64xf32> to vector<64xf32>
    %1128 = vector.extract_strided_slice %1097 {offsets = [4, 0, 0], sizes = [8, 8, 64], strides = [1, 1, 1]} : vector<12x8x64xf32> to vector<8x8x64xf32>
    %1129 = vector.shape_cast %1127 : vector<64xf32> to vector<1x1x64xf32>
    %1130 = vector.broadcast %1129 : vector<1x1x64xf32> to vector<8x8x64xf32>
    %1131 = arith.mulf %1130, %1128 : vector<8x8x64xf32>
    %1132 = arith.addf %1118, %1131 : vector<8x8x64xf32>
    %1133 = arith.addf %1132, %1125 : vector<8x8x64xf32>
    %c0_343 = arith.constant 0 : index
    %c0_344 = arith.constant 0 : index
    %1134 = vector.load %arg5[%c0_343, %c0_344] : memref<1x64xf32, #tpu.memory_space<vmem>>, vector<1x64xf32>
    %1135 = vector.shape_cast %1134 : vector<1x64xf32> to vector<1x1x64xf32>
    %1136 = vector.broadcast %1135 : vector<1x1x64xf32> to vector<8x8x64xf32>
    %1137 = arith.addf %1133, %1136 : vector<8x8x64xf32>
    %cst_345 = arith.constant 0.000000e+00 : f32
    %1138 = vector.broadcast %cst_345 : f32 to vector<8x8x64xf32>
    %1139 = arith.maximumf %1137, %1138 : vector<8x8x64xf32>
    %cst_346 = arith.constant dense<0.000000e+00> : vector<8x64xf32>
    %1140 = vector.multi_reduction <add>, %215, %cst_346 [0] : vector<8x8x64xf32> to vector<8x64xf32>
    %cst_347 = arith.constant dense<0.000000e+00> : vector<64xf32>
    %1141 = vector.multi_reduction <add>, %1140, %cst_347 [0] : vector<8x64xf32> to vector<64xf32>
    %1142 = vector.shape_cast %1141 : vector<64xf32> to vector<1x64xf32>
    %cst_348 = arith.constant dense<0.000000e+00> : vector<8x64xf32>
    %1143 = vector.multi_reduction <add>, %1139, %cst_348 [0] : vector<8x8x64xf32> to vector<8x64xf32>
    %cst_349 = arith.constant dense<0.000000e+00> : vector<64xf32>
    %1144 = vector.multi_reduction <add>, %1143, %cst_349 [0] : vector<8x64xf32> to vector<64xf32>
    %1145 = vector.shape_cast %1144 : vector<64xf32> to vector<1x64xf32>
    %1146 = arith.addf %1142, %1145 : vector<1x64xf32>
    %cst_350 = arith.constant 0.001953125 : f32
    %1147 = vector.broadcast %cst_350 : f32 to vector<1x64xf32>
    %1148 = arith.mulf %1146, %1147 : vector<1x64xf32>
    %c0_351 = arith.constant 0 : index
    %c0_352 = arith.constant 0 : index
    %1149 = vector.load %arg6[%c0_351, %c0_352] : memref<64x32xf32, #tpu.memory_space<vmem>>, vector<64x32xf32>
    %cst_353 = arith.constant dense<0.000000e+00> : vector<1x32xf32>
    %1150 = tpu.matmul %1148, %1149, %cst_353 {dimension_numbers = #tpu.dot_dimension_numbers<[1], [0], [0], [1], [0, 0, 1, 1], [], []>} : vector<1x64xf32>, vector<64x32xf32>, vector<1x32xf32> -> vector<1x32xf32>
    %c0_354 = arith.constant 0 : index
    %c0_355 = arith.constant 0 : index
    %1151 = vector.load %arg7[%c0_354, %c0_355] : memref<1x32xf32, #tpu.memory_space<vmem>>, vector<1x32xf32>
    %1152 = arith.addf %1150, %1151 : vector<1x32xf32>
    %cst_356 = arith.constant 0.000000e+00 : f32
    %1153 = vector.broadcast %cst_356 : f32 to vector<1x32xf32>
    %1154 = arith.maximumf %1152, %1153 : vector<1x32xf32>
    %c0_357 = arith.constant 0 : index
    %c0_358 = arith.constant 0 : index
    %1155 = vector.load %arg8[%c0_357, %c0_358] : memref<32x128xf32, #tpu.memory_space<vmem>>, vector<32x128xf32>
    %cst_359 = arith.constant dense<0.000000e+00> : vector<1x128xf32>
    %1156 = tpu.matmul %1154, %1155, %cst_359 {dimension_numbers = #tpu.dot_dimension_numbers<[1], [0], [0], [1], [0, 0, 1, 1], [], []>} : vector<1x32xf32>, vector<32x128xf32>, vector<1x128xf32> -> vector<1x128xf32>
    %c0_360 = arith.constant 0 : index
    %c0_361 = arith.constant 0 : index
    %1157 = vector.load %arg9[%c0_360, %c0_361] : memref<1x128xf32, #tpu.memory_space<vmem>>, vector<1x128xf32>
    %1158 = arith.addf %1156, %1157 : vector<1x128xf32>
    %1159 = vector.extract_strided_slice %1158 {offsets = [0, 0], sizes = [1, 64], strides = [1, 1]} : vector<1x128xf32> to vector<1x64xf32>
    %1160 = vector.extract_strided_slice %1158 {offsets = [0, 64], sizes = [1, 64], strides = [1, 1]} : vector<1x128xf32> to vector<1x64xf32>
    %1161 = arith.maximumf %1159, %1160 : vector<1x64xf32>
    %1162 = arith.subf %1159, %1161 : vector<1x64xf32>
    %1163 = math.exp %1162 : vector<1x64xf32>
    %1164 = arith.subf %1160, %1161 : vector<1x64xf32>
    %1165 = math.exp %1164 : vector<1x64xf32>
    %1166 = arith.addf %1163, %1165 : vector<1x64xf32>
    %cst_362 = arith.constant 1.000000e+00 : f32
    %1167 = vector.broadcast %cst_362 : f32 to vector<1x64xf32>
    %1168 = arith.divf %1167, %1166 : vector<1x64xf32>
    %1169 = arith.mulf %1163, %1168 : vector<1x64xf32>
    %1170 = arith.mulf %1165, %1168 : vector<1x64xf32>
    %1171 = vector.shape_cast %1169 : vector<1x64xf32> to vector<1x1x64xf32>
    %1172 = vector.broadcast %1171 : vector<1x1x64xf32> to vector<8x8x64xf32>
    %1173 = arith.mulf %1172, %215 : vector<8x8x64xf32>
    %1174 = vector.shape_cast %1170 : vector<1x64xf32> to vector<1x1x64xf32>
    %1175 = vector.broadcast %1174 : vector<1x1x64xf32> to vector<8x8x64xf32>
    %1176 = arith.mulf %1175, %1139 : vector<8x8x64xf32>
    %1177 = arith.addf %1173, %1176 : vector<8x8x64xf32>
    %c0_363 = arith.constant 0 : index
    %c0_364 = arith.constant 0 : index
    %c0_365 = arith.constant 0 : index
    %c0_366 = arith.constant 0 : index
    %1178 = vector.load %arg10[%c0_363, %c0_364, %c0_365, %c0_366] : memref<1x8x8x64xf32, #tpu.memory_space<vmem>>, vector<1x8x8x64xf32>
    %1179 = vector.shape_cast %1178 : vector<1x8x8x64xf32> to vector<8x8x64xf32>
    %1180 = vector.shape_cast %1177 : vector<8x8x64xf32> to vector<1x8x8x64xf32>
    tpu.vector_store %arg10[%c0_363, %c0_364, %c0_365, %c0_366], %1180 {strides = array<i32>} : memref<1x8x8x64xf32, #tpu.memory_space<vmem>>, vector<1x8x8x64xf32>,
    return
  }
  func.func @transform_0(%arg0: i32) -> (i32, i32, i32, i32) {
    %c0_i32 = arith.constant 0 : i32
    %c0_i32_0 = arith.constant 0 : i32
    %c0_i32_1 = arith.constant 0 : i32
    %c0_i32_2 = arith.constant 0 : i32
    return %arg0, %c0_i32, %c0_i32_0, %c0_i32_1 : i32, i32, i32, i32
  }
  func.func @transform_1(%arg0: i32) -> (i32, i32) {
    %c0_i32 = arith.constant 0 : i32
    %c0_i32_0 = arith.constant 0 : i32
    %c0_i32_1 = arith.constant 0 : i32
    return %c0_i32, %c0_i32_0 : i32, i32
  }
  func.func @transform_2(%arg0: i32) -> (i32, i32) {
    %c0_i32 = arith.constant 0 : i32
    %c0_i32_0 = arith.constant 0 : i32
    %c0_i32_1 = arith.constant 0 : i32
    return %c0_i32, %c0_i32_0 : i32, i32
  }
  func.func @transform_3(%arg0: i32) -> (i32, i32) {
    %c0_i32 = arith.constant 0 : i32
    %c0_i32_0 = arith.constant 0 : i32
    %c0_i32_1 = arith.constant 0 : i32
    return %c0_i32, %c0_i32_0 : i32, i32
  }
  func.func @transform_4(%arg0: i32) -> (i32, i32) {
    %c0_i32 = arith.constant 0 : i32
    %c0_i32_0 = arith.constant 0 : i32
    %c0_i32_1 = arith.constant 0 : i32
    return %c0_i32, %c0_i32_0 : i32, i32
  }
  func.func @transform_5(%arg0: i32) -> (i32, i32) {
    %c0_i32 = arith.constant 0 : i32
    %c0_i32_0 = arith.constant 0 : i32
    %c0_i32_1 = arith.constant 0 : i32
    return %c0_i32, %c0_i32_0 : i32, i32
  }
  func.func @transform_6(%arg0: i32) -> (i32, i32) {
    %c0_i32 = arith.constant 0 : i32
    %c0_i32_0 = arith.constant 0 : i32
    %c0_i32_1 = arith.constant 0 : i32
    return %c0_i32, %c0_i32_0 : i32, i32
  }
  func.func @transform_7(%arg0: i32) -> (i32, i32) {
    %c0_i32 = arith.constant 0 : i32
    %c0_i32_0 = arith.constant 0 : i32
    %c0_i32_1 = arith.constant 0 : i32
    return %c0_i32, %c0_i32_0 : i32, i32
  }
  func.func @transform_8(%arg0: i32) -> (i32, i32) {
    %c0_i32 = arith.constant 0 : i32
    %c0_i32_0 = arith.constant 0 : i32
    %c0_i32_1 = arith.constant 0 : i32
    return %c0_i32, %c0_i32_0 : i32, i32
  }
  func.func @transform_9(%arg0: i32) -> (i32, i32, i32, i32) {
    %c0_i32 = arith.constant 0 : i32
    %c0_i32_0 = arith.constant 0 : i32
    %c0_i32_1 = arith.constant 0 : i32
    %c0_i32_2 = arith.constant 0 : i32
    return %arg0, %c0_i32, %c0_i32_0, %c0_i32_1 : i32, i32, i32, i32
  }
}

</mosaic_0001>

<llo_original>
// kernel: tpu_custom_call.1
$region0: #{tpu_custom_call.1}
  #allocation0 [shape = 'u32[]', space=smem, size = 0x4, offset = 0x4, fixed_abs, tag = 'smem constant byte address 0x4 - core index']
  #allocation1 [shape = 'u32[144,128]{1,0:T(1,128)}', space=vmem, size = 0x12000, scoped, tag = 'internal scratch']
  #allocation2 [shape = 'f32[12,12,64]{2,1,0:T(8,128)}', space=vmem, size = 0x18000, scoped, tag = 'scratch operand']
  %s0 = inlined_call_operand.vmem [shape: f32[2,12,12,96], index: 0, kind: input, shape index: {}]
  %s1 = inlined_call_operand.vmem [shape: f32[27,64], index: 1, kind: input, shape index: {}]
  %s2 = inlined_call_operand.vmem [shape: f32[1,64], index: 2, kind: input, shape index: {}]
  %s3 = inlined_call_operand.vmem [shape: f32[125,64], index: 3, kind: input, shape index: {}]
  %s4 = inlined_call_operand.vmem [shape: f32[1,64], index: 4, kind: input, shape index: {}]
  %s5 = inlined_call_operand.vmem [shape: f32[64,32], index: 5, kind: input, shape index: {}]
  %s6 = inlined_call_operand.vmem [shape: f32[1,32], index: 6, kind: input, shape index: {}]
  %s7 = inlined_call_operand.vmem [shape: f32[32,128], index: 7, kind: input, shape index: {}]
  %s8 = inlined_call_operand.vmem [shape: f32[1,128], index: 8, kind: input, shape index: {}]
  %s9 = inlined_call_operand.hbm [shape: f32[2,8,8,64], index: 9, kind: output, shape index: {}]
  %s10 = sld [smem:[#allocation0]]
  $region69: #{tpu_custom_call.1} parent=0
    _
  %s12 = ssub.s32 1, %s10
  %s13 = scalar_select 0, %s12, %s10
  $region1: #{tpu_custom_call.1} parent=0
    #allocation3 [shape = 'u8[65536]{0}', space=vmem, size = 0x10000, scoped, tag = 'output window, operand 0']
    #allocation4 [shape = 's32[2]{0}', space=sflag, size = 0x8, scoped, tag = 'scoped memory for tpu_custom_call.1']
    %14 = vsyncpa [#allocation4], 0
    %s15 = scalar_lea.sflag [#allocation4], 1
    %16 = vsyncpa %s15, 0
    loop: start=0, step=1, limit=4
    $region2: #{tpu_custom_call.1} parent=1 // loop_pre_header
      _
    $region3: #{tpu_custom_call.1} parent=1 // loop_header
      %s18 = sphi 0, %s22
      %p19 = scmp.ge.s32.totalorder %s18, 4
      %s28 = sphi 0, %s30
      %s31 = sphi 0, %s28
      %s32 = sphi 0, %s31
      %s48 = sphi 0, %s32
      %s52 = sphi 0, %s52
      %s54 = sphi 0, %s52
      %s55 = sphi 0, %s54
      %s69 = sphi 0, %s55
      %s73 = sphi 0, %s73
      %s75 = sphi 0, %s73
      %s76 = sphi 0, %s75
      %s90 = sphi 0, %s76
      %s94 = sphi 0, %s94
      %s96 = sphi 0, %s94
      %s97 = sphi 0, %s96
      %s111 = sphi 0, %s97
      %s115 = sphi 0, %s115
      %s117 = sphi 0, %s115
      %s118 = sphi 0, %s117
      %s132 = sphi 0, %s118
      %s136 = sphi 0, %s136
      %s138 = sphi 0, %s136
      %s139 = sphi 0, %s138
      %s153 = sphi 0, %s139
      %s157 = sphi 0, %s157
      %s159 = sphi 0, %s157
      %s160 = sphi 0, %s159
      %s174 = sphi 0, %s160
      %s178 = sphi 0, %s178
      %s180 = sphi 0, %s178
      %s181 = sphi 0, %s180
      %s195 = sphi 0, %s181
      %s199 = sphi 0, %s199
      %s201 = sphi 0, %s199
      %s202 = sphi 0, %s201
      %s216 = sphi 0, %s202
      %s222 = sphi 0, %s224
      %s225 = sphi 0, %s222
      %s226 = sphi 0, %s225
      %s242 = sphi 0, %s226
    $region4: #{tpu_custom_call.1} parent=1 // loop_header_branch
      %21 = sbr.rel (%p19) target = $region8
    $region5: #{tpu_custom_call.1} parent=1 // loop_body
      %s23 = ssub.s32 %s18, 1
      %s24 = ssub.s32 %s18, 2
      %s25 = sadd.s32 %s18, 1
      %s26 = ssub.s32 %s18, %s25
      %p27 = scmp.eq.s32.totalorder %s26, 0
      %s29 = sadd.s32 %s28, 1
      %s30 = scalar_select %p27, %s28, %s29
      %p33 = pneg %p27
      %p34 = scmp.eq.s32.totalorder %s18, 1
      %p35 = por %p33, %p34
      %p36 = scmp.ne.s32.totalorder %s28, %s31
      %p37 = scmp.eq.s32.totalorder %s18, 0
      %p38 = por %p36, %p37
      %p39 = scmp.ne.s32.totalorder %s28, %s31
      %p40 = scmp.eq.s32.totalorder %s23, 1
      %p41 = por %p39, %p40
      %p42 = scmp.ne.s32.totalorder %s31, %s32
      %p43 = scmp.eq.s32.totalorder %s23, 0
      %p44 = por %p42, %p43
      %p45 = scmp.ne.s32.totalorder %s31, %s32
      %p46 = scmp.eq.s32.totalorder %s24, 1
      %p47 = por %p45, %p46
      %p49 = scmp.ne.s32.totalorder %s32, %s48
      %p50 = scmp.eq.s32.totalorder %s24, 0
      %p51 = por %p49, %p50
      %s53 = sadd.s32 %s52, 1
      %p56 = scmp.eq.s32.totalorder %s18, 1
      %p57 = scmp.ne.s32.totalorder %s52, %s54
      %p58 = scmp.eq.s32.totalorder %s18, 0
      %p59 = por %p57, %p58
      %p60 = scmp.ne.s32.totalorder %s52, %s54
      %p61 = scmp.eq.s32.totalorder %s23, 1
      %p62 = por %p60, %p61
      %p63 = scmp.ne.s32.totalorder %s54, %s55
      %p64 = scmp.eq.s32.totalorder %s23, 0
      %p65 = por %p63, %p64
      %p66 = scmp.ne.s32.totalorder %s54, %s55
      %p67 = scmp.eq.s32.totalorder %s24, 1
      %p68 = por %p66, %p67
      %p70 = scmp.ne.s32.totalorder %s55, %s69
      %p71 = scmp.eq.s32.totalorder %s24, 0
      %p72 = por %p70, %p71
      %s74 = sadd.s32 %s73, 1
      %p77 = scmp.eq.s32.totalorder %s18, 1
      %p78 = scmp.ne.s32.totalorder %s73, %s75
      %p79 = scmp.eq.s32.totalorder %s18, 0
      %p80 = por %p78, %p79
      %p81 = scmp.ne.s32.totalorder %s73, %s75
      %p82 = scmp.eq.s32.totalorder %s23, 1
      %p83 = por %p81, %p82
      %p84 = scmp.ne.s32.totalorder %s75, %s76
      %p85 = scmp.eq.s32.totalorder %s23, 0
      %p86 = por %p84, %p85
      %p87 = scmp.ne.s32.totalorder %s75, %s76
      %p88 = scmp.eq.s32.totalorder %s24, 1
      %p89 = por %p87, %p88
      %p91 = scmp.ne.s32.totalorder %s76, %s90
      %p92 = scmp.eq.s32.totalorder %s24, 0
      %p93 = por %p91, %p92
      %s95 = sadd.s32 %s94, 1
      %p98 = scmp.eq.s32.totalorder %s18, 1
      %p99 = scmp.ne.s32.totalorder %s94, %s96
      %p100 = scmp.eq.s32.totalorder %s18, 0
      %p101 = por %p99, %p100
      %p102 = scmp.ne.s32.totalorder %s94, %s96
      %p103 = scmp.eq.s32.totalorder %s23, 1
      %p104 = por %p102, %p103
      %p105 = scmp.ne.s32.totalorder %s96, %s97
      %p106 = scmp.eq.s32.totalorder %s23, 0
      %p107 = por %p105, %p106
      %p108 = scmp.ne.s32.totalorder %s96, %s97
      %p109 = scmp.eq.s32.totalorder %s24, 1
      %p110 = por %p108, %p109
      %p112 = scmp.ne.s32.totalorder %s97, %s111
      %p113 = scmp.eq.s32.totalorder %s24, 0
      %p114 = por %p112, %p113
      %s116 = sadd.s32 %s115, 1
      %p119 = scmp.eq.s32.totalorder %s18, 1
      %p120 = scmp.ne.s32.totalorder %s115, %s117
      %p121 = scmp.eq.s32.totalorder %s18, 0
      %p122 = por %p120, %p121
      %p123 = scmp.ne.s32.totalorder %s115, %s117
      %p124 = scmp.eq.s32.totalorder %s23, 1
      %p125 = por %p123, %p124
      %p126 = scmp.ne.s32.totalorder %s117, %s118
      %p127 = scmp.eq.s32.totalorder %s23, 0
      %p128 = por %p126, %p127
      %p129 = scmp.ne.s32.totalorder %s117, %s118
      %p130 = scmp.eq.s32.totalorder %s24, 1
      %p131 = por %p129, %p130
      %p133 = scmp.ne.s32.totalorder %s118, %s132
      %p134 = scmp.eq.s32.totalorder %s24, 0
      %p135 = por %p133, %p134
      %s137 = sadd.s32 %s136, 1
      %p140 = scmp.eq.s32.totalorder %s18, 1
      %p141 = scmp.ne.s32.totalorder %s136, %s138
      %p142 = scmp.eq.s32.totalorder %s18, 0
      %p143 = por %p141, %p142
      %p144 = scmp.ne.s32.totalorder %s136, %s138
      %p145 = scmp.eq.s32.totalorder %s23, 1
      %p146 = por %p144, %p145
      %p147 = scmp.ne.s32.totalorder %s138, %s139
      %p148 = scmp.eq.s32.totalorder %s23, 0
      %p149 = por %p147, %p148
      %p150 = scmp.ne.s32.totalorder %s138, %s139
      %p151 = scmp.eq.s32.totalorder %s24, 1
      %p152 = por %p150, %p151
      %p154 = scmp.ne.s32.totalorder %s139, %s153
      %p155 = scmp.eq.s32.totalorder %s24, 0
      %p156 = por %p154, %p155
      %s158 = sadd.s32 %s157, 1
      %p161 = scmp.eq.s32.totalorder %s18, 1
      %p162 = scmp.ne.s32.totalorder %s157, %s159
      %p163 = scmp.eq.s32.totalorder %s18, 0
      %p164 = por %p162, %p163
      %p165 = scmp.ne.s32.totalorder %s157, %s159
      %p166 = scmp.eq.s32.totalorder %s23, 1
      %p167 = por %p165, %p166
      %p168 = scmp.ne.s32.totalorder %s159, %s160
      %p169 = scmp.eq.s32.totalorder %s23, 0
      %p170 = por %p168, %p169
      %p171 = scmp.ne.s32.totalorder %s159, %s160
      %p172 = scmp.eq.s32.totalorder %s24, 1
      %p173 = por %p171, %p172
      %p175 = scmp.ne.s32.totalorder %s160, %s174
      %p176 = scmp.eq.s32.totalorder %s24, 0
      %p177 = por %p175, %p176
      %s179 = sadd.s32 %s178, 1
      %p182 = scmp.eq.s32.totalorder %s18, 1
      %p183 = scmp.ne.s32.totalorder %s178, %s180
      %p184 = scmp.eq.s32.totalorder %s18, 0
      %p185 = por %p183, %p184
      %p186 = scmp.ne.s32.totalorder %s178, %s180
      %p187 = scmp.eq.s32.totalorder %s23, 1
      %p188 = por %p186, %p187
      %p189 = scmp.ne.s32.totalorder %s180, %s181
      %p190 = scmp.eq.s32.totalorder %s23, 0
      %p191 = por %p189, %p190
      %p192 = scmp.ne.s32.totalorder %s180, %s181
      %p193 = scmp.eq.s32.totalorder %s24, 1
      %p194 = por %p192, %p193
      %p196 = scmp.ne.s32.totalorder %s181, %s195
      %p197 = scmp.eq.s32.totalorder %s24, 0
      %p198 = por %p196, %p197
      %s200 = sadd.s32 %s199, 1
      %p203 = scmp.eq.s32.totalorder %s18, 1
      %p204 = scmp.ne.s32.totalorder %s199, %s201
      %p205 = scmp.eq.s32.totalorder %s18, 0
      %p206 = por %p204, %p205
      %p207 = scmp.ne.s32.totalorder %s199, %s201
      %p208 = scmp.eq.s32.totalorder %s23, 1
      %p209 = por %p207, %p208
      %p210 = scmp.ne.s32.totalorder %s201, %s202
      %p211 = scmp.eq.s32.totalorder %s23, 0
      %p212 = por %p210, %p211
      %p213 = scmp.ne.s32.totalorder %s201, %s202
      %p214 = scmp.eq.s32.totalorder %s24, 1
      %p215 = por %p213, %p214
      %p217 = scmp.ne.s32.totalorder %s202, %s216
      %p218 = scmp.eq.s32.totalorder %s24, 0
      %p219 = por %p217, %p218
      %s220 = ssub.s32 %s18, %s25
      %p221 = scmp.eq.s32.totalorder %s220, 0
      %s223 = sadd.s32 %s222, 1
      %s224 = scalar_select %p221, %s222, %s223
      %p227 = pneg %p221
      %p228 = scmp.eq.s32.totalorder %s18, 1
      %p229 = por %p227, %p228
      %p230 = scmp.ne.s32.totalorder %s222, %s225
      %p231 = scmp.eq.s32.totalorder %s18, 0
      %p232 = por %p230, %p231
      %p233 = scmp.ne.s32.totalorder %s222, %s225
      %p234 = scmp.eq.s32.totalorder %s23, 1
      %p235 = por %p233, %p234
      %p236 = scmp.ne.s32.totalorder %s225, %s226
      %p237 = scmp.eq.s32.totalorder %s23, 0
      %p238 = por %p236, %p237
      %p239 = scmp.ne.s32.totalorder %s225, %s226
      %p240 = scmp.eq.s32.totalorder %s24, 1
      %p241 = por %p239, %p240
      %p243 = scmp.ne.s32.totalorder %s226, %s242
      %p244 = scmp.eq.s32.totalorder %s24, 0
      %p245 = por %p243, %p244
      %p246 = scmp.le.s32.totalorder 1, %s18
      %p247 = scmp.lt.s32.totalorder %s18, 3
      %p248 = pnand %p246, %p247
      %p249 = pneg %p248
      // Predicated region
      $region9: #{tpu_custom_call.1} parent=5 // pred_check
        _
      $region10: #{tpu_custom_call.1} parent=5 // pred_check_branch
        %251 = sbr.rel (%p248) target = $region12
      $region11: #{tpu_custom_call.1} parent=5 // pred_region
        %s252 = ssub.s32 %s18, 1
        // Predicated region
        $region13: #{tpu_custom_call.1} parent=11 // pred_check
          %p253 = pneg %p65
        $region14: #{tpu_custom_call.1} parent=11 // pred_check_branch
          %255 = sbr.rel (%p253) target = $region16
        $region15: #{tpu_custom_call.1} parent=11 // pred_region
          _
        $region16: #{tpu_custom_call.1} parent=11 // pred_fallthru
          _
        // Predicated region
        $region17: #{tpu_custom_call.1} parent=11 // pred_check
          %p256 = pneg %p86
        $region18: #{tpu_custom_call.1} parent=11 // pred_check_branch
          %258 = sbr.rel (%p256) target = $region20
        $region19: #{tpu_custom_call.1} parent=11 // pred_region
          _
        $region20: #{tpu_custom_call.1} parent=11 // pred_fallthru
          _
        // Predicated region
        $region21: #{tpu_custom_call.1} parent=11 // pred_check
          %p259 = pneg %p107
        $region22: #{tpu_custom_call.1} parent=11 // pred_check_branch
          %261 = sbr.rel (%p259) target = $region24
        $region23: #{tpu_custom_call.1} parent=11 // pred_region
          _
        $region24: #{tpu_custom_call.1} parent=11 // pred_fallthru
          _
        // Predicated region
        $region25: #{tpu_custom_call.1} parent=11 // pred_check
          %p262 = pneg %p128
        $region26: #{tpu_custom_call.1} parent=11 // pred_check_branch
          %264 = sbr.rel (%p262) target = $region28
        $region27: #{tpu_custom_call.1} parent=11 // pred_region
          _
        $region28: #{tpu_custom_call.1} parent=11 // pred_fallthru
          _
        // Predicated region
        $region29: #{tpu_custom_call.1} parent=11 // pred_check
          %p265 = pneg %p149
        $region30: #{tpu_custom_call.1} parent=11 // pred_check_branch
          %267 = sbr.rel (%p265) target = $region32
        $region31: #{tpu_custom_call.1} parent=11 // pred_region
          _
        $region32: #{tpu_custom_call.1} parent=11 // pred_fallthru
          _
        // Predicated region
        $region33: #{tpu_custom_call.1} parent=11 // pred_check
          %p268 = pneg %p170
        $region34: #{tpu_custom_call.1} parent=11 // pred_check_branch
          %270 = sbr.rel (%p268) target = $region36
        $region35: #{tpu_custom_call.1} parent=11 // pred_region
          _
        $region36: #{tpu_custom_call.1} parent=11 // pred_fallthru
          _
        // Predicated region
        $region37: #{tpu_custom_call.1} parent=11 // pred_check
          %p271 = pneg %p191
        $region38: #{tpu_custom_call.1} parent=11 // pred_check_branch
          %273 = sbr.rel (%p271) target = $region40
        $region39: #{tpu_custom_call.1} parent=11 // pred_region
          _
        $region40: #{tpu_custom_call.1} parent=11 // pred_fallthru
          _
        // Predicated region
        $region41: #{tpu_custom_call.1} parent=11 // pred_check
          %p274 = pneg %p212
        $region42: #{tpu_custom_call.1} parent=11 // pred_check_branch
          %276 = sbr.rel (%p274) target = $region44
        $region43: #{tpu_custom_call.1} parent=11 // pred_region
          _
        $region44: #{tpu_custom_call.1} parent=11 // pred_fallthru
          _
      $region12: #{tpu_custom_call.1} parent=5 // pred_fallthru
        _
      %p277 = scmp.lt.s32.totalorder %s18, 2
      // Predicated region
      $region45: #{tpu_custom_call.1} parent=5 // pred_check
        %p278 = pneg %p277
      $region46: #{tpu_custom_call.1} parent=5 // pred_check_branch
        %280 = sbr.rel (%p278) target = $region48
      $region47: #{tpu_custom_call.1} parent=5 // pred_region
        // Predicated region
        $region49: #{tpu_custom_call.1} parent=47 // pred_check
          %p281 = pneg %p38
        $region50: #{tpu_custom_call.1} parent=47 // pred_check_branch
          %283 = sbr.rel (%p281) target = $region52
        $region51: #{tpu_custom_call.1} parent=47 // pred_region
          %p284 = scmp.lt.s32.totalorder %s18, 1
          %s285 = scalar_select %p284, %s18, 1
          %s286 = smul.addr %s285, 24
          %s287 = smul.addr %s286, 8
          %s288 = scalar_lea.vmem %s0, %s287
        $region52: #{tpu_custom_call.1} parent=47 // pred_fallthru
          _
      $region48: #{tpu_custom_call.1} parent=5 // pred_fallthru
        _
      %p289 = scmp.le.s32.totalorder 1, %s18
      %p290 = scmp.lt.s32.totalorder %s18, 3
      %p291 = pnand %p289, %p290
      %p292 = pneg %p291
      // Predicated region
      $region53: #{tpu_custom_call.1} parent=5 // pred_check
        _
      $region54: #{tpu_custom_call.1} parent=5 // pred_check_branch
        %294 = sbr.rel (%p291) target = $region56
      $region55: #{tpu_custom_call.1} parent=5 // pred_region
        %s295 = ssub.s32 %s18, 1
        %p296 = scmp.lt.s32.totalorder %s23, 1
        %s297 = scalar_select %p296, %s23, 1
        %s298 = smul.addr %s297, 24
        %s299 = smul.addr %s298, 8
        %s300 = scalar_lea.vmem %s0, %s299
        %p301 = pneg %p44
        %p302 = pneg %p41
        %p303 = pneg %p65
        %p304 = pneg %p62
        %p305 = pneg %p86
        %p306 = pneg %p83
        %p307 = pneg %p107
        %p308 = pneg %p104
        %p309 = pneg %p128
        %p310 = pneg %p125
        %p311 = pneg %p149
        %p312 = pneg %p146
        %p313 = pneg %p170
        %p314 = pneg %p167
        %p315 = pneg %p191
        %p316 = pneg %p188
        %p317 = pneg %p212
        %p318 = pneg %p209
        %p319 = pneg %p238
        %p320 = pneg %p235
        %s321 = sand.u32 %s225, 1
        %s322 = scalar_lea.sflag [#allocation4], %s321
        %s323 = sand.u32 %s225, 1
        %s324 = smul.addr %s323, 64
        %s325 = scalar_lea.vmem [#allocation3], %s324
        %p326 = scmp.lt.s32.totalorder %s23, 1
        %s327 = scalar_select %p326, %s23, 1
        %s328 = smul.addr %s327, 24
        %s329 = smul.addr %s328, 8
        %s330 = scalar_lea.vmem %s0, %s329
        %v331 = vld [vmem:[%s330] sm:$0xff]
        %v332 = vld [vmem:[%s330 + $0x8] sm:$0xf]
        %v333 = vld [vmem:[%s330 + $0x10] sm:$0xff]
        %v334 = vld [vmem:[%s330 + $0x18] sm:$0xf]
        %v335 = vld [vmem:[%s330 + $0x20] sm:$0xff]
        %v336 = vld [vmem:[%s330 + $0x28] sm:$0xf]
        %v337 = vld [vmem:[%s330 + $0x30] sm:$0xff]
        %v338 = vld [vmem:[%s330 + $0x38] sm:$0xf]
        %v339 = vld [vmem:[%s330 + $0x40] sm:$0xff]
        %v340 = vld [vmem:[%s330 + $0x48] sm:$0xf]
        %v341 = vld [vmem:[%s330 + $0x50] sm:$0xff]
        %v342 = vld [vmem:[%s330 + $0x58] sm:$0xf]
        %v343 = vld [vmem:[%s330 + $0x60] sm:$0xff]
        %v344 = vld [vmem:[%s330 + $0x68] sm:$0xf]
        %v345 = vld [vmem:[%s330 + $0x70] sm:$0xff]
        %v346 = vld [vmem:[%s330 + $0x78] sm:$0xf]
        %v347 = vld [vmem:[%s330 + $0x80] sm:$0xff]
        %v348 = vld [vmem:[%s330 + $0x88] sm:$0xf]
        %v349 = vld [vmem:[%s330 + $0x90] sm:$0xff]
        %v350 = vld [vmem:[%s330 + $0x98] sm:$0xf]
        %v351 = vld [vmem:[%s330 + $0xa0] sm:$0xff]
        %v352 = vld [vmem:[%s330 + $0xa8] sm:$0xf]
        %v353 = vld [vmem:[%s330 + $0xb0] sm:$0xff]
        %v354 = vld [vmem:[%s330 + $0xb8] sm:$0xf]
        %379 = vrot.lane.b32.xlu0 %v331, 120
        %v380 = vpop.permute.xlu0 %379
        %381 = vrot.lane.b32.xlu0 %v332, 120
        %v382 = vpop.permute.xlu0 %381
        %383 = vrot.lane.b32.xlu0 %v333, 120
        %v384 = vpop.permute.xlu0 %383
        %385 = vrot.lane.b32.xlu0 %v334, 120
        %v386 = vpop.permute.xlu0 %385
        %387 = vrot.lane.b32.xlu0 %v335, 120
        %v388 = vpop.permute.xlu0 %387
        %389 = vrot.lane.b32.xlu0 %v336, 120
        %v390 = vpop.permute.xlu0 %389
        %391 = vrot.lane.b32.xlu0 %v337, 120
        %v392 = vpop.permute.xlu0 %391
        %393 = vrot.lane.b32.xlu0 %v338, 120
        %v394 = vpop.permute.xlu0 %393
        %395 = vrot.lane.b32.xlu0 %v339, 120
        %v396 = vpop.permute.xlu0 %395
        %397 = vrot.lane.b32.xlu0 %v340, 120
        %v398 = vpop.permute.xlu0 %397
        %399 = vrot.lane.b32.xlu0 %v341, 120
        %v400 = vpop.permute.xlu0 %399
        %401 = vrot.lane.b32.xlu0 %v342, 120
        %v402 = vpop.permute.xlu0 %401
        %403 = vrot.lane.b32.xlu0 %v343, 120
        %v404 = vpop.permute.xlu0 %403
        %405 = vrot.lane.b32.xlu0 %v344, 120
        %v406 = vpop.permute.xlu0 %405
        %407 = vrot.lane.b32.xlu0 %v345, 120
        %v408 = vpop.permute.xlu0 %407
        %409 = vrot.lane.b32.xlu0 %v346, 120
        %v410 = vpop.permute.xlu0 %409
        %411 = vrot.lane.b32.xlu0 %v347, 120
        %v412 = vpop.permute.xlu0 %411
        %413 = vrot.lane.b32.xlu0 %v348, 120
        %v414 = vpop.permute.xlu0 %413
        %415 = vrot.lane.b32.xlu0 %v349, 120
        %v416 = vpop.permute.xlu0 %415
        %417 = vrot.lane.b32.xlu0 %v350, 120
        %v418 = vpop.permute.xlu0 %417
        %419 = vrot.lane.b32.xlu0 %v351, 120
        %v420 = vpop.permute.xlu0 %419
        %421 = vrot.lane.b32.xlu0 %v352, 120
        %v422 = vpop.permute.xlu0 %421
        %423 = vrot.lane.b32.xlu0 %v353, 120
        %v424 = vpop.permute.xlu0 %423
        %425 = vrot.lane.b32.xlu0 %v354, 120
        %v426 = vpop.permute.xlu0 %425
        %vm451 = vcmask 523264
        %452 = vst.msk [vmem:[#allocation2] sm:$0xff] %vm451, %v380
        %vm453 = vcmask 519168
        %454 = vst.msk [vmem:[#allocation2 + $0x8] sm:$0xf] %vm453, %v382
        %455 = vst.msk [vmem:[#allocation2 + $0x10] sm:$0xff] %vm451, %v384
        %456 = vst.msk [vmem:[#allocation2 + $0x18] sm:$0xf] %vm453, %v386
        %457 = vst.msk [vmem:[#allocation2 + $0x20] sm:$0xff] %vm451, %v388
        %458 = vst.msk [vmem:[#allocation2 + $0x28] sm:$0xf] %vm453, %v390
        %459 = vst.msk [vmem:[#allocation2 + $0x30] sm:$0xff] %vm451, %v392
        %460 = vst.msk [vmem:[#allocation2 + $0x38] sm:$0xf] %vm453, %v394
        %461 = vst.msk [vmem:[#allocation2 + $0x40] sm:$0xff] %vm451, %v396
        %462 = vst.msk [vmem:[#allocation2 + $0x48] sm:$0xf] %vm453, %v398
        %463 = vst.msk [vmem:[#allocation2 + $0x50] sm:$0xff] %vm451, %v400
        %464 = vst.msk [vmem:[#allocation2 + $0x58] sm:$0xf] %vm453, %v402
        %465 = vst.msk [vmem:[#allocation2 + $0x60] sm:$0xff] %vm451, %v404
        %466 = vst.msk [vmem:[#allocation2 + $0x68] sm:$0xf] %vm453, %v406
        %467 = vst.msk [vmem:[#allocation2 + $0x70] sm:$0xff] %vm451, %v408
        %468 = vst.msk [vmem:[#allocation2 + $0x78] sm:$0xf] %vm453, %v410
        %469 = vst.msk [vmem:[#allocation2 + $0x80] sm:$0xff] %vm451, %v412
        %470 = vst.msk [vmem:[#allocation2 + $0x88] sm:$0xf] %vm453, %v414
        %471 = vst.msk [vmem:[#allocation2 + $0x90] sm:$0xff] %vm451, %v416
        %472 = vst.msk [vmem:[#allocation2 + $0x98] sm:$0xf] %vm453, %v418
        %473 = vst.msk [vmem:[#allocation2 + $0xa0] sm:$0xff] %vm451, %v420
        %474 = vst.msk [vmem:[#allocation2 + $0xa8] sm:$0xf] %vm453, %v422
        %475 = vst.msk [vmem:[#allocation2 + $0xb0] sm:$0xff] %vm451, %v424
        %476 = vst.msk [vmem:[#allocation2 + $0xb8] sm:$0xf] %vm453, %v426
        %v477 = vld [vmem:[#allocation2 + $0x11] sm:$0xff]
        %v478 = vld [vmem:[#allocation2 + $0x21] sm:$0xff]
        %v479 = vld [vmem:[#allocation2 + $0x31] sm:$0xff]
        %v480 = vld [vmem:[#allocation2 + $0x41] sm:$0xff]
        %v481 = vld [vmem:[#allocation2 + $0x51] sm:$0xff]
        %v482 = vld [vmem:[#allocation2 + $0x61] sm:$0xff]
        %v483 = vld [vmem:[#allocation2 + $0x71] sm:$0xff]
        %v484 = vld [vmem:[#allocation2 + $0x81] sm:$0xff]
        %v485 = vld [vmem:[#allocation2 + $0x91] sm:$0xff]
        %v486 = vld [vmem:[#allocation2 + $0xa1] sm:$0xff]
        %v487 = vld [vmem:[%s1] sm:$0x1]
        %v488 = vlaneseq
        %v489 = vshrl.u32 %v488, 7
        %v490 = vsub.s32 0, %v489
        %v491 = vrot.slane %v487, %v490
        %v492 = vmul.f32 %v491, %v477
        %v493 = vmul.f32 %v491, %v478
        %v494 = vmul.f32 %v491, %v479
        %v495 = vmul.f32 %v491, %v480
        %v496 = vmul.f32 %v491, %v481
        %v497 = vmul.f32 %v491, %v482
        %v498 = vmul.f32 %v491, %v483
        %v499 = vmul.f32 %v491, %v484
        %v500 = vadd.f32 %v492, 0.0
        %v501 = vadd.f32 %v493, 0.0
        %v502 = vadd.f32 %v494, 0.0
        %v503 = vadd.f32 %v495, 0.0
        %v504 = vadd.f32 %v496, 0.0
        %v505 = vadd.f32 %v497, 0.0
        %v506 = vadd.f32 %v498, 0.0
        %v507 = vadd.f32 %v499, 0.0
        %v508 = vld [vmem:[%s1 + $0x9] sm:$0x1]
        %v509 = vlaneseq
        %v510 = vshrl.u32 %v509, 7
        %v511 = vsub.s32 0, %v510
        %v512 = vrot.slane %v508, %v511
        %v513 = vmul.f32 %v512, %v478
        %v514 = vmul.f32 %v512, %v479
        %v515 = vmul.f32 %v512, %v480
        %v516 = vmul.f32 %v512, %v481
        %v517 = vmul.f32 %v512, %v482
        %v518 = vmul.f32 %v512, %v483
        %v519 = vmul.f32 %v512, %v484
        %v520 = vmul.f32 %v512, %v485
        %v521 = vadd.f32 %v513, 0.0
        %v522 = vadd.f32 %v514, 0.0
        %v523 = vadd.f32 %v515, 0.0
        %v524 = vadd.f32 %v516, 0.0
        %v525 = vadd.f32 %v517, 0.0
        %v526 = vadd.f32 %v518, 0.0
        %v527 = vadd.f32 %v519, 0.0
        %v528 = vadd.f32 %v520, 0.0
        %v529 = vld [vmem:[%s1 + $0x12] sm:$0x1]
        %v530 = vlaneseq
        %v531 = vshrl.u32 %v530, 7
        %v532 = vsub.s32 0, %v531
        %v533 = vrot.slane %v529, %v532
        %v534 = vmul.f32 %v533, %v479
        %v535 = vmul.f32 %v533, %v480
        %v536 = vmul.f32 %v533, %v481
        %v537 = vmul.f32 %v533, %v482
        %v538 = vmul.f32 %v533, %v483
        %v539 = vmul.f32 %v533, %v484
        %v540 = vmul.f32 %v533, %v485
        %v541 = vmul.f32 %v533, %v486
        %v542 = vadd.f32 %v500, %v534
        %v543 = vadd.f32 %v501, %v535
        %v544 = vadd.f32 %v502, %v536
        %v545 = vadd.f32 %v503, %v537
        %v546 = vadd.f32 %v504, %v538
        %v547 = vadd.f32 %v505, %v539
        %v548 = vadd.f32 %v506, %v540
        %v549 = vadd.f32 %v507, %v541
        %v550 = vld [vmem:[#allocation2 + $0x12] sm:$0xff]
        %v551 = vld [vmem:[#allocation2 + $0x22] sm:$0xff]
        %v552 = vld [vmem:[#allocation2 + $0x32] sm:$0xff]
        %v553 = vld [vmem:[#allocation2 + $0x42] sm:$0xff]
        %v554 = vld [vmem:[#allocation2 + $0x52] sm:$0xff]
        %v555 = vld [vmem:[#allocation2 + $0x62] sm:$0xff]
        %v556 = vld [vmem:[#allocation2 + $0x72] sm:$0xff]
        %v557 = vld [vmem:[#allocation2 + $0x82] sm:$0xff]
        %v558 = vld [vmem:[#allocation2 + $0x92] sm:$0xff]
        %v559 = vld [vmem:[#allocation2 + $0xa2] sm:$0xff]
        %v560 = vld [vmem:[%s1 + $0x3] sm:$0x1]
        %v561 = vlaneseq
        %v562 = vshrl.u32 %v561, 7
        %v563 = vsub.s32 0, %v562
        %v564 = vrot.slane %v560, %v563
        %v565 = vmul.f32 %v564, %v550
        %v566 = vmul.f32 %v564, %v551
        %v567 = vmul.f32 %v564, %v552
        %v568 = vmul.f32 %v564, %v553
        %v569 = vmul.f32 %v564, %v554
        %v570 = vmul.f32 %v564, %v555
        %v571 = vmul.f32 %v564, %v556
        %v572 = vmul.f32 %v564, %v557
        %v573 = vadd.f32 %v542, %v565
        %v574 = vadd.f32 %v543, %v566
        %v575 = vadd.f32 %v544, %v567
        %v576 = vadd.f32 %v545, %v568
        %v577 = vadd.f32 %v546, %v569
        %v578 = vadd.f32 %v547, %v570
        %v579 = vadd.f32 %v548, %v571
        %v580 = vadd.f32 %v549, %v572
        %v581 = vld [vmem:[%s1 + $0xc] sm:$0x1]
        %v582 = vlaneseq
        %v583 = vshrl.u32 %v582, 7
        %v584 = vsub.s32 0, %v583
        %v585 = vrot.slane %v581, %v584
        %v586 = vmul.f32 %v585, %v551
        %v587 = vmul.f32 %v585, %v552
        %v588 = vmul.f32 %v585, %v553
        %v589 = vmul.f32 %v585, %v554
        %v590 = vmul.f32 %v585, %v555
        %v591 = vmul.f32 %v585, %v556
        %v592 = vmul.f32 %v585, %v557
        %v593 = vmul.f32 %v585, %v558
        %v594 = vadd.f32 %v521, %v586
        %v595 = vadd.f32 %v522, %v587
        %v596 = vadd.f32 %v523, %v588
        %v597 = vadd.f32 %v524, %v589
        %v598 = vadd.f32 %v525, %v590
        %v599 = vadd.f32 %v526, %v591
        %v600 = vadd.f32 %v527, %v592
        %v601 = vadd.f32 %v528, %v593
        %v602 = vld [vmem:[%s1 + $0x15] sm:$0x1]
        %v603 = vlaneseq
        %v604 = vshrl.u32 %v603, 7
        %v605 = vsub.s32 0, %v604
        %v606 = vrot.slane %v602, %v605
        %v607 = vmul.f32 %v606, %v552
        %v608 = vmul.f32 %v606, %v553
        %v609 = vmul.f32 %v606, %v554
        %v610 = vmul.f32 %v606, %v555
        %v611 = vmul.f32 %v606, %v556
        %v612 = vmul.f32 %v606, %v557
        %v613 = vmul.f32 %v606, %v558
        %v614 = vmul.f32 %v606, %v559
        %v615 = vadd.f32 %v573, %v607
        %v616 = vadd.f32 %v574, %v608
        %v617 = vadd.f32 %v575, %v609
        %v618 = vadd.f32 %v576, %v610
        %v619 = vadd.f32 %v577, %v611
        %v620 = vadd.f32 %v578, %v612
        %v621 = vadd.f32 %v579, %v613
        %v622 = vadd.f32 %v580, %v614
        %v623 = vld [vmem:[#allocation2 + $0x13] sm:$0xff]
        %v624 = vld [vmem:[#allocation2 + $0x23] sm:$0xff]
        %v625 = vld [vmem:[#allocation2 + $0x33] sm:$0xff]
        %v626 = vld [vmem:[#allocation2 + $0x43] sm:$0xff]
        %v627 = vld [vmem:[#allocation2 + $0x53] sm:$0xff]
        %v628 = vld [vmem:[#allocation2 + $0x63] sm:$0xff]
        %v629 = vld [vmem:[#allocation2 + $0x73] sm:$0xff]
        %v630 = vld [vmem:[#allocation2 + $0x83] sm:$0xff]
        %v631 = vld [vmem:[#allocation2 + $0x93] sm:$0xff]
        %v632 = vld [vmem:[#allocation2 + $0xa3] sm:$0xff]
        %v633 = vld [vmem:[%s1 + $0x6] sm:$0x1]
        %v634 = vlaneseq
        %v635 = vshrl.u32 %v634, 7
        %v636 = vsub.s32 0, %v635
        %v637 = vrot.slane %v633, %v636
        %v638 = vmul.f32 %v637, %v623
        %v639 = vmul.f32 %v637, %v624
        %v640 = vmul.f32 %v637, %v625
        %v641 = vmul.f32 %v637, %v626
        %v642 = vmul.f32 %v637, %v627
        %v643 = vmul.f32 %v637, %v628
        %v644 = vmul.f32 %v637, %v629
        %v645 = vmul.f32 %v637, %v630
        %v646 = vadd.f32 %v615, %v638
        %v647 = vadd.f32 %v616, %v639
        %v648 = vadd.f32 %v617, %v640
        %v649 = vadd.f32 %v618, %v641
        %v650 = vadd.f32 %v619, %v642
        %v651 = vadd.f32 %v620, %v643
        %v652 = vadd.f32 %v621, %v644
        %v653 = vadd.f32 %v622, %v645
        %v654 = vld [vmem:[%s1 + $0xf] sm:$0x1]
        %v655 = vlaneseq
        %v656 = vshrl.u32 %v655, 7
        %v657 = vsub.s32 0, %v656
        %v658 = vrot.slane %v654, %v657
        %v659 = vmul.f32 %v658, %v624
        %v660 = vmul.f32 %v658, %v625
        %v661 = vmul.f32 %v658, %v626
        %v662 = vmul.f32 %v658, %v627
        %v663 = vmul.f32 %v658, %v628
        %v664 = vmul.f32 %v658, %v629
        %v665 = vmul.f32 %v658, %v630
        %v666 = vmul.f32 %v658, %v631
        %v667 = vadd.f32 %v594, %v659
        %v668 = vadd.f32 %v595, %v660
        %v669 = vadd.f32 %v596, %v661
        %v670 = vadd.f32 %v597, %v662
        %v671 = vadd.f32 %v598, %v663
        %v672 = vadd.f32 %v599, %v664
        %v673 = vadd.f32 %v600, %v665
        %v674 = vadd.f32 %v601, %v666
        %v675 = vld [vmem:[%s1 + $0x18] sm:$0x1]
        %v676 = vlaneseq
        %v677 = vshrl.u32 %v676, 7
        %v678 = vsub.s32 0, %v677
        %v679 = vrot.slane %v675, %v678
        %v680 = vmul.f32 %v679, %v625
        %v681 = vmul.f32 %v679, %v626
        %v682 = vmul.f32 %v679, %v627
        %v683 = vmul.f32 %v679, %v628
        %v684 = vmul.f32 %v679, %v629
        %v685 = vmul.f32 %v679, %v630
        %v686 = vmul.f32 %v679, %v631
        %v687 = vmul.f32 %v679, %v632
        %v688 = vadd.f32 %v646, %v680
        %v689 = vadd.f32 %v647, %v681
        %v690 = vadd.f32 %v648, %v682
        %v691 = vadd.f32 %v649, %v683
        %v692 = vadd.f32 %v650, %v684
        %v693 = vadd.f32 %v651, %v685
        %v694 = vadd.f32 %v652, %v686
        %v695 = vadd.f32 %v653, %v687
        %v696 = vld [vmem:[%s330] sm:$0xff]
        %v697 = vld [vmem:[%s330 + $0x8] sm:$0xf]
        %v698 = vld [vmem:[%s330 + $0x10] sm:$0xff]
        %v699 = vld [vmem:[%s330 + $0x18] sm:$0xf]
        %v700 = vld [vmem:[%s330 + $0x20] sm:$0xff]
        %v701 = vld [vmem:[%s330 + $0x28] sm:$0xf]
        %v702 = vld [vmem:[%s330 + $0x30] sm:$0xff]
        %v703 = vld [vmem:[%s330 + $0x38] sm:$0xf]
        %v704 = vld [vmem:[%s330 + $0x40] sm:$0xff]
        %v705 = vld [vmem:[%s330 + $0x48] sm:$0xf]
        %v706 = vld [vmem:[%s330 + $0x50] sm:$0xff]
        %v707 = vld [vmem:[%s330 + $0x58] sm:$0xf]
        %v708 = vld [vmem:[%s330 + $0x60] sm:$0xff]
        %v709 = vld [vmem:[%s330 + $0x68] sm:$0xf]
        %v710 = vld [vmem:[%s330 + $0x70] sm:$0xff]
        %v711 = vld [vmem:[%s330 + $0x78] sm:$0xf]
        %v712 = vld [vmem:[%s330 + $0x80] sm:$0xff]
        %v713 = vld [vmem:[%s330 + $0x88] sm:$0xf]
        %v714 = vld [vmem:[%s330 + $0x90] sm:$0xff]
        %v715 = vld [vmem:[%s330 + $0x98] sm:$0xf]
        %v716 = vld [vmem:[%s330 + $0xa0] sm:$0xff]
        %v717 = vld [vmem:[%s330 + $0xa8] sm:$0xf]
        %v718 = vld [vmem:[%s330 + $0xb0] sm:$0xff]
        %v719 = vld [vmem:[%s330 + $0xb8] sm:$0xf]
        %744 = vrot.lane.b32.xlu0 %v696, 112
        %v745 = vpop.permute.xlu0 %744
        %746 = vrot.lane.b32.xlu0 %v697, 112
        %v747 = vpop.permute.xlu0 %746
        %748 = vrot.lane.b32.xlu0 %v698, 112
        %v749 = vpop.permute.xlu0 %748
        %750 = vrot.lane.b32.xlu0 %v699, 112
        %v751 = vpop.permute.xlu0 %750
        %752 = vrot.lane.b32.xlu0 %v700, 112
        %v753 = vpop.permute.xlu0 %752
        %754 = vrot.lane.b32.xlu0 %v701, 112
        %v755 = vpop.permute.xlu0 %754
        %756 = vrot.lane.b32.xlu0 %v702, 112
        %v757 = vpop.permute.xlu0 %756
        %758 = vrot.lane.b32.xlu0 %v703, 112
        %v759 = vpop.permute.xlu0 %758
        %760 = vrot.lane.b32.xlu0 %v704, 112
        %v761 = vpop.permute.xlu0 %760
        %762 = vrot.lane.b32.xlu0 %v705, 112
        %v763 = vpop.permute.xlu0 %762
        %764 = vrot.lane.b32.xlu0 %v706, 112
        %v765 = vpop.permute.xlu0 %764
        %766 = vrot.lane.b32.xlu0 %v707, 112
        %v767 = vpop.permute.xlu0 %766
        %768 = vrot.lane.b32.xlu0 %v708, 112
        %v769 = vpop.permute.xlu0 %768
        %770 = vrot.lane.b32.xlu0 %v709, 112
        %v771 = vpop.permute.xlu0 %770
        %772 = vrot.lane.b32.xlu0 %v710, 112
        %v773 = vpop.permute.xlu0 %772
        %774 = vrot.lane.b32.xlu0 %v711, 112
        %v775 = vpop.permute.xlu0 %774
        %776 = vrot.lane.b32.xlu0 %v712, 112
        %v777 = vpop.permute.xlu0 %776
        %778 = vrot.lane.b32.xlu0 %v713, 112
        %v779 = vpop.permute.xlu0 %778
        %780 = vrot.lane.b32.xlu0 %v714, 112
        %v781 = vpop.permute.xlu0 %780
        %782 = vrot.lane.b32.xlu0 %v715, 112
        %v783 = vpop.permute.xlu0 %782
        %784 = vrot.lane.b32.xlu0 %v716, 112
        %v785 = vpop.permute.xlu0 %784
        %786 = vrot.lane.b32.xlu0 %v717, 112
        %v787 = vpop.permute.xlu0 %786
        %788 = vrot.lane.b32.xlu0 %v718, 112
        %v789 = vpop.permute.xlu0 %788
        %790 = vrot.lane.b32.xlu0 %v719, 112
        %v791 = vpop.permute.xlu0 %790
        %816 = vst.msk [vmem:[#allocation2] sm:$0xff] %vm451, %v745
        %817 = vst.msk [vmem:[#allocation2 + $0x8] sm:$0xf] %vm453, %v747
        %818 = vst.msk [vmem:[#allocation2 + $0x10] sm:$0xff] %vm451, %v749
        %819 = vst.msk [vmem:[#allocation2 + $0x18] sm:$0xf] %vm453, %v751
        %820 = vst.msk [vmem:[#allocation2 + $0x20] sm:$0xff] %vm451, %v753
        %821 = vst.msk [vmem:[#allocation2 + $0x28] sm:$0xf] %vm453, %v755
        %822 = vst.msk [vmem:[#allocation2 + $0x30] sm:$0xff] %vm451, %v757
        %823 = vst.msk [vmem:[#allocation2 + $0x38] sm:$0xf] %vm453, %v759
        %824 = vst.msk [vmem:[#allocation2 + $0x40] sm:$0xff] %vm451, %v761
        %825 = vst.msk [vmem:[#allocation2 + $0x48] sm:$0xf] %vm453, %v763
        %826 = vst.msk [vmem:[#allocation2 + $0x50] sm:$0xff] %vm451, %v765
        %827 = vst.msk [vmem:[#allocation2 + $0x58] sm:$0xf] %vm453, %v767
        %828 = vst.msk [vmem:[#allocation2 + $0x60] sm:$0xff] %vm451, %v769
        %829 = vst.msk [vmem:[#allocation2 + $0x68] sm:$0xf] %vm453, %v771
        %830 = vst.msk [vmem:[#allocation2 + $0x70] sm:$0xff] %vm451, %v773
        %831 = vst.msk [vmem:[#allocation2 + $0x78] sm:$0xf] %vm453, %v775
        %832 = vst.msk [vmem:[#allocation2 + $0x80] sm:$0xff] %vm451, %v777
        %833 = vst.msk [vmem:[#allocation2 + $0x88] sm:$0xf] %vm453, %v779
        %834 = vst.msk [vmem:[#allocation2 + $0x90] sm:$0xff] %vm451, %v781
        %835 = vst.msk [vmem:[#allocation2 + $0x98] sm:$0xf] %vm453, %v783
        %836 = vst.msk [vmem:[#allocation2 + $0xa0] sm:$0xff] %vm451, %v785
        %837 = vst.msk [vmem:[#allocation2 + $0xa8] sm:$0xf] %vm453, %v787
        %838 = vst.msk [vmem:[#allocation2 + $0xb0] sm:$0xff] %vm451, %v789
        %839 = vst.msk [vmem:[#allocation2 + $0xb8] sm:$0xf] %vm453, %v791
        %v840 = vld [vmem:[#allocation2 + $0x11] sm:$0xff]
        %v841 = vld [vmem:[#allocation2 + $0x21] sm:$0xff]
        %v842 = vld [vmem:[#allocation2 + $0x31] sm:$0xff]
        %v843 = vld [vmem:[#allocation2 + $0x41] sm:$0xff]
        %v844 = vld [vmem:[#allocation2 + $0x51] sm:$0xff]
        %v845 = vld [vmem:[#allocation2 + $0x61] sm:$0xff]
        %v846 = vld [vmem:[#allocation2 + $0x71] sm:$0xff]
        %v847 = vld [vmem:[#allocation2 + $0x81] sm:$0xff]
        %v848 = vld [vmem:[#allocation2 + $0x91] sm:$0xff]
        %v849 = vld [vmem:[#allocation2 + $0xa1] sm:$0xff]
        %v850 = vld [vmem:[%s1 + $0x1] sm:$0x1]
        %v851 = vlaneseq
        %v852 = vshrl.u32 %v851, 7
        %v853 = vsub.s32 0, %v852
        %v854 = vrot.slane %v850, %v853
        %v855 = vmul.f32 %v854, %v840
        %v856 = vmul.f32 %v854, %v841
        %v857 = vmul.f32 %v854, %v842
        %v858 = vmul.f32 %v854, %v843
        %v859 = vmul.f32 %v854, %v844
        %v860 = vmul.f32 %v854, %v845
        %v861 = vmul.f32 %v854, %v846
        %v862 = vmul.f32 %v854, %v847
        %v863 = vadd.f32 %v688, %v855
        %v864 = vadd.f32 %v689, %v856
        %v865 = vadd.f32 %v690, %v857
        %v866 = vadd.f32 %v691, %v858
        %v867 = vadd.f32 %v692, %v859
        %v868 = vadd.f32 %v693, %v860
        %v869 = vadd.f32 %v694, %v861
        %v870 = vadd.f32 %v695, %v862
        %v871 = vld [vmem:[%s1 + $0xa] sm:$0x1]
        %v872 = vlaneseq
        %v873 = vshrl.u32 %v872, 7
        %v874 = vsub.s32 0, %v873
        %v875 = vrot.slane %v871, %v874
        %v876 = vmul.f32 %v875, %v841
        %v877 = vmul.f32 %v875, %v842
        %v878 = vmul.f32 %v875, %v843
        %v879 = vmul.f32 %v875, %v844
        %v880 = vmul.f32 %v875, %v845
        %v881 = vmul.f32 %v875, %v846
        %v882 = vmul.f32 %v875, %v847
        %v883 = vmul.f32 %v875, %v848
        %v884 = vadd.f32 %v667, %v876
        %v885 = vadd.f32 %v668, %v877
        %v886 = vadd.f32 %v669, %v878
        %v887 = vadd.f32 %v670, %v879
        %v888 = vadd.f32 %v671, %v880
        %v889 = vadd.f32 %v672, %v881
        %v890 = vadd.f32 %v673, %v882
        %v891 = vadd.f32 %v674, %v883
        %v892 = vld [vmem:[%s1 + $0x13] sm:$0x1]
        %v893 = vlaneseq
        %v894 = vshrl.u32 %v893, 7
        %v895 = vsub.s32 0, %v894
        %v896 = vrot.slane %v892, %v895
        %v897 = vmul.f32 %v896, %v842
        %v898 = vmul.f32 %v896, %v843
        %v899 = vmul.f32 %v896, %v844
        %v900 = vmul.f32 %v896, %v845
        %v901 = vmul.f32 %v896, %v846
        %v902 = vmul.f32 %v896, %v847
        %v903 = vmul.f32 %v896, %v848
        %v904 = vmul.f32 %v896, %v849
        %v905 = vadd.f32 %v863, %v897
        %v906 = vadd.f32 %v864, %v898
        %v907 = vadd.f32 %v865, %v899
        %v908 = vadd.f32 %v866, %v900
        %v909 = vadd.f32 %v867, %v901
        %v910 = vadd.f32 %v868, %v902
        %v911 = vadd.f32 %v869, %v903
        %v912 = vadd.f32 %v870, %v904
        %v913 = vld [vmem:[#allocation2 + $0x12] sm:$0xff]
        %v914 = vld [vmem:[#allocation2 + $0x22] sm:$0xff]
        %v915 = vld [vmem:[#allocation2 + $0x32] sm:$0xff]
        %v916 = vld [vmem:[#allocation2 + $0x42] sm:$0xff]
        %v917 = vld [vmem:[#allocation2 + $0x52] sm:$0xff]
        %v918 = vld [vmem:[#allocation2 + $0x62] sm:$0xff]
        %v919 = vld [vmem:[#allocation2 + $0x72] sm:$0xff]
        %v920 = vld [vmem:[#allocation2 + $0x82] sm:$0xff]
        %v921 = vld [vmem:[#allocation2 + $0x92] sm:$0xff]
        %v922 = vld [vmem:[#allocation2 + $0xa2] sm:$0xff]
        %v923 = vld [vmem:[%s1 + $0x4] sm:$0x1]
        %v924 = vlaneseq
        %v925 = vshrl.u32 %v924, 7
        %v926 = vsub.s32 0, %v925
        %v927 = vrot.slane %v923, %v926
        %v928 = vmul.f32 %v927, %v913
        %v929 = vmul.f32 %v927, %v914
        %v930 = vmul.f32 %v927, %v915
        %v931 = vmul.f32 %v927, %v916
        %v932 = vmul.f32 %v927, %v917
        %v933 = vmul.f32 %v927, %v918
        %v934 = vmul.f32 %v927, %v919
        %v935 = vmul.f32 %v927, %v920
        %v936 = vadd.f32 %v905, %v928
        %v937 = vadd.f32 %v906, %v929
        %v938 = vadd.f32 %v907, %v930
        %v939 = vadd.f32 %v908, %v931
        %v940 = vadd.f32 %v909, %v932
        %v941 = vadd.f32 %v910, %v933
        %v942 = vadd.f32 %v911, %v934
        %v943 = vadd.f32 %v912, %v935
        %v944 = vld [vmem:[%s1 + $0xd] sm:$0x1]
        %v945 = vlaneseq
        %v946 = vshrl.u32 %v945, 7
        %v947 = vsub.s32 0, %v946
        %v948 = vrot.slane %v944, %v947
        %v949 = vmul.f32 %v948, %v914
        %v950 = vmul.f32 %v948, %v915
        %v951 = vmul.f32 %v948, %v916
        %v952 = vmul.f32 %v948, %v917
        %v953 = vmul.f32 %v948, %v918
        %v954 = vmul.f32 %v948, %v919
        %v955 = vmul.f32 %v948, %v920
        %v956 = vmul.f32 %v948, %v921
        %v957 = vadd.f32 %v884, %v949
        %v958 = vadd.f32 %v885, %v950
        %v959 = vadd.f32 %v886, %v951
        %v960 = vadd.f32 %v887, %v952
        %v961 = vadd.f32 %v888, %v953
        %v962 = vadd.f32 %v889, %v954
        %v963 = vadd.f32 %v890, %v955
        %v964 = vadd.f32 %v891, %v956
        %v965 = vld [vmem:[%s1 + $0x16] sm:$0x1]
        %v966 = vlaneseq
        %v967 = vshrl.u32 %v966, 7
        %v968 = vsub.s32 0, %v967
        %v969 = vrot.slane %v965, %v968
        %v970 = vmul.f32 %v969, %v915
        %v971 = vmul.f32 %v969, %v916
        %v972 = vmul.f32 %v969, %v917
        %v973 = vmul.f32 %v969, %v918
        %v974 = vmul.f32 %v969, %v919
        %v975 = vmul.f32 %v969, %v920
        %v976 = vmul.f32 %v969, %v921
        %v977 = vmul.f32 %v969, %v922
        %v978 = vadd.f32 %v936, %v970
        %v979 = vadd.f32 %v937, %v971
        %v980 = vadd.f32 %v938, %v972
        %v981 = vadd.f32 %v939, %v973
        %v982 = vadd.f32 %v940, %v974
        %v983 = vadd.f32 %v941, %v975
        %v984 = vadd.f32 %v942, %v976
        %v985 = vadd.f32 %v943, %v977
        %v986 = vld [vmem:[#allocation2 + $0x13] sm:$0xff]
        %v987 = vld [vmem:[#allocation2 + $0x23] sm:$0xff]
        %v988 = vld [vmem:[#allocation2 + $0x33] sm:$0xff]
        %v989 = vld [vmem:[#allocation2 + $0x43] sm:$0xff]
        %v990 = vld [vmem:[#allocation2 + $0x53] sm:$0xff]
        %v991 = vld [vmem:[#allocation2 + $0x63] sm:$0xff]
        %v992 = vld [vmem:[#allocation2 + $0x73] sm:$0xff]
        %v993 = vld [vmem:[#allocation2 + $0x83] sm:$0xff]
        %v994 = vld [vmem:[#allocation2 + $0x93] sm:$0xff]
        %v995 = vld [vmem:[#allocation2 + $0xa3] sm:$0xff]
        %v996 = vld [vmem:[%s1 + $0x7] sm:$0x1]
        %v997 = vlaneseq
        %v998 = vshrl.u32 %v997, 7
        %v999 = vsub.s32 0, %v998
        %v1000 = vrot.slane %v996, %v999
        %v1001 = vmul.f32 %v1000, %v986
        %v1002 = vmul.f32 %v1000, %v987
        %v1003 = vmul.f32 %v1000, %v988
        %v1004 = vmul.f32 %v1000, %v989
        %v1005 = vmul.f32 %v1000, %v990
        %v1006 = vmul.f32 %v1000, %v991
        %v1007 = vmul.f32 %v1000, %v992
        %v1008 = vmul.f32 %v1000, %v993
        %v1009 = vadd.f32 %v978, %v1001
        %v1010 = vadd.f32 %v979, %v1002
        %v1011 = vadd.f32 %v980, %v1003
        %v1012 = vadd.f32 %v981, %v1004
        %v1013 = vadd.f32 %v982, %v1005
        %v1014 = vadd.f32 %v983, %v1006
        %v1015 = vadd.f32 %v984, %v1007
        %v1016 = vadd.f32 %v985, %v1008
        %v1017 = vld [vmem:[%s1 + $0x10] sm:$0x1]
        %v1018 = vlaneseq
        %v1019 = vshrl.u32 %v1018, 7
        %v1020 = vsub.s32 0, %v1019
        %v1021 = vrot.slane %v1017, %v1020
        %v1022 = vmul.f32 %v1021, %v987
        %v1023 = vmul.f32 %v1021, %v988
        %v1024 = vmul.f32 %v1021, %v989
        %v1025 = vmul.f32 %v1021, %v990
        %v1026 = vmul.f32 %v1021, %v991
        %v1027 = vmul.f32 %v1021, %v992
        %v1028 = vmul.f32 %v1021, %v993
        %v1029 = vmul.f32 %v1021, %v994
        %v1030 = vadd.f32 %v957, %v1022
        %v1031 = vadd.f32 %v958, %v1023
        %v1032 = vadd.f32 %v959, %v1024
        %v1033 = vadd.f32 %v960, %v1025
        %v1034 = vadd.f32 %v961, %v1026
        %v1035 = vadd.f32 %v962, %v1027
        %v1036 = vadd.f32 %v963, %v1028
        %v1037 = vadd.f32 %v964, %v1029
        %v1038 = vld [vmem:[%s1 + $0x19] sm:$0x1]
        %v1039 = vlaneseq
        %v1040 = vshrl.u32 %v1039, 7
        %v1041 = vsub.s32 0, %v1040
        %v1042 = vrot.slane %v1038, %v1041
        %v1043 = vmul.f32 %v1042, %v988
        %v1044 = vmul.f32 %v1042, %v989
        %v1045 = vmul.f32 %v1042, %v990
        %v1046 = vmul.f32 %v1042, %v991
        %v1047 = vmul.f32 %v1042, %v992
        %v1048 = vmul.f32 %v1042, %v993
        %v1049 = vmul.f32 %v1042, %v994
        %v1050 = vmul.f32 %v1042, %v995
        %v1051 = vadd.f32 %v1009, %v1043
        %v1052 = vadd.f32 %v1010, %v1044
        %v1053 = vadd.f32 %v1011, %v1045
        %v1054 = vadd.f32 %v1012, %v1046
        %v1055 = vadd.f32 %v1013, %v1047
        %v1056 = vadd.f32 %v1014, %v1048
        %v1057 = vadd.f32 %v1015, %v1049
        %v1058 = vadd.f32 %v1016, %v1050
        %v1059 = vld [vmem:[%s330] sm:$0xff]
        %v1060 = vld [vmem:[%s330 + $0x8] sm:$0xf]
        %v1061 = vld [vmem:[%s330 + $0x10] sm:$0xff]
        %v1062 = vld [vmem:[%s330 + $0x18] sm:$0xf]
        %v1063 = vld [vmem:[%s330 + $0x20] sm:$0xff]
        %v1064 = vld [vmem:[%s330 + $0x28] sm:$0xf]
        %v1065 = vld [vmem:[%s330 + $0x30] sm:$0xff]
        %v1066 = vld [vmem:[%s330 + $0x38] sm:$0xf]
        %v1067 = vld [vmem:[%s330 + $0x40] sm:$0xff]
        %v1068 = vld [vmem:[%s330 + $0x48] sm:$0xf]
        %v1069 = vld [vmem:[%s330 + $0x50] sm:$0xff]
        %v1070 = vld [vmem:[%s330 + $0x58] sm:$0xf]
        %v1071 = vld [vmem:[%s330 + $0x60] sm:$0xff]
        %v1072 = vld [vmem:[%s330 + $0x68] sm:$0xf]
        %v1073 = vld [vmem:[%s330 + $0x70] sm:$0xff]
        %v1074 = vld [vmem:[%s330 + $0x78] sm:$0xf]
        %v1075 = vld [vmem:[%s330 + $0x80] sm:$0xff]
        %v1076 = vld [vmem:[%s330 + $0x88] sm:$0xf]
        %v1077 = vld [vmem:[%s330 + $0x90] sm:$0xff]
        %v1078 = vld [vmem:[%s330 + $0x98] sm:$0xf]
        %v1079 = vld [vmem:[%s330 + $0xa0] sm:$0xff]
        %v1080 = vld [vmem:[%s330 + $0xa8] sm:$0xf]
        %v1081 = vld [vmem:[%s330 + $0xb0] sm:$0xff]
        %v1082 = vld [vmem:[%s330 + $0xb8] sm:$0xf]
        %1107 = vrot.lane.b32.xlu0 %v1059, 104
        %v1108 = vpop.permute.xlu0 %1107
        %1109 = vrot.lane.b32.xlu0 %v1060, 104
        %v1110 = vpop.permute.xlu0 %1109
        %1111 = vrot.lane.b32.xlu0 %v1061, 104
        %v1112 = vpop.permute.xlu0 %1111
        %1113 = vrot.lane.b32.xlu0 %v1062, 104
        %v1114 = vpop.permute.xlu0 %1113
        %1115 = vrot.lane.b32.xlu0 %v1063, 104
        %v1116 = vpop.permute.xlu0 %1115
        %1117 = vrot.lane.b32.xlu0 %v1064, 104
        %v1118 = vpop.permute.xlu0 %1117
        %1119 = vrot.lane.b32.xlu0 %v1065, 104
        %v1120 = vpop.permute.xlu0 %1119
        %1121 = vrot.lane.b32.xlu0 %v1066, 104
        %v1122 = vpop.permute.xlu0 %1121
        %1123 = vrot.lane.b32.xlu0 %v1067, 104
        %v1124 = vpop.permute.xlu0 %1123
        %1125 = vrot.lane.b32.xlu0 %v1068, 104
        %v1126 = vpop.permute.xlu0 %1125
        %1127 = vrot.lane.b32.xlu0 %v1069, 104
        %v1128 = vpop.permute.xlu0 %1127
        %1129 = vrot.lane.b32.xlu0 %v1070, 104
        %v1130 = vpop.permute.xlu0 %1129
        %1131 = vrot.lane.b32.xlu0 %v1071, 104
        %v1132 = vpop.permute.xlu0 %1131
        %1133 = vrot.lane.b32.xlu0 %v1072, 104
        %v1134 = vpop.permute.xlu0 %1133
        %1135 = vrot.lane.b32.xlu0 %v1073, 104
        %v1136 = vpop.permute.xlu0 %1135
        %1137 = vrot.lane.b32.xlu0 %v1074, 104
        %v1138 = vpop.permute.xlu0 %1137
        %1139 = vrot.lane.b32.xlu0 %v1075, 104
        %v1140 = vpop.permute.xlu0 %1139
        %1141 = vrot.lane.b32.xlu0 %v1076, 104
        %v1142 = vpop.permute.xlu0 %1141
        %1143 = vrot.lane.b32.xlu0 %v1077, 104
        %v1144 = vpop.permute.xlu0 %1143
        %1145 = vrot.lane.b32.xlu0 %v1078, 104
        %v1146 = vpop.permute.xlu0 %1145
        %1147 = vrot.lane.b32.xlu0 %v1079, 104
        %v1148 = vpop.permute.xlu0 %1147
        %1149 = vrot.lane.b32.xlu0 %v1080, 104
        %v1150 = vpop.permute.xlu0 %1149
        %1151 = vrot.lane.b32.xlu0 %v1081, 104
        %v1152 = vpop.permute.xlu0 %1151
        %1153 = vrot.lane.b32.xlu0 %v1082, 104
        %v1154 = vpop.permute.xlu0 %1153
        %1179 = vst.msk [vmem:[#allocation2] sm:$0xff] %vm451, %v1108
        %1180 = vst.msk [vmem:[#allocation2 + $0x8] sm:$0xf] %vm453, %v1110
        %1181 = vst.msk [vmem:[#allocation2 + $0x10] sm:$0xff] %vm451, %v1112
        %1182 = vst.msk [vmem:[#allocation2 + $0x18] sm:$0xf] %vm453, %v1114
        %1183 = vst.msk [vmem:[#allocation2 + $0x20] sm:$0xff] %vm451, %v1116
        %1184 = vst.msk [vmem:[#allocation2 + $0x28] sm:$0xf] %vm453, %v1118
        %1185 = vst.msk [vmem:[#allocation2 + $0x30] sm:$0xff] %vm451, %v1120
        %1186 = vst.msk [vmem:[#allocation2 + $0x38] sm:$0xf] %vm453, %v1122
        %1187 = vst.msk [vmem:[#allocation2 + $0x40] sm:$0xff] %vm451, %v1124
        %1188 = vst.msk [vmem:[#allocation2 + $0x48] sm:$0xf] %vm453, %v1126
        %1189 = vst.msk [vmem:[#allocation2 + $0x50] sm:$0xff] %vm451, %v1128
        %1190 = vst.msk [vmem:[#allocation2 + $0x58] sm:$0xf] %vm453, %v1130
        %1191 = vst.msk [vmem:[#allocation2 + $0x60] sm:$0xff] %vm451, %v1132
        %1192 = vst.msk [vmem:[#allocation2 + $0x68] sm:$0xf] %vm453, %v1134
        %1193 = vst.msk [vmem:[#allocation2 + $0x70] sm:$0xff] %vm451, %v1136
        %1194 = vst.msk [vmem:[#allocation2 + $0x78] sm:$0xf] %vm453, %v1138
        %1195 = vst.msk [vmem:[#allocation2 + $0x80] sm:$0xff] %vm451, %v1140
        %1196 = vst.msk [vmem:[#allocation2 + $0x88] sm:$0xf] %vm453, %v1142
        %1197 = vst.msk [vmem:[#allocation2 + $0x90] sm:$0xff] %vm451, %v1144
        %1198 = vst.msk [vmem:[#allocation2 + $0x98] sm:$0xf] %vm453, %v1146
        %1199 = vst.msk [vmem:[#allocation2 + $0xa0] sm:$0xff] %vm451, %v1148
        %1200 = vst.msk [vmem:[#allocation2 + $0xa8] sm:$0xf] %vm453, %v1150
        %1201 = vst.msk [vmem:[#allocation2 + $0xb0] sm:$0xff] %vm451, %v1152
        %1202 = vst.msk [vmem:[#allocation2 + $0xb8] sm:$0xf] %vm453, %v1154
        %v1203 = vld [vmem:[#allocation2 + $0x11] sm:$0xff]
        %v1204 = vld [vmem:[#allocation2 + $0x21] sm:$0xff]
        %v1205 = vld [vmem:[#allocation2 + $0x31] sm:$0xff]
        %v1206 = vld [vmem:[#allocation2 + $0x41] sm:$0xff]
        %v1207 = vld [vmem:[#allocation2 + $0x51] sm:$0xff]
        %v1208 = vld [vmem:[#allocation2 + $0x61] sm:$0xff]
        %v1209 = vld [vmem:[#allocation2 + $0x71] sm:$0xff]
        %v1210 = vld [vmem:[#allocation2 + $0x81] sm:$0xff]
        %v1211 = vld [vmem:[#allocation2 + $0x91] sm:$0xff]
        %v1212 = vld [vmem:[#allocation2 + $0xa1] sm:$0xff]
        %v1213 = vld [vmem:[%s1 + $0x2] sm:$0x1]
        %v1214 = vlaneseq
        %v1215 = vshrl.u32 %v1214, 7
        %v1216 = vsub.s32 0, %v1215
        %v1217 = vrot.slane %v1213, %v1216
        %v1218 = vmul.f32 %v1217, %v1203
        %v1219 = vmul.f32 %v1217, %v1204
        %v1220 = vmul.f32 %v1217, %v1205
        %v1221 = vmul.f32 %v1217, %v1206
        %v1222 = vmul.f32 %v1217, %v1207
        %v1223 = vmul.f32 %v1217, %v1208
        %v1224 = vmul.f32 %v1217, %v1209
        %v1225 = vmul.f32 %v1217, %v1210
        %v1226 = vadd.f32 %v1051, %v1218
        %v1227 = vadd.f32 %v1052, %v1219
        %v1228 = vadd.f32 %v1053, %v1220
        %v1229 = vadd.f32 %v1054, %v1221
        %v1230 = vadd.f32 %v1055, %v1222
        %v1231 = vadd.f32 %v1056, %v1223
        %v1232 = vadd.f32 %v1057, %v1224
        %v1233 = vadd.f32 %v1058, %v1225
        %v1234 = vld [vmem:[%s1 + $0xb] sm:$0x1]
        %v1235 = vlaneseq
        %v1236 = vshrl.u32 %v1235, 7
        %v1237 = vsub.s32 0, %v1236
        %v1238 = vrot.slane %v1234, %v1237
        %v1239 = vmul.f32 %v1238, %v1204
        %v1240 = vmul.f32 %v1238, %v1205
        %v1241 = vmul.f32 %v1238, %v1206
        %v1242 = vmul.f32 %v1238, %v1207
        %v1243 = vmul.f32 %v1238, %v1208
        %v1244 = vmul.f32 %v1238, %v1209
        %v1245 = vmul.f32 %v1238, %v1210
        %v1246 = vmul.f32 %v1238, %v1211
        %v1247 = vadd.f32 %v1030, %v1239
        %v1248 = vadd.f32 %v1031, %v1240
        %v1249 = vadd.f32 %v1032, %v1241
        %v1250 = vadd.f32 %v1033, %v1242
        %v1251 = vadd.f32 %v1034, %v1243
        %v1252 = vadd.f32 %v1035, %v1244
        %v1253 = vadd.f32 %v1036, %v1245
        %v1254 = vadd.f32 %v1037, %v1246
        %v1255 = vld [vmem:[%s1 + $0x14] sm:$0x1]
        %v1256 = vlaneseq
        %v1257 = vshrl.u32 %v1256, 7
        %v1258 = vsub.s32 0, %v1257
        %v1259 = vrot.slane %v1255, %v1258
        %v1260 = vmul.f32 %v1259, %v1205
        %v1261 = vmul.f32 %v1259, %v1206
        %v1262 = vmul.f32 %v1259, %v1207
        %v1263 = vmul.f32 %v1259, %v1208
        %v1264 = vmul.f32 %v1259, %v1209
        %v1265 = vmul.f32 %v1259, %v1210
        %v1266 = vmul.f32 %v1259, %v1211
        %v1267 = vmul.f32 %v1259, %v1212
        %v1268 = vadd.f32 %v1226, %v1260
        %v1269 = vadd.f32 %v1227, %v1261
        %v1270 = vadd.f32 %v1228, %v1262
        %v1271 = vadd.f32 %v1229, %v1263
        %v1272 = vadd.f32 %v1230, %v1264
        %v1273 = vadd.f32 %v1231, %v1265
        %v1274 = vadd.f32 %v1232, %v1266
        %v1275 = vadd.f32 %v1233, %v1267
        %v1276 = vld [vmem:[#allocation2 + $0x12] sm:$0xff]
        %v1277 = vld [vmem:[#allocation2 + $0x22] sm:$0xff]
        %v1278 = vld [vmem:[#allocation2 + $0x32] sm:$0xff]
        %v1279 = vld [vmem:[#allocation2 + $0x42] sm:$0xff]
        %v1280 = vld [vmem:[#allocation2 + $0x52] sm:$0xff]
        %v1281 = vld [vmem:[#allocation2 + $0x62] sm:$0xff]
        %v1282 = vld [vmem:[#allocation2 + $0x72] sm:$0xff]
        %v1283 = vld [vmem:[#allocation2 + $0x82] sm:$0xff]
        %v1284 = vld [vmem:[#allocation2 + $0x92] sm:$0xff]
        %v1285 = vld [vmem:[#allocation2 + $0xa2] sm:$0xff]
        %v1286 = vld [vmem:[%s1 + $0x5] sm:$0x1]
        %v1287 = vlaneseq
        %v1288 = vshrl.u32 %v1287, 7
        %v1289 = vsub.s32 0, %v1288
        %v1290 = vrot.slane %v1286, %v1289
        %v1291 = vmul.f32 %v1290, %v1276
        %v1292 = vmul.f32 %v1290, %v1277
        %v1293 = vmul.f32 %v1290, %v1278
        %v1294 = vmul.f32 %v1290, %v1279
        %v1295 = vmul.f32 %v1290, %v1280
        %v1296 = vmul.f32 %v1290, %v1281
        %v1297 = vmul.f32 %v1290, %v1282
        %v1298 = vmul.f32 %v1290, %v1283
        %v1299 = vadd.f32 %v1268, %v1291
        %v1300 = vadd.f32 %v1269, %v1292
        %v1301 = vadd.f32 %v1270, %v1293
        %v1302 = vadd.f32 %v1271, %v1294
        %v1303 = vadd.f32 %v1272, %v1295
        %v1304 = vadd.f32 %v1273, %v1296
        %v1305 = vadd.f32 %v1274, %v1297
        %v1306 = vadd.f32 %v1275, %v1298
        %v1307 = vld [vmem:[%s1 + $0xe] sm:$0x1]
        %v1308 = vlaneseq
        %v1309 = vshrl.u32 %v1308, 7
        %v1310 = vsub.s32 0, %v1309
        %v1311 = vrot.slane %v1307, %v1310
        %v1312 = vmul.f32 %v1311, %v1277
        %v1313 = vmul.f32 %v1311, %v1278
        %v1314 = vmul.f32 %v1311, %v1279
        %v1315 = vmul.f32 %v1311, %v1280
        %v1316 = vmul.f32 %v1311, %v1281
        %v1317 = vmul.f32 %v1311, %v1282
        %v1318 = vmul.f32 %v1311, %v1283
        %v1319 = vmul.f32 %v1311, %v1284
        %v1320 = vadd.f32 %v1247, %v1312
        %v1321 = vadd.f32 %v1248, %v1313
        %v1322 = vadd.f32 %v1249, %v1314
        %v1323 = vadd.f32 %v1250, %v1315
        %v1324 = vadd.f32 %v1251, %v1316
        %v1325 = vadd.f32 %v1252, %v1317
        %v1326 = vadd.f32 %v1253, %v1318
        %v1327 = vadd.f32 %v1254, %v1319
        %v1328 = vld [vmem:[%s1 + $0x17] sm:$0x1]
        %v1329 = vlaneseq
        %v1330 = vshrl.u32 %v1329, 7
        %v1331 = vsub.s32 0, %v1330
        %v1332 = vrot.slane %v1328, %v1331
        %v1333 = vmul.f32 %v1332, %v1278
        %v1334 = vmul.f32 %v1332, %v1279
        %v1335 = vmul.f32 %v1332, %v1280
        %v1336 = vmul.f32 %v1332, %v1281
        %v1337 = vmul.f32 %v1332, %v1282
        %v1338 = vmul.f32 %v1332, %v1283
        %v1339 = vmul.f32 %v1332, %v1284
        %v1340 = vmul.f32 %v1332, %v1285
        %v1341 = vadd.f32 %v1299, %v1333
        %v1342 = vadd.f32 %v1300, %v1334
        %v1343 = vadd.f32 %v1301, %v1335
        %v1344 = vadd.f32 %v1302, %v1336
        %v1345 = vadd.f32 %v1303, %v1337
        %v1346 = vadd.f32 %v1304, %v1338
        %v1347 = vadd.f32 %v1305, %v1339
        %v1348 = vadd.f32 %v1306, %v1340
        %v1349 = vld [vmem:[#allocation2 + $0x13] sm:$0xff]
        %v1350 = vld [vmem:[#allocation2 + $0x23] sm:$0xff]
        %v1351 = vld [vmem:[#allocation2 + $0x33] sm:$0xff]
        %v1352 = vld [vmem:[#allocation2 + $0x43] sm:$0xff]
        %v1353 = vld [vmem:[#allocation2 + $0x53] sm:$0xff]
        %v1354 = vld [vmem:[#allocation2 + $0x63] sm:$0xff]
        %v1355 = vld [vmem:[#allocation2 + $0x73] sm:$0xff]
        %v1356 = vld [vmem:[#allocation2 + $0x83] sm:$0xff]
        %v1357 = vld [vmem:[#allocation2 + $0x93] sm:$0xff]
        %v1358 = vld [vmem:[#allocation2 + $0xa3] sm:$0xff]
        %v1359 = vld [vmem:[%s1 + $0x8] sm:$0x1]
        %v1360 = vlaneseq
        %v1361 = vshrl.u32 %v1360, 7
        %v1362 = vsub.s32 0, %v1361
        %v1363 = vrot.slane %v1359, %v1362
        %v1364 = vmul.f32 %v1363, %v1349
        %v1365 = vmul.f32 %v1363, %v1350
        %v1366 = vmul.f32 %v1363, %v1351
        %v1367 = vmul.f32 %v1363, %v1352
        %v1368 = vmul.f32 %v1363, %v1353
        %v1369 = vmul.f32 %v1363, %v1354
        %v1370 = vmul.f32 %v1363, %v1355
        %v1371 = vmul.f32 %v1363, %v1356
        %v1372 = vadd.f32 %v1341, %v1364
        %v1373 = vadd.f32 %v1342, %v1365
        %v1374 = vadd.f32 %v1343, %v1366
        %v1375 = vadd.f32 %v1344, %v1367
        %v1376 = vadd.f32 %v1345, %v1368
        %v1377 = vadd.f32 %v1346, %v1369
        %v1378 = vadd.f32 %v1347, %v1370
        %v1379 = vadd.f32 %v1348, %v1371
        %v1380 = vld [vmem:[%s1 + $0x11] sm:$0x1]
        %v1381 = vlaneseq
        %v1382 = vshrl.u32 %v1381, 7
        %v1383 = vsub.s32 0, %v1382
        %v1384 = vrot.slane %v1380, %v1383
        %v1385 = vmul.f32 %v1384, %v1350
        %v1386 = vmul.f32 %v1384, %v1351
        %v1387 = vmul.f32 %v1384, %v1352
        %v1388 = vmul.f32 %v1384, %v1353
        %v1389 = vmul.f32 %v1384, %v1354
        %v1390 = vmul.f32 %v1384, %v1355
        %v1391 = vmul.f32 %v1384, %v1356
        %v1392 = vmul.f32 %v1384, %v1357
        %v1393 = vadd.f32 %v1320, %v1385
        %v1394 = vadd.f32 %v1321, %v1386
        %v1395 = vadd.f32 %v1322, %v1387
        %v1396 = vadd.f32 %v1323, %v1388
        %v1397 = vadd.f32 %v1324, %v1389
        %v1398 = vadd.f32 %v1325, %v1390
        %v1399 = vadd.f32 %v1326, %v1391
        %v1400 = vadd.f32 %v1327, %v1392
        %v1401 = vld [vmem:[%s1 + $0x1a] sm:$0x1]
        %v1402 = vlaneseq
        %v1403 = vshrl.u32 %v1402, 7
        %v1404 = vsub.s32 0, %v1403
        %v1405 = vrot.slane %v1401, %v1404
        %v1406 = vmul.f32 %v1405, %v1351
        %v1407 = vmul.f32 %v1405, %v1352
        %v1408 = vmul.f32 %v1405, %v1353
        %v1409 = vmul.f32 %v1405, %v1354
        %v1410 = vmul.f32 %v1405, %v1355
        %v1411 = vmul.f32 %v1405, %v1356
        %v1412 = vmul.f32 %v1405, %v1357
        %v1413 = vmul.f32 %v1405, %v1358
        %v1414 = vadd.f32 %v1372, %v1406
        %v1415 = vadd.f32 %v1373, %v1407
        %v1416 = vadd.f32 %v1374, %v1408
        %v1417 = vadd.f32 %v1375, %v1409
        %v1418 = vadd.f32 %v1376, %v1410
        %v1419 = vadd.f32 %v1377, %v1411
        %v1420 = vadd.f32 %v1378, %v1412
        %v1421 = vadd.f32 %v1379, %v1413
        %v1422 = vadd.f32 %v1414, %v1393
        %v1423 = vadd.f32 %v1415, %v1394
        %v1424 = vadd.f32 %v1416, %v1395
        %v1425 = vadd.f32 %v1417, %v1396
        %v1426 = vadd.f32 %v1418, %v1397
        %v1427 = vadd.f32 %v1419, %v1398
        %v1428 = vadd.f32 %v1420, %v1399
        %v1429 = vadd.f32 %v1421, %v1400
        %v1430 = vld [vmem:[%s2] sm:$0x1]
        %v1432 = vlaneseq
        %v1433 = vshrl.u32 %v1432, 7
        %v1434 = vsub.s32 0, %v1433
        %v1435 = vrot.slane %v1430, %v1434
        %v1437 = vadd.f32 %v1422, %v1435
        %v1438 = vadd.f32 %v1423, %v1435
        %v1439 = vadd.f32 %v1424, %v1435
        %v1440 = vadd.f32 %v1425, %v1435
        %v1441 = vadd.f32 %v1426, %v1435
        %v1442 = vadd.f32 %v1427, %v1435
        %v1443 = vadd.f32 %v1428, %v1435
        %v1444 = vadd.f32 %v1429, %v1435
        %v1445 = vmax.f32 %v1437, 0.0
        %v1446 = vmax.f32 %v1438, 0.0
        %v1447 = vmax.f32 %v1439, 0.0
        %v1448 = vmax.f32 %v1440, 0.0
        %v1449 = vmax.f32 %v1441, 0.0
        %v1450 = vmax.f32 %v1442, 0.0
        %v1451 = vmax.f32 %v1443, 0.0
        %v1452 = vmax.f32 %v1444, 0.0
        %v1453 = vld [vmem:[%s330] sm:$0xff]
        %v1454 = vld [vmem:[%s330 + $0x8] sm:$0xf]
        %v1455 = vld [vmem:[%s330 + $0x10] sm:$0xff]
        %v1456 = vld [vmem:[%s330 + $0x18] sm:$0xf]
        %v1457 = vld [vmem:[%s330 + $0x20] sm:$0xff]
        %v1458 = vld [vmem:[%s330 + $0x28] sm:$0xf]
        %v1459 = vld [vmem:[%s330 + $0x30] sm:$0xff]
        %v1460 = vld [vmem:[%s330 + $0x38] sm:$0xf]
        %v1461 = vld [vmem:[%s330 + $0x40] sm:$0xff]
        %v1462 = vld [vmem:[%s330 + $0x48] sm:$0xf]
        %v1463 = vld [vmem:[%s330 + $0x50] sm:$0xff]
        %v1464 = vld [vmem:[%s330 + $0x58] sm:$0xf]
        %v1465 = vld [vmem:[%s330 + $0x60] sm:$0xff]
        %v1466 = vld [vmem:[%s330 + $0x68] sm:$0xf]
        %v1467 = vld [vmem:[%s330 + $0x70] sm:$0xff]
        %v1468 = vld [vmem:[%s330 + $0x78] sm:$0xf]
        %v1469 = vld [vmem:[%s330 + $0x80] sm:$0xff]
        %v1470 = vld [vmem:[%s330 + $0x88] sm:$0xf]
        %v1471 = vld [vmem:[%s330 + $0x90] sm:$0xff]
        %v1472 = vld [vmem:[%s330 + $0x98] sm:$0xf]
        %v1473 = vld [vmem:[%s330 + $0xa0] sm:$0xff]
        %v1474 = vld [vmem:[%s330 + $0xa8] sm:$0xf]
        %v1475 = vld [vmem:[%s330 + $0xb0] sm:$0xff]
        %v1476 = vld [vmem:[%s330 + $0xb8] sm:$0xf]
        %1477 = vst.msk [vmem:[#allocation2] sm:$0xff] %vm451, %v1453
        %1478 = vst.msk [vmem:[#allocation2 + $0x8] sm:$0xf] %vm453, %v1454
        %1479 = vst.msk [vmem:[#allocation2 + $0x10] sm:$0xff] %vm451, %v1455
        %1480 = vst.msk [vmem:[#allocation2 + $0x18] sm:$0xf] %vm453, %v1456
        %1481 = vst.msk [vmem:[#allocation2 + $0x20] sm:$0xff] %vm451, %v1457
        %1482 = vst.msk [vmem:[#allocation2 + $0x28] sm:$0xf] %vm453, %v1458
        %1483 = vst.msk [vmem:[#allocation2 + $0x30] sm:$0xff] %vm451, %v1459
        %1484 = vst.msk [vmem:[#allocation2 + $0x38] sm:$0xf] %vm453, %v1460
        %1485 = vst.msk [vmem:[#allocation2 + $0x40] sm:$0xff] %vm451, %v1461
        %1486 = vst.msk [vmem:[#allocation2 + $0x48] sm:$0xf] %vm453, %v1462
        %1487 = vst.msk [vmem:[#allocation2 + $0x50] sm:$0xff] %vm451, %v1463
        %1488 = vst.msk [vmem:[#allocation2 + $0x58] sm:$0xf] %vm453, %v1464
        %1489 = vst.msk [vmem:[#allocation2 + $0x60] sm:$0xff] %vm451, %v1465
        %1490 = vst.msk [vmem:[#allocation2 + $0x68] sm:$0xf] %vm453, %v1466
        %1491 = vst.msk [vmem:[#allocation2 + $0x70] sm:$0xff] %vm451, %v1467
        %1492 = vst.msk [vmem:[#allocation2 + $0x78] sm:$0xf] %vm453, %v1468
        %1493 = vst.msk [vmem:[#allocation2 + $0x80] sm:$0xff] %vm451, %v1469
        %1494 = vst.msk [vmem:[#allocation2 + $0x88] sm:$0xf] %vm453, %v1470
        %1495 = vst.msk [vmem:[#allocation2 + $0x90] sm:$0xff] %vm451, %v1471
        %1496 = vst.msk [vmem:[#allocation2 + $0x98] sm:$0xf] %vm453, %v1472
        %1497 = vst.msk [vmem:[#allocation2 + $0xa0] sm:$0xff] %vm451, %v1473
        %1498 = vst.msk [vmem:[#allocation2 + $0xa8] sm:$0xf] %vm453, %v1474
        %1499 = vst.msk [vmem:[#allocation2 + $0xb0] sm:$0xff] %vm451, %v1475
        %1500 = vst.msk [vmem:[#allocation2 + $0xb8] sm:$0xf] %vm453, %v1476
        %v1501 = vld [vmem:[#allocation2] sm:$0xff]
        %v1502 = vld [vmem:[#allocation2 + $0x10] sm:$0xff]
        %v1503 = vld [vmem:[#allocation2 + $0x20] sm:$0xff]
        %v1504 = vld [vmem:[#allocation2 + $0x30] sm:$0xff]
        %v1505 = vld [vmem:[#allocation2 + $0x40] sm:$0xff]
        %v1506 = vld [vmem:[#allocation2 + $0x50] sm:$0xff]
        %v1507 = vld [vmem:[#allocation2 + $0x60] sm:$0xff]
        %v1508 = vld [vmem:[#allocation2 + $0x70] sm:$0xff]
        %v1509 = vld [vmem:[#allocation2 + $0x80] sm:$0xff]
        %v1510 = vld [vmem:[#allocation2 + $0x90] sm:$0xff]
        %v1511 = vld [vmem:[#allocation2 + $0xa0] sm:$0xff]
        %v1512 = vld [vmem:[#allocation2 + $0xb0] sm:$0xff]
        %v1513 = vld [vmem:[%s3] sm:$0x1]
        %v1514 = vlaneseq
        %v1515 = vshrl.u32 %v1514, 7
        %v1516 = vsub.s32 0, %v1515
        %v1517 = vrot.slane %v1513, %v1516
        %v1518 = vmul.f32 %v1517, %v1501
        %v1519 = vmul.f32 %v1517, %v1502
        %v1520 = vmul.f32 %v1517, %v1503
        %v1521 = vmul.f32 %v1517, %v1504
        %v1522 = vmul.f32 %v1517, %v1505
        %v1523 = vmul.f32 %v1517, %v1506
        %v1524 = vmul.f32 %v1517, %v1507
        %v1525 = vmul.f32 %v1517, %v1508
        %v1526 = vadd.f32 %v1518, 0.0
        %v1527 = vadd.f32 %v1519, 0.0
        %v1528 = vadd.f32 %v1520, 0.0
        %v1529 = vadd.f32 %v1521, 0.0
        %v1530 = vadd.f32 %v1522, 0.0
        %v1531 = vadd.f32 %v1523, 0.0
        %v1532 = vadd.f32 %v1524, 0.0
        %v1533 = vadd.f32 %v1525, 0.0
        %v1534 = vld [vmem:[%s3 + $0x19] sm:$0x1]
        %v1535 = vlaneseq
        %v1536 = vshrl.u32 %v1535, 7
        %v1537 = vsub.s32 0, %v1536
        %v1538 = vrot.slane %v1534, %v1537
        %v1539 = vmul.f32 %v1538, %v1502
        %v1540 = vmul.f32 %v1538, %v1503
        %v1541 = vmul.f32 %v1538, %v1504
        %v1542 = vmul.f32 %v1538, %v1505
        %v1543 = vmul.f32 %v1538, %v1506
        %v1544 = vmul.f32 %v1538, %v1507
        %v1545 = vmul.f32 %v1538, %v1508
        %v1546 = vmul.f32 %v1538, %v1509
        %v1547 = vadd.f32 %v1539, 0.0
        %v1548 = vadd.f32 %v1540, 0.0
        %v1549 = vadd.f32 %v1541, 0.0
        %v1550 = vadd.f32 %v1542, 0.0
        %v1551 = vadd.f32 %v1543, 0.0
        %v1552 = vadd.f32 %v1544, 0.0
        %v1553 = vadd.f32 %v1545, 0.0
        %v1554 = vadd.f32 %v1546, 0.0
        %v1555 = vld [vmem:[%s3 + $0x32] sm:$0x1]
        %v1556 = vlaneseq
        %v1557 = vshrl.u32 %v1556, 7
        %v1558 = vsub.s32 0, %v1557
        %v1559 = vrot.slane %v1555, %v1558
        %v1560 = vmul.f32 %v1559, %v1503
        %v1561 = vmul.f32 %v1559, %v1504
        %v1562 = vmul.f32 %v1559, %v1505
        %v1563 = vmul.f32 %v1559, %v1506
        %v1564 = vmul.f32 %v1559, %v1507
        %v1565 = vmul.f32 %v1559, %v1508
        %v1566 = vmul.f32 %v1559, %v1509
        %v1567 = vmul.f32 %v1559, %v1510
        %v1568 = vadd.f32 %v1526, %v1560
        %v1569 = vadd.f32 %v1527, %v1561
        %v1570 = vadd.f32 %v1528, %v1562
        %v1571 = vadd.f32 %v1529, %v1563
        %v1572 = vadd.f32 %v1530, %v1564
        %v1573 = vadd.f32 %v1531, %v1565
        %v1574 = vadd.f32 %v1532, %v1566
        %v1575 = vadd.f32 %v1533, %v1567
        %v1576 = vld [vmem:[%s3 + $0x4b] sm:$0x1]
        %v1577 = vlaneseq
        %v1578 = vshrl.u32 %v1577, 7
        %v1579 = vsub.s32 0, %v1578
        %v1580 = vrot.slane %v1576, %v1579
        %v1581 = vmul.f32 %v1580, %v1504
        %v1582 = vmul.f32 %v1580, %v1505
        %v1583 = vmul.f32 %v1580, %v1506
        %v1584 = vmul.f32 %v1580, %v1507
        %v1585 = vmul.f32 %v1580, %v1508
        %v1586 = vmul.f32 %v1580, %v1509
        %v1587 = vmul.f32 %v1580, %v1510
        %v1588 = vmul.f32 %v1580, %v1511
        %v1589 = vadd.f32 %v1547, %v1581
        %v1590 = vadd.f32 %v1548, %v1582
        %v1591 = vadd.f32 %v1549, %v1583
        %v1592 = vadd.f32 %v1550, %v1584
        %v1593 = vadd.f32 %v1551, %v1585
        %v1594 = vadd.f32 %v1552, %v1586
        %v1595 = vadd.f32 %v1553, %v1587
        %v1596 = vadd.f32 %v1554, %v1588
        %v1597 = vld [vmem:[%s3 + $0x64] sm:$0x1]
        %v1598 = vlaneseq
        %v1599 = vshrl.u32 %v1598, 7
        %v1600 = vsub.s32 0, %v1599
        %v1601 = vrot.slane %v1597, %v1600
        %v1602 = vmul.f32 %v1601, %v1505
        %v1603 = vmul.f32 %v1601, %v1506
        %v1604 = vmul.f32 %v1601, %v1507
        %v1605 = vmul.f32 %v1601, %v1508
        %v1606 = vmul.f32 %v1601, %v1509
        %v1607 = vmul.f32 %v1601, %v1510
        %v1608 = vmul.f32 %v1601, %v1511
        %v1609 = vmul.f32 %v1601, %v1512
        %v1610 = vadd.f32 %v1568, %v1602
        %v1611 = vadd.f32 %v1569, %v1603
        %v1612 = vadd.f32 %v1570, %v1604
        %v1613 = vadd.f32 %v1571, %v1605
        %v1614 = vadd.f32 %v1572, %v1606
        %v1615 = vadd.f32 %v1573, %v1607
        %v1616 = vadd.f32 %v1574, %v1608
        %v1617 = vadd.f32 %v1575, %v1609
        %v1618 = vld [vmem:[#allocation2 + $0x1] sm:$0xff]
        %v1619 = vld [vmem:[#allocation2 + $0x11] sm:$0xff]
        %v1620 = vld [vmem:[#allocation2 + $0x21] sm:$0xff]
        %v1621 = vld [vmem:[#allocation2 + $0x31] sm:$0xff]
        %v1622 = vld [vmem:[#allocation2 + $0x41] sm:$0xff]
        %v1623 = vld [vmem:[#allocation2 + $0x51] sm:$0xff]
        %v1624 = vld [vmem:[#allocation2 + $0x61] sm:$0xff]
        %v1625 = vld [vmem:[#allocation2 + $0x71] sm:$0xff]
        %v1626 = vld [vmem:[#allocation2 + $0x81] sm:$0xff]
        %v1627 = vld [vmem:[#allocation2 + $0x91] sm:$0xff]
        %v1628 = vld [vmem:[#allocation2 + $0xa1] sm:$0xff]
        %v1629 = vld [vmem:[#allocation2 + $0xb1] sm:$0xff]
        %v1630 = vld [vmem:[%s3 + $0x5] sm:$0x1]
        %v1631 = vlaneseq
        %v1632 = vshrl.u32 %v1631, 7
        %v1633 = vsub.s32 0, %v1632
        %v1634 = vrot.slane %v1630, %v1633
        %v1635 = vmul.f32 %v1634, %v1618
        %v1636 = vmul.f32 %v1634, %v1619
        %v1637 = vmul.f32 %v1634, %v1620
        %v1638 = vmul.f32 %v1634, %v1621
        %v1639 = vmul.f32 %v1634, %v1622
        %v1640 = vmul.f32 %v1634, %v1623
        %v1641 = vmul.f32 %v1634, %v1624
        %v1642 = vmul.f32 %v1634, %v1625
        %v1643 = vadd.f32 %v1610, %v1635
        %v1644 = vadd.f32 %v1611, %v1636
        %v1645 = vadd.f32 %v1612, %v1637
        %v1646 = vadd.f32 %v1613, %v1638
        %v1647 = vadd.f32 %v1614, %v1639
        %v1648 = vadd.f32 %v1615, %v1640
        %v1649 = vadd.f32 %v1616, %v1641
        %v1650 = vadd.f32 %v1617, %v1642
        %v1651 = vld [vmem:[%s3 + $0x1e] sm:$0x1]
        %v1652 = vlaneseq
        %v1653 = vshrl.u32 %v1652, 7
        %v1654 = vsub.s32 0, %v1653
        %v1655 = vrot.slane %v1651, %v1654
        %v1656 = vmul.f32 %v1655, %v1619
        %v1657 = vmul.f32 %v1655, %v1620
        %v1658 = vmul.f32 %v1655, %v1621
        %v1659 = vmul.f32 %v1655, %v1622
        %v1660 = vmul.f32 %v1655, %v1623
        %v1661 = vmul.f32 %v1655, %v1624
        %v1662 = vmul.f32 %v1655, %v1625
        %v1663 = vmul.f32 %v1655, %v1626
        %v1664 = vadd.f32 %v1589, %v1656
        %v1665 = vadd.f32 %v1590, %v1657
        %v1666 = vadd.f32 %v1591, %v1658
        %v1667 = vadd.f32 %v1592, %v1659
        %v1668 = vadd.f32 %v1593, %v1660
        %v1669 = vadd.f32 %v1594, %v1661
        %v1670 = vadd.f32 %v1595, %v1662
        %v1671 = vadd.f32 %v1596, %v1663
        %v1672 = vld [vmem:[%s3 + $0x37] sm:$0x1]
        %v1673 = vlaneseq
        %v1674 = vshrl.u32 %v1673, 7
        %v1675 = vsub.s32 0, %v1674
        %v1676 = vrot.slane %v1672, %v1675
        %v1677 = vmul.f32 %v1676, %v1620
        %v1678 = vmul.f32 %v1676, %v1621
        %v1679 = vmul.f32 %v1676, %v1622
        %v1680 = vmul.f32 %v1676, %v1623
        %v1681 = vmul.f32 %v1676, %v1624
        %v1682 = vmul.f32 %v1676, %v1625
        %v1683 = vmul.f32 %v1676, %v1626
        %v1684 = vmul.f32 %v1676, %v1627
        %v1685 = vadd.f32 %v1643, %v1677
        %v1686 = vadd.f32 %v1644, %v1678
        %v1687 = vadd.f32 %v1645, %v1679
        %v1688 = vadd.f32 %v1646, %v1680
        %v1689 = vadd.f32 %v1647, %v1681
        %v1690 = vadd.f32 %v1648, %v1682
        %v1691 = vadd.f32 %v1649, %v1683
        %v1692 = vadd.f32 %v1650, %v1684
        %v1693 = vld [vmem:[%s3 + $0x50] sm:$0x1]
        %v1694 = vlaneseq
        %v1695 = vshrl.u32 %v1694, 7
        %v1696 = vsub.s32 0, %v1695
        %v1697 = vrot.slane %v1693, %v1696
        %v1698 = vmul.f32 %v1697, %v1621
        %v1699 = vmul.f32 %v1697, %v1622
        %v1700 = vmul.f32 %v1697, %v1623
        %v1701 = vmul.f32 %v1697, %v1624
        %v1702 = vmul.f32 %v1697, %v1625
        %v1703 = vmul.f32 %v1697, %v1626
        %v1704 = vmul.f32 %v1697, %v1627
        %v1705 = vmul.f32 %v1697, %v1628
        %v1706 = vadd.f32 %v1664, %v1698
        %v1707 = vadd.f32 %v1665, %v1699
        %v1708 = vadd.f32 %v1666, %v1700
        %v1709 = vadd.f32 %v1667, %v1701
        %v1710 = vadd.f32 %v1668, %v1702
        %v1711 = vadd.f32 %v1669, %v1703
        %v1712 = vadd.f32 %v1670, %v1704
        %v1713 = vadd.f32 %v1671, %v1705
        %v1714 = vld [vmem:[%s3 + $0x69] sm:$0x1]
        %v1715 = vlaneseq
        %v1716 = vshrl.u32 %v1715, 7
        %v1717 = vsub.s32 0, %v1716
        %v1718 = vrot.slane %v1714, %v1717
        %v1719 = vmul.f32 %v1718, %v1622
        %v1720 = vmul.f32 %v1718, %v1623
        %v1721 = vmul.f32 %v1718, %v1624
        %v1722 = vmul.f32 %v1718, %v1625
        %v1723 = vmul.f32 %v1718, %v1626
        %v1724 = vmul.f32 %v1718, %v1627
        %v1725 = vmul.f32 %v1718, %v1628
        %v1726 = vmul.f32 %v1718, %v1629
        %v1727 = vadd.f32 %v1685, %v1719
        %v1728 = vadd.f32 %v1686, %v1720
        %v1729 = vadd.f32 %v1687, %v1721
        %v1730 = vadd.f32 %v1688, %v1722
        %v1731 = vadd.f32 %v1689, %v1723
        %v1732 = vadd.f32 %v1690, %v1724
        %v1733 = vadd.f32 %v1691, %v1725
        %v1734 = vadd.f32 %v1692, %v1726
        %v1735 = vld [vmem:[#allocation2 + $0x2] sm:$0xff]
        %v1736 = vld [vmem:[#allocation2 + $0x12] sm:$0xff]
        %v1737 = vld [vmem:[#allocation2 + $0x22] sm:$0xff]
        %v1738 = vld [vmem:[#allocation2 + $0x32] sm:$0xff]
        %v1739 = vld [vmem:[#allocation2 + $0x42] sm:$0xff]
        %v1740 = vld [vmem:[#allocation2 + $0x52] sm:$0xff]
        %v1741 = vld [vmem:[#allocation2 + $0x62] sm:$0xff]
        %v1742 = vld [vmem:[#allocation2 + $0x72] sm:$0xff]
        %v1743 = vld [vmem:[#allocation2 + $0x82] sm:$0xff]
        %v1744 = vld [vmem:[#allocation2 + $0x92] sm:$0xff]
        %v1745 = vld [vmem:[#allocation2 + $0xa2] sm:$0xff]
        %v1746 = vld [vmem:[#allocation2 + $0xb2] sm:$0xff]
        %v1747 = vld [vmem:[%s3 + $0xa] sm:$0x1]
        %v1748 = vlaneseq
        %v1749 = vshrl.u32 %v1748, 7
        %v1750 = vsub.s32 0, %v1749
        %v1751 = vrot.slane %v1747, %v1750
        %v1752 = vmul.f32 %v1751, %v1735
        %v1753 = vmul.f32 %v1751, %v1736
        %v1754 = vmul.f32 %v1751, %v1737
        %v1755 = vmul.f32 %v1751, %v1738
        %v1756 = vmul.f32 %v1751, %v1739
        %v1757 = vmul.f32 %v1751, %v1740
        %v1758 = vmul.f32 %v1751, %v1741
        %v1759 = vmul.f32 %v1751, %v1742
        %v1760 = vadd.f32 %v1727, %v1752
        %v1761 = vadd.f32 %v1728, %v1753
        %v1762 = vadd.f32 %v1729, %v1754
        %v1763 = vadd.f32 %v1730, %v1755
        %v1764 = vadd.f32 %v1731, %v1756
        %v1765 = vadd.f32 %v1732, %v1757
        %v1766 = vadd.f32 %v1733, %v1758
        %v1767 = vadd.f32 %v1734, %v1759
        %v1768 = vld [vmem:[%s3 + $0x23] sm:$0x1]
        %v1769 = vlaneseq
        %v1770 = vshrl.u32 %v1769, 7
        %v1771 = vsub.s32 0, %v1770
        %v1772 = vrot.slane %v1768, %v1771
        %v1773 = vmul.f32 %v1772, %v1736
        %v1774 = vmul.f32 %v1772, %v1737
        %v1775 = vmul.f32 %v1772, %v1738
        %v1776 = vmul.f32 %v1772, %v1739
        %v1777 = vmul.f32 %v1772, %v1740
        %v1778 = vmul.f32 %v1772, %v1741
        %v1779 = vmul.f32 %v1772, %v1742
        %v1780 = vmul.f32 %v1772, %v1743
        %v1781 = vadd.f32 %v1706, %v1773
        %v1782 = vadd.f32 %v1707, %v1774
        %v1783 = vadd.f32 %v1708, %v1775
        %v1784 = vadd.f32 %v1709, %v1776
        %v1785 = vadd.f32 %v1710, %v1777
        %v1786 = vadd.f32 %v1711, %v1778
        %v1787 = vadd.f32 %v1712, %v1779
        %v1788 = vadd.f32 %v1713, %v1780
        %v1789 = vld [vmem:[%s3 + $0x3c] sm:$0x1]
        %v1790 = vlaneseq
        %v1791 = vshrl.u32 %v1790, 7
        %v1792 = vsub.s32 0, %v1791
        %v1793 = vrot.slane %v1789, %v1792
        %v1794 = vmul.f32 %v1793, %v1737
        %v1795 = vmul.f32 %v1793, %v1738
        %v1796 = vmul.f32 %v1793, %v1739
        %v1797 = vmul.f32 %v1793, %v1740
        %v1798 = vmul.f32 %v1793, %v1741
        %v1799 = vmul.f32 %v1793, %v1742
        %v1800 = vmul.f32 %v1793, %v1743
        %v1801 = vmul.f32 %v1793, %v1744
        %v1802 = vadd.f32 %v1760, %v1794
        %v1803 = vadd.f32 %v1761, %v1795
        %v1804 = vadd.f32 %v1762, %v1796
        %v1805 = vadd.f32 %v1763, %v1797
        %v1806 = vadd.f32 %v1764, %v1798
        %v1807 = vadd.f32 %v1765, %v1799
        %v1808 = vadd.f32 %v1766, %v1800
        %v1809 = vadd.f32 %v1767, %v1801
        %v1810 = vld [vmem:[%s3 + $0x55] sm:$0x1]
        %v1811 = vlaneseq
        %v1812 = vshrl.u32 %v1811, 7
        %v1813 = vsub.s32 0, %v1812
        %v1814 = vrot.slane %v1810, %v1813
        %v1815 = vmul.f32 %v1814, %v1738
        %v1816 = vmul.f32 %v1814, %v1739
        %v1817 = vmul.f32 %v1814, %v1740
        %v1818 = vmul.f32 %v1814, %v1741
        %v1819 = vmul.f32 %v1814, %v1742
        %v1820 = vmul.f32 %v1814, %v1743
        %v1821 = vmul.f32 %v1814, %v1744
        %v1822 = vmul.f32 %v1814, %v1745
        %v1823 = vadd.f32 %v1781, %v1815
        %v1824 = vadd.f32 %v1782, %v1816
        %v1825 = vadd.f32 %v1783, %v1817
        %v1826 = vadd.f32 %v1784, %v1818
        %v1827 = vadd.f32 %v1785, %v1819
        %v1828 = vadd.f32 %v1786, %v1820
        %v1829 = vadd.f32 %v1787, %v1821
        %v1830 = vadd.f32 %v1788, %v1822
        %v1831 = vld [vmem:[%s3 + $0x6e] sm:$0x1]
        %v1832 = vlaneseq
        %v1833 = vshrl.u32 %v1832, 7
        %v1834 = vsub.s32 0, %v1833
        %v1835 = vrot.slane %v1831, %v1834
        %v1836 = vmul.f32 %v1835, %v1739
        %v1837 = vmul.f32 %v1835, %v1740
        %v1838 = vmul.f32 %v1835, %v1741
        %v1839 = vmul.f32 %v1835, %v1742
        %v1840 = vmul.f32 %v1835, %v1743
        %v1841 = vmul.f32 %v1835, %v1744
        %v1842 = vmul.f32 %v1835, %v1745
        %v1843 = vmul.f32 %v1835, %v1746
        %v1844 = vadd.f32 %v1802, %v1836
        %v1845 = vadd.f32 %v1803, %v1837
        %v1846 = vadd.f32 %v1804, %v1838
        %v1847 = vadd.f32 %v1805, %v1839
        %v1848 = vadd.f32 %v1806, %v1840
        %v1849 = vadd.f32 %v1807, %v1841
        %v1850 = vadd.f32 %v1808, %v1842
        %v1851 = vadd.f32 %v1809, %v1843
        %v1852 = vld [vmem:[#allocation2 + $0x3] sm:$0xff]
        %v1853 = vld [vmem:[#allocation2 + $0x13] sm:$0xff]
        %v1854 = vld [vmem:[#allocation2 + $0x23] sm:$0xff]
        %v1855 = vld [vmem:[#allocation2 + $0x33] sm:$0xff]
        %v1856 = vld [vmem:[#allocation2 + $0x43] sm:$0xff]
        %v1857 = vld [vmem:[#allocation2 + $0x53] sm:$0xff]
        %v1858 = vld [vmem:[#allocation2 + $0x63] sm:$0xff]
        %v1859 = vld [vmem:[#allocation2 + $0x73] sm:$0xff]
        %v1860 = vld [vmem:[#allocation2 + $0x83] sm:$0xff]
        %v1861 = vld [vmem:[#allocation2 + $0x93] sm:$0xff]
        %v1862 = vld [vmem:[#allocation2 + $0xa3] sm:$0xff]
        %v1863 = vld [vmem:[#allocation2 + $0xb3] sm:$0xff]
        %v1864 = vld [vmem:[%s3 + $0xf] sm:$0x1]
        %v1865 = vlaneseq
        %v1866 = vshrl.u32 %v1865, 7
        %v1867 = vsub.s32 0, %v1866
        %v1868 = vrot.slane %v1864, %v1867
        %v1869 = vmul.f32 %v1868, %v1852
        %v1870 = vmul.f32 %v1868, %v1853
        %v1871 = vmul.f32 %v1868, %v1854
        %v1872 = vmul.f32 %v1868, %v1855
        %v1873 = vmul.f32 %v1868, %v1856
        %v1874 = vmul.f32 %v1868, %v1857
        %v1875 = vmul.f32 %v1868, %v1858
        %v1876 = vmul.f32 %v1868, %v1859
        %v1877 = vadd.f32 %v1844, %v1869
        %v1878 = vadd.f32 %v1845, %v1870
        %v1879 = vadd.f32 %v1846, %v1871
        %v1880 = vadd.f32 %v1847, %v1872
        %v1881 = vadd.f32 %v1848, %v1873
        %v1882 = vadd.f32 %v1849, %v1874
        %v1883 = vadd.f32 %v1850, %v1875
        %v1884 = vadd.f32 %v1851, %v1876
        %v1885 = vld [vmem:[%s3 + $0x28] sm:$0x1]
        %v1886 = vlaneseq
        %v1887 = vshrl.u32 %v1886, 7
        %v1888 = vsub.s32 0, %v1887
        %v1889 = vrot.slane %v1885, %v1888
        %v1890 = vmul.f32 %v1889, %v1853
        %v1891 = vmul.f32 %v1889, %v1854
        %v1892 = vmul.f32 %v1889, %v1855
        %v1893 = vmul.f32 %v1889, %v1856
        %v1894 = vmul.f32 %v1889, %v1857
        %v1895 = vmul.f32 %v1889, %v1858
        %v1896 = vmul.f32 %v1889, %v1859
        %v1897 = vmul.f32 %v1889, %v1860
        %v1898 = vadd.f32 %v1823, %v1890
        %v1899 = vadd.f32 %v1824, %v1891
        %v1900 = vadd.f32 %v1825, %v1892
        %v1901 = vadd.f32 %v1826, %v1893
        %v1902 = vadd.f32 %v1827, %v1894
        %v1903 = vadd.f32 %v1828, %v1895
        %v1904 = vadd.f32 %v1829, %v1896
        %v1905 = vadd.f32 %v1830, %v1897
        %v1906 = vld [vmem:[%s3 + $0x41] sm:$0x1]
        %v1907 = vlaneseq
        %v1908 = vshrl.u32 %v1907, 7
        %v1909 = vsub.s32 0, %v1908
        %v1910 = vrot.slane %v1906, %v1909
        %v1911 = vmul.f32 %v1910, %v1854
        %v1912 = vmul.f32 %v1910, %v1855
        %v1913 = vmul.f32 %v1910, %v1856
        %v1914 = vmul.f32 %v1910, %v1857
        %v1915 = vmul.f32 %v1910, %v1858
        %v1916 = vmul.f32 %v1910, %v1859
        %v1917 = vmul.f32 %v1910, %v1860
        %v1918 = vmul.f32 %v1910, %v1861
        %v1919 = vadd.f32 %v1877, %v1911
        %v1920 = vadd.f32 %v1878, %v1912
        %v1921 = vadd.f32 %v1879, %v1913
        %v1922 = vadd.f32 %v1880, %v1914
        %v1923 = vadd.f32 %v1881, %v1915
        %v1924 = vadd.f32 %v1882, %v1916
        %v1925 = vadd.f32 %v1883, %v1917
        %v1926 = vadd.f32 %v1884, %v1918
        %v1927 = vld [vmem:[%s3 + $0x5a] sm:$0x1]
        %v1928 = vlaneseq
        %v1929 = vshrl.u32 %v1928, 7
        %v1930 = vsub.s32 0, %v1929
        %v1931 = vrot.slane %v1927, %v1930
        %v1932 = vmul.f32 %v1931, %v1855
        %v1933 = vmul.f32 %v1931, %v1856
        %v1934 = vmul.f32 %v1931, %v1857
        %v1935 = vmul.f32 %v1931, %v1858
        %v1936 = vmul.f32 %v1931, %v1859
        %v1937 = vmul.f32 %v1931, %v1860
        %v1938 = vmul.f32 %v1931, %v1861
        %v1939 = vmul.f32 %v1931, %v1862
        %v1940 = vadd.f32 %v1898, %v1932
        %v1941 = vadd.f32 %v1899, %v1933
        %v1942 = vadd.f32 %v1900, %v1934
        %v1943 = vadd.f32 %v1901, %v1935
        %v1944 = vadd.f32 %v1902, %v1936
        %v1945 = vadd.f32 %v1903, %v1937
        %v1946 = vadd.f32 %v1904, %v1938
        %v1947 = vadd.f32 %v1905, %v1939
        %v1948 = vld [vmem:[%s3 + $0x73] sm:$0x1]
        %v1949 = vlaneseq
        %v1950 = vshrl.u32 %v1949, 7
        %v1951 = vsub.s32 0, %v1950
        %v1952 = vrot.slane %v1948, %v1951
        %v1953 = vmul.f32 %v1952, %v1856
        %v1954 = vmul.f32 %v1952, %v1857
        %v1955 = vmul.f32 %v1952, %v1858
        %v1956 = vmul.f32 %v1952, %v1859
        %v1957 = vmul.f32 %v1952, %v1860
        %v1958 = vmul.f32 %v1952, %v1861
        %v1959 = vmul.f32 %v1952, %v1862
        %v1960 = vmul.f32 %v1952, %v1863
        %v1961 = vadd.f32 %v1919, %v1953
        %v1962 = vadd.f32 %v1920, %v1954
        %v1963 = vadd.f32 %v1921, %v1955
        %v1964 = vadd.f32 %v1922, %v1956
        %v1965 = vadd.f32 %v1923, %v1957
        %v1966 = vadd.f32 %v1924, %v1958
        %v1967 = vadd.f32 %v1925, %v1959
        %v1968 = vadd.f32 %v1926, %v1960
        %v1969 = vld [vmem:[#allocation2 + $0x4] sm:$0xff]
        %v1970 = vld [vmem:[#allocation2 + $0x14] sm:$0xff]
        %v1971 = vld [vmem:[#allocation2 + $0x24] sm:$0xff]
        %v1972 = vld [vmem:[#allocation2 + $0x34] sm:$0xff]
        %v1973 = vld [vmem:[#allocation2 + $0x44] sm:$0xff]
        %v1974 = vld [vmem:[#allocation2 + $0x54] sm:$0xff]
        %v1975 = vld [vmem:[#allocation2 + $0x64] sm:$0xff]
        %v1976 = vld [vmem:[#allocation2 + $0x74] sm:$0xff]
        %v1977 = vld [vmem:[#allocation2 + $0x84] sm:$0xff]
        %v1978 = vld [vmem:[#allocation2 + $0x94] sm:$0xff]
        %v1979 = vld [vmem:[#allocation2 + $0xa4] sm:$0xff]
        %v1980 = vld [vmem:[#allocation2 + $0xb4] sm:$0xff]
        %v1981 = vld [vmem:[%s3 + $0x14] sm:$0x1]
        %v1982 = vlaneseq
        %v1983 = vshrl.u32 %v1982, 7
        %v1984 = vsub.s32 0, %v1983
        %v1985 = vrot.slane %v1981, %v1984
        %v1986 = vmul.f32 %v1985, %v1969
        %v1987 = vmul.f32 %v1985, %v1970
        %v1988 = vmul.f32 %v1985, %v1971
        %v1989 = vmul.f32 %v1985, %v1972
        %v1990 = vmul.f32 %v1985, %v1973
        %v1991 = vmul.f32 %v1985, %v1974
        %v1992 = vmul.f32 %v1985, %v1975
        %v1993 = vmul.f32 %v1985, %v1976
        %v1994 = vadd.f32 %v1961, %v1986
        %v1995 = vadd.f32 %v1962, %v1987
        %v1996 = vadd.f32 %v1963, %v1988
        %v1997 = vadd.f32 %v1964, %v1989
        %v1998 = vadd.f32 %v1965, %v1990
        %v1999 = vadd.f32 %v1966, %v1991
        %v2000 = vadd.f32 %v1967, %v1992
        %v2001 = vadd.f32 %v1968, %v1993
        %v2002 = vld [vmem:[%s3 + $0x2d] sm:$0x1]
        %v2003 = vlaneseq
        %v2004 = vshrl.u32 %v2003, 7
        %v2005 = vsub.s32 0, %v2004
        %v2006 = vrot.slane %v2002, %v2005
        %v2007 = vmul.f32 %v2006, %v1970
        %v2008 = vmul.f32 %v2006, %v1971
        %v2009 = vmul.f32 %v2006, %v1972
        %v2010 = vmul.f32 %v2006, %v1973
        %v2011 = vmul.f32 %v2006, %v1974
        %v2012 = vmul.f32 %v2006, %v1975
        %v2013 = vmul.f32 %v2006, %v1976
        %v2014 = vmul.f32 %v2006, %v1977
        %v2015 = vadd.f32 %v1940, %v2007
        %v2016 = vadd.f32 %v1941, %v2008
        %v2017 = vadd.f32 %v1942, %v2009
        %v2018 = vadd.f32 %v1943, %v2010
        %v2019 = vadd.f32 %v1944, %v2011
        %v2020 = vadd.f32 %v1945, %v2012
        %v2021 = vadd.f32 %v1946, %v2013
        %v2022 = vadd.f32 %v1947, %v2014
        %v2023 = vld [vmem:[%s3 + $0x46] sm:$0x1]
        %v2024 = vlaneseq
        %v2025 = vshrl.u32 %v2024, 7
        %v2026 = vsub.s32 0, %v2025
        %v2027 = vrot.slane %v2023, %v2026
        %v2028 = vmul.f32 %v2027, %v1971
        %v2029 = vmul.f32 %v2027, %v1972
        %v2030 = vmul.f32 %v2027, %v1973
        %v2031 = vmul.f32 %v2027, %v1974
        %v2032 = vmul.f32 %v2027, %v1975
        %v2033 = vmul.f32 %v2027, %v1976
        %v2034 = vmul.f32 %v2027, %v1977
        %v2035 = vmul.f32 %v2027, %v1978
        %v2036 = vadd.f32 %v1994, %v2028
        %v2037 = vadd.f32 %v1995, %v2029
        %v2038 = vadd.f32 %v1996, %v2030
        %v2039 = vadd.f32 %v1997, %v2031
        %v2040 = vadd.f32 %v1998, %v2032
        %v2041 = vadd.f32 %v1999, %v2033
        %v2042 = vadd.f32 %v2000, %v2034
        %v2043 = vadd.f32 %v2001, %v2035
        %v2044 = vld [vmem:[%s3 + $0x5f] sm:$0x1]
        %v2045 = vlaneseq
        %v2046 = vshrl.u32 %v2045, 7
        %v2047 = vsub.s32 0, %v2046
        %v2048 = vrot.slane %v2044, %v2047
        %v2049 = vmul.f32 %v2048, %v1972
        %v2050 = vmul.f32 %v2048, %v1973
        %v2051 = vmul.f32 %v2048, %v1974
        %v2052 = vmul.f32 %v2048, %v1975
        %v2053 = vmul.f32 %v2048, %v1976
        %v2054 = vmul.f32 %v2048, %v1977
        %v2055 = vmul.f32 %v2048, %v1978
        %v2056 = vmul.f32 %v2048, %v1979
        %v2057 = vadd.f32 %v2015, %v2049
        %v2058 = vadd.f32 %v2016, %v2050
        %v2059 = vadd.f32 %v2017, %v2051
        %v2060 = vadd.f32 %v2018, %v2052
        %v2061 = vadd.f32 %v2019, %v2053
        %v2062 = vadd.f32 %v2020, %v2054
        %v2063 = vadd.f32 %v2021, %v2055
        %v2064 = vadd.f32 %v2022, %v2056
        %v2065 = vld [vmem:[%s3 + $0x78] sm:$0x1]
        %v2066 = vlaneseq
        %v2067 = vshrl.u32 %v2066, 7
        %v2068 = vsub.s32 0, %v2067
        %v2069 = vrot.slane %v2065, %v2068
        %v2070 = vmul.f32 %v2069, %v1973
        %v2071 = vmul.f32 %v2069, %v1974
        %v2072 = vmul.f32 %v2069, %v1975
        %v2073 = vmul.f32 %v2069, %v1976
        %v2074 = vmul.f32 %v2069, %v1977
        %v2075 = vmul.f32 %v2069, %v1978
        %v2076 = vmul.f32 %v2069, %v1979
        %v2077 = vmul.f32 %v2069, %v1980
        %v2078 = vadd.f32 %v2036, %v2070
        %v2079 = vadd.f32 %v2037, %v2071
        %v2080 = vadd.f32 %v2038, %v2072
        %v2081 = vadd.f32 %v2039, %v2073
        %v2082 = vadd.f32 %v2040, %v2074
        %v2083 = vadd.f32 %v2041, %v2075
        %v2084 = vadd.f32 %v2042, %v2076
        %v2085 = vadd.f32 %v2043, %v2077
        %v2086 = vld [vmem:[%s330] sm:$0xff]
        %v2087 = vld [vmem:[%s330 + $0x8] sm:$0xf]
        %v2088 = vld [vmem:[%s330 + $0x10] sm:$0xff]
        %v2089 = vld [vmem:[%s330 + $0x18] sm:$0xf]
        %v2090 = vld [vmem:[%s330 + $0x20] sm:$0xff]
        %v2091 = vld [vmem:[%s330 + $0x28] sm:$0xf]
        %v2092 = vld [vmem:[%s330 + $0x30] sm:$0xff]
        %v2093 = vld [vmem:[%s330 + $0x38] sm:$0xf]
        %v2094 = vld [vmem:[%s330 + $0x40] sm:$0xff]
        %v2095 = vld [vmem:[%s330 + $0x48] sm:$0xf]
        %v2096 = vld [vmem:[%s330 + $0x50] sm:$0xff]
        %v2097 = vld [vmem:[%s330 + $0x58] sm:$0xf]
        %v2098 = vld [vmem:[%s330 + $0x60] sm:$0xff]
        %v2099 = vld [vmem:[%s330 + $0x68] sm:$0xf]
        %v2100 = vld [vmem:[%s330 + $0x70] sm:$0xff]
        %v2101 = vld [vmem:[%s330 + $0x78] sm:$0xf]
        %v2102 = vld [vmem:[%s330 + $0x80] sm:$0xff]
        %v2103 = vld [vmem:[%s330 + $0x88] sm:$0xf]
        %v2104 = vld [vmem:[%s330 + $0x90] sm:$0xff]
        %v2105 = vld [vmem:[%s330 + $0x98] sm:$0xf]
        %v2106 = vld [vmem:[%s330 + $0xa0] sm:$0xff]
        %v2107 = vld [vmem:[%s330 + $0xa8] sm:$0xf]
        %v2108 = vld [vmem:[%s330 + $0xb0] sm:$0xff]
        %v2109 = vld [vmem:[%s330 + $0xb8] sm:$0xf]
        %2134 = vrot.lane.b32.xlu0 %v2086, 120
        %v2135 = vpop.permute.xlu0 %2134
        %2136 = vrot.lane.b32.xlu0 %v2087, 120
        %v2137 = vpop.permute.xlu0 %2136
        %2138 = vrot.lane.b32.xlu0 %v2088, 120
        %v2139 = vpop.permute.xlu0 %2138
        %2140 = vrot.lane.b32.xlu0 %v2089, 120
        %v2141 = vpop.permute.xlu0 %2140
        %2142 = vrot.lane.b32.xlu0 %v2090, 120
        %v2143 = vpop.permute.xlu0 %2142
        %2144 = vrot.lane.b32.xlu0 %v2091, 120
        %v2145 = vpop.permute.xlu0 %2144
        %2146 = vrot.lane.b32.xlu0 %v2092, 120
        %v2147 = vpop.permute.xlu0 %2146
        %2148 = vrot.lane.b32.xlu0 %v2093, 120
        %v2149 = vpop.permute.xlu0 %2148
        %2150 = vrot.lane.b32.xlu0 %v2094, 120
        %v2151 = vpop.permute.xlu0 %2150
        %2152 = vrot.lane.b32.xlu0 %v2095, 120
        %v2153 = vpop.permute.xlu0 %2152
        %2154 = vrot.lane.b32.xlu0 %v2096, 120
        %v2155 = vpop.permute.xlu0 %2154
        %2156 = vrot.lane.b32.xlu0 %v2097, 120
        %v2157 = vpop.permute.xlu0 %2156
        %2158 = vrot.lane.b32.xlu0 %v2098, 120
        %v2159 = vpop.permute.xlu0 %2158
        %2160 = vrot.lane.b32.xlu0 %v2099, 120
        %v2161 = vpop.permute.xlu0 %2160
        %2162 = vrot.lane.b32.xlu0 %v2100, 120
        %v2163 = vpop.permute.xlu0 %2162
        %2164 = vrot.lane.b32.xlu0 %v2101, 120
        %v2165 = vpop.permute.xlu0 %2164
        %2166 = vrot.lane.b32.xlu0 %v2102, 120
        %v2167 = vpop.permute.xlu0 %2166
        %2168 = vrot.lane.b32.xlu0 %v2103, 120
        %v2169 = vpop.permute.xlu0 %2168
        %2170 = vrot.lane.b32.xlu0 %v2104, 120
        %v2171 = vpop.permute.xlu0 %2170
        %2172 = vrot.lane.b32.xlu0 %v2105, 120
        %v2173 = vpop.permute.xlu0 %2172
        %2174 = vrot.lane.b32.xlu0 %v2106, 120
        %v2175 = vpop.permute.xlu0 %2174
        %2176 = vrot.lane.b32.xlu0 %v2107, 120
        %v2177 = vpop.permute.xlu0 %2176
        %2178 = vrot.lane.b32.xlu0 %v2108, 120
        %v2179 = vpop.permute.xlu0 %2178
        %2180 = vrot.lane.b32.xlu0 %v2109, 120
        %v2181 = vpop.permute.xlu0 %2180
        %2206 = vst.msk [vmem:[#allocation2] sm:$0xff] %vm451, %v2135
        %2207 = vst.msk [vmem:[#allocation2 + $0x8] sm:$0xf] %vm453, %v2137
        %2208 = vst.msk [vmem:[#allocation2 + $0x10] sm:$0xff] %vm451, %v2139
        %2209 = vst.msk [vmem:[#allocation2 + $0x18] sm:$0xf] %vm453, %v2141
        %2210 = vst.msk [vmem:[#allocation2 + $0x20] sm:$0xff] %vm451, %v2143
        %2211 = vst.msk [vmem:[#allocation2 + $0x28] sm:$0xf] %vm453, %v2145
        %2212 = vst.msk [vmem:[#allocation2 + $0x30] sm:$0xff] %vm451, %v2147
        %2213 = vst.msk [vmem:[#allocation2 + $0x38] sm:$0xf] %vm453, %v2149
        %2214 = vst.msk [vmem:[#allocation2 + $0x40] sm:$0xff] %vm451, %v2151
        %2215 = vst.msk [vmem:[#allocation2 + $0x48] sm:$0xf] %vm453, %v2153
        %2216 = vst.msk [vmem:[#allocation2 + $0x50] sm:$0xff] %vm451, %v2155
        %2217 = vst.msk [vmem:[#allocation2 + $0x58] sm:$0xf] %vm453, %v2157
        %2218 = vst.msk [vmem:[#allocation2 + $0x60] sm:$0xff] %vm451, %v2159
        %2219 = vst.msk [vmem:[#allocation2 + $0x68] sm:$0xf] %vm453, %v2161
        %2220 = vst.msk [vmem:[#allocation2 + $0x70] sm:$0xff] %vm451, %v2163
        %2221 = vst.msk [vmem:[#allocation2 + $0x78] sm:$0xf] %vm453, %v2165
        %2222 = vst.msk [vmem:[#allocation2 + $0x80] sm:$0xff] %vm451, %v2167
        %2223 = vst.msk [vmem:[#allocation2 + $0x88] sm:$0xf] %vm453, %v2169
        %2224 = vst.msk [vmem:[#allocation2 + $0x90] sm:$0xff] %vm451, %v2171
        %2225 = vst.msk [vmem:[#allocation2 + $0x98] sm:$0xf] %vm453, %v2173
        %2226 = vst.msk [vmem:[#allocation2 + $0xa0] sm:$0xff] %vm451, %v2175
        %2227 = vst.msk [vmem:[#allocation2 + $0xa8] sm:$0xf] %vm453, %v2177
        %2228 = vst.msk [vmem:[#allocation2 + $0xb0] sm:$0xff] %vm451, %v2179
        %2229 = vst.msk [vmem:[#allocation2 + $0xb8] sm:$0xf] %vm453, %v2181
        %v2230 = vld [vmem:[#allocation2] sm:$0xff]
        %v2231 = vld [vmem:[#allocation2 + $0x10] sm:$0xff]
        %v2232 = vld [vmem:[#allocation2 + $0x20] sm:$0xff]
        %v2233 = vld [vmem:[#allocation2 + $0x30] sm:$0xff]
        %v2234 = vld [vmem:[#allocation2 + $0x40] sm:$0xff]
        %v2235 = vld [vmem:[#allocation2 + $0x50] sm:$0xff]
        %v2236 = vld [vmem:[#allocation2 + $0x60] sm:$0xff]
        %v2237 = vld [vmem:[#allocation2 + $0x70] sm:$0xff]
        %v2238 = vld [vmem:[#allocation2 + $0x80] sm:$0xff]
        %v2239 = vld [vmem:[#allocation2 + $0x90] sm:$0xff]
        %v2240 = vld [vmem:[#allocation2 + $0xa0] sm:$0xff]
        %v2241 = vld [vmem:[#allocation2 + $0xb0] sm:$0xff]
        %v2242 = vld [vmem:[%s3 + $0x1] sm:$0x1]
        %v2243 = vlaneseq
        %v2244 = vshrl.u32 %v2243, 7
        %v2245 = vsub.s32 0, %v2244
        %v2246 = vrot.slane %v2242, %v2245
        %v2247 = vmul.f32 %v2246, %v2230
        %v2248 = vmul.f32 %v2246, %v2231
        %v2249 = vmul.f32 %v2246, %v2232
        %v2250 = vmul.f32 %v2246, %v2233
        %v2251 = vmul.f32 %v2246, %v2234
        %v2252 = vmul.f32 %v2246, %v2235
        %v2253 = vmul.f32 %v2246, %v2236
        %v2254 = vmul.f32 %v2246, %v2237
        %v2255 = vadd.f32 %v2078, %v2247
        %v2256 = vadd.f32 %v2079, %v2248
        %v2257 = vadd.f32 %v2080, %v2249
        %v2258 = vadd.f32 %v2081, %v2250
        %v2259 = vadd.f32 %v2082, %v2251
        %v2260 = vadd.f32 %v2083, %v2252
        %v2261 = vadd.f32 %v2084, %v2253
        %v2262 = vadd.f32 %v2085, %v2254
        %v2263 = vld [vmem:[%s3 + $0x1a] sm:$0x1]
        %v2264 = vlaneseq
        %v2265 = vshrl.u32 %v2264, 7
        %v2266 = vsub.s32 0, %v2265
        %v2267 = vrot.slane %v2263, %v2266
        %v2268 = vmul.f32 %v2267, %v2231
        %v2269 = vmul.f32 %v2267, %v2232
        %v2270 = vmul.f32 %v2267, %v2233
        %v2271 = vmul.f32 %v2267, %v2234
        %v2272 = vmul.f32 %v2267, %v2235
        %v2273 = vmul.f32 %v2267, %v2236
        %v2274 = vmul.f32 %v2267, %v2237
        %v2275 = vmul.f32 %v2267, %v2238
        %v2276 = vadd.f32 %v2057, %v2268
        %v2277 = vadd.f32 %v2058, %v2269
        %v2278 = vadd.f32 %v2059, %v2270
        %v2279 = vadd.f32 %v2060, %v2271
        %v2280 = vadd.f32 %v2061, %v2272
        %v2281 = vadd.f32 %v2062, %v2273
        %v2282 = vadd.f32 %v2063, %v2274
        %v2283 = vadd.f32 %v2064, %v2275
        %v2284 = vld [vmem:[%s3 + $0x33] sm:$0x1]
        %v2285 = vlaneseq
        %v2286 = vshrl.u32 %v2285, 7
        %v2287 = vsub.s32 0, %v2286
        %v2288 = vrot.slane %v2284, %v2287
        %v2289 = vmul.f32 %v2288, %v2232
        %v2290 = vmul.f32 %v2288, %v2233
        %v2291 = vmul.f32 %v2288, %v2234
        %v2292 = vmul.f32 %v2288, %v2235
        %v2293 = vmul.f32 %v2288, %v2236
        %v2294 = vmul.f32 %v2288, %v2237
        %v2295 = vmul.f32 %v2288, %v2238
        %v2296 = vmul.f32 %v2288, %v2239
        %v2297 = vadd.f32 %v2255, %v2289
        %v2298 = vadd.f32 %v2256, %v2290
        %v2299 = vadd.f32 %v2257, %v2291
        %v2300 = vadd.f32 %v2258, %v2292
        %v2301 = vadd.f32 %v2259, %v2293
        %v2302 = vadd.f32 %v2260, %v2294
        %v2303 = vadd.f32 %v2261, %v2295
        %v2304 = vadd.f32 %v2262, %v2296
        %v2305 = vld [vmem:[%s3 + $0x4c] sm:$0x1]
        %v2306 = vlaneseq
        %v2307 = vshrl.u32 %v2306, 7
        %v2308 = vsub.s32 0, %v2307
        %v2309 = vrot.slane %v2305, %v2308
        %v2310 = vmul.f32 %v2309, %v2233
        %v2311 = vmul.f32 %v2309, %v2234
        %v2312 = vmul.f32 %v2309, %v2235
        %v2313 = vmul.f32 %v2309, %v2236
        %v2314 = vmul.f32 %v2309, %v2237
        %v2315 = vmul.f32 %v2309, %v2238
        %v2316 = vmul.f32 %v2309, %v2239
        %v2317 = vmul.f32 %v2309, %v2240
        %v2318 = vadd.f32 %v2276, %v2310
        %v2319 = vadd.f32 %v2277, %v2311
        %v2320 = vadd.f32 %v2278, %v2312
        %v2321 = vadd.f32 %v2279, %v2313
        %v2322 = vadd.f32 %v2280, %v2314
        %v2323 = vadd.f32 %v2281, %v2315
        %v2324 = vadd.f32 %v2282, %v2316
        %v2325 = vadd.f32 %v2283, %v2317
        %v2326 = vld [vmem:[%s3 + $0x65] sm:$0x1]
        %v2327 = vlaneseq
        %v2328 = vshrl.u32 %v2327, 7
        %v2329 = vsub.s32 0, %v2328
        %v2330 = vrot.slane %v2326, %v2329
        %v2331 = vmul.f32 %v2330, %v2234
        %v2332 = vmul.f32 %v2330, %v2235
        %v2333 = vmul.f32 %v2330, %v2236
        %v2334 = vmul.f32 %v2330, %v2237
        %v2335 = vmul.f32 %v2330, %v2238
        %v2336 = vmul.f32 %v2330, %v2239
        %v2337 = vmul.f32 %v2330, %v2240
        %v2338 = vmul.f32 %v2330, %v2241
        %v2339 = vadd.f32 %v2297, %v2331
        %v2340 = vadd.f32 %v2298, %v2332
        %v2341 = vadd.f32 %v2299, %v2333
        %v2342 = vadd.f32 %v2300, %v2334
        %v2343 = vadd.f32 %v2301, %v2335
        %v2344 = vadd.f32 %v2302, %v2336
        %v2345 = vadd.f32 %v2303, %v2337
        %v2346 = vadd.f32 %v2304, %v2338
        %v2347 = vld [vmem:[#allocation2 + $0x1] sm:$0xff]
        %v2348 = vld [vmem:[#allocation2 + $0x11] sm:$0xff]
        %v2349 = vld [vmem:[#allocation2 + $0x21] sm:$0xff]
        %v2350 = vld [vmem:[#allocation2 + $0x31] sm:$0xff]
        %v2351 = vld [vmem:[#allocation2 + $0x41] sm:$0xff]
        %v2352 = vld [vmem:[#allocation2 + $0x51] sm:$0xff]
        %v2353 = vld [vmem:[#allocation2 + $0x61] sm:$0xff]
        %v2354 = vld [vmem:[#allocation2 + $0x71] sm:$0xff]
        %v2355 = vld [vmem:[#allocation2 + $0x81] sm:$0xff]
        %v2356 = vld [vmem:[#allocation2 + $0x91] sm:$0xff]
        %v2357 = vld [vmem:[#allocation2 + $0xa1] sm:$0xff]
        %v2358 = vld [vmem:[#allocation2 + $0xb1] sm:$0xff]
        %v2359 = vld [vmem:[%s3 + $0x6] sm:$0x1]
        %v2360 = vlaneseq
        %v2361 = vshrl.u32 %v2360, 7
        %v2362 = vsub.s32 0, %v2361
        %v2363 = vrot.slane %v2359, %v2362
        %v2364 = vmul.f32 %v2363, %v2347
        %v2365 = vmul.f32 %v2363, %v2348
        %v2366 = vmul.f32 %v2363, %v2349
        %v2367 = vmul.f32 %v2363, %v2350
        %v2368 = vmul.f32 %v2363, %v2351
        %v2369 = vmul.f32 %v2363, %v2352
        %v2370 = vmul.f32 %v2363, %v2353
        %v2371 = vmul.f32 %v2363, %v2354
        %v2372 = vadd.f32 %v2339, %v2364
        %v2373 = vadd.f32 %v2340, %v2365
        %v2374 = vadd.f32 %v2341, %v2366
        %v2375 = vadd.f32 %v2342, %v2367
        %v2376 = vadd.f32 %v2343, %v2368
        %v2377 = vadd.f32 %v2344, %v2369
        %v2378 = vadd.f32 %v2345, %v2370
        %v2379 = vadd.f32 %v2346, %v2371
        %v2380 = vld [vmem:[%s3 + $0x1f] sm:$0x1]
        %v2381 = vlaneseq
        %v2382 = vshrl.u32 %v2381, 7
        %v2383 = vsub.s32 0, %v2382
        %v2384 = vrot.slane %v2380, %v2383
        %v2385 = vmul.f32 %v2384, %v2348
        %v2386 = vmul.f32 %v2384, %v2349
        %v2387 = vmul.f32 %v2384, %v2350
        %v2388 = vmul.f32 %v2384, %v2351
        %v2389 = vmul.f32 %v2384, %v2352
        %v2390 = vmul.f32 %v2384, %v2353
        %v2391 = vmul.f32 %v2384, %v2354
        %v2392 = vmul.f32 %v2384, %v2355
        %v2393 = vadd.f32 %v2318, %v2385
        %v2394 = vadd.f32 %v2319, %v2386
        %v2395 = vadd.f32 %v2320, %v2387
        %v2396 = vadd.f32 %v2321, %v2388
        %v2397 = vadd.f32 %v2322, %v2389
        %v2398 = vadd.f32 %v2323, %v2390
        %v2399 = vadd.f32 %v2324, %v2391
        %v2400 = vadd.f32 %v2325, %v2392
        %v2401 = vld [vmem:[%s3 + $0x38] sm:$0x1]
        %v2402 = vlaneseq
        %v2403 = vshrl.u32 %v2402, 7
        %v2404 = vsub.s32 0, %v2403
        %v2405 = vrot.slane %v2401, %v2404
        %v2406 = vmul.f32 %v2405, %v2349
        %v2407 = vmul.f32 %v2405, %v2350
        %v2408 = vmul.f32 %v2405, %v2351
        %v2409 = vmul.f32 %v2405, %v2352
        %v2410 = vmul.f32 %v2405, %v2353
        %v2411 = vmul.f32 %v2405, %v2354
        %v2412 = vmul.f32 %v2405, %v2355
        %v2413 = vmul.f32 %v2405, %v2356
        %v2414 = vadd.f32 %v2372, %v2406
        %v2415 = vadd.f32 %v2373, %v2407
        %v2416 = vadd.f32 %v2374, %v2408
        %v2417 = vadd.f32 %v2375, %v2409
        %v2418 = vadd.f32 %v2376, %v2410
        %v2419 = vadd.f32 %v2377, %v2411
        %v2420 = vadd.f32 %v2378, %v2412
        %v2421 = vadd.f32 %v2379, %v2413
        %v2422 = vld [vmem:[%s3 + $0x51] sm:$0x1]
        %v2423 = vlaneseq
        %v2424 = vshrl.u32 %v2423, 7
        %v2425 = vsub.s32 0, %v2424
        %v2426 = vrot.slane %v2422, %v2425
        %v2427 = vmul.f32 %v2426, %v2350
        %v2428 = vmul.f32 %v2426, %v2351
        %v2429 = vmul.f32 %v2426, %v2352
        %v2430 = vmul.f32 %v2426, %v2353
        %v2431 = vmul.f32 %v2426, %v2354
        %v2432 = vmul.f32 %v2426, %v2355
        %v2433 = vmul.f32 %v2426, %v2356
        %v2434 = vmul.f32 %v2426, %v2357
        %v2435 = vadd.f32 %v2393, %v2427
        %v2436 = vadd.f32 %v2394, %v2428
        %v2437 = vadd.f32 %v2395, %v2429
        %v2438 = vadd.f32 %v2396, %v2430
        %v2439 = vadd.f32 %v2397, %v2431
        %v2440 = vadd.f32 %v2398, %v2432
        %v2441 = vadd.f32 %v2399, %v2433
        %v2442 = vadd.f32 %v2400, %v2434
        %v2443 = vld [vmem:[%s3 + $0x6a] sm:$0x1]
        %v2444 = vlaneseq
        %v2445 = vshrl.u32 %v2444, 7
        %v2446 = vsub.s32 0, %v2445
        %v2447 = vrot.slane %v2443, %v2446
        %v2448 = vmul.f32 %v2447, %v2351
        %v2449 = vmul.f32 %v2447, %v2352
        %v2450 = vmul.f32 %v2447, %v2353
        %v2451 = vmul.f32 %v2447, %v2354
        %v2452 = vmul.f32 %v2447, %v2355
        %v2453 = vmul.f32 %v2447, %v2356
        %v2454 = vmul.f32 %v2447, %v2357
        %v2455 = vmul.f32 %v2447, %v2358
        %v2456 = vadd.f32 %v2414, %v2448
        %v2457 = vadd.f32 %v2415, %v2449
        %v2458 = vadd.f32 %v2416, %v2450
        %v2459 = vadd.f32 %v2417, %v2451
        %v2460 = vadd.f32 %v2418, %v2452
        %v2461 = vadd.f32 %v2419, %v2453
        %v2462 = vadd.f32 %v2420, %v2454
        %v2463 = vadd.f32 %v2421, %v2455
        %v2464 = vld [vmem:[#allocation2 + $0x2] sm:$0xff]
        %v2465 = vld [vmem:[#allocation2 + $0x12] sm:$0xff]
        %v2466 = vld [vmem:[#allocation2 + $0x22] sm:$0xff]
        %v2467 = vld [vmem:[#allocation2 + $0x32] sm:$0xff]
        %v2468 = vld [vmem:[#allocation2 + $0x42] sm:$0xff]
        %v2469 = vld [vmem:[#allocation2 + $0x52] sm:$0xff]
        %v2470 = vld [vmem:[#allocation2 + $0x62] sm:$0xff]
        %v2471 = vld [vmem:[#allocation2 + $0x72] sm:$0xff]
        %v2472 = vld [vmem:[#allocation2 + $0x82] sm:$0xff]
        %v2473 = vld [vmem:[#allocation2 + $0x92] sm:$0xff]
        %v2474 = vld [vmem:[#allocation2 + $0xa2] sm:$0xff]
        %v2475 = vld [vmem:[#allocation2 + $0xb2] sm:$0xff]
        %v2476 = vld [vmem:[%s3 + $0xb] sm:$0x1]
        %v2477 = vlaneseq
        %v2478 = vshrl.u32 %v2477, 7
        %v2479 = vsub.s32 0, %v2478
        %v2480 = vrot.slane %v2476, %v2479
        %v2481 = vmul.f32 %v2480, %v2464
        %v2482 = vmul.f32 %v2480, %v2465
        %v2483 = vmul.f32 %v2480, %v2466
        %v2484 = vmul.f32 %v2480, %v2467
        %v2485 = vmul.f32 %v2480, %v2468
        %v2486 = vmul.f32 %v2480, %v2469
        %v2487 = vmul.f32 %v2480, %v2470
        %v2488 = vmul.f32 %v2480, %v2471
        %v2489 = vadd.f32 %v2456, %v2481
        %v2490 = vadd.f32 %v2457, %v2482
        %v2491 = vadd.f32 %v2458, %v2483
        %v2492 = vadd.f32 %v2459, %v2484
        %v2493 = vadd.f32 %v2460, %v2485
        %v2494 = vadd.f32 %v2461, %v2486
        %v2495 = vadd.f32 %v2462, %v2487
        %v2496 = vadd.f32 %v2463, %v2488
        %v2497 = vld [vmem:[%s3 + $0x24] sm:$0x1]
        %v2498 = vlaneseq
        %v2499 = vshrl.u32 %v2498, 7
        %v2500 = vsub.s32 0, %v2499
        %v2501 = vrot.slane %v2497, %v2500
        %v2502 = vmul.f32 %v2501, %v2465
        %v2503 = vmul.f32 %v2501, %v2466
        %v2504 = vmul.f32 %v2501, %v2467
        %v2505 = vmul.f32 %v2501, %v2468
        %v2506 = vmul.f32 %v2501, %v2469
        %v2507 = vmul.f32 %v2501, %v2470
        %v2508 = vmul.f32 %v2501, %v2471
        %v2509 = vmul.f32 %v2501, %v2472
        %v2510 = vadd.f32 %v2435, %v2502
        %v2511 = vadd.f32 %v2436, %v2503
        %v2512 = vadd.f32 %v2437, %v2504
        %v2513 = vadd.f32 %v2438, %v2505
        %v2514 = vadd.f32 %v2439, %v2506
        %v2515 = vadd.f32 %v2440, %v2507
        %v2516 = vadd.f32 %v2441, %v2508
        %v2517 = vadd.f32 %v2442, %v2509
        %v2518 = vld [vmem:[%s3 + $0x3d] sm:$0x1]
        %v2519 = vlaneseq
        %v2520 = vshrl.u32 %v2519, 7
        %v2521 = vsub.s32 0, %v2520
        %v2522 = vrot.slane %v2518, %v2521
        %v2523 = vmul.f32 %v2522, %v2466
        %v2524 = vmul.f32 %v2522, %v2467
        %v2525 = vmul.f32 %v2522, %v2468
        %v2526 = vmul.f32 %v2522, %v2469
        %v2527 = vmul.f32 %v2522, %v2470
        %v2528 = vmul.f32 %v2522, %v2471
        %v2529 = vmul.f32 %v2522, %v2472
        %v2530 = vmul.f32 %v2522, %v2473
        %v2531 = vadd.f32 %v2489, %v2523
        %v2532 = vadd.f32 %v2490, %v2524
        %v2533 = vadd.f32 %v2491, %v2525
        %v2534 = vadd.f32 %v2492, %v2526
        %v2535 = vadd.f32 %v2493, %v2527
        %v2536 = vadd.f32 %v2494, %v2528
        %v2537 = vadd.f32 %v2495, %v2529
        %v2538 = vadd.f32 %v2496, %v2530
        %v2539 = vld [vmem:[%s3 + $0x56] sm:$0x1]
        %v2540 = vlaneseq
        %v2541 = vshrl.u32 %v2540, 7
        %v2542 = vsub.s32 0, %v2541
        %v2543 = vrot.slane %v2539, %v2542
        %v2544 = vmul.f32 %v2543, %v2467
        %v2545 = vmul.f32 %v2543, %v2468
        %v2546 = vmul.f32 %v2543, %v2469
        %v2547 = vmul.f32 %v2543, %v2470
        %v2548 = vmul.f32 %v2543, %v2471
        %v2549 = vmul.f32 %v2543, %v2472
        %v2550 = vmul.f32 %v2543, %v2473
        %v2551 = vmul.f32 %v2543, %v2474
        %v2552 = vadd.f32 %v2510, %v2544
        %v2553 = vadd.f32 %v2511, %v2545
        %v2554 = vadd.f32 %v2512, %v2546
        %v2555 = vadd.f32 %v2513, %v2547
        %v2556 = vadd.f32 %v2514, %v2548
        %v2557 = vadd.f32 %v2515, %v2549
        %v2558 = vadd.f32 %v2516, %v2550
        %v2559 = vadd.f32 %v2517, %v2551
        %v2560 = vld [vmem:[%s3 + $0x6f] sm:$0x1]
        %v2561 = vlaneseq
        %v2562 = vshrl.u32 %v2561, 7
        %v2563 = vsub.s32 0, %v2562
        %v2564 = vrot.slane %v2560, %v2563
        %v2565 = vmul.f32 %v2564, %v2468
        %v2566 = vmul.f32 %v2564, %v2469
        %v2567 = vmul.f32 %v2564, %v2470
        %v2568 = vmul.f32 %v2564, %v2471
        %v2569 = vmul.f32 %v2564, %v2472
        %v2570 = vmul.f32 %v2564, %v2473
        %v2571 = vmul.f32 %v2564, %v2474
        %v2572 = vmul.f32 %v2564, %v2475
        %v2573 = vadd.f32 %v2531, %v2565
        %v2574 = vadd.f32 %v2532, %v2566
        %v2575 = vadd.f32 %v2533, %v2567
        %v2576 = vadd.f32 %v2534, %v2568
        %v2577 = vadd.f32 %v2535, %v2569
        %v2578 = vadd.f32 %v2536, %v2570
        %v2579 = vadd.f32 %v2537, %v2571
        %v2580 = vadd.f32 %v2538, %v2572
        %v2581 = vld [vmem:[#allocation2 + $0x3] sm:$0xff]
        %v2582 = vld [vmem:[#allocation2 + $0x13] sm:$0xff]
        %v2583 = vld [vmem:[#allocation2 + $0x23] sm:$0xff]
        %v2584 = vld [vmem:[#allocation2 + $0x33] sm:$0xff]
        %v2585 = vld [vmem:[#allocation2 + $0x43] sm:$0xff]
        %v2586 = vld [vmem:[#allocation2 + $0x53] sm:$0xff]
        %v2587 = vld [vmem:[#allocation2 + $0x63] sm:$0xff]
        %v2588 = vld [vmem:[#allocation2 + $0x73] sm:$0xff]
        %v2589 = vld [vmem:[#allocation2 + $0x83] sm:$0xff]
        %v2590 = vld [vmem:[#allocation2 + $0x93] sm:$0xff]
        %v2591 = vld [vmem:[#allocation2 + $0xa3] sm:$0xff]
        %v2592 = vld [vmem:[#allocation2 + $0xb3] sm:$0xff]
        %v2593 = vld [vmem:[%s3 + $0x10] sm:$0x1]
        %v2594 = vlaneseq
        %v2595 = vshrl.u32 %v2594, 7
        %v2596 = vsub.s32 0, %v2595
        %v2597 = vrot.slane %v2593, %v2596
        %v2598 = vmul.f32 %v2597, %v2581
        %v2599 = vmul.f32 %v2597, %v2582
        %v2600 = vmul.f32 %v2597, %v2583
        %v2601 = vmul.f32 %v2597, %v2584
        %v2602 = vmul.f32 %v2597, %v2585
        %v2603 = vmul.f32 %v2597, %v2586
        %v2604 = vmul.f32 %v2597, %v2587
        %v2605 = vmul.f32 %v2597, %v2588
        %v2606 = vadd.f32 %v2573, %v2598
        %v2607 = vadd.f32 %v2574, %v2599
        %v2608 = vadd.f32 %v2575, %v2600
        %v2609 = vadd.f32 %v2576, %v2601
        %v2610 = vadd.f32 %v2577, %v2602
        %v2611 = vadd.f32 %v2578, %v2603
        %v2612 = vadd.f32 %v2579, %v2604
        %v2613 = vadd.f32 %v2580, %v2605
        %v2614 = vld [vmem:[%s3 + $0x29] sm:$0x1]
        %v2615 = vlaneseq
        %v2616 = vshrl.u32 %v2615, 7
        %v2617 = vsub.s32 0, %v2616
        %v2618 = vrot.slane %v2614, %v2617
        %v2619 = vmul.f32 %v2618, %v2582
        %v2620 = vmul.f32 %v2618, %v2583
        %v2621 = vmul.f32 %v2618, %v2584
        %v2622 = vmul.f32 %v2618, %v2585
        %v2623 = vmul.f32 %v2618, %v2586
        %v2624 = vmul.f32 %v2618, %v2587
        %v2625 = vmul.f32 %v2618, %v2588
        %v2626 = vmul.f32 %v2618, %v2589
        %v2627 = vadd.f32 %v2552, %v2619
        %v2628 = vadd.f32 %v2553, %v2620
        %v2629 = vadd.f32 %v2554, %v2621
        %v2630 = vadd.f32 %v2555, %v2622
        %v2631 = vadd.f32 %v2556, %v2623
        %v2632 = vadd.f32 %v2557, %v2624
        %v2633 = vadd.f32 %v2558, %v2625
        %v2634 = vadd.f32 %v2559, %v2626
        %v2635 = vld [vmem:[%s3 + $0x42] sm:$0x1]
        %v2636 = vlaneseq
        %v2637 = vshrl.u32 %v2636, 7
        %v2638 = vsub.s32 0, %v2637
        %v2639 = vrot.slane %v2635, %v2638
        %v2640 = vmul.f32 %v2639, %v2583
        %v2641 = vmul.f32 %v2639, %v2584
        %v2642 = vmul.f32 %v2639, %v2585
        %v2643 = vmul.f32 %v2639, %v2586
        %v2644 = vmul.f32 %v2639, %v2587
        %v2645 = vmul.f32 %v2639, %v2588
        %v2646 = vmul.f32 %v2639, %v2589
        %v2647 = vmul.f32 %v2639, %v2590
        %v2648 = vadd.f32 %v2606, %v2640
        %v2649 = vadd.f32 %v2607, %v2641
        %v2650 = vadd.f32 %v2608, %v2642
        %v2651 = vadd.f32 %v2609, %v2643
        %v2652 = vadd.f32 %v2610, %v2644
        %v2653 = vadd.f32 %v2611, %v2645
        %v2654 = vadd.f32 %v2612, %v2646
        %v2655 = vadd.f32 %v2613, %v2647
        %v2656 = vld [vmem:[%s3 + $0x5b] sm:$0x1]
        %v2657 = vlaneseq
        %v2658 = vshrl.u32 %v2657, 7
        %v2659 = vsub.s32 0, %v2658
        %v2660 = vrot.slane %v2656, %v2659
        %v2661 = vmul.f32 %v2660, %v2584
        %v2662 = vmul.f32 %v2660, %v2585
        %v2663 = vmul.f32 %v2660, %v2586
        %v2664 = vmul.f32 %v2660, %v2587
        %v2665 = vmul.f32 %v2660, %v2588
        %v2666 = vmul.f32 %v2660, %v2589
        %v2667 = vmul.f32 %v2660, %v2590
        %v2668 = vmul.f32 %v2660, %v2591
        %v2669 = vadd.f32 %v2627, %v2661
        %v2670 = vadd.f32 %v2628, %v2662
        %v2671 = vadd.f32 %v2629, %v2663
        %v2672 = vadd.f32 %v2630, %v2664
        %v2673 = vadd.f32 %v2631, %v2665
        %v2674 = vadd.f32 %v2632, %v2666
        %v2675 = vadd.f32 %v2633, %v2667
        %v2676 = vadd.f32 %v2634, %v2668
        %v2677 = vld [vmem:[%s3 + $0x74] sm:$0x1]
        %v2678 = vlaneseq
        %v2679 = vshrl.u32 %v2678, 7
        %v2680 = vsub.s32 0, %v2679
        %v2681 = vrot.slane %v2677, %v2680
        %v2682 = vmul.f32 %v2681, %v2585
        %v2683 = vmul.f32 %v2681, %v2586
        %v2684 = vmul.f32 %v2681, %v2587
        %v2685 = vmul.f32 %v2681, %v2588
        %v2686 = vmul.f32 %v2681, %v2589
        %v2687 = vmul.f32 %v2681, %v2590
        %v2688 = vmul.f32 %v2681, %v2591
        %v2689 = vmul.f32 %v2681, %v2592
        %v2690 = vadd.f32 %v2648, %v2682
        %v2691 = vadd.f32 %v2649, %v2683
        %v2692 = vadd.f32 %v2650, %v2684
        %v2693 = vadd.f32 %v2651, %v2685
        %v2694 = vadd.f32 %v2652, %v2686
        %v2695 = vadd.f32 %v2653, %v2687
        %v2696 = vadd.f32 %v2654, %v2688
        %v2697 = vadd.f32 %v2655, %v2689
        %v2698 = vld [vmem:[#allocation2 + $0x4] sm:$0xff]
        %v2699 = vld [vmem:[#allocation2 + $0x14] sm:$0xff]
        %v2700 = vld [vmem:[#allocation2 + $0x24] sm:$0xff]
        %v2701 = vld [vmem:[#allocation2 + $0x34] sm:$0xff]
        %v2702 = vld [vmem:[#allocation2 + $0x44] sm:$0xff]
        %v2703 = vld [vmem:[#allocation2 + $0x54] sm:$0xff]
        %v2704 = vld [vmem:[#allocation2 + $0x64] sm:$0xff]
        %v2705 = vld [vmem:[#allocation2 + $0x74] sm:$0xff]
        %v2706 = vld [vmem:[#allocation2 + $0x84] sm:$0xff]
        %v2707 = vld [vmem:[#allocation2 + $0x94] sm:$0xff]
        %v2708 = vld [vmem:[#allocation2 + $0xa4] sm:$0xff]
        %v2709 = vld [vmem:[#allocation2 + $0xb4] sm:$0xff]
        %v2710 = vld [vmem:[%s3 + $0x15] sm:$0x1]
        %v2711 = vlaneseq
        %v2712 = vshrl.u32 %v2711, 7
        %v2713 = vsub.s32 0, %v2712
        %v2714 = vrot.slane %v2710, %v2713
        %v2715 = vmul.f32 %v2714, %v2698
        %v2716 = vmul.f32 %v2714, %v2699
        %v2717 = vmul.f32 %v2714, %v2700
        %v2718 = vmul.f32 %v2714, %v2701
        %v2719 = vmul.f32 %v2714, %v2702
        %v2720 = vmul.f32 %v2714, %v2703
        %v2721 = vmul.f32 %v2714, %v2704
        %v2722 = vmul.f32 %v2714, %v2705
        %v2723 = vadd.f32 %v2690, %v2715
        %v2724 = vadd.f32 %v2691, %v2716
        %v2725 = vadd.f32 %v2692, %v2717
        %v2726 = vadd.f32 %v2693, %v2718
        %v2727 = vadd.f32 %v2694, %v2719
        %v2728 = vadd.f32 %v2695, %v2720
        %v2729 = vadd.f32 %v2696, %v2721
        %v2730 = vadd.f32 %v2697, %v2722
        %v2731 = vld [vmem:[%s3 + $0x2e] sm:$0x1]
        %v2732 = vlaneseq
        %v2733 = vshrl.u32 %v2732, 7
        %v2734 = vsub.s32 0, %v2733
        %v2735 = vrot.slane %v2731, %v2734
        %v2736 = vmul.f32 %v2735, %v2699
        %v2737 = vmul.f32 %v2735, %v2700
        %v2738 = vmul.f32 %v2735, %v2701
        %v2739 = vmul.f32 %v2735, %v2702
        %v2740 = vmul.f32 %v2735, %v2703
        %v2741 = vmul.f32 %v2735, %v2704
        %v2742 = vmul.f32 %v2735, %v2705
        %v2743 = vmul.f32 %v2735, %v2706
        %v2744 = vadd.f32 %v2669, %v2736
        %v2745 = vadd.f32 %v2670, %v2737
        %v2746 = vadd.f32 %v2671, %v2738
        %v2747 = vadd.f32 %v2672, %v2739
        %v2748 = vadd.f32 %v2673, %v2740
        %v2749 = vadd.f32 %v2674, %v2741
        %v2750 = vadd.f32 %v2675, %v2742
        %v2751 = vadd.f32 %v2676, %v2743
        %v2752 = vld [vmem:[%s3 + $0x47] sm:$0x1]
        %v2753 = vlaneseq
        %v2754 = vshrl.u32 %v2753, 7
        %v2755 = vsub.s32 0, %v2754
        %v2756 = vrot.slane %v2752, %v2755
        %v2757 = vmul.f32 %v2756, %v2700
        %v2758 = vmul.f32 %v2756, %v2701
        %v2759 = vmul.f32 %v2756, %v2702
        %v2760 = vmul.f32 %v2756, %v2703
        %v2761 = vmul.f32 %v2756, %v2704
        %v2762 = vmul.f32 %v2756, %v2705
        %v2763 = vmul.f32 %v2756, %v2706
        %v2764 = vmul.f32 %v2756, %v2707
        %v2765 = vadd.f32 %v2723, %v2757
        %v2766 = vadd.f32 %v2724, %v2758
        %v2767 = vadd.f32 %v2725, %v2759
        %v2768 = vadd.f32 %v2726, %v2760
        %v2769 = vadd.f32 %v2727, %v2761
        %v2770 = vadd.f32 %v2728, %v2762
        %v2771 = vadd.f32 %v2729, %v2763
        %v2772 = vadd.f32 %v2730, %v2764
        %v2773 = vld [vmem:[%s3 + $0x60] sm:$0x1]
        %v2774 = vlaneseq
        %v2775 = vshrl.u32 %v2774, 7
        %v2776 = vsub.s32 0, %v2775
        %v2777 = vrot.slane %v2773, %v2776
        %v2778 = vmul.f32 %v2777, %v2701
        %v2779 = vmul.f32 %v2777, %v2702
        %v2780 = vmul.f32 %v2777, %v2703
        %v2781 = vmul.f32 %v2777, %v2704
        %v2782 = vmul.f32 %v2777, %v2705
        %v2783 = vmul.f32 %v2777, %v2706
        %v2784 = vmul.f32 %v2777, %v2707
        %v2785 = vmul.f32 %v2777, %v2708
        %v2786 = vadd.f32 %v2744, %v2778
        %v2787 = vadd.f32 %v2745, %v2779
        %v2788 = vadd.f32 %v2746, %v2780
        %v2789 = vadd.f32 %v2747, %v2781
        %v2790 = vadd.f32 %v2748, %v2782
        %v2791 = vadd.f32 %v2749, %v2783
        %v2792 = vadd.f32 %v2750, %v2784
        %v2793 = vadd.f32 %v2751, %v2785
        %v2794 = vld [vmem:[%s3 + $0x79] sm:$0x1]
        %v2795 = vlaneseq
        %v2796 = vshrl.u32 %v2795, 7
        %v2797 = vsub.s32 0, %v2796
        %v2798 = vrot.slane %v2794, %v2797
        %v2799 = vmul.f32 %v2798, %v2702
        %v2800 = vmul.f32 %v2798, %v2703
        %v2801 = vmul.f32 %v2798, %v2704
        %v2802 = vmul.f32 %v2798, %v2705
        %v2803 = vmul.f32 %v2798, %v2706
        %v2804 = vmul.f32 %v2798, %v2707
        %v2805 = vmul.f32 %v2798, %v2708
        %v2806 = vmul.f32 %v2798, %v2709
        %v2807 = vadd.f32 %v2765, %v2799
        %v2808 = vadd.f32 %v2766, %v2800
        %v2809 = vadd.f32 %v2767, %v2801
        %v2810 = vadd.f32 %v2768, %v2802
        %v2811 = vadd.f32 %v2769, %v2803
        %v2812 = vadd.f32 %v2770, %v2804
        %v2813 = vadd.f32 %v2771, %v2805
        %v2814 = vadd.f32 %v2772, %v2806
        %v2815 = vld [vmem:[%s330] sm:$0xff]
        %v2816 = vld [vmem:[%s330 + $0x8] sm:$0xf]
        %v2817 = vld [vmem:[%s330 + $0x10] sm:$0xff]
        %v2818 = vld [vmem:[%s330 + $0x18] sm:$0xf]
        %v2819 = vld [vmem:[%s330 + $0x20] sm:$0xff]
        %v2820 = vld [vmem:[%s330 + $0x28] sm:$0xf]
        %v2821 = vld [vmem:[%s330 + $0x30] sm:$0xff]
        %v2822 = vld [vmem:[%s330 + $0x38] sm:$0xf]
        %v2823 = vld [vmem:[%s330 + $0x40] sm:$0xff]
        %v2824 = vld [vmem:[%s330 + $0x48] sm:$0xf]
        %v2825 = vld [vmem:[%s330 + $0x50] sm:$0xff]
        %v2826 = vld [vmem:[%s330 + $0x58] sm:$0xf]
        %v2827 = vld [vmem:[%s330 + $0x60] sm:$0xff]
        %v2828 = vld [vmem:[%s330 + $0x68] sm:$0xf]
        %v2829 = vld [vmem:[%s330 + $0x70] sm:$0xff]
        %v2830 = vld [vmem:[%s330 + $0x78] sm:$0xf]
        %v2831 = vld [vmem:[%s330 + $0x80] sm:$0xff]
        %v2832 = vld [vmem:[%s330 + $0x88] sm:$0xf]
        %v2833 = vld [vmem:[%s330 + $0x90] sm:$0xff]
        %v2834 = vld [vmem:[%s330 + $0x98] sm:$0xf]
        %v2835 = vld [vmem:[%s330 + $0xa0] sm:$0xff]
        %v2836 = vld [vmem:[%s330 + $0xa8] sm:$0xf]
        %v2837 = vld [vmem:[%s330 + $0xb0] sm:$0xff]
        %v2838 = vld [vmem:[%s330 + $0xb8] sm:$0xf]
        %2863 = vrot.lane.b32.xlu0 %v2815, 112
        %v2864 = vpop.permute.xlu0 %2863
        %2865 = vrot.lane.b32.xlu0 %v2816, 112
        %v2866 = vpop.permute.xlu0 %2865
        %2867 = vrot.lane.b32.xlu0 %v2817, 112
        %v2868 = vpop.permute.xlu0 %2867
        %2869 = vrot.lane.b32.xlu0 %v2818, 112
        %v2870 = vpop.permute.xlu0 %2869
        %2871 = vrot.lane.b32.xlu0 %v2819, 112
        %v2872 = vpop.permute.xlu0 %2871
        %2873 = vrot.lane.b32.xlu0 %v2820, 112
        %v2874 = vpop.permute.xlu0 %2873
        %2875 = vrot.lane.b32.xlu0 %v2821, 112
        %v2876 = vpop.permute.xlu0 %2875
        %2877 = vrot.lane.b32.xlu0 %v2822, 112
        %v2878 = vpop.permute.xlu0 %2877
        %2879 = vrot.lane.b32.xlu0 %v2823, 112
        %v2880 = vpop.permute.xlu0 %2879
        %2881 = vrot.lane.b32.xlu0 %v2824, 112
        %v2882 = vpop.permute.xlu0 %2881
        %2883 = vrot.lane.b32.xlu0 %v2825, 112
        %v2884 = vpop.permute.xlu0 %2883
        %2885 = vrot.lane.b32.xlu0 %v2826, 112
        %v2886 = vpop.permute.xlu0 %2885
        %2887 = vrot.lane.b32.xlu0 %v2827, 112
        %v2888 = vpop.permute.xlu0 %2887
        %2889 = vrot.lane.b32.xlu0 %v2828, 112
        %v2890 = vpop.permute.xlu0 %2889
        %2891 = vrot.lane.b32.xlu0 %v2829, 112
        %v2892 = vpop.permute.xlu0 %2891
        %2893 = vrot.lane.b32.xlu0 %v2830, 112
        %v2894 = vpop.permute.xlu0 %2893
        %2895 = vrot.lane.b32.xlu0 %v2831, 112
        %v2896 = vpop.permute.xlu0 %2895
        %2897 = vrot.lane.b32.xlu0 %v2832, 112
        %v2898 = vpop.permute.xlu0 %2897
        %2899 = vrot.lane.b32.xlu0 %v2833, 112
        %v2900 = vpop.permute.xlu0 %2899
        %2901 = vrot.lane.b32.xlu0 %v2834, 112
        %v2902 = vpop.permute.xlu0 %2901
        %2903 = vrot.lane.b32.xlu0 %v2835, 112
        %v2904 = vpop.permute.xlu0 %2903
        %2905 = vrot.lane.b32.xlu0 %v2836, 112
        %v2906 = vpop.permute.xlu0 %2905
        %2907 = vrot.lane.b32.xlu0 %v2837, 112
        %v2908 = vpop.permute.xlu0 %2907
        %2909 = vrot.lane.b32.xlu0 %v2838, 112
        %v2910 = vpop.permute.xlu0 %2909
        %2935 = vst.msk [vmem:[#allocation2] sm:$0xff] %vm451, %v2864
        %2936 = vst.msk [vmem:[#allocation2 + $0x8] sm:$0xf] %vm453, %v2866
        %2937 = vst.msk [vmem:[#allocation2 + $0x10] sm:$0xff] %vm451, %v2868
        %2938 = vst.msk [vmem:[#allocation2 + $0x18] sm:$0xf] %vm453, %v2870
        %2939 = vst.msk [vmem:[#allocation2 + $0x20] sm:$0xff] %vm451, %v2872
        %2940 = vst.msk [vmem:[#allocation2 + $0x28] sm:$0xf] %vm453, %v2874
        %2941 = vst.msk [vmem:[#allocation2 + $0x30] sm:$0xff] %vm451, %v2876
        %2942 = vst.msk [vmem:[#allocation2 + $0x38] sm:$0xf] %vm453, %v2878
        %2943 = vst.msk [vmem:[#allocation2 + $0x40] sm:$0xff] %vm451, %v2880
        %2944 = vst.msk [vmem:[#allocation2 + $0x48] sm:$0xf] %vm453, %v2882
        %2945 = vst.msk [vmem:[#allocation2 + $0x50] sm:$0xff] %vm451, %v2884
        %2946 = vst.msk [vmem:[#allocation2 + $0x58] sm:$0xf] %vm453, %v2886
        %2947 = vst.msk [vmem:[#allocation2 + $0x60] sm:$0xff] %vm451, %v2888
        %2948 = vst.msk [vmem:[#allocation2 + $0x68] sm:$0xf] %vm453, %v2890
        %2949 = vst.msk [vmem:[#allocation2 + $0x70] sm:$0xff] %vm451, %v2892
        %2950 = vst.msk [vmem:[#allocation2 + $0x78] sm:$0xf] %vm453, %v2894
        %2951 = vst.msk [vmem:[#allocation2 + $0x80] sm:$0xff] %vm451, %v2896
        %2952 = vst.msk [vmem:[#allocation2 + $0x88] sm:$0xf] %vm453, %v2898
        %2953 = vst.msk [vmem:[#allocation2 + $0x90] sm:$0xff] %vm451, %v2900
        %2954 = vst.msk [vmem:[#allocation2 + $0x98] sm:$0xf] %vm453, %v2902
        %2955 = vst.msk [vmem:[#allocation2 + $0xa0] sm:$0xff] %vm451, %v2904
        %2956 = vst.msk [vmem:[#allocation2 + $0xa8] sm:$0xf] %vm453, %v2906
        %2957 = vst.msk [vmem:[#allocation2 + $0xb0] sm:$0xff] %vm451, %v2908
        %2958 = vst.msk [vmem:[#allocation2 + $0xb8] sm:$0xf] %vm453, %v2910
        %v2959 = vld [vmem:[#allocation2] sm:$0xff]
        %v2960 = vld [vmem:[#allocation2 + $0x10] sm:$0xff]
        %v2961 = vld [vmem:[#allocation2 + $0x20] sm:$0xff]
        %v2962 = vld [vmem:[#allocation2 + $0x30] sm:$0xff]
        %v2963 = vld [vmem:[#allocation2 + $0x40] sm:$0xff]
        %v2964 = vld [vmem:[#allocation2 + $0x50] sm:$0xff]
        %v2965 = vld [vmem:[#allocation2 + $0x60] sm:$0xff]
        %v2966 = vld [vmem:[#allocation2 + $0x70] sm:$0xff]
        %v2967 = vld [vmem:[#allocation2 + $0x80] sm:$0xff]
        %v2968 = vld [vmem:[#allocation2 + $0x90] sm:$0xff]
        %v2969 = vld [vmem:[#allocation2 + $0xa0] sm:$0xff]
        %v2970 = vld [vmem:[#allocation2 + $0xb0] sm:$0xff]
        %v2971 = vld [vmem:[%s3 + $0x2] sm:$0x1]
        %v2972 = vlaneseq
        %v2973 = vshrl.u32 %v2972, 7
        %v2974 = vsub.s32 0, %v2973
        %v2975 = vrot.slane %v2971, %v2974
        %v2976 = vmul.f32 %v2975, %v2959
        %v2977 = vmul.f32 %v2975, %v2960
        %v2978 = vmul.f32 %v2975, %v2961
        %v2979 = vmul.f32 %v2975, %v2962
        %v2980 = vmul.f32 %v2975, %v2963
        %v2981 = vmul.f32 %v2975, %v2964
        %v2982 = vmul.f32 %v2975, %v2965
        %v2983 = vmul.f32 %v2975, %v2966
        %v2984 = vadd.f32 %v2807, %v2976
        %v2985 = vadd.f32 %v2808, %v2977
        %v2986 = vadd.f32 %v2809, %v2978
        %v2987 = vadd.f32 %v2810, %v2979
        %v2988 = vadd.f32 %v2811, %v2980
        %v2989 = vadd.f32 %v2812, %v2981
        %v2990 = vadd.f32 %v2813, %v2982
        %v2991 = vadd.f32 %v2814, %v2983
        %v2992 = vld [vmem:[%s3 + $0x1b] sm:$0x1]
        %v2993 = vlaneseq
        %v2994 = vshrl.u32 %v2993, 7
        %v2995 = vsub.s32 0, %v2994
        %v2996 = vrot.slane %v2992, %v2995
        %v2997 = vmul.f32 %v2996, %v2960
        %v2998 = vmul.f32 %v2996, %v2961
        %v2999 = vmul.f32 %v2996, %v2962
        %v3000 = vmul.f32 %v2996, %v2963
        %v3001 = vmul.f32 %v2996, %v2964
        %v3002 = vmul.f32 %v2996, %v2965
        %v3003 = vmul.f32 %v2996, %v2966
        %v3004 = vmul.f32 %v2996, %v2967
        %v3005 = vadd.f32 %v2786, %v2997
        %v3006 = vadd.f32 %v2787, %v2998
        %v3007 = vadd.f32 %v2788, %v2999
        %v3008 = vadd.f32 %v2789, %v3000
        %v3009 = vadd.f32 %v2790, %v3001
        %v3010 = vadd.f32 %v2791, %v3002
        %v3011 = vadd.f32 %v2792, %v3003
        %v3012 = vadd.f32 %v2793, %v3004
        %v3013 = vld [vmem:[%s3 + $0x34] sm:$0x1]
        %v3014 = vlaneseq
        %v3015 = vshrl.u32 %v3014, 7
        %v3016 = vsub.s32 0, %v3015
        %v3017 = vrot.slane %v3013, %v3016
        %v3018 = vmul.f32 %v3017, %v2961
        %v3019 = vmul.f32 %v3017, %v2962
        %v3020 = vmul.f32 %v3017, %v2963
        %v3021 = vmul.f32 %v3017, %v2964
        %v3022 = vmul.f32 %v3017, %v2965
        %v3023 = vmul.f32 %v3017, %v2966
        %v3024 = vmul.f32 %v3017, %v2967
        %v3025 = vmul.f32 %v3017, %v2968
        %v3026 = vadd.f32 %v2984, %v3018
        %v3027 = vadd.f32 %v2985, %v3019
        %v3028 = vadd.f32 %v2986, %v3020
        %v3029 = vadd.f32 %v2987, %v3021
        %v3030 = vadd.f32 %v2988, %v3022
        %v3031 = vadd.f32 %v2989, %v3023
        %v3032 = vadd.f32 %v2990, %v3024
        %v3033 = vadd.f32 %v2991, %v3025
        %v3034 = vld [vmem:[%s3 + $0x4d] sm:$0x1]
        %v3035 = vlaneseq
        %v3036 = vshrl.u32 %v3035, 7
        %v3037 = vsub.s32 0, %v3036
        %v3038 = vrot.slane %v3034, %v3037
        %v3039 = vmul.f32 %v3038, %v2962
        %v3040 = vmul.f32 %v3038, %v2963
        %v3041 = vmul.f32 %v3038, %v2964
        %v3042 = vmul.f32 %v3038, %v2965
        %v3043 = vmul.f32 %v3038, %v2966
        %v3044 = vmul.f32 %v3038, %v2967
        %v3045 = vmul.f32 %v3038, %v2968
        %v3046 = vmul.f32 %v3038, %v2969
        %v3047 = vadd.f32 %v3005, %v3039
        %v3048 = vadd.f32 %v3006, %v3040
        %v3049 = vadd.f32 %v3007, %v3041
        %v3050 = vadd.f32 %v3008, %v3042
        %v3051 = vadd.f32 %v3009, %v3043
        %v3052 = vadd.f32 %v3010, %v3044
        %v3053 = vadd.f32 %v3011, %v3045
        %v3054 = vadd.f32 %v3012, %v3046
        %v3055 = vld [vmem:[%s3 + $0x66] sm:$0x1]
        %v3056 = vlaneseq
        %v3057 = vshrl.u32 %v3056, 7
        %v3058 = vsub.s32 0, %v3057
        %v3059 = vrot.slane %v3055, %v3058
        %v3060 = vmul.f32 %v3059, %v2963
        %v3061 = vmul.f32 %v3059, %v2964
        %v3062 = vmul.f32 %v3059, %v2965
        %v3063 = vmul.f32 %v3059, %v2966
        %v3064 = vmul.f32 %v3059, %v2967
        %v3065 = vmul.f32 %v3059, %v2968
        %v3066 = vmul.f32 %v3059, %v2969
        %v3067 = vmul.f32 %v3059, %v2970
        %v3068 = vadd.f32 %v3026, %v3060
        %v3069 = vadd.f32 %v3027, %v3061
        %v3070 = vadd.f32 %v3028, %v3062
        %v3071 = vadd.f32 %v3029, %v3063
        %v3072 = vadd.f32 %v3030, %v3064
        %v3073 = vadd.f32 %v3031, %v3065
        %v3074 = vadd.f32 %v3032, %v3066
        %v3075 = vadd.f32 %v3033, %v3067
        %v3076 = vld [vmem:[#allocation2 + $0x1] sm:$0xff]
        %v3077 = vld [vmem:[#allocation2 + $0x11] sm:$0xff]
        %v3078 = vld [vmem:[#allocation2 + $0x21] sm:$0xff]
        %v3079 = vld [vmem:[#allocation2 + $0x31] sm:$0xff]
        %v3080 = vld [vmem:[#allocation2 + $0x41] sm:$0xff]
        %v3081 = vld [vmem:[#allocation2 + $0x51] sm:$0xff]
        %v3082 = vld [vmem:[#allocation2 + $0x61] sm:$0xff]
        %v3083 = vld [vmem:[#allocation2 + $0x71] sm:$0xff]
        %v3084 = vld [vmem:[#allocation2 + $0x81] sm:$0xff]
        %v3085 = vld [vmem:[#allocation2 + $0x91] sm:$0xff]
        %v3086 = vld [vmem:[#allocation2 + $0xa1] sm:$0xff]
        %v3087 = vld [vmem:[#allocation2 + $0xb1] sm:$0xff]
        %v3088 = vld [vmem:[%s3 + $0x7] sm:$0x1]
        %v3089 = vlaneseq
        %v3090 = vshrl.u32 %v3089, 7
        %v3091 = vsub.s32 0, %v3090
        %v3092 = vrot.slane %v3088, %v3091
        %v3093 = vmul.f32 %v3092, %v3076
        %v3094 = vmul.f32 %v3092, %v3077
        %v3095 = vmul.f32 %v3092, %v3078
        %v3096 = vmul.f32 %v3092, %v3079
        %v3097 = vmul.f32 %v3092, %v3080
        %v3098 = vmul.f32 %v3092, %v3081
        %v3099 = vmul.f32 %v3092, %v3082
        %v3100 = vmul.f32 %v3092, %v3083
        %v3101 = vadd.f32 %v3068, %v3093
        %v3102 = vadd.f32 %v3069, %v3094
        %v3103 = vadd.f32 %v3070, %v3095
        %v3104 = vadd.f32 %v3071, %v3096
        %v3105 = vadd.f32 %v3072, %v3097
        %v3106 = vadd.f32 %v3073, %v3098
        %v3107 = vadd.f32 %v3074, %v3099
        %v3108 = vadd.f32 %v3075, %v3100
        %v3109 = vld [vmem:[%s3 + $0x20] sm:$0x1]
        %v3110 = vlaneseq
        %v3111 = vshrl.u32 %v3110, 7
        %v3112 = vsub.s32 0, %v3111
        %v3113 = vrot.slane %v3109, %v3112
        %v3114 = vmul.f32 %v3113, %v3077
        %v3115 = vmul.f32 %v3113, %v3078
        %v3116 = vmul.f32 %v3113, %v3079
        %v3117 = vmul.f32 %v3113, %v3080
        %v3118 = vmul.f32 %v3113, %v3081
        %v3119 = vmul.f32 %v3113, %v3082
        %v3120 = vmul.f32 %v3113, %v3083
        %v3121 = vmul.f32 %v3113, %v3084
        %v3122 = vadd.f32 %v3047, %v3114
        %v3123 = vadd.f32 %v3048, %v3115
        %v3124 = vadd.f32 %v3049, %v3116
        %v3125 = vadd.f32 %v3050, %v3117
        %v3126 = vadd.f32 %v3051, %v3118
        %v3127 = vadd.f32 %v3052, %v3119
        %v3128 = vadd.f32 %v3053, %v3120
        %v3129 = vadd.f32 %v3054, %v3121
        %v3130 = vld [vmem:[%s3 + $0x39] sm:$0x1]
        %v3131 = vlaneseq
        %v3132 = vshrl.u32 %v3131, 7
        %v3133 = vsub.s32 0, %v3132
        %v3134 = vrot.slane %v3130, %v3133
        %v3135 = vmul.f32 %v3134, %v3078
        %v3136 = vmul.f32 %v3134, %v3079
        %v3137 = vmul.f32 %v3134, %v3080
        %v3138 = vmul.f32 %v3134, %v3081
        %v3139 = vmul.f32 %v3134, %v3082
        %v3140 = vmul.f32 %v3134, %v3083
        %v3141 = vmul.f32 %v3134, %v3084
        %v3142 = vmul.f32 %v3134, %v3085
        %v3143 = vadd.f32 %v3101, %v3135
        %v3144 = vadd.f32 %v3102, %v3136
        %v3145 = vadd.f32 %v3103, %v3137
        %v3146 = vadd.f32 %v3104, %v3138
        %v3147 = vadd.f32 %v3105, %v3139
        %v3148 = vadd.f32 %v3106, %v3140
        %v3149 = vadd.f32 %v3107, %v3141
        %v3150 = vadd.f32 %v3108, %v3142
        %v3151 = vld [vmem:[%s3 + $0x52] sm:$0x1]
        %v3152 = vlaneseq
        %v3153 = vshrl.u32 %v3152, 7
        %v3154 = vsub.s32 0, %v3153
        %v3155 = vrot.slane %v3151, %v3154
        %v3156 = vmul.f32 %v3155, %v3079
        %v3157 = vmul.f32 %v3155, %v3080
        %v3158 = vmul.f32 %v3155, %v3081
        %v3159 = vmul.f32 %v3155, %v3082
        %v3160 = vmul.f32 %v3155, %v3083
        %v3161 = vmul.f32 %v3155, %v3084
        %v3162 = vmul.f32 %v3155, %v3085
        %v3163 = vmul.f32 %v3155, %v3086
        %v3164 = vadd.f32 %v3122, %v3156
        %v3165 = vadd.f32 %v3123, %v3157
        %v3166 = vadd.f32 %v3124, %v3158
        %v3167 = vadd.f32 %v3125, %v3159
        %v3168 = vadd.f32 %v3126, %v3160
        %v3169 = vadd.f32 %v3127, %v3161
        %v3170 = vadd.f32 %v3128, %v3162
        %v3171 = vadd.f32 %v3129, %v3163
        %v3172 = vld [vmem:[%s3 + $0x6b] sm:$0x1]
        %v3173 = vlaneseq
        %v3174 = vshrl.u32 %v3173, 7
        %v3175 = vsub.s32 0, %v3174
        %v3176 = vrot.slane %v3172, %v3175
        %v3177 = vmul.f32 %v3176, %v3080
        %v3178 = vmul.f32 %v3176, %v3081
        %v3179 = vmul.f32 %v3176, %v3082
        %v3180 = vmul.f32 %v3176, %v3083
        %v3181 = vmul.f32 %v3176, %v3084
        %v3182 = vmul.f32 %v3176, %v3085
        %v3183 = vmul.f32 %v3176, %v3086
        %v3184 = vmul.f32 %v3176, %v3087
        %v3185 = vadd.f32 %v3143, %v3177
        %v3186 = vadd.f32 %v3144, %v3178
        %v3187 = vadd.f32 %v3145, %v3179
        %v3188 = vadd.f32 %v3146, %v3180
        %v3189 = vadd.f32 %v3147, %v3181
        %v3190 = vadd.f32 %v3148, %v3182
        %v3191 = vadd.f32 %v3149, %v3183
        %v3192 = vadd.f32 %v3150, %v3184
        %v3193 = vld [vmem:[#allocation2 + $0x2] sm:$0xff]
        %v3194 = vld [vmem:[#allocation2 + $0x12] sm:$0xff]
        %v3195 = vld [vmem:[#allocation2 + $0x22] sm:$0xff]
        %v3196 = vld [vmem:[#allocation2 + $0x32] sm:$0xff]
        %v3197 = vld [vmem:[#allocation2 + $0x42] sm:$0xff]
        %v3198 = vld [vmem:[#allocation2 + $0x52] sm:$0xff]
        %v3199 = vld [vmem:[#allocation2 + $0x62] sm:$0xff]
        %v3200 = vld [vmem:[#allocation2 + $0x72] sm:$0xff]
        %v3201 = vld [vmem:[#allocation2 + $0x82] sm:$0xff]
        %v3202 = vld [vmem:[#allocation2 + $0x92] sm:$0xff]
        %v3203 = vld [vmem:[#allocation2 + $0xa2] sm:$0xff]
        %v3204 = vld [vmem:[#allocation2 + $0xb2] sm:$0xff]
        %v3205 = vld [vmem:[%s3 + $0xc] sm:$0x1]
        %v3206 = vlaneseq
        %v3207 = vshrl.u32 %v3206, 7
        %v3208 = vsub.s32 0, %v3207
        %v3209 = vrot.slane %v3205, %v3208
        %v3210 = vmul.f32 %v3209, %v3193
        %v3211 = vmul.f32 %v3209, %v3194
        %v3212 = vmul.f32 %v3209, %v3195
        %v3213 = vmul.f32 %v3209, %v3196
        %v3214 = vmul.f32 %v3209, %v3197
        %v3215 = vmul.f32 %v3209, %v3198
        %v3216 = vmul.f32 %v3209, %v3199
        %v3217 = vmul.f32 %v3209, %v3200
        %v3218 = vadd.f32 %v3185, %v3210
        %v3219 = vadd.f32 %v3186, %v3211
        %v3220 = vadd.f32 %v3187, %v3212
        %v3221 = vadd.f32 %v3188, %v3213
        %v3222 = vadd.f32 %v3189, %v3214
        %v3223 = vadd.f32 %v3190, %v3215
        %v3224 = vadd.f32 %v3191, %v3216
        %v3225 = vadd.f32 %v3192, %v3217
        %v3226 = vld [vmem:[%s3 + $0x25] sm:$0x1]
        %v3227 = vlaneseq
        %v3228 = vshrl.u32 %v3227, 7
        %v3229 = vsub.s32 0, %v3228
        %v3230 = vrot.slane %v3226, %v3229
        %v3231 = vmul.f32 %v3230, %v3194
        %v3232 = vmul.f32 %v3230, %v3195
        %v3233 = vmul.f32 %v3230, %v3196
        %v3234 = vmul.f32 %v3230, %v3197
        %v3235 = vmul.f32 %v3230, %v3198
        %v3236 = vmul.f32 %v3230, %v3199
        %v3237 = vmul.f32 %v3230, %v3200
        %v3238 = vmul.f32 %v3230, %v3201
        %v3239 = vadd.f32 %v3164, %v3231
        %v3240 = vadd.f32 %v3165, %v3232
        %v3241 = vadd.f32 %v3166, %v3233
        %v3242 = vadd.f32 %v3167, %v3234
        %v3243 = vadd.f32 %v3168, %v3235
        %v3244 = vadd.f32 %v3169, %v3236
        %v3245 = vadd.f32 %v3170, %v3237
        %v3246 = vadd.f32 %v3171, %v3238
        %v3247 = vld [vmem:[%s3 + $0x3e] sm:$0x1]
        %v3248 = vlaneseq
        %v3249 = vshrl.u32 %v3248, 7
        %v3250 = vsub.s32 0, %v3249
        %v3251 = vrot.slane %v3247, %v3250
        %v3252 = vmul.f32 %v3251, %v3195
        %v3253 = vmul.f32 %v3251, %v3196
        %v3254 = vmul.f32 %v3251, %v3197
        %v3255 = vmul.f32 %v3251, %v3198
        %v3256 = vmul.f32 %v3251, %v3199
        %v3257 = vmul.f32 %v3251, %v3200
        %v3258 = vmul.f32 %v3251, %v3201
        %v3259 = vmul.f32 %v3251, %v3202
        %v3260 = vadd.f32 %v3218, %v3252
        %v3261 = vadd.f32 %v3219, %v3253
        %v3262 = vadd.f32 %v3220, %v3254
        %v3263 = vadd.f32 %v3221, %v3255
        %v3264 = vadd.f32 %v3222, %v3256
        %v3265 = vadd.f32 %v3223, %v3257
        %v3266 = vadd.f32 %v3224, %v3258
        %v3267 = vadd.f32 %v3225, %v3259
        %v3268 = vld [vmem:[%s3 + $0x57] sm:$0x1]
        %v3269 = vlaneseq
        %v3270 = vshrl.u32 %v3269, 7
        %v3271 = vsub.s32 0, %v3270
        %v3272 = vrot.slane %v3268, %v3271
        %v3273 = vmul.f32 %v3272, %v3196
        %v3274 = vmul.f32 %v3272, %v3197
        %v3275 = vmul.f32 %v3272, %v3198
        %v3276 = vmul.f32 %v3272, %v3199
        %v3277 = vmul.f32 %v3272, %v3200
        %v3278 = vmul.f32 %v3272, %v3201
        %v3279 = vmul.f32 %v3272, %v3202
        %v3280 = vmul.f32 %v3272, %v3203
        %v3281 = vadd.f32 %v3239, %v3273
        %v3282 = vadd.f32 %v3240, %v3274
        %v3283 = vadd.f32 %v3241, %v3275
        %v3284 = vadd.f32 %v3242, %v3276
        %v3285 = vadd.f32 %v3243, %v3277
        %v3286 = vadd.f32 %v3244, %v3278
        %v3287 = vadd.f32 %v3245, %v3279
        %v3288 = vadd.f32 %v3246, %v3280
        %v3289 = vld [vmem:[%s3 + $0x70] sm:$0x1]
        %v3290 = vlaneseq
        %v3291 = vshrl.u32 %v3290, 7
        %v3292 = vsub.s32 0, %v3291
        %v3293 = vrot.slane %v3289, %v3292
        %v3294 = vmul.f32 %v3293, %v3197
        %v3295 = vmul.f32 %v3293, %v3198
        %v3296 = vmul.f32 %v3293, %v3199
        %v3297 = vmul.f32 %v3293, %v3200
        %v3298 = vmul.f32 %v3293, %v3201
        %v3299 = vmul.f32 %v3293, %v3202
        %v3300 = vmul.f32 %v3293, %v3203
        %v3301 = vmul.f32 %v3293, %v3204
        %v3302 = vadd.f32 %v3260, %v3294
        %v3303 = vadd.f32 %v3261, %v3295
        %v3304 = vadd.f32 %v3262, %v3296
        %v3305 = vadd.f32 %v3263, %v3297
        %v3306 = vadd.f32 %v3264, %v3298
        %v3307 = vadd.f32 %v3265, %v3299
        %v3308 = vadd.f32 %v3266, %v3300
        %v3309 = vadd.f32 %v3267, %v3301
        %v3310 = vld [vmem:[#allocation2 + $0x3] sm:$0xff]
        %v3311 = vld [vmem:[#allocation2 + $0x13] sm:$0xff]
        %v3312 = vld [vmem:[#allocation2 + $0x23] sm:$0xff]
        %v3313 = vld [vmem:[#allocation2 + $0x33] sm:$0xff]
        %v3314 = vld [vmem:[#allocation2 + $0x43] sm:$0xff]
        %v3315 = vld [vmem:[#allocation2 + $0x53] sm:$0xff]
        %v3316 = vld [vmem:[#allocation2 + $0x63] sm:$0xff]
        %v3317 = vld [vmem:[#allocation2 + $0x73] sm:$0xff]
        %v3318 = vld [vmem:[#allocation2 + $0x83] sm:$0xff]
        %v3319 = vld [vmem:[#allocation2 + $0x93] sm:$0xff]
        %v3320 = vld [vmem:[#allocation2 + $0xa3] sm:$0xff]
        %v3321 = vld [vmem:[#allocation2 + $0xb3] sm:$0xff]
        %v3322 = vld [vmem:[%s3 + $0x11] sm:$0x1]
        %v3323 = vlaneseq
        %v3324 = vshrl.u32 %v3323, 7
        %v3325 = vsub.s32 0, %v3324
        %v3326 = vrot.slane %v3322, %v3325
        %v3327 = vmul.f32 %v3326, %v3310
        %v3328 = vmul.f32 %v3326, %v3311
        %v3329 = vmul.f32 %v3326, %v3312
        %v3330 = vmul.f32 %v3326, %v3313
        %v3331 = vmul.f32 %v3326, %v3314
        %v3332 = vmul.f32 %v3326, %v3315
        %v3333 = vmul.f32 %v3326, %v3316
        %v3334 = vmul.f32 %v3326, %v3317
        %v3335 = vadd.f32 %v3302, %v3327
        %v3336 = vadd.f32 %v3303, %v3328
        %v3337 = vadd.f32 %v3304, %v3329
        %v3338 = vadd.f32 %v3305, %v3330
        %v3339 = vadd.f32 %v3306, %v3331
        %v3340 = vadd.f32 %v3307, %v3332
        %v3341 = vadd.f32 %v3308, %v3333
        %v3342 = vadd.f32 %v3309, %v3334
        %v3343 = vld [vmem:[%s3 + $0x2a] sm:$0x1]
        %v3344 = vlaneseq
        %v3345 = vshrl.u32 %v3344, 7
        %v3346 = vsub.s32 0, %v3345
        %v3347 = vrot.slane %v3343, %v3346
        %v3348 = vmul.f32 %v3347, %v3311
        %v3349 = vmul.f32 %v3347, %v3312
        %v3350 = vmul.f32 %v3347, %v3313
        %v3351 = vmul.f32 %v3347, %v3314
        %v3352 = vmul.f32 %v3347, %v3315
        %v3353 = vmul.f32 %v3347, %v3316
        %v3354 = vmul.f32 %v3347, %v3317
        %v3355 = vmul.f32 %v3347, %v3318
        %v3356 = vadd.f32 %v3281, %v3348
        %v3357 = vadd.f32 %v3282, %v3349
        %v3358 = vadd.f32 %v3283, %v3350
        %v3359 = vadd.f32 %v3284, %v3351
        %v3360 = vadd.f32 %v3285, %v3352
        %v3361 = vadd.f32 %v3286, %v3353
        %v3362 = vadd.f32 %v3287, %v3354
        %v3363 = vadd.f32 %v3288, %v3355
        %v3364 = vld [vmem:[%s3 + $0x43] sm:$0x1]
        %v3365 = vlaneseq
        %v3366 = vshrl.u32 %v3365, 7
        %v3367 = vsub.s32 0, %v3366
        %v3368 = vrot.slane %v3364, %v3367
        %v3369 = vmul.f32 %v3368, %v3312
        %v3370 = vmul.f32 %v3368, %v3313
        %v3371 = vmul.f32 %v3368, %v3314
        %v3372 = vmul.f32 %v3368, %v3315
        %v3373 = vmul.f32 %v3368, %v3316
        %v3374 = vmul.f32 %v3368, %v3317
        %v3375 = vmul.f32 %v3368, %v3318
        %v3376 = vmul.f32 %v3368, %v3319
        %v3377 = vadd.f32 %v3335, %v3369
        %v3378 = vadd.f32 %v3336, %v3370
        %v3379 = vadd.f32 %v3337, %v3371
        %v3380 = vadd.f32 %v3338, %v3372
        %v3381 = vadd.f32 %v3339, %v3373
        %v3382 = vadd.f32 %v3340, %v3374
        %v3383 = vadd.f32 %v3341, %v3375
        %v3384 = vadd.f32 %v3342, %v3376
        %v3385 = vld [vmem:[%s3 + $0x5c] sm:$0x1]
        %v3386 = vlaneseq
        %v3387 = vshrl.u32 %v3386, 7
        %v3388 = vsub.s32 0, %v3387
        %v3389 = vrot.slane %v3385, %v3388
        %v3390 = vmul.f32 %v3389, %v3313
        %v3391 = vmul.f32 %v3389, %v3314
        %v3392 = vmul.f32 %v3389, %v3315
        %v3393 = vmul.f32 %v3389, %v3316
        %v3394 = vmul.f32 %v3389, %v3317
        %v3395 = vmul.f32 %v3389, %v3318
        %v3396 = vmul.f32 %v3389, %v3319
        %v3397 = vmul.f32 %v3389, %v3320
        %v3398 = vadd.f32 %v3356, %v3390
        %v3399 = vadd.f32 %v3357, %v3391
        %v3400 = vadd.f32 %v3358, %v3392
        %v3401 = vadd.f32 %v3359, %v3393
        %v3402 = vadd.f32 %v3360, %v3394
        %v3403 = vadd.f32 %v3361, %v3395
        %v3404 = vadd.f32 %v3362, %v3396
        %v3405 = vadd.f32 %v3363, %v3397
        %v3406 = vld [vmem:[%s3 + $0x75] sm:$0x1]
        %v3407 = vlaneseq
        %v3408 = vshrl.u32 %v3407, 7
        %v3409 = vsub.s32 0, %v3408
        %v3410 = vrot.slane %v3406, %v3409
        %v3411 = vmul.f32 %v3410, %v3314
        %v3412 = vmul.f32 %v3410, %v3315
        %v3413 = vmul.f32 %v3410, %v3316
        %v3414 = vmul.f32 %v3410, %v3317
        %v3415 = vmul.f32 %v3410, %v3318
        %v3416 = vmul.f32 %v3410, %v3319
        %v3417 = vmul.f32 %v3410, %v3320
        %v3418 = vmul.f32 %v3410, %v3321
        %v3419 = vadd.f32 %v3377, %v3411
        %v3420 = vadd.f32 %v3378, %v3412
        %v3421 = vadd.f32 %v3379, %v3413
        %v3422 = vadd.f32 %v3380, %v3414
        %v3423 = vadd.f32 %v3381, %v3415
        %v3424 = vadd.f32 %v3382, %v3416
        %v3425 = vadd.f32 %v3383, %v3417
        %v3426 = vadd.f32 %v3384, %v3418
        %v3427 = vld [vmem:[#allocation2 + $0x4] sm:$0xff]
        %v3428 = vld [vmem:[#allocation2 + $0x14] sm:$0xff]
        %v3429 = vld [vmem:[#allocation2 + $0x24] sm:$0xff]
        %v3430 = vld [vmem:[#allocation2 + $0x34] sm:$0xff]
        %v3431 = vld [vmem:[#allocation2 + $0x44] sm:$0xff]
        %v3432 = vld [vmem:[#allocation2 + $0x54] sm:$0xff]
        %v3433 = vld [vmem:[#allocation2 + $0x64] sm:$0xff]
        %v3434 = vld [vmem:[#allocation2 + $0x74] sm:$0xff]
        %v3435 = vld [vmem:[#allocation2 + $0x84] sm:$0xff]
        %v3436 = vld [vmem:[#allocation2 + $0x94] sm:$0xff]
        %v3437 = vld [vmem:[#allocation2 + $0xa4] sm:$0xff]
        %v3438 = vld [vmem:[#allocation2 + $0xb4] sm:$0xff]
        %v3439 = vld [vmem:[%s3 + $0x16] sm:$0x1]
        %v3440 = vlaneseq
        %v3441 = vshrl.u32 %v3440, 7
        %v3442 = vsub.s32 0, %v3441
        %v3443 = vrot.slane %v3439, %v3442
        %v3444 = vmul.f32 %v3443, %v3427
        %v3445 = vmul.f32 %v3443, %v3428
        %v3446 = vmul.f32 %v3443, %v3429
        %v3447 = vmul.f32 %v3443, %v3430
        %v3448 = vmul.f32 %v3443, %v3431
        %v3449 = vmul.f32 %v3443, %v3432
        %v3450 = vmul.f32 %v3443, %v3433
        %v3451 = vmul.f32 %v3443, %v3434
        %v3452 = vadd.f32 %v3419, %v3444
        %v3453 = vadd.f32 %v3420, %v3445
        %v3454 = vadd.f32 %v3421, %v3446
        %v3455 = vadd.f32 %v3422, %v3447
        %v3456 = vadd.f32 %v3423, %v3448
        %v3457 = vadd.f32 %v3424, %v3449
        %v3458 = vadd.f32 %v3425, %v3450
        %v3459 = vadd.f32 %v3426, %v3451
        %v3460 = vld [vmem:[%s3 + $0x2f] sm:$0x1]
        %v3461 = vlaneseq
        %v3462 = vshrl.u32 %v3461, 7
        %v3463 = vsub.s32 0, %v3462
        %v3464 = vrot.slane %v3460, %v3463
        %v3465 = vmul.f32 %v3464, %v3428
        %v3466 = vmul.f32 %v3464, %v3429
        %v3467 = vmul.f32 %v3464, %v3430
        %v3468 = vmul.f32 %v3464, %v3431
        %v3469 = vmul.f32 %v3464, %v3432
        %v3470 = vmul.f32 %v3464, %v3433
        %v3471 = vmul.f32 %v3464, %v3434
        %v3472 = vmul.f32 %v3464, %v3435
        %v3473 = vadd.f32 %v3398, %v3465
        %v3474 = vadd.f32 %v3399, %v3466
        %v3475 = vadd.f32 %v3400, %v3467
        %v3476 = vadd.f32 %v3401, %v3468
        %v3477 = vadd.f32 %v3402, %v3469
        %v3478 = vadd.f32 %v3403, %v3470
        %v3479 = vadd.f32 %v3404, %v3471
        %v3480 = vadd.f32 %v3405, %v3472
        %v3481 = vld [vmem:[%s3 + $0x48] sm:$0x1]
        %v3482 = vlaneseq
        %v3483 = vshrl.u32 %v3482, 7
        %v3484 = vsub.s32 0, %v3483
        %v3485 = vrot.slane %v3481, %v3484
        %v3486 = vmul.f32 %v3485, %v3429
        %v3487 = vmul.f32 %v3485, %v3430
        %v3488 = vmul.f32 %v3485, %v3431
        %v3489 = vmul.f32 %v3485, %v3432
        %v3490 = vmul.f32 %v3485, %v3433
        %v3491 = vmul.f32 %v3485, %v3434
        %v3492 = vmul.f32 %v3485, %v3435
        %v3493 = vmul.f32 %v3485, %v3436
        %v3494 = vadd.f32 %v3452, %v3486
        %v3495 = vadd.f32 %v3453, %v3487
        %v3496 = vadd.f32 %v3454, %v3488
        %v3497 = vadd.f32 %v3455, %v3489
        %v3498 = vadd.f32 %v3456, %v3490
        %v3499 = vadd.f32 %v3457, %v3491
        %v3500 = vadd.f32 %v3458, %v3492
        %v3501 = vadd.f32 %v3459, %v3493
        %v3502 = vld [vmem:[%s3 + $0x61] sm:$0x1]
        %v3503 = vlaneseq
        %v3504 = vshrl.u32 %v3503, 7
        %v3505 = vsub.s32 0, %v3504
        %v3506 = vrot.slane %v3502, %v3505
        %v3507 = vmul.f32 %v3506, %v3430
        %v3508 = vmul.f32 %v3506, %v3431
        %v3509 = vmul.f32 %v3506, %v3432
        %v3510 = vmul.f32 %v3506, %v3433
        %v3511 = vmul.f32 %v3506, %v3434
        %v3512 = vmul.f32 %v3506, %v3435
        %v3513 = vmul.f32 %v3506, %v3436
        %v3514 = vmul.f32 %v3506, %v3437
        %v3515 = vadd.f32 %v3473, %v3507
        %v3516 = vadd.f32 %v3474, %v3508
        %v3517 = vadd.f32 %v3475, %v3509
        %v3518 = vadd.f32 %v3476, %v3510
        %v3519 = vadd.f32 %v3477, %v3511
        %v3520 = vadd.f32 %v3478, %v3512
        %v3521 = vadd.f32 %v3479, %v3513
        %v3522 = vadd.f32 %v3480, %v3514
        %v3523 = vld [vmem:[%s3 + $0x7a] sm:$0x1]
        %v3524 = vlaneseq
        %v3525 = vshrl.u32 %v3524, 7
        %v3526 = vsub.s32 0, %v3525
        %v3527 = vrot.slane %v3523, %v3526
        %v3528 = vmul.f32 %v3527, %v3431
        %v3529 = vmul.f32 %v3527, %v3432
        %v3530 = vmul.f32 %v3527, %v3433
        %v3531 = vmul.f32 %v3527, %v3434
        %v3532 = vmul.f32 %v3527, %v3435
        %v3533 = vmul.f32 %v3527, %v3436
        %v3534 = vmul.f32 %v3527, %v3437
        %v3535 = vmul.f32 %v3527, %v3438
        %v3536 = vadd.f32 %v3494, %v3528
        %v3537 = vadd.f32 %v3495, %v3529
        %v3538 = vadd.f32 %v3496, %v3530
        %v3539 = vadd.f32 %v3497, %v3531
        %v3540 = vadd.f32 %v3498, %v3532
        %v3541 = vadd.f32 %v3499, %v3533
        %v3542 = vadd.f32 %v3500, %v3534
        %v3543 = vadd.f32 %v3501, %v3535
        %v3544 = vld [vmem:[%s330] sm:$0xff]
        %v3545 = vld [vmem:[%s330 + $0x8] sm:$0xf]
        %v3546 = vld [vmem:[%s330 + $0x10] sm:$0xff]
        %v3547 = vld [vmem:[%s330 + $0x18] sm:$0xf]
        %v3548 = vld [vmem:[%s330 + $0x20] sm:$0xff]
        %v3549 = vld [vmem:[%s330 + $0x28] sm:$0xf]
        %v3550 = vld [vmem:[%s330 + $0x30] sm:$0xff]
        %v3551 = vld [vmem:[%s330 + $0x38] sm:$0xf]
        %v3552 = vld [vmem:[%s330 + $0x40] sm:$0xff]
        %v3553 = vld [vmem:[%s330 + $0x48] sm:$0xf]
        %v3554 = vld [vmem:[%s330 + $0x50] sm:$0xff]
        %v3555 = vld [vmem:[%s330 + $0x58] sm:$0xf]
        %v3556 = vld [vmem:[%s330 + $0x60] sm:$0xff]
        %v3557 = vld [vmem:[%s330 + $0x68] sm:$0xf]
        %v3558 = vld [vmem:[%s330 + $0x70] sm:$0xff]
        %v3559 = vld [vmem:[%s330 + $0x78] sm:$0xf]
        %v3560 = vld [vmem:[%s330 + $0x80] sm:$0xff]
        %v3561 = vld [vmem:[%s330 + $0x88] sm:$0xf]
        %v3562 = vld [vmem:[%s330 + $0x90] sm:$0xff]
        %v3563 = vld [vmem:[%s330 + $0x98] sm:$0xf]
        %v3564 = vld [vmem:[%s330 + $0xa0] sm:$0xff]
        %v3565 = vld [vmem:[%s330 + $0xa8] sm:$0xf]
        %v3566 = vld [vmem:[%s330 + $0xb0] sm:$0xff]
        %v3567 = vld [vmem:[%s330 + $0xb8] sm:$0xf]
        %3592 = vrot.lane.b32.xlu0 %v3544, 104
        %v3593 = vpop.permute.xlu0 %3592
        %3594 = vrot.lane.b32.xlu0 %v3545, 104
        %v3595 = vpop.permute.xlu0 %3594
        %3596 = vrot.lane.b32.xlu0 %v3546, 104
        %v3597 = vpop.permute.xlu0 %3596
        %3598 = vrot.lane.b32.xlu0 %v3547, 104
        %v3599 = vpop.permute.xlu0 %3598
        %3600 = vrot.lane.b32.xlu0 %v3548, 104
        %v3601 = vpop.permute.xlu0 %3600
        %3602 = vrot.lane.b32.xlu0 %v3549, 104
        %v3603 = vpop.permute.xlu0 %3602
        %3604 = vrot.lane.b32.xlu0 %v3550, 104
        %v3605 = vpop.permute.xlu0 %3604
        %3606 = vrot.lane.b32.xlu0 %v3551, 104
        %v3607 = vpop.permute.xlu0 %3606
        %3608 = vrot.lane.b32.xlu0 %v3552, 104
        %v3609 = vpop.permute.xlu0 %3608
        %3610 = vrot.lane.b32.xlu0 %v3553, 104
        %v3611 = vpop.permute.xlu0 %3610
        %3612 = vrot.lane.b32.xlu0 %v3554, 104
        %v3613 = vpop.permute.xlu0 %3612
        %3614 = vrot.lane.b32.xlu0 %v3555, 104
        %v3615 = vpop.permute.xlu0 %3614
        %3616 = vrot.lane.b32.xlu0 %v3556, 104
        %v3617 = vpop.permute.xlu0 %3616
        %3618 = vrot.lane.b32.xlu0 %v3557, 104
        %v3619 = vpop.permute.xlu0 %3618
        %3620 = vrot.lane.b32.xlu0 %v3558, 104
        %v3621 = vpop.permute.xlu0 %3620
        %3622 = vrot.lane.b32.xlu0 %v3559, 104
        %v3623 = vpop.permute.xlu0 %3622
        %3624 = vrot.lane.b32.xlu0 %v3560, 104
        %v3625 = vpop.permute.xlu0 %3624
        %3626 = vrot.lane.b32.xlu0 %v3561, 104
        %v3627 = vpop.permute.xlu0 %3626
        %3628 = vrot.lane.b32.xlu0 %v3562, 104
        %v3629 = vpop.permute.xlu0 %3628
        %3630 = vrot.lane.b32.xlu0 %v3563, 104
        %v3631 = vpop.permute.xlu0 %3630
        %3632 = vrot.lane.b32.xlu0 %v3564, 104
        %v3633 = vpop.permute.xlu0 %3632
        %3634 = vrot.lane.b32.xlu0 %v3565, 104
        %v3635 = vpop.permute.xlu0 %3634
        %3636 = vrot.lane.b32.xlu0 %v3566, 104
        %v3637 = vpop.permute.xlu0 %3636
        %3638 = vrot.lane.b32.xlu0 %v3567, 104
        %v3639 = vpop.permute.xlu0 %3638
        %3664 = vst.msk [vmem:[#allocation2] sm:$0xff] %vm451, %v3593
        %3665 = vst.msk [vmem:[#allocation2 + $0x8] sm:$0xf] %vm453, %v3595
        %3666 = vst.msk [vmem:[#allocation2 + $0x10] sm:$0xff] %vm451, %v3597
        %3667 = vst.msk [vmem:[#allocation2 + $0x18] sm:$0xf] %vm453, %v3599
        %3668 = vst.msk [vmem:[#allocation2 + $0x20] sm:$0xff] %vm451, %v3601
        %3669 = vst.msk [vmem:[#allocation2 + $0x28] sm:$0xf] %vm453, %v3603
        %3670 = vst.msk [vmem:[#allocation2 + $0x30] sm:$0xff] %vm451, %v3605
        %3671 = vst.msk [vmem:[#allocation2 + $0x38] sm:$0xf] %vm453, %v3607
        %3672 = vst.msk [vmem:[#allocation2 + $0x40] sm:$0xff] %vm451, %v3609
        %3673 = vst.msk [vmem:[#allocation2 + $0x48] sm:$0xf] %vm453, %v3611
        %3674 = vst.msk [vmem:[#allocation2 + $0x50] sm:$0xff] %vm451, %v3613
        %3675 = vst.msk [vmem:[#allocation2 + $0x58] sm:$0xf] %vm453, %v3615
        %3676 = vst.msk [vmem:[#allocation2 + $0x60] sm:$0xff] %vm451, %v3617
        %3677 = vst.msk [vmem:[#allocation2 + $0x68] sm:$0xf] %vm453, %v3619
        %3678 = vst.msk [vmem:[#allocation2 + $0x70] sm:$0xff] %vm451, %v3621
        %3679 = vst.msk [vmem:[#allocation2 + $0x78] sm:$0xf] %vm453, %v3623
        %3680 = vst.msk [vmem:[#allocation2 + $0x80] sm:$0xff] %vm451, %v3625
        %3681 = vst.msk [vmem:[#allocation2 + $0x88] sm:$0xf] %vm453, %v3627
        %3682 = vst.msk [vmem:[#allocation2 + $0x90] sm:$0xff] %vm451, %v3629
        %3683 = vst.msk [vmem:[#allocation2 + $0x98] sm:$0xf] %vm453, %v3631
        %3684 = vst.msk [vmem:[#allocation2 + $0xa0] sm:$0xff] %vm451, %v3633
        %3685 = vst.msk [vmem:[#allocation2 + $0xa8] sm:$0xf] %vm453, %v3635
        %3686 = vst.msk [vmem:[#allocation2 + $0xb0] sm:$0xff] %vm451, %v3637
        %3687 = vst.msk [vmem:[#allocation2 + $0xb8] sm:$0xf] %vm453, %v3639
        %v3688 = vld [vmem:[#allocation2] sm:$0xff]
        %v3689 = vld [vmem:[#allocation2 + $0x10] sm:$0xff]
        %v3690 = vld [vmem:[#allocation2 + $0x20] sm:$0xff]
        %v3691 = vld [vmem:[#allocation2 + $0x30] sm:$0xff]
        %v3692 = vld [vmem:[#allocation2 + $0x40] sm:$0xff]
        %v3693 = vld [vmem:[#allocation2 + $0x50] sm:$0xff]
        %v3694 = vld [vmem:[#allocation2 + $0x60] sm:$0xff]
        %v3695 = vld [vmem:[#allocation2 + $0x70] sm:$0xff]
        %v3696 = vld [vmem:[#allocation2 + $0x80] sm:$0xff]
        %v3697 = vld [vmem:[#allocation2 + $0x90] sm:$0xff]
        %v3698 = vld [vmem:[#allocation2 + $0xa0] sm:$0xff]
        %v3699 = vld [vmem:[#allocation2 + $0xb0] sm:$0xff]
        %v3700 = vld [vmem:[%s3 + $0x3] sm:$0x1]
        %v3701 = vlaneseq
        %v3702 = vshrl.u32 %v3701, 7
        %v3703 = vsub.s32 0, %v3702
        %v3704 = vrot.slane %v3700, %v3703
        %v3705 = vmul.f32 %v3704, %v3688
        %v3706 = vmul.f32 %v3704, %v3689
        %v3707 = vmul.f32 %v3704, %v3690
        %v3708 = vmul.f32 %v3704, %v3691
        %v3709 = vmul.f32 %v3704, %v3692
        %v3710 = vmul.f32 %v3704, %v3693
        %v3711 = vmul.f32 %v3704, %v3694
        %v3712 = vmul.f32 %v3704, %v3695
        %v3713 = vadd.f32 %v3536, %v3705
        %v3714 = vadd.f32 %v3537, %v3706
        %v3715 = vadd.f32 %v3538, %v3707
        %v3716 = vadd.f32 %v3539, %v3708
        %v3717 = vadd.f32 %v3540, %v3709
        %v3718 = vadd.f32 %v3541, %v3710
        %v3719 = vadd.f32 %v3542, %v3711
        %v3720 = vadd.f32 %v3543, %v3712
        %v3721 = vld [vmem:[%s3 + $0x1c] sm:$0x1]
        %v3722 = vlaneseq
        %v3723 = vshrl.u32 %v3722, 7
        %v3724 = vsub.s32 0, %v3723
        %v3725 = vrot.slane %v3721, %v3724
        %v3726 = vmul.f32 %v3725, %v3689
        %v3727 = vmul.f32 %v3725, %v3690
        %v3728 = vmul.f32 %v3725, %v3691
        %v3729 = vmul.f32 %v3725, %v3692
        %v3730 = vmul.f32 %v3725, %v3693
        %v3731 = vmul.f32 %v3725, %v3694
        %v3732 = vmul.f32 %v3725, %v3695
        %v3733 = vmul.f32 %v3725, %v3696
        %v3734 = vadd.f32 %v3515, %v3726
        %v3735 = vadd.f32 %v3516, %v3727
        %v3736 = vadd.f32 %v3517, %v3728
        %v3737 = vadd.f32 %v3518, %v3729
        %v3738 = vadd.f32 %v3519, %v3730
        %v3739 = vadd.f32 %v3520, %v3731
        %v3740 = vadd.f32 %v3521, %v3732
        %v3741 = vadd.f32 %v3522, %v3733
        %v3742 = vld [vmem:[%s3 + $0x35] sm:$0x1]
        %v3743 = vlaneseq
        %v3744 = vshrl.u32 %v3743, 7
        %v3745 = vsub.s32 0, %v3744
        %v3746 = vrot.slane %v3742, %v3745
        %v3747 = vmul.f32 %v3746, %v3690
        %v3748 = vmul.f32 %v3746, %v3691
        %v3749 = vmul.f32 %v3746, %v3692
        %v3750 = vmul.f32 %v3746, %v3693
        %v3751 = vmul.f32 %v3746, %v3694
        %v3752 = vmul.f32 %v3746, %v3695
        %v3753 = vmul.f32 %v3746, %v3696
        %v3754 = vmul.f32 %v3746, %v3697
        %v3755 = vadd.f32 %v3713, %v3747
        %v3756 = vadd.f32 %v3714, %v3748
        %v3757 = vadd.f32 %v3715, %v3749
        %v3758 = vadd.f32 %v3716, %v3750
        %v3759 = vadd.f32 %v3717, %v3751
        %v3760 = vadd.f32 %v3718, %v3752
        %v3761 = vadd.f32 %v3719, %v3753
        %v3762 = vadd.f32 %v3720, %v3754
        %v3763 = vld [vmem:[%s3 + $0x4e] sm:$0x1]
        %v3764 = vlaneseq
        %v3765 = vshrl.u32 %v3764, 7
        %v3766 = vsub.s32 0, %v3765
        %v3767 = vrot.slane %v3763, %v3766
        %v3768 = vmul.f32 %v3767, %v3691
        %v3769 = vmul.f32 %v3767, %v3692
        %v3770 = vmul.f32 %v3767, %v3693
        %v3771 = vmul.f32 %v3767, %v3694
        %v3772 = vmul.f32 %v3767, %v3695
        %v3773 = vmul.f32 %v3767, %v3696
        %v3774 = vmul.f32 %v3767, %v3697
        %v3775 = vmul.f32 %v3767, %v3698
        %v3776 = vadd.f32 %v3734, %v3768
        %v3777 = vadd.f32 %v3735, %v3769
        %v3778 = vadd.f32 %v3736, %v3770
        %v3779 = vadd.f32 %v3737, %v3771
        %v3780 = vadd.f32 %v3738, %v3772
        %v3781 = vadd.f32 %v3739, %v3773
        %v3782 = vadd.f32 %v3740, %v3774
        %v3783 = vadd.f32 %v3741, %v3775
        %v3784 = vld [vmem:[%s3 + $0x67] sm:$0x1]
        %v3785 = vlaneseq
        %v3786 = vshrl.u32 %v3785, 7
        %v3787 = vsub.s32 0, %v3786
        %v3788 = vrot.slane %v3784, %v3787
        %v3789 = vmul.f32 %v3788, %v3692
        %v3790 = vmul.f32 %v3788, %v3693
        %v3791 = vmul.f32 %v3788, %v3694
        %v3792 = vmul.f32 %v3788, %v3695
        %v3793 = vmul.f32 %v3788, %v3696
        %v3794 = vmul.f32 %v3788, %v3697
        %v3795 = vmul.f32 %v3788, %v3698
        %v3796 = vmul.f32 %v3788, %v3699
        %v3797 = vadd.f32 %v3755, %v3789
        %v3798 = vadd.f32 %v3756, %v3790
        %v3799 = vadd.f32 %v3757, %v3791
        %v3800 = vadd.f32 %v3758, %v3792
        %v3801 = vadd.f32 %v3759, %v3793
        %v3802 = vadd.f32 %v3760, %v3794
        %v3803 = vadd.f32 %v3761, %v3795
        %v3804 = vadd.f32 %v3762, %v3796
        %v3805 = vld [vmem:[#allocation2 + $0x1] sm:$0xff]
        %v3806 = vld [vmem:[#allocation2 + $0x11] sm:$0xff]
        %v3807 = vld [vmem:[#allocation2 + $0x21] sm:$0xff]
        %v3808 = vld [vmem:[#allocation2 + $0x31] sm:$0xff]
        %v3809 = vld [vmem:[#allocation2 + $0x41] sm:$0xff]
        %v3810 = vld [vmem:[#allocation2 + $0x51] sm:$0xff]
        %v3811 = vld [vmem:[#allocation2 + $0x61] sm:$0xff]
        %v3812 = vld [vmem:[#allocation2 + $0x71] sm:$0xff]
        %v3813 = vld [vmem:[#allocation2 + $0x81] sm:$0xff]
        %v3814 = vld [vmem:[#allocation2 + $0x91] sm:$0xff]
        %v3815 = vld [vmem:[#allocation2 + $0xa1] sm:$0xff]
        %v3816 = vld [vmem:[#allocation2 + $0xb1] sm:$0xff]
        %v3817 = vld [vmem:[%s3 + $0x8] sm:$0x1]
        %v3818 = vlaneseq
        %v3819 = vshrl.u32 %v3818, 7
        %v3820 = vsub.s32 0, %v3819
        %v3821 = vrot.slane %v3817, %v3820
        %v3822 = vmul.f32 %v3821, %v3805
        %v3823 = vmul.f32 %v3821, %v3806
        %v3824 = vmul.f32 %v3821, %v3807
        %v3825 = vmul.f32 %v3821, %v3808
        %v3826 = vmul.f32 %v3821, %v3809
        %v3827 = vmul.f32 %v3821, %v3810
        %v3828 = vmul.f32 %v3821, %v3811
        %v3829 = vmul.f32 %v3821, %v3812
        %v3830 = vadd.f32 %v3797, %v3822
        %v3831 = vadd.f32 %v3798, %v3823
        %v3832 = vadd.f32 %v3799, %v3824
        %v3833 = vadd.f32 %v3800, %v3825
        %v3834 = vadd.f32 %v3801, %v3826
        %v3835 = vadd.f32 %v3802, %v3827
        %v3836 = vadd.f32 %v3803, %v3828
        %v3837 = vadd.f32 %v3804, %v3829
        %v3838 = vld [vmem:[%s3 + $0x21] sm:$0x1]
        %v3839 = vlaneseq
        %v3840 = vshrl.u32 %v3839, 7
        %v3841 = vsub.s32 0, %v3840
        %v3842 = vrot.slane %v3838, %v3841
        %v3843 = vmul.f32 %v3842, %v3806
        %v3844 = vmul.f32 %v3842, %v3807
        %v3845 = vmul.f32 %v3842, %v3808
        %v3846 = vmul.f32 %v3842, %v3809
        %v3847 = vmul.f32 %v3842, %v3810
        %v3848 = vmul.f32 %v3842, %v3811
        %v3849 = vmul.f32 %v3842, %v3812
        %v3850 = vmul.f32 %v3842, %v3813
        %v3851 = vadd.f32 %v3776, %v3843
        %v3852 = vadd.f32 %v3777, %v3844
        %v3853 = vadd.f32 %v3778, %v3845
        %v3854 = vadd.f32 %v3779, %v3846
        %v3855 = vadd.f32 %v3780, %v3847
        %v3856 = vadd.f32 %v3781, %v3848
        %v3857 = vadd.f32 %v3782, %v3849
        %v3858 = vadd.f32 %v3783, %v3850
        %v3859 = vld [vmem:[%s3 + $0x3a] sm:$0x1]
        %v3860 = vlaneseq
        %v3861 = vshrl.u32 %v3860, 7
        %v3862 = vsub.s32 0, %v3861
        %v3863 = vrot.slane %v3859, %v3862
        %v3864 = vmul.f32 %v3863, %v3807
        %v3865 = vmul.f32 %v3863, %v3808
        %v3866 = vmul.f32 %v3863, %v3809
        %v3867 = vmul.f32 %v3863, %v3810
        %v3868 = vmul.f32 %v3863, %v3811
        %v3869 = vmul.f32 %v3863, %v3812
        %v3870 = vmul.f32 %v3863, %v3813
        %v3871 = vmul.f32 %v3863, %v3814
        %v3872 = vadd.f32 %v3830, %v3864
        %v3873 = vadd.f32 %v3831, %v3865
        %v3874 = vadd.f32 %v3832, %v3866
        %v3875 = vadd.f32 %v3833, %v3867
        %v3876 = vadd.f32 %v3834, %v3868
        %v3877 = vadd.f32 %v3835, %v3869
        %v3878 = vadd.f32 %v3836, %v3870
        %v3879 = vadd.f32 %v3837, %v3871
        %v3880 = vld [vmem:[%s3 + $0x53] sm:$0x1]
        %v3881 = vlaneseq
        %v3882 = vshrl.u32 %v3881, 7
        %v3883 = vsub.s32 0, %v3882
        %v3884 = vrot.slane %v3880, %v3883
        %v3885 = vmul.f32 %v3884, %v3808
        %v3886 = vmul.f32 %v3884, %v3809
        %v3887 = vmul.f32 %v3884, %v3810
        %v3888 = vmul.f32 %v3884, %v3811
        %v3889 = vmul.f32 %v3884, %v3812
        %v3890 = vmul.f32 %v3884, %v3813
        %v3891 = vmul.f32 %v3884, %v3814
        %v3892 = vmul.f32 %v3884, %v3815
        %v3893 = vadd.f32 %v3851, %v3885
        %v3894 = vadd.f32 %v3852, %v3886
        %v3895 = vadd.f32 %v3853, %v3887
        %v3896 = vadd.f32 %v3854, %v3888
        %v3897 = vadd.f32 %v3855, %v3889
        %v3898 = vadd.f32 %v3856, %v3890
        %v3899 = vadd.f32 %v3857, %v3891
        %v3900 = vadd.f32 %v3858, %v3892
        %v3901 = vld [vmem:[%s3 + $0x6c] sm:$0x1]
        %v3902 = vlaneseq
        %v3903 = vshrl.u32 %v3902, 7
        %v3904 = vsub.s32 0, %v3903
        %v3905 = vrot.slane %v3901, %v3904
        %v3906 = vmul.f32 %v3905, %v3809
        %v3907 = vmul.f32 %v3905, %v3810
        %v3908 = vmul.f32 %v3905, %v3811
        %v3909 = vmul.f32 %v3905, %v3812
        %v3910 = vmul.f32 %v3905, %v3813
        %v3911 = vmul.f32 %v3905, %v3814
        %v3912 = vmul.f32 %v3905, %v3815
        %v3913 = vmul.f32 %v3905, %v3816
        %v3914 = vadd.f32 %v3872, %v3906
        %v3915 = vadd.f32 %v3873, %v3907
        %v3916 = vadd.f32 %v3874, %v3908
        %v3917 = vadd.f32 %v3875, %v3909
        %v3918 = vadd.f32 %v3876, %v3910
        %v3919 = vadd.f32 %v3877, %v3911
        %v3920 = vadd.f32 %v3878, %v3912
        %v3921 = vadd.f32 %v3879, %v3913
        %v3922 = vld [vmem:[#allocation2 + $0x2] sm:$0xff]
        %v3923 = vld [vmem:[#allocation2 + $0x12] sm:$0xff]
        %v3924 = vld [vmem:[#allocation2 + $0x22] sm:$0xff]
        %v3925 = vld [vmem:[#allocation2 + $0x32] sm:$0xff]
        %v3926 = vld [vmem:[#allocation2 + $0x42] sm:$0xff]
        %v3927 = vld [vmem:[#allocation2 + $0x52] sm:$0xff]
        %v3928 = vld [vmem:[#allocation2 + $0x62] sm:$0xff]
        %v3929 = vld [vmem:[#allocation2 + $0x72] sm:$0xff]
        %v3930 = vld [vmem:[#allocation2 + $0x82] sm:$0xff]
        %v3931 = vld [vmem:[#allocation2 + $0x92] sm:$0xff]
        %v3932 = vld [vmem:[#allocation2 + $0xa2] sm:$0xff]
        %v3933 = vld [vmem:[#allocation2 + $0xb2] sm:$0xff]
        %v3934 = vld [vmem:[%s3 + $0xd] sm:$0x1]
        %v3935 = vlaneseq
        %v3936 = vshrl.u32 %v3935, 7
        %v3937 = vsub.s32 0, %v3936
        %v3938 = vrot.slane %v3934, %v3937
        %v3939 = vmul.f32 %v3938, %v3922
        %v3940 = vmul.f32 %v3938, %v3923
        %v3941 = vmul.f32 %v3938, %v3924
        %v3942 = vmul.f32 %v3938, %v3925
        %v3943 = vmul.f32 %v3938, %v3926
        %v3944 = vmul.f32 %v3938, %v3927
        %v3945 = vmul.f32 %v3938, %v3928
        %v3946 = vmul.f32 %v3938, %v3929
        %v3947 = vadd.f32 %v3914, %v3939
        %v3948 = vadd.f32 %v3915, %v3940
        %v3949 = vadd.f32 %v3916, %v3941
        %v3950 = vadd.f32 %v3917, %v3942
        %v3951 = vadd.f32 %v3918, %v3943
        %v3952 = vadd.f32 %v3919, %v3944
        %v3953 = vadd.f32 %v3920, %v3945
        %v3954 = vadd.f32 %v3921, %v3946
        %v3955 = vld [vmem:[%s3 + $0x26] sm:$0x1]
        %v3956 = vlaneseq
        %v3957 = vshrl.u32 %v3956, 7
        %v3958 = vsub.s32 0, %v3957
        %v3959 = vrot.slane %v3955, %v3958
        %v3960 = vmul.f32 %v3959, %v3923
        %v3961 = vmul.f32 %v3959, %v3924
        %v3962 = vmul.f32 %v3959, %v3925
        %v3963 = vmul.f32 %v3959, %v3926
        %v3964 = vmul.f32 %v3959, %v3927
        %v3965 = vmul.f32 %v3959, %v3928
        %v3966 = vmul.f32 %v3959, %v3929
        %v3967 = vmul.f32 %v3959, %v3930
        %v3968 = vadd.f32 %v3893, %v3960
        %v3969 = vadd.f32 %v3894, %v3961
        %v3970 = vadd.f32 %v3895, %v3962
        %v3971 = vadd.f32 %v3896, %v3963
        %v3972 = vadd.f32 %v3897, %v3964
        %v3973 = vadd.f32 %v3898, %v3965
        %v3974 = vadd.f32 %v3899, %v3966
        %v3975 = vadd.f32 %v3900, %v3967
        %v3976 = vld [vmem:[%s3 + $0x3f] sm:$0x1]
        %v3977 = vlaneseq
        %v3978 = vshrl.u32 %v3977, 7
        %v3979 = vsub.s32 0, %v3978
        %v3980 = vrot.slane %v3976, %v3979
        %v3981 = vmul.f32 %v3980, %v3924
        %v3982 = vmul.f32 %v3980, %v3925
        %v3983 = vmul.f32 %v3980, %v3926
        %v3984 = vmul.f32 %v3980, %v3927
        %v3985 = vmul.f32 %v3980, %v3928
        %v3986 = vmul.f32 %v3980, %v3929
        %v3987 = vmul.f32 %v3980, %v3930
        %v3988 = vmul.f32 %v3980, %v3931
        %v3989 = vadd.f32 %v3947, %v3981
        %v3990 = vadd.f32 %v3948, %v3982
        %v3991 = vadd.f32 %v3949, %v3983
        %v3992 = vadd.f32 %v3950, %v3984
        %v3993 = vadd.f32 %v3951, %v3985
        %v3994 = vadd.f32 %v3952, %v3986
        %v3995 = vadd.f32 %v3953, %v3987
        %v3996 = vadd.f32 %v3954, %v3988
        %v3997 = vld [vmem:[%s3 + $0x58] sm:$0x1]
        %v3998 = vlaneseq
        %v3999 = vshrl.u32 %v3998, 7
        %v4000 = vsub.s32 0, %v3999
        %v4001 = vrot.slane %v3997, %v4000
        %v4002 = vmul.f32 %v4001, %v3925
        %v4003 = vmul.f32 %v4001, %v3926
        %v4004 = vmul.f32 %v4001, %v3927
        %v4005 = vmul.f32 %v4001, %v3928
        %v4006 = vmul.f32 %v4001, %v3929
        %v4007 = vmul.f32 %v4001, %v3930
        %v4008 = vmul.f32 %v4001, %v3931
        %v4009 = vmul.f32 %v4001, %v3932
        %v4010 = vadd.f32 %v3968, %v4002
        %v4011 = vadd.f32 %v3969, %v4003
        %v4012 = vadd.f32 %v3970, %v4004
        %v4013 = vadd.f32 %v3971, %v4005
        %v4014 = vadd.f32 %v3972, %v4006
        %v4015 = vadd.f32 %v3973, %v4007
        %v4016 = vadd.f32 %v3974, %v4008
        %v4017 = vadd.f32 %v3975, %v4009
        %v4018 = vld [vmem:[%s3 + $0x71] sm:$0x1]
        %v4019 = vlaneseq
        %v4020 = vshrl.u32 %v4019, 7
        %v4021 = vsub.s32 0, %v4020
        %v4022 = vrot.slane %v4018, %v4021
        %v4023 = vmul.f32 %v4022, %v3926
        %v4024 = vmul.f32 %v4022, %v3927
        %v4025 = vmul.f32 %v4022, %v3928
        %v4026 = vmul.f32 %v4022, %v3929
        %v4027 = vmul.f32 %v4022, %v3930
        %v4028 = vmul.f32 %v4022, %v3931
        %v4029 = vmul.f32 %v4022, %v3932
        %v4030 = vmul.f32 %v4022, %v3933
        %v4031 = vadd.f32 %v3989, %v4023
        %v4032 = vadd.f32 %v3990, %v4024
        %v4033 = vadd.f32 %v3991, %v4025
        %v4034 = vadd.f32 %v3992, %v4026
        %v4035 = vadd.f32 %v3993, %v4027
        %v4036 = vadd.f32 %v3994, %v4028
        %v4037 = vadd.f32 %v3995, %v4029
        %v4038 = vadd.f32 %v3996, %v4030
        %v4039 = vld [vmem:[#allocation2 + $0x3] sm:$0xff]
        %v4040 = vld [vmem:[#allocation2 + $0x13] sm:$0xff]
        %v4041 = vld [vmem:[#allocation2 + $0x23] sm:$0xff]
        %v4042 = vld [vmem:[#allocation2 + $0x33] sm:$0xff]
        %v4043 = vld [vmem:[#allocation2 + $0x43] sm:$0xff]
        %v4044 = vld [vmem:[#allocation2 + $0x53] sm:$0xff]
        %v4045 = vld [vmem:[#allocation2 + $0x63] sm:$0xff]
        %v4046 = vld [vmem:[#allocation2 + $0x73] sm:$0xff]
        %v4047 = vld [vmem:[#allocation2 + $0x83] sm:$0xff]
        %v4048 = vld [vmem:[#allocation2 + $0x93] sm:$0xff]
        %v4049 = vld [vmem:[#allocation2 + $0xa3] sm:$0xff]
        %v4050 = vld [vmem:[#allocation2 + $0xb3] sm:$0xff]
        %v4051 = vld [vmem:[%s3 + $0x12] sm:$0x1]
        %v4052 = vlaneseq
        %v4053 = vshrl.u32 %v4052, 7
        %v4054 = vsub.s32 0, %v4053
        %v4055 = vrot.slane %v4051, %v4054
        %v4056 = vmul.f32 %v4055, %v4039
        %v4057 = vmul.f32 %v4055, %v4040
        %v4058 = vmul.f32 %v4055, %v4041
        %v4059 = vmul.f32 %v4055, %v4042
        %v4060 = vmul.f32 %v4055, %v4043
        %v4061 = vmul.f32 %v4055, %v4044
        %v4062 = vmul.f32 %v4055, %v4045
        %v4063 = vmul.f32 %v4055, %v4046
        %v4064 = vadd.f32 %v4031, %v4056
        %v4065 = vadd.f32 %v4032, %v4057
        %v4066 = vadd.f32 %v4033, %v4058
        %v4067 = vadd.f32 %v4034, %v4059
        %v4068 = vadd.f32 %v4035, %v4060
        %v4069 = vadd.f32 %v4036, %v4061
        %v4070 = vadd.f32 %v4037, %v4062
        %v4071 = vadd.f32 %v4038, %v4063
        %v4072 = vld [vmem:[%s3 + $0x2b] sm:$0x1]
        %v4073 = vlaneseq
        %v4074 = vshrl.u32 %v4073, 7
        %v4075 = vsub.s32 0, %v4074
        %v4076 = vrot.slane %v4072, %v4075
        %v4077 = vmul.f32 %v4076, %v4040
        %v4078 = vmul.f32 %v4076, %v4041
        %v4079 = vmul.f32 %v4076, %v4042
        %v4080 = vmul.f32 %v4076, %v4043
        %v4081 = vmul.f32 %v4076, %v4044
        %v4082 = vmul.f32 %v4076, %v4045
        %v4083 = vmul.f32 %v4076, %v4046
        %v4084 = vmul.f32 %v4076, %v4047
        %v4085 = vadd.f32 %v4010, %v4077
        %v4086 = vadd.f32 %v4011, %v4078
        %v4087 = vadd.f32 %v4012, %v4079
        %v4088 = vadd.f32 %v4013, %v4080
        %v4089 = vadd.f32 %v4014, %v4081
        %v4090 = vadd.f32 %v4015, %v4082
        %v4091 = vadd.f32 %v4016, %v4083
        %v4092 = vadd.f32 %v4017, %v4084
        %v4093 = vld [vmem:[%s3 + $0x44] sm:$0x1]
        %v4094 = vlaneseq
        %v4095 = vshrl.u32 %v4094, 7
        %v4096 = vsub.s32 0, %v4095
        %v4097 = vrot.slane %v4093, %v4096
        %v4098 = vmul.f32 %v4097, %v4041
        %v4099 = vmul.f32 %v4097, %v4042
        %v4100 = vmul.f32 %v4097, %v4043
        %v4101 = vmul.f32 %v4097, %v4044
        %v4102 = vmul.f32 %v4097, %v4045
        %v4103 = vmul.f32 %v4097, %v4046
        %v4104 = vmul.f32 %v4097, %v4047
        %v4105 = vmul.f32 %v4097, %v4048
        %v4106 = vadd.f32 %v4064, %v4098
        %v4107 = vadd.f32 %v4065, %v4099
        %v4108 = vadd.f32 %v4066, %v4100
        %v4109 = vadd.f32 %v4067, %v4101
        %v4110 = vadd.f32 %v4068, %v4102
        %v4111 = vadd.f32 %v4069, %v4103
        %v4112 = vadd.f32 %v4070, %v4104
        %v4113 = vadd.f32 %v4071, %v4105
        %v4114 = vld [vmem:[%s3 + $0x5d] sm:$0x1]
        %v4115 = vlaneseq
        %v4116 = vshrl.u32 %v4115, 7
        %v4117 = vsub.s32 0, %v4116
        %v4118 = vrot.slane %v4114, %v4117
        %v4119 = vmul.f32 %v4118, %v4042
        %v4120 = vmul.f32 %v4118, %v4043
        %v4121 = vmul.f32 %v4118, %v4044
        %v4122 = vmul.f32 %v4118, %v4045
        %v4123 = vmul.f32 %v4118, %v4046
        %v4124 = vmul.f32 %v4118, %v4047
        %v4125 = vmul.f32 %v4118, %v4048
        %v4126 = vmul.f32 %v4118, %v4049
        %v4127 = vadd.f32 %v4085, %v4119
        %v4128 = vadd.f32 %v4086, %v4120
        %v4129 = vadd.f32 %v4087, %v4121
        %v4130 = vadd.f32 %v4088, %v4122
        %v4131 = vadd.f32 %v4089, %v4123
        %v4132 = vadd.f32 %v4090, %v4124
        %v4133 = vadd.f32 %v4091, %v4125
        %v4134 = vadd.f32 %v4092, %v4126
        %v4135 = vld [vmem:[%s3 + $0x76] sm:$0x1]
        %v4136 = vlaneseq
        %v4137 = vshrl.u32 %v4136, 7
        %v4138 = vsub.s32 0, %v4137
        %v4139 = vrot.slane %v4135, %v4138
        %v4140 = vmul.f32 %v4139, %v4043
        %v4141 = vmul.f32 %v4139, %v4044
        %v4142 = vmul.f32 %v4139, %v4045
        %v4143 = vmul.f32 %v4139, %v4046
        %v4144 = vmul.f32 %v4139, %v4047
        %v4145 = vmul.f32 %v4139, %v4048
        %v4146 = vmul.f32 %v4139, %v4049
        %v4147 = vmul.f32 %v4139, %v4050
        %v4148 = vadd.f32 %v4106, %v4140
        %v4149 = vadd.f32 %v4107, %v4141
        %v4150 = vadd.f32 %v4108, %v4142
        %v4151 = vadd.f32 %v4109, %v4143
        %v4152 = vadd.f32 %v4110, %v4144
        %v4153 = vadd.f32 %v4111, %v4145
        %v4154 = vadd.f32 %v4112, %v4146
        %v4155 = vadd.f32 %v4113, %v4147
        %v4156 = vld [vmem:[#allocation2 + $0x4] sm:$0xff]
        %v4157 = vld [vmem:[#allocation2 + $0x14] sm:$0xff]
        %v4158 = vld [vmem:[#allocation2 + $0x24] sm:$0xff]
        %v4159 = vld [vmem:[#allocation2 + $0x34] sm:$0xff]
        %v4160 = vld [vmem:[#allocation2 + $0x44] sm:$0xff]
        %v4161 = vld [vmem:[#allocation2 + $0x54] sm:$0xff]
        %v4162 = vld [vmem:[#allocation2 + $0x64] sm:$0xff]
        %v4163 = vld [vmem:[#allocation2 + $0x74] sm:$0xff]
        %v4164 = vld [vmem:[#allocation2 + $0x84] sm:$0xff]
        %v4165 = vld [vmem:[#allocation2 + $0x94] sm:$0xff]
        %v4166 = vld [vmem:[#allocation2 + $0xa4] sm:$0xff]
        %v4167 = vld [vmem:[#allocation2 + $0xb4] sm:$0xff]
        %v4168 = vld [vmem:[%s3 + $0x17] sm:$0x1]
        %v4169 = vlaneseq
        %v4170 = vshrl.u32 %v4169, 7
        %v4171 = vsub.s32 0, %v4170
        %v4172 = vrot.slane %v4168, %v4171
        %v4173 = vmul.f32 %v4172, %v4156
        %v4174 = vmul.f32 %v4172, %v4157
        %v4175 = vmul.f32 %v4172, %v4158
        %v4176 = vmul.f32 %v4172, %v4159
        %v4177 = vmul.f32 %v4172, %v4160
        %v4178 = vmul.f32 %v4172, %v4161
        %v4179 = vmul.f32 %v4172, %v4162
        %v4180 = vmul.f32 %v4172, %v4163
        %v4181 = vadd.f32 %v4148, %v4173
        %v4182 = vadd.f32 %v4149, %v4174
        %v4183 = vadd.f32 %v4150, %v4175
        %v4184 = vadd.f32 %v4151, %v4176
        %v4185 = vadd.f32 %v4152, %v4177
        %v4186 = vadd.f32 %v4153, %v4178
        %v4187 = vadd.f32 %v4154, %v4179
        %v4188 = vadd.f32 %v4155, %v4180
        %v4189 = vld [vmem:[%s3 + $0x30] sm:$0x1]
        %v4190 = vlaneseq
        %v4191 = vshrl.u32 %v4190, 7
        %v4192 = vsub.s32 0, %v4191
        %v4193 = vrot.slane %v4189, %v4192
        %v4194 = vmul.f32 %v4193, %v4157
        %v4195 = vmul.f32 %v4193, %v4158
        %v4196 = vmul.f32 %v4193, %v4159
        %v4197 = vmul.f32 %v4193, %v4160
        %v4198 = vmul.f32 %v4193, %v4161
        %v4199 = vmul.f32 %v4193, %v4162
        %v4200 = vmul.f32 %v4193, %v4163
        %v4201 = vmul.f32 %v4193, %v4164
        %v4202 = vadd.f32 %v4127, %v4194
        %v4203 = vadd.f32 %v4128, %v4195
        %v4204 = vadd.f32 %v4129, %v4196
        %v4205 = vadd.f32 %v4130, %v4197
        %v4206 = vadd.f32 %v4131, %v4198
        %v4207 = vadd.f32 %v4132, %v4199
        %v4208 = vadd.f32 %v4133, %v4200
        %v4209 = vadd.f32 %v4134, %v4201
        %v4210 = vld [vmem:[%s3 + $0x49] sm:$0x1]
        %v4211 = vlaneseq
        %v4212 = vshrl.u32 %v4211, 7
        %v4213 = vsub.s32 0, %v4212
        %v4214 = vrot.slane %v4210, %v4213
        %v4215 = vmul.f32 %v4214, %v4158
        %v4216 = vmul.f32 %v4214, %v4159
        %v4217 = vmul.f32 %v4214, %v4160
        %v4218 = vmul.f32 %v4214, %v4161
        %v4219 = vmul.f32 %v4214, %v4162
        %v4220 = vmul.f32 %v4214, %v4163
        %v4221 = vmul.f32 %v4214, %v4164
        %v4222 = vmul.f32 %v4214, %v4165
        %v4223 = vadd.f32 %v4181, %v4215
        %v4224 = vadd.f32 %v4182, %v4216
        %v4225 = vadd.f32 %v4183, %v4217
        %v4226 = vadd.f32 %v4184, %v4218
        %v4227 = vadd.f32 %v4185, %v4219
        %v4228 = vadd.f32 %v4186, %v4220
        %v4229 = vadd.f32 %v4187, %v4221
        %v4230 = vadd.f32 %v4188, %v4222
        %v4231 = vld [vmem:[%s3 + $0x62] sm:$0x1]
        %v4232 = vlaneseq
        %v4233 = vshrl.u32 %v4232, 7
        %v4234 = vsub.s32 0, %v4233
        %v4235 = vrot.slane %v4231, %v4234
        %v4236 = vmul.f32 %v4235, %v4159
        %v4237 = vmul.f32 %v4235, %v4160
        %v4238 = vmul.f32 %v4235, %v4161
        %v4239 = vmul.f32 %v4235, %v4162
        %v4240 = vmul.f32 %v4235, %v4163
        %v4241 = vmul.f32 %v4235, %v4164
        %v4242 = vmul.f32 %v4235, %v4165
        %v4243 = vmul.f32 %v4235, %v4166
        %v4244 = vadd.f32 %v4202, %v4236
        %v4245 = vadd.f32 %v4203, %v4237
        %v4246 = vadd.f32 %v4204, %v4238
        %v4247 = vadd.f32 %v4205, %v4239
        %v4248 = vadd.f32 %v4206, %v4240
        %v4249 = vadd.f32 %v4207, %v4241
        %v4250 = vadd.f32 %v4208, %v4242
        %v4251 = vadd.f32 %v4209, %v4243
        %v4252 = vld [vmem:[%s3 + $0x7b] sm:$0x1]
        %v4253 = vlaneseq
        %v4254 = vshrl.u32 %v4253, 7
        %v4255 = vsub.s32 0, %v4254
        %v4256 = vrot.slane %v4252, %v4255
        %v4257 = vmul.f32 %v4256, %v4160
        %v4258 = vmul.f32 %v4256, %v4161
        %v4259 = vmul.f32 %v4256, %v4162
        %v4260 = vmul.f32 %v4256, %v4163
        %v4261 = vmul.f32 %v4256, %v4164
        %v4262 = vmul.f32 %v4256, %v4165
        %v4263 = vmul.f32 %v4256, %v4166
        %v4264 = vmul.f32 %v4256, %v4167
        %v4265 = vadd.f32 %v4223, %v4257
        %v4266 = vadd.f32 %v4224, %v4258
        %v4267 = vadd.f32 %v4225, %v4259
        %v4268 = vadd.f32 %v4226, %v4260
        %v4269 = vadd.f32 %v4227, %v4261
        %v4270 = vadd.f32 %v4228, %v4262
        %v4271 = vadd.f32 %v4229, %v4263
        %v4272 = vadd.f32 %v4230, %v4264
        %v4273 = vld [vmem:[%s330] sm:$0xff]
        %v4274 = vld [vmem:[%s330 + $0x8] sm:$0xf]
        %v4275 = vld [vmem:[%s330 + $0x10] sm:$0xff]
        %v4276 = vld [vmem:[%s330 + $0x18] sm:$0xf]
        %v4277 = vld [vmem:[%s330 + $0x20] sm:$0xff]
        %v4278 = vld [vmem:[%s330 + $0x28] sm:$0xf]
        %v4279 = vld [vmem:[%s330 + $0x30] sm:$0xff]
        %v4280 = vld [vmem:[%s330 + $0x38] sm:$0xf]
        %v4281 = vld [vmem:[%s330 + $0x40] sm:$0xff]
        %v4282 = vld [vmem:[%s330 + $0x48] sm:$0xf]
        %v4283 = vld [vmem:[%s330 + $0x50] sm:$0xff]
        %v4284 = vld [vmem:[%s330 + $0x58] sm:$0xf]
        %v4285 = vld [vmem:[%s330 + $0x60] sm:$0xff]
        %v4286 = vld [vmem:[%s330 + $0x68] sm:$0xf]
        %v4287 = vld [vmem:[%s330 + $0x70] sm:$0xff]
        %v4288 = vld [vmem:[%s330 + $0x78] sm:$0xf]
        %v4289 = vld [vmem:[%s330 + $0x80] sm:$0xff]
        %v4290 = vld [vmem:[%s330 + $0x88] sm:$0xf]
        %v4291 = vld [vmem:[%s330 + $0x90] sm:$0xff]
        %v4292 = vld [vmem:[%s330 + $0x98] sm:$0xf]
        %v4293 = vld [vmem:[%s330 + $0xa0] sm:$0xff]
        %v4294 = vld [vmem:[%s330 + $0xa8] sm:$0xf]
        %v4295 = vld [vmem:[%s330 + $0xb0] sm:$0xff]
        %v4296 = vld [vmem:[%s330 + $0xb8] sm:$0xf]
        %4321 = vrot.lane.b32.xlu0 %v4273, 96
        %v4322 = vpop.permute.xlu0 %4321
        %4323 = vrot.lane.b32.xlu0 %v4274, 96
        %v4324 = vpop.permute.xlu0 %4323
        %4325 = vrot.lane.b32.xlu0 %v4275, 96
        %v4326 = vpop.permute.xlu0 %4325
        %4327 = vrot.lane.b32.xlu0 %v4276, 96
        %v4328 = vpop.permute.xlu0 %4327
        %4329 = vrot.lane.b32.xlu0 %v4277, 96
        %v4330 = vpop.permute.xlu0 %4329
        %4331 = vrot.lane.b32.xlu0 %v4278, 96
        %v4332 = vpop.permute.xlu0 %4331
        %4333 = vrot.lane.b32.xlu0 %v4279, 96
        %v4334 = vpop.permute.xlu0 %4333
        %4335 = vrot.lane.b32.xlu0 %v4280, 96
        %v4336 = vpop.permute.xlu0 %4335
        %4337 = vrot.lane.b32.xlu0 %v4281, 96
        %v4338 = vpop.permute.xlu0 %4337
        %4339 = vrot.lane.b32.xlu0 %v4282, 96
        %v4340 = vpop.permute.xlu0 %4339
        %4341 = vrot.lane.b32.xlu0 %v4283, 96
        %v4342 = vpop.permute.xlu0 %4341
        %4343 = vrot.lane.b32.xlu0 %v4284, 96
        %v4344 = vpop.permute.xlu0 %4343
        %4345 = vrot.lane.b32.xlu0 %v4285, 96
        %v4346 = vpop.permute.xlu0 %4345
        %4347 = vrot.lane.b32.xlu0 %v4286, 96
        %v4348 = vpop.permute.xlu0 %4347
        %4349 = vrot.lane.b32.xlu0 %v4287, 96
        %v4350 = vpop.permute.xlu0 %4349
        %4351 = vrot.lane.b32.xlu0 %v4288, 96
        %v4352 = vpop.permute.xlu0 %4351
        %4353 = vrot.lane.b32.xlu0 %v4289, 96
        %v4354 = vpop.permute.xlu0 %4353
        %4355 = vrot.lane.b32.xlu0 %v4290, 96
        %v4356 = vpop.permute.xlu0 %4355
        %4357 = vrot.lane.b32.xlu0 %v4291, 96
        %v4358 = vpop.permute.xlu0 %4357
        %4359 = vrot.lane.b32.xlu0 %v4292, 96
        %v4360 = vpop.permute.xlu0 %4359
        %4361 = vrot.lane.b32.xlu0 %v4293, 96
        %v4362 = vpop.permute.xlu0 %4361
        %4363 = vrot.lane.b32.xlu0 %v4294, 96
        %v4364 = vpop.permute.xlu0 %4363
        %4365 = vrot.lane.b32.xlu0 %v4295, 96
        %v4366 = vpop.permute.xlu0 %4365
        %4367 = vrot.lane.b32.xlu0 %v4296, 96
        %v4368 = vpop.permute.xlu0 %4367
        %4393 = vst.msk [vmem:[#allocation2] sm:$0xff] %vm451, %v4322
        %4394 = vst.msk [vmem:[#allocation2 + $0x8] sm:$0xf] %vm453, %v4324
        %4395 = vst.msk [vmem:[#allocation2 + $0x10] sm:$0xff] %vm451, %v4326
        %4396 = vst.msk [vmem:[#allocation2 + $0x18] sm:$0xf] %vm453, %v4328
        %4397 = vst.msk [vmem:[#allocation2 + $0x20] sm:$0xff] %vm451, %v4330
        %4398 = vst.msk [vmem:[#allocation2 + $0x28] sm:$0xf] %vm453, %v4332
        %4399 = vst.msk [vmem:[#allocation2 + $0x30] sm:$0xff] %vm451, %v4334
        %4400 = vst.msk [vmem:[#allocation2 + $0x38] sm:$0xf] %vm453, %v4336
        %4401 = vst.msk [vmem:[#allocation2 + $0x40] sm:$0xff] %vm451, %v4338
        %4402 = vst.msk [vmem:[#allocation2 + $0x48] sm:$0xf] %vm453, %v4340
        %4403 = vst.msk [vmem:[#allocation2 + $0x50] sm:$0xff] %vm451, %v4342
        %4404 = vst.msk [vmem:[#allocation2 + $0x58] sm:$0xf] %vm453, %v4344
        %4405 = vst.msk [vmem:[#allocation2 + $0x60] sm:$0xff] %vm451, %v4346
        %4406 = vst.msk [vmem:[#allocation2 + $0x68] sm:$0xf] %vm453, %v4348
        %4407 = vst.msk [vmem:[#allocation2 + $0x70] sm:$0xff] %vm451, %v4350
        %4408 = vst.msk [vmem:[#allocation2 + $0x78] sm:$0xf] %vm453, %v4352
        %4409 = vst.msk [vmem:[#allocation2 + $0x80] sm:$0xff] %vm451, %v4354
        %4410 = vst.msk [vmem:[#allocation2 + $0x88] sm:$0xf] %vm453, %v4356
        %4411 = vst.msk [vmem:[#allocation2 + $0x90] sm:$0xff] %vm451, %v4358
        %4412 = vst.msk [vmem:[#allocation2 + $0x98] sm:$0xf] %vm453, %v4360
        %4413 = vst.msk [vmem:[#allocation2 + $0xa0] sm:$0xff] %vm451, %v4362
        %4414 = vst.msk [vmem:[#allocation2 + $0xa8] sm:$0xf] %vm453, %v4364
        %4415 = vst.msk [vmem:[#allocation2 + $0xb0] sm:$0xff] %vm451, %v4366
        %4416 = vst.msk [vmem:[#allocation2 + $0xb8] sm:$0xf] %vm453, %v4368
        %v4417 = vld [vmem:[#allocation2] sm:$0xff]
        %v4418 = vld [vmem:[#allocation2 + $0x10] sm:$0xff]
        %v4419 = vld [vmem:[#allocation2 + $0x20] sm:$0xff]
        %v4420 = vld [vmem:[#allocation2 + $0x30] sm:$0xff]
        %v4421 = vld [vmem:[#allocation2 + $0x40] sm:$0xff]
        %v4422 = vld [vmem:[#allocation2 + $0x50] sm:$0xff]
        %v4423 = vld [vmem:[#allocation2 + $0x60] sm:$0xff]
        %v4424 = vld [vmem:[#allocation2 + $0x70] sm:$0xff]
        %v4425 = vld [vmem:[#allocation2 + $0x80] sm:$0xff]
        %v4426 = vld [vmem:[#allocation2 + $0x90] sm:$0xff]
        %v4427 = vld [vmem:[#allocation2 + $0xa0] sm:$0xff]
        %v4428 = vld [vmem:[#allocation2 + $0xb0] sm:$0xff]
        %v4429 = vld [vmem:[%s3 + $0x4] sm:$0x1]
        %v4430 = vlaneseq
        %v4431 = vshrl.u32 %v4430, 7
        %v4432 = vsub.s32 0, %v4431
        %v4433 = vrot.slane %v4429, %v4432
        %v4434 = vmul.f32 %v4433, %v4417
        %v4435 = vmul.f32 %v4433, %v4418
        %v4436 = vmul.f32 %v4433, %v4419
        %v4437 = vmul.f32 %v4433, %v4420
        %v4438 = vmul.f32 %v4433, %v4421
        %v4439 = vmul.f32 %v4433, %v4422
        %v4440 = vmul.f32 %v4433, %v4423
        %v4441 = vmul.f32 %v4433, %v4424
        %v4442 = vadd.f32 %v4265, %v4434
        %v4443 = vadd.f32 %v4266, %v4435
        %v4444 = vadd.f32 %v4267, %v4436
        %v4445 = vadd.f32 %v4268, %v4437
        %v4446 = vadd.f32 %v4269, %v4438
        %v4447 = vadd.f32 %v4270, %v4439
        %v4448 = vadd.f32 %v4271, %v4440
        %v4449 = vadd.f32 %v4272, %v4441
        %v4450 = vld [vmem:[%s3 + $0x1d] sm:$0x1]
        %v4451 = vlaneseq
        %v4452 = vshrl.u32 %v4451, 7
        %v4453 = vsub.s32 0, %v4452
        %v4454 = vrot.slane %v4450, %v4453
        %v4455 = vmul.f32 %v4454, %v4418
        %v4456 = vmul.f32 %v4454, %v4419
        %v4457 = vmul.f32 %v4454, %v4420
        %v4458 = vmul.f32 %v4454, %v4421
        %v4459 = vmul.f32 %v4454, %v4422
        %v4460 = vmul.f32 %v4454, %v4423
        %v4461 = vmul.f32 %v4454, %v4424
        %v4462 = vmul.f32 %v4454, %v4425
        %v4463 = vadd.f32 %v4244, %v4455
        %v4464 = vadd.f32 %v4245, %v4456
        %v4465 = vadd.f32 %v4246, %v4457
        %v4466 = vadd.f32 %v4247, %v4458
        %v4467 = vadd.f32 %v4248, %v4459
        %v4468 = vadd.f32 %v4249, %v4460
        %v4469 = vadd.f32 %v4250, %v4461
        %v4470 = vadd.f32 %v4251, %v4462
        %v4471 = vld [vmem:[%s3 + $0x36] sm:$0x1]
        %v4472 = vlaneseq
        %v4473 = vshrl.u32 %v4472, 7
        %v4474 = vsub.s32 0, %v4473
        %v4475 = vrot.slane %v4471, %v4474
        %v4476 = vmul.f32 %v4475, %v4419
        %v4477 = vmul.f32 %v4475, %v4420
        %v4478 = vmul.f32 %v4475, %v4421
        %v4479 = vmul.f32 %v4475, %v4422
        %v4480 = vmul.f32 %v4475, %v4423
        %v4481 = vmul.f32 %v4475, %v4424
        %v4482 = vmul.f32 %v4475, %v4425
        %v4483 = vmul.f32 %v4475, %v4426
        %v4484 = vadd.f32 %v4442, %v4476
        %v4485 = vadd.f32 %v4443, %v4477
        %v4486 = vadd.f32 %v4444, %v4478
        %v4487 = vadd.f32 %v4445, %v4479
        %v4488 = vadd.f32 %v4446, %v4480
        %v4489 = vadd.f32 %v4447, %v4481
        %v4490 = vadd.f32 %v4448, %v4482
        %v4491 = vadd.f32 %v4449, %v4483
        %v4492 = vld [vmem:[%s3 + $0x4f] sm:$0x1]
        %v4493 = vlaneseq
        %v4494 = vshrl.u32 %v4493, 7
        %v4495 = vsub.s32 0, %v4494
        %v4496 = vrot.slane %v4492, %v4495
        %v4497 = vmul.f32 %v4496, %v4420
        %v4498 = vmul.f32 %v4496, %v4421
        %v4499 = vmul.f32 %v4496, %v4422
        %v4500 = vmul.f32 %v4496, %v4423
        %v4501 = vmul.f32 %v4496, %v4424
        %v4502 = vmul.f32 %v4496, %v4425
        %v4503 = vmul.f32 %v4496, %v4426
        %v4504 = vmul.f32 %v4496, %v4427
        %v4505 = vadd.f32 %v4463, %v4497
        %v4506 = vadd.f32 %v4464, %v4498
        %v4507 = vadd.f32 %v4465, %v4499
        %v4508 = vadd.f32 %v4466, %v4500
        %v4509 = vadd.f32 %v4467, %v4501
        %v4510 = vadd.f32 %v4468, %v4502
        %v4511 = vadd.f32 %v4469, %v4503
        %v4512 = vadd.f32 %v4470, %v4504
        %v4513 = vld [vmem:[%s3 + $0x68] sm:$0x1]
        %v4514 = vlaneseq
        %v4515 = vshrl.u32 %v4514, 7
        %v4516 = vsub.s32 0, %v4515
        %v4517 = vrot.slane %v4513, %v4516
        %v4518 = vmul.f32 %v4517, %v4421
        %v4519 = vmul.f32 %v4517, %v4422
        %v4520 = vmul.f32 %v4517, %v4423
        %v4521 = vmul.f32 %v4517, %v4424
        %v4522 = vmul.f32 %v4517, %v4425
        %v4523 = vmul.f32 %v4517, %v4426
        %v4524 = vmul.f32 %v4517, %v4427
        %v4525 = vmul.f32 %v4517, %v4428
        %v4526 = vadd.f32 %v4484, %v4518
        %v4527 = vadd.f32 %v4485, %v4519
        %v4528 = vadd.f32 %v4486, %v4520
        %v4529 = vadd.f32 %v4487, %v4521
        %v4530 = vadd.f32 %v4488, %v4522
        %v4531 = vadd.f32 %v4489, %v4523
        %v4532 = vadd.f32 %v4490, %v4524
        %v4533 = vadd.f32 %v4491, %v4525
        %v4534 = vld [vmem:[#allocation2 + $0x1] sm:$0xff]
        %v4535 = vld [vmem:[#allocation2 + $0x11] sm:$0xff]
        %v4536 = vld [vmem:[#allocation2 + $0x21] sm:$0xff]
        %v4537 = vld [vmem:[#allocation2 + $0x31] sm:$0xff]
        %v4538 = vld [vmem:[#allocation2 + $0x41] sm:$0xff]
        %v4539 = vld [vmem:[#allocation2 + $0x51] sm:$0xff]
        %v4540 = vld [vmem:[#allocation2 + $0x61] sm:$0xff]
        %v4541 = vld [vmem:[#allocation2 + $0x71] sm:$0xff]
        %v4542 = vld [vmem:[#allocation2 + $0x81] sm:$0xff]
        %v4543 = vld [vmem:[#allocation2 + $0x91] sm:$0xff]
        %v4544 = vld [vmem:[#allocation2 + $0xa1] sm:$0xff]
        %v4545 = vld [vmem:[#allocation2 + $0xb1] sm:$0xff]
        %v4546 = vld [vmem:[%s3 + $0x9] sm:$0x1]
        %v4547 = vlaneseq
        %v4548 = vshrl.u32 %v4547, 7
        %v4549 = vsub.s32 0, %v4548
        %v4550 = vrot.slane %v4546, %v4549
        %v4551 = vmul.f32 %v4550, %v4534
        %v4552 = vmul.f32 %v4550, %v4535
        %v4553 = vmul.f32 %v4550, %v4536
        %v4554 = vmul.f32 %v4550, %v4537
        %v4555 = vmul.f32 %v4550, %v4538
        %v4556 = vmul.f32 %v4550, %v4539
        %v4557 = vmul.f32 %v4550, %v4540
        %v4558 = vmul.f32 %v4550, %v4541
        %v4559 = vadd.f32 %v4526, %v4551
        %v4560 = vadd.f32 %v4527, %v4552
        %v4561 = vadd.f32 %v4528, %v4553
        %v4562 = vadd.f32 %v4529, %v4554
        %v4563 = vadd.f32 %v4530, %v4555
        %v4564 = vadd.f32 %v4531, %v4556
        %v4565 = vadd.f32 %v4532, %v4557
        %v4566 = vadd.f32 %v4533, %v4558
        %v4567 = vld [vmem:[%s3 + $0x22] sm:$0x1]
        %v4568 = vlaneseq
        %v4569 = vshrl.u32 %v4568, 7
        %v4570 = vsub.s32 0, %v4569
        %v4571 = vrot.slane %v4567, %v4570
        %v4572 = vmul.f32 %v4571, %v4535
        %v4573 = vmul.f32 %v4571, %v4536
        %v4574 = vmul.f32 %v4571, %v4537
        %v4575 = vmul.f32 %v4571, %v4538
        %v4576 = vmul.f32 %v4571, %v4539
        %v4577 = vmul.f32 %v4571, %v4540
        %v4578 = vmul.f32 %v4571, %v4541
        %v4579 = vmul.f32 %v4571, %v4542
        %v4580 = vadd.f32 %v4505, %v4572
        %v4581 = vadd.f32 %v4506, %v4573
        %v4582 = vadd.f32 %v4507, %v4574
        %v4583 = vadd.f32 %v4508, %v4575
        %v4584 = vadd.f32 %v4509, %v4576
        %v4585 = vadd.f32 %v4510, %v4577
        %v4586 = vadd.f32 %v4511, %v4578
        %v4587 = vadd.f32 %v4512, %v4579
        %v4588 = vld [vmem:[%s3 + $0x3b] sm:$0x1]
        %v4589 = vlaneseq
        %v4590 = vshrl.u32 %v4589, 7
        %v4591 = vsub.s32 0, %v4590
        %v4592 = vrot.slane %v4588, %v4591
        %v4593 = vmul.f32 %v4592, %v4536
        %v4594 = vmul.f32 %v4592, %v4537
        %v4595 = vmul.f32 %v4592, %v4538
        %v4596 = vmul.f32 %v4592, %v4539
        %v4597 = vmul.f32 %v4592, %v4540
        %v4598 = vmul.f32 %v4592, %v4541
        %v4599 = vmul.f32 %v4592, %v4542
        %v4600 = vmul.f32 %v4592, %v4543
        %v4601 = vadd.f32 %v4559, %v4593
        %v4602 = vadd.f32 %v4560, %v4594
        %v4603 = vadd.f32 %v4561, %v4595
        %v4604 = vadd.f32 %v4562, %v4596
        %v4605 = vadd.f32 %v4563, %v4597
        %v4606 = vadd.f32 %v4564, %v4598
        %v4607 = vadd.f32 %v4565, %v4599
        %v4608 = vadd.f32 %v4566, %v4600
        %v4609 = vld [vmem:[%s3 + $0x54] sm:$0x1]
        %v4610 = vlaneseq
        %v4611 = vshrl.u32 %v4610, 7
        %v4612 = vsub.s32 0, %v4611
        %v4613 = vrot.slane %v4609, %v4612
        %v4614 = vmul.f32 %v4613, %v4537
        %v4615 = vmul.f32 %v4613, %v4538
        %v4616 = vmul.f32 %v4613, %v4539
        %v4617 = vmul.f32 %v4613, %v4540
        %v4618 = vmul.f32 %v4613, %v4541
        %v4619 = vmul.f32 %v4613, %v4542
        %v4620 = vmul.f32 %v4613, %v4543
        %v4621 = vmul.f32 %v4613, %v4544
        %v4622 = vadd.f32 %v4580, %v4614
        %v4623 = vadd.f32 %v4581, %v4615
        %v4624 = vadd.f32 %v4582, %v4616
        %v4625 = vadd.f32 %v4583, %v4617
        %v4626 = vadd.f32 %v4584, %v4618
        %v4627 = vadd.f32 %v4585, %v4619
        %v4628 = vadd.f32 %v4586, %v4620
        %v4629 = vadd.f32 %v4587, %v4621
        %v4630 = vld [vmem:[%s3 + $0x6d] sm:$0x1]
        %v4631 = vlaneseq
        %v4632 = vshrl.u32 %v4631, 7
        %v4633 = vsub.s32 0, %v4632
        %v4634 = vrot.slane %v4630, %v4633
        %v4635 = vmul.f32 %v4634, %v4538
        %v4636 = vmul.f32 %v4634, %v4539
        %v4637 = vmul.f32 %v4634, %v4540
        %v4638 = vmul.f32 %v4634, %v4541
        %v4639 = vmul.f32 %v4634, %v4542
        %v4640 = vmul.f32 %v4634, %v4543
        %v4641 = vmul.f32 %v4634, %v4544
        %v4642 = vmul.f32 %v4634, %v4545
        %v4643 = vadd.f32 %v4601, %v4635
        %v4644 = vadd.f32 %v4602, %v4636
        %v4645 = vadd.f32 %v4603, %v4637
        %v4646 = vadd.f32 %v4604, %v4638
        %v4647 = vadd.f32 %v4605, %v4639
        %v4648 = vadd.f32 %v4606, %v4640
        %v4649 = vadd.f32 %v4607, %v4641
        %v4650 = vadd.f32 %v4608, %v4642
        %v4651 = vld [vmem:[#allocation2 + $0x2] sm:$0xff]
        %v4652 = vld [vmem:[#allocation2 + $0x12] sm:$0xff]
        %v4653 = vld [vmem:[#allocation2 + $0x22] sm:$0xff]
        %v4654 = vld [vmem:[#allocation2 + $0x32] sm:$0xff]
        %v4655 = vld [vmem:[#allocation2 + $0x42] sm:$0xff]
        %v4656 = vld [vmem:[#allocation2 + $0x52] sm:$0xff]
        %v4657 = vld [vmem:[#allocation2 + $0x62] sm:$0xff]
        %v4658 = vld [vmem:[#allocation2 + $0x72] sm:$0xff]
        %v4659 = vld [vmem:[#allocation2 + $0x82] sm:$0xff]
        %v4660 = vld [vmem:[#allocation2 + $0x92] sm:$0xff]
        %v4661 = vld [vmem:[#allocation2 + $0xa2] sm:$0xff]
        %v4662 = vld [vmem:[#allocation2 + $0xb2] sm:$0xff]
        %v4663 = vld [vmem:[%s3 + $0xe] sm:$0x1]
        %v4664 = vlaneseq
        %v4665 = vshrl.u32 %v4664, 7
        %v4666 = vsub.s32 0, %v4665
        %v4667 = vrot.slane %v4663, %v4666
        %v4668 = vmul.f32 %v4667, %v4651
        %v4669 = vmul.f32 %v4667, %v4652
        %v4670 = vmul.f32 %v4667, %v4653
        %v4671 = vmul.f32 %v4667, %v4654
        %v4672 = vmul.f32 %v4667, %v4655
        %v4673 = vmul.f32 %v4667, %v4656
        %v4674 = vmul.f32 %v4667, %v4657
        %v4675 = vmul.f32 %v4667, %v4658
        %v4676 = vadd.f32 %v4643, %v4668
        %v4677 = vadd.f32 %v4644, %v4669
        %v4678 = vadd.f32 %v4645, %v4670
        %v4679 = vadd.f32 %v4646, %v4671
        %v4680 = vadd.f32 %v4647, %v4672
        %v4681 = vadd.f32 %v4648, %v4673
        %v4682 = vadd.f32 %v4649, %v4674
        %v4683 = vadd.f32 %v4650, %v4675
        %v4684 = vld [vmem:[%s3 + $0x27] sm:$0x1]
        %v4685 = vlaneseq
        %v4686 = vshrl.u32 %v4685, 7
        %v4687 = vsub.s32 0, %v4686
        %v4688 = vrot.slane %v4684, %v4687
        %v4689 = vmul.f32 %v4688, %v4652
        %v4690 = vmul.f32 %v4688, %v4653
        %v4691 = vmul.f32 %v4688, %v4654
        %v4692 = vmul.f32 %v4688, %v4655
        %v4693 = vmul.f32 %v4688, %v4656
        %v4694 = vmul.f32 %v4688, %v4657
        %v4695 = vmul.f32 %v4688, %v4658
        %v4696 = vmul.f32 %v4688, %v4659
        %v4697 = vadd.f32 %v4622, %v4689
        %v4698 = vadd.f32 %v4623, %v4690
        %v4699 = vadd.f32 %v4624, %v4691
        %v4700 = vadd.f32 %v4625, %v4692
        %v4701 = vadd.f32 %v4626, %v4693
        %v4702 = vadd.f32 %v4627, %v4694
        %v4703 = vadd.f32 %v4628, %v4695
        %v4704 = vadd.f32 %v4629, %v4696
        %v4705 = vld [vmem:[%s3 + $0x40] sm:$0x1]
        %v4706 = vlaneseq
        %v4707 = vshrl.u32 %v4706, 7
        %v4708 = vsub.s32 0, %v4707
        %v4709 = vrot.slane %v4705, %v4708
        %v4710 = vmul.f32 %v4709, %v4653
        %v4711 = vmul.f32 %v4709, %v4654
        %v4712 = vmul.f32 %v4709, %v4655
        %v4713 = vmul.f32 %v4709, %v4656
        %v4714 = vmul.f32 %v4709, %v4657
        %v4715 = vmul.f32 %v4709, %v4658
        %v4716 = vmul.f32 %v4709, %v4659
        %v4717 = vmul.f32 %v4709, %v4660
        %v4718 = vadd.f32 %v4676, %v4710
        %v4719 = vadd.f32 %v4677, %v4711
        %v4720 = vadd.f32 %v4678, %v4712
        %v4721 = vadd.f32 %v4679, %v4713
        %v4722 = vadd.f32 %v4680, %v4714
        %v4723 = vadd.f32 %v4681, %v4715
        %v4724 = vadd.f32 %v4682, %v4716
        %v4725 = vadd.f32 %v4683, %v4717
        %v4726 = vld [vmem:[%s3 + $0x59] sm:$0x1]
        %v4727 = vlaneseq
        %v4728 = vshrl.u32 %v4727, 7
        %v4729 = vsub.s32 0, %v4728
        %v4730 = vrot.slane %v4726, %v4729
        %v4731 = vmul.f32 %v4730, %v4654
        %v4732 = vmul.f32 %v4730, %v4655
        %v4733 = vmul.f32 %v4730, %v4656
        %v4734 = vmul.f32 %v4730, %v4657
        %v4735 = vmul.f32 %v4730, %v4658
        %v4736 = vmul.f32 %v4730, %v4659
        %v4737 = vmul.f32 %v4730, %v4660
        %v4738 = vmul.f32 %v4730, %v4661
        %v4739 = vadd.f32 %v4697, %v4731
        %v4740 = vadd.f32 %v4698, %v4732
        %v4741 = vadd.f32 %v4699, %v4733
        %v4742 = vadd.f32 %v4700, %v4734
        %v4743 = vadd.f32 %v4701, %v4735
        %v4744 = vadd.f32 %v4702, %v4736
        %v4745 = vadd.f32 %v4703, %v4737
        %v4746 = vadd.f32 %v4704, %v4738
        %v4747 = vld [vmem:[%s3 + $0x72] sm:$0x1]
        %v4748 = vlaneseq
        %v4749 = vshrl.u32 %v4748, 7
        %v4750 = vsub.s32 0, %v4749
        %v4751 = vrot.slane %v4747, %v4750
        %v4752 = vmul.f32 %v4751, %v4655
        %v4753 = vmul.f32 %v4751, %v4656
        %v4754 = vmul.f32 %v4751, %v4657
        %v4755 = vmul.f32 %v4751, %v4658
        %v4756 = vmul.f32 %v4751, %v4659
        %v4757 = vmul.f32 %v4751, %v4660
        %v4758 = vmul.f32 %v4751, %v4661
        %v4759 = vmul.f32 %v4751, %v4662
        %v4760 = vadd.f32 %v4718, %v4752
        %v4761 = vadd.f32 %v4719, %v4753
        %v4762 = vadd.f32 %v4720, %v4754
        %v4763 = vadd.f32 %v4721, %v4755
        %v4764 = vadd.f32 %v4722, %v4756
        %v4765 = vadd.f32 %v4723, %v4757
        %v4766 = vadd.f32 %v4724, %v4758
        %v4767 = vadd.f32 %v4725, %v4759
        %v4768 = vld [vmem:[#allocation2 + $0x3] sm:$0xff]
        %v4769 = vld [vmem:[#allocation2 + $0x13] sm:$0xff]
        %v4770 = vld [vmem:[#allocation2 + $0x23] sm:$0xff]
        %v4771 = vld [vmem:[#allocation2 + $0x33] sm:$0xff]
        %v4772 = vld [vmem:[#allocation2 + $0x43] sm:$0xff]
        %v4773 = vld [vmem:[#allocation2 + $0x53] sm:$0xff]
        %v4774 = vld [vmem:[#allocation2 + $0x63] sm:$0xff]
        %v4775 = vld [vmem:[#allocation2 + $0x73] sm:$0xff]
        %v4776 = vld [vmem:[#allocation2 + $0x83] sm:$0xff]
        %v4777 = vld [vmem:[#allocation2 + $0x93] sm:$0xff]
        %v4778 = vld [vmem:[#allocation2 + $0xa3] sm:$0xff]
        %v4779 = vld [vmem:[#allocation2 + $0xb3] sm:$0xff]
        %v4780 = vld [vmem:[%s3 + $0x13] sm:$0x1]
        %v4781 = vlaneseq
        %v4782 = vshrl.u32 %v4781, 7
        %v4783 = vsub.s32 0, %v4782
        %v4784 = vrot.slane %v4780, %v4783
        %v4785 = vmul.f32 %v4784, %v4768
        %v4786 = vmul.f32 %v4784, %v4769
        %v4787 = vmul.f32 %v4784, %v4770
        %v4788 = vmul.f32 %v4784, %v4771
        %v4789 = vmul.f32 %v4784, %v4772
        %v4790 = vmul.f32 %v4784, %v4773
        %v4791 = vmul.f32 %v4784, %v4774
        %v4792 = vmul.f32 %v4784, %v4775
        %v4793 = vadd.f32 %v4760, %v4785
        %v4794 = vadd.f32 %v4761, %v4786
        %v4795 = vadd.f32 %v4762, %v4787
        %v4796 = vadd.f32 %v4763, %v4788
        %v4797 = vadd.f32 %v4764, %v4789
        %v4798 = vadd.f32 %v4765, %v4790
        %v4799 = vadd.f32 %v4766, %v4791
        %v4800 = vadd.f32 %v4767, %v4792
        %v4801 = vld [vmem:[%s3 + $0x2c] sm:$0x1]
        %v4802 = vlaneseq
        %v4803 = vshrl.u32 %v4802, 7
        %v4804 = vsub.s32 0, %v4803
        %v4805 = vrot.slane %v4801, %v4804
        %v4806 = vmul.f32 %v4805, %v4769
        %v4807 = vmul.f32 %v4805, %v4770
        %v4808 = vmul.f32 %v4805, %v4771
        %v4809 = vmul.f32 %v4805, %v4772
        %v4810 = vmul.f32 %v4805, %v4773
        %v4811 = vmul.f32 %v4805, %v4774
        %v4812 = vmul.f32 %v4805, %v4775
        %v4813 = vmul.f32 %v4805, %v4776
        %v4814 = vadd.f32 %v4739, %v4806
        %v4815 = vadd.f32 %v4740, %v4807
        %v4816 = vadd.f32 %v4741, %v4808
        %v4817 = vadd.f32 %v4742, %v4809
        %v4818 = vadd.f32 %v4743, %v4810
        %v4819 = vadd.f32 %v4744, %v4811
        %v4820 = vadd.f32 %v4745, %v4812
        %v4821 = vadd.f32 %v4746, %v4813
        %v4822 = vld [vmem:[%s3 + $0x45] sm:$0x1]
        %v4823 = vlaneseq
        %v4824 = vshrl.u32 %v4823, 7
        %v4825 = vsub.s32 0, %v4824
        %v4826 = vrot.slane %v4822, %v4825
        %v4827 = vmul.f32 %v4826, %v4770
        %v4828 = vmul.f32 %v4826, %v4771
        %v4829 = vmul.f32 %v4826, %v4772
        %v4830 = vmul.f32 %v4826, %v4773
        %v4831 = vmul.f32 %v4826, %v4774
        %v4832 = vmul.f32 %v4826, %v4775
        %v4833 = vmul.f32 %v4826, %v4776
        %v4834 = vmul.f32 %v4826, %v4777
        %v4835 = vadd.f32 %v4793, %v4827
        %v4836 = vadd.f32 %v4794, %v4828
        %v4837 = vadd.f32 %v4795, %v4829
        %v4838 = vadd.f32 %v4796, %v4830
        %v4839 = vadd.f32 %v4797, %v4831
        %v4840 = vadd.f32 %v4798, %v4832
        %v4841 = vadd.f32 %v4799, %v4833
        %v4842 = vadd.f32 %v4800, %v4834
        %v4843 = vld [vmem:[%s3 + $0x5e] sm:$0x1]
        %v4844 = vlaneseq
        %v4845 = vshrl.u32 %v4844, 7
        %v4846 = vsub.s32 0, %v4845
        %v4847 = vrot.slane %v4843, %v4846
        %v4848 = vmul.f32 %v4847, %v4771
        %v4849 = vmul.f32 %v4847, %v4772
        %v4850 = vmul.f32 %v4847, %v4773
        %v4851 = vmul.f32 %v4847, %v4774
        %v4852 = vmul.f32 %v4847, %v4775
        %v4853 = vmul.f32 %v4847, %v4776
        %v4854 = vmul.f32 %v4847, %v4777
        %v4855 = vmul.f32 %v4847, %v4778
        %v4856 = vadd.f32 %v4814, %v4848
        %v4857 = vadd.f32 %v4815, %v4849
        %v4858 = vadd.f32 %v4816, %v4850
        %v4859 = vadd.f32 %v4817, %v4851
        %v4860 = vadd.f32 %v4818, %v4852
        %v4861 = vadd.f32 %v4819, %v4853
        %v4862 = vadd.f32 %v4820, %v4854
        %v4863 = vadd.f32 %v4821, %v4855
        %v4864 = vld [vmem:[%s3 + $0x77] sm:$0x1]
        %v4865 = vlaneseq
        %v4866 = vshrl.u32 %v4865, 7
        %v4867 = vsub.s32 0, %v4866
        %v4868 = vrot.slane %v4864, %v4867
        %v4869 = vmul.f32 %v4868, %v4772
        %v4870 = vmul.f32 %v4868, %v4773
        %v4871 = vmul.f32 %v4868, %v4774
        %v4872 = vmul.f32 %v4868, %v4775
        %v4873 = vmul.f32 %v4868, %v4776
        %v4874 = vmul.f32 %v4868, %v4777
        %v4875 = vmul.f32 %v4868, %v4778
        %v4876 = vmul.f32 %v4868, %v4779
        %v4877 = vadd.f32 %v4835, %v4869
        %v4878 = vadd.f32 %v4836, %v4870
        %v4879 = vadd.f32 %v4837, %v4871
        %v4880 = vadd.f32 %v4838, %v4872
        %v4881 = vadd.f32 %v4839, %v4873
        %v4882 = vadd.f32 %v4840, %v4874
        %v4883 = vadd.f32 %v4841, %v4875
        %v4884 = vadd.f32 %v4842, %v4876
        %v4885 = vld [vmem:[#allocation2 + $0x4] sm:$0xff]
        %v4886 = vld [vmem:[#allocation2 + $0x14] sm:$0xff]
        %v4887 = vld [vmem:[#allocation2 + $0x24] sm:$0xff]
        %v4888 = vld [vmem:[#allocation2 + $0x34] sm:$0xff]
        %v4889 = vld [vmem:[#allocation2 + $0x44] sm:$0xff]
        %v4890 = vld [vmem:[#allocation2 + $0x54] sm:$0xff]
        %v4891 = vld [vmem:[#allocation2 + $0x64] sm:$0xff]
        %v4892 = vld [vmem:[#allocation2 + $0x74] sm:$0xff]
        %v4893 = vld [vmem:[#allocation2 + $0x84] sm:$0xff]
        %v4894 = vld [vmem:[#allocation2 + $0x94] sm:$0xff]
        %v4895 = vld [vmem:[#allocation2 + $0xa4] sm:$0xff]
        %v4896 = vld [vmem:[#allocation2 + $0xb4] sm:$0xff]
        %v4897 = vld [vmem:[%s3 + $0x18] sm:$0x1]
        %v4898 = vlaneseq
        %v4899 = vshrl.u32 %v4898, 7
        %v4900 = vsub.s32 0, %v4899
        %v4901 = vrot.slane %v4897, %v4900
        %v4902 = vmul.f32 %v4901, %v4885
        %v4903 = vmul.f32 %v4901, %v4886
        %v4904 = vmul.f32 %v4901, %v4887
        %v4905 = vmul.f32 %v4901, %v4888
        %v4906 = vmul.f32 %v4901, %v4889
        %v4907 = vmul.f32 %v4901, %v4890
        %v4908 = vmul.f32 %v4901, %v4891
        %v4909 = vmul.f32 %v4901, %v4892
        %v4910 = vadd.f32 %v4877, %v4902
        %v4911 = vadd.f32 %v4878, %v4903
        %v4912 = vadd.f32 %v4879, %v4904
        %v4913 = vadd.f32 %v4880, %v4905
        %v4914 = vadd.f32 %v4881, %v4906
        %v4915 = vadd.f32 %v4882, %v4907
        %v4916 = vadd.f32 %v4883, %v4908
        %v4917 = vadd.f32 %v4884, %v4909
        %v4918 = vld [vmem:[%s3 + $0x31] sm:$0x1]
        %v4919 = vlaneseq
        %v4920 = vshrl.u32 %v4919, 7
        %v4921 = vsub.s32 0, %v4920
        %v4922 = vrot.slane %v4918, %v4921
        %v4923 = vmul.f32 %v4922, %v4886
        %v4924 = vmul.f32 %v4922, %v4887
        %v4925 = vmul.f32 %v4922, %v4888
        %v4926 = vmul.f32 %v4922, %v4889
        %v4927 = vmul.f32 %v4922, %v4890
        %v4928 = vmul.f32 %v4922, %v4891
        %v4929 = vmul.f32 %v4922, %v4892
        %v4930 = vmul.f32 %v4922, %v4893
        %v4931 = vadd.f32 %v4856, %v4923
        %v4932 = vadd.f32 %v4857, %v4924
        %v4933 = vadd.f32 %v4858, %v4925
        %v4934 = vadd.f32 %v4859, %v4926
        %v4935 = vadd.f32 %v4860, %v4927
        %v4936 = vadd.f32 %v4861, %v4928
        %v4937 = vadd.f32 %v4862, %v4929
        %v4938 = vadd.f32 %v4863, %v4930
        %v4939 = vld [vmem:[%s3 + $0x4a] sm:$0x1]
        %v4940 = vlaneseq
        %v4941 = vshrl.u32 %v4940, 7
        %v4942 = vsub.s32 0, %v4941
        %v4943 = vrot.slane %v4939, %v4942
        %v4944 = vmul.f32 %v4943, %v4887
        %v4945 = vmul.f32 %v4943, %v4888
        %v4946 = vmul.f32 %v4943, %v4889
        %v4947 = vmul.f32 %v4943, %v4890
        %v4948 = vmul.f32 %v4943, %v4891
        %v4949 = vmul.f32 %v4943, %v4892
        %v4950 = vmul.f32 %v4943, %v4893
        %v4951 = vmul.f32 %v4943, %v4894
        %v4952 = vadd.f32 %v4910, %v4944
        %v4953 = vadd.f32 %v4911, %v4945
        %v4954 = vadd.f32 %v4912, %v4946
        %v4955 = vadd.f32 %v4913, %v4947
        %v4956 = vadd.f32 %v4914, %v4948
        %v4957 = vadd.f32 %v4915, %v4949
        %v4958 = vadd.f32 %v4916, %v4950
        %v4959 = vadd.f32 %v4917, %v4951
        %v4960 = vld [vmem:[%s3 + $0x63] sm:$0x1]
        %v4961 = vlaneseq
        %v4962 = vshrl.u32 %v4961, 7
        %v4963 = vsub.s32 0, %v4962
        %v4964 = vrot.slane %v4960, %v4963
        %v4965 = vmul.f32 %v4964, %v4888
        %v4966 = vmul.f32 %v4964, %v4889
        %v4967 = vmul.f32 %v4964, %v4890
        %v4968 = vmul.f32 %v4964, %v4891
        %v4969 = vmul.f32 %v4964, %v4892
        %v4970 = vmul.f32 %v4964, %v4893
        %v4971 = vmul.f32 %v4964, %v4894
        %v4972 = vmul.f32 %v4964, %v4895
        %v4973 = vadd.f32 %v4931, %v4965
        %v4974 = vadd.f32 %v4932, %v4966
        %v4975 = vadd.f32 %v4933, %v4967
        %v4976 = vadd.f32 %v4934, %v4968
        %v4977 = vadd.f32 %v4935, %v4969
        %v4978 = vadd.f32 %v4936, %v4970
        %v4979 = vadd.f32 %v4937, %v4971
        %v4980 = vadd.f32 %v4938, %v4972
        %v4981 = vld [vmem:[%s3 + $0x7c] sm:$0x1]
        %v4982 = vlaneseq
        %v4983 = vshrl.u32 %v4982, 7
        %v4984 = vsub.s32 0, %v4983
        %v4985 = vrot.slane %v4981, %v4984
        %v4986 = vmul.f32 %v4985, %v4889
        %v4987 = vmul.f32 %v4985, %v4890
        %v4988 = vmul.f32 %v4985, %v4891
        %v4989 = vmul.f32 %v4985, %v4892
        %v4990 = vmul.f32 %v4985, %v4893
        %v4991 = vmul.f32 %v4985, %v4894
        %v4992 = vmul.f32 %v4985, %v4895
        %v4993 = vmul.f32 %v4985, %v4896
        %v4994 = vadd.f32 %v4952, %v4986
        %v4995 = vadd.f32 %v4953, %v4987
        %v4996 = vadd.f32 %v4954, %v4988
        %v4997 = vadd.f32 %v4955, %v4989
        %v4998 = vadd.f32 %v4956, %v4990
        %v4999 = vadd.f32 %v4957, %v4991
        %v5000 = vadd.f32 %v4958, %v4992
        %v5001 = vadd.f32 %v4959, %v4993
        %v5002 = vadd.f32 %v4994, %v4973
        %v5003 = vadd.f32 %v4995, %v4974
        %v5004 = vadd.f32 %v4996, %v4975
        %v5005 = vadd.f32 %v4997, %v4976
        %v5006 = vadd.f32 %v4998, %v4977
        %v5007 = vadd.f32 %v4999, %v4978
        %v5008 = vadd.f32 %v5000, %v4979
        %v5009 = vadd.f32 %v5001, %v4980
        %v5010 = vld [vmem:[%s4] sm:$0x1]
        %v5012 = vlaneseq
        %v5013 = vshrl.u32 %v5012, 7
        %v5014 = vsub.s32 0, %v5013
        %v5015 = vrot.slane %v5010, %v5014
        %v5017 = vadd.f32 %v5002, %v5015
        %v5018 = vadd.f32 %v5003, %v5015
        %v5019 = vadd.f32 %v5004, %v5015
        %v5020 = vadd.f32 %v5005, %v5015
        %v5021 = vadd.f32 %v5006, %v5015
        %v5022 = vadd.f32 %v5007, %v5015
        %v5023 = vadd.f32 %v5008, %v5015
        %v5024 = vadd.f32 %v5009, %v5015
        %v5025 = vmax.f32 %v5017, 0.0
        %v5026 = vmax.f32 %v5018, 0.0
        %v5027 = vmax.f32 %v5019, 0.0
        %v5028 = vmax.f32 %v5020, 0.0
        %v5029 = vmax.f32 %v5021, 0.0
        %v5030 = vmax.f32 %v5022, 0.0
        %v5031 = vmax.f32 %v5023, 0.0
        %v5032 = vmax.f32 %v5024, 0.0
        %v5033 = vsel %vm451, %v1445, 0.0
        %v5034 = vsel %vm451, %v1446, 0.0
        %v5035 = vadd.f32 %v5033, %v5034
        %v5036 = vsel %vm451, %v1447, 0.0
        %v5037 = vadd.f32 %v5035, %v5036
        %v5038 = vsel %vm451, %v1448, 0.0
        %v5039 = vadd.f32 %v5037, %v5038
        %v5040 = vsel %vm451, %v1449, 0.0
        %v5041 = vadd.f32 %v5039, %v5040
        %v5042 = vsel %vm451, %v1450, 0.0
        %v5043 = vadd.f32 %v5041, %v5042
        %v5044 = vsel %vm451, %v1451, 0.0
        %v5045 = vadd.f32 %v5043, %v5044
        %v5046 = vsel %vm451, %v1452, 0.0
        %v5047 = vadd.f32 %v5045, %v5046
        %v5048 = vsel %vm451, %v5047, 0.0
        %v5049 = vrot.slane %v5048, 4
        %v5050 = vadd.f32 %v5048, %v5049
        %v5051 = vrot.slane %v5050, 2
        %v5052 = vadd.f32 %v5050, %v5051
        %v5053 = vrot.slane %v5052, 1
        %v5054 = vadd.f32 %v5052, %v5053
        %v5055 = vsel %vm451, %v5025, 0.0
        %v5056 = vsel %vm451, %v5026, 0.0
        %v5057 = vadd.f32 %v5055, %v5056
        %v5058 = vsel %vm451, %v5027, 0.0
        %v5059 = vadd.f32 %v5057, %v5058
        %v5060 = vsel %vm451, %v5028, 0.0
        %v5061 = vadd.f32 %v5059, %v5060
        %v5062 = vsel %vm451, %v5029, 0.0
        %v5063 = vadd.f32 %v5061, %v5062
        %v5064 = vsel %vm451, %v5030, 0.0
        %v5065 = vadd.f32 %v5063, %v5064
        %v5066 = vsel %vm451, %v5031, 0.0
        %v5067 = vadd.f32 %v5065, %v5066
        %v5068 = vsel %vm451, %v5032, 0.0
        %v5069 = vadd.f32 %v5067, %v5068
        %v5070 = vsel %vm451, %v5069, 0.0
        %v5071 = vrot.slane %v5070, 4
        %v5072 = vadd.f32 %v5070, %v5071
        %v5073 = vrot.slane %v5072, 2
        %v5074 = vadd.f32 %v5072, %v5073
        %v5075 = vrot.slane %v5074, 1
        %v5076 = vadd.f32 %v5074, %v5075
        %v5077 = vadd.f32 %v5054, %v5076
        %v5078 = vmul.f32 %v5077, 0.001953125
        %v5079 = vld [vmem:[%s5] sm:$0xff]
        %v5080 = vld [vmem:[%s5 + $0x8] sm:$0xff]
        %v5081 = vld [vmem:[%s5 + $0x10] sm:$0xff]
        %v5082 = vld [vmem:[%s5 + $0x18] sm:$0xff]
        %v5083 = vld [vmem:[%s5 + $0x20] sm:$0xff]
        %v5084 = vld [vmem:[%s5 + $0x28] sm:$0xff]
        %v5085 = vld [vmem:[%s5 + $0x30] sm:$0xff]
        %v5086 = vld [vmem:[%s5 + $0x38] sm:$0xff]
        %v5087 = vld [vmem:[%s6] sm:$0x1]
        %v5089 = vsel %vm451, %v5078, 0
        %5091 = vmatprep.subr.mxu0 0.0
        %5092 = vmatpush1.msra.mxu0 %v5079
        %5093 = vmatprep.subr.mxu0 0.0
        %5094 = vmatpush1.msra.mxu0 %v5080
        %5095 = vmatprep.subr.mxu0 0.0
        %5096 = vmatpush1.msra.mxu0 %v5081
        %5097 = vmatprep.subr.mxu0 0.0
        %5098 = vmatpush1.msra.mxu0 %v5082
        %5099 = vmatprep.subr.mxu0 0.0
        %5100 = vmatpush1.msra.mxu0 %v5083
        %5101 = vmatprep.subr.mxu0 0.0
        %5102 = vmatpush1.msra.mxu0 %v5084
        %5103 = vmatprep.subr.mxu0 0.0
        %5104 = vmatpush1.msra.mxu0 %v5085
        %5105 = vmatprep.subr.mxu0 0.0
        %5106 = vmatpush1.msra.mxu0 %v5086
        %5107 = vmatprep.subr.mxu0 0.0
        %5108 = vmatpush1.msra.mxu0 0.0
        %5109 = vmatprep.subr.mxu0 0.0
        %5110 = vmatpush1.msra.mxu0 0.0
        %5111 = vmatprep.subr.mxu0 0.0
        %5112 = vmatpush1.msra.mxu0 0.0
        %5113 = vmatprep.subr.mxu0 0.0
        %5114 = vmatpush1.msra.mxu0 0.0
        %5115 = vmatprep.subr.mxu0 0.0
        %5116 = vmatpush1.msra.mxu0 0.0
        %5117 = vmatprep.subr.mxu0 0.0
        %5118 = vmatpush1.msra.mxu0 0.0
        %5119 = vmatprep.subr.mxu0 0.0
        %5120 = vmatpush1.msra.mxu0 0.0
        %5121 = vmatprep.subr.mxu0 0.0
        %5122 = vmatpush1.msra.mxu0 0.0
        %5123 = vmatprep.subr.mxu0 0.0
        %5124 = vmatpush1.msra.mxu0 0.0
        %5125 = vmatprep.subr.mxu0 0.0
        %5126 = vmatpush1.msra.mxu0 0.0
        %5127 = vmatprep.subr.mxu0 0.0
        %5128 = vmatpush1.msra.mxu0 0.0
        %5129 = vmatprep.subr.mxu0 0.0
        %5130 = vmatpush1.msra.mxu0 0.0
        %5131 = vmatprep.subr.mxu0 0.0
        %5132 = vmatpush1.msra.mxu0 0.0
        %5133 = vmatprep.subr.mxu0 0.0
        %5134 = vmatpush1.msra.mxu0 0.0
        %5135 = vmatprep.subr.mxu0 0.0
        %5136 = vmatpush1.msra.mxu0 0.0
        %5137 = vmatprep.subr.mxu0 0.0
        %5138 = vmatpush1.msra.mxu0 0.0
        %5139 = vmatprep.subr.mxu0 0.0
        %5140 = vmatpush1.msra.mxu0 0.0
        %5141 = vmatprep.subr.mxu0 0.0
        %5142 = vmatpush1.msra.mxu0 0.0
        %5143 = vmatprep.subr.mxu0 0.0
        %5144 = vmatpush1.msra.mxu0 0.0
        %5145 = vmatprep.subr.mxu0 0.0
        %5146 = vmatpush1.msra.mxu0 0.0
        %5147 = vmatprep.subr.mxu0 0.0
        %5148 = vmatpush1.msra.mxu0 0.0
        %5149 = vmatprep.subr.mxu0 0.0
        %5150 = vmatpush1.msra.mxu0 0.0
        %5151 = vmatprep.subr.mxu0 0.0
        %5152 = vmatpush1.msra.mxu0 0.0
        %5153 = vmatprep.subr.mxu0 0.0
        %5154 = vmatpush1.msra.mxu0 0.0
        %5155 = vmatprep.mubr.f32.mxu0 0.0
        %5156 = vmatmul.mubr.f32.gmra.mrb[0].mxu0 %v5089
        %v5157 = vpop.f32.mrb[0].mxu0
        %v5158 = vadd.f32 %v5087, %v5157
        %v5159 = vpop.f32.mrb[0].mxu0
        %5160 = vdwg.mxu0
        %v5161 = vmax.f32 %v5158, 0.0
        %v5162 = vld [vmem:[%s7] sm:$0xff]
        %v5163 = vld [vmem:[%s7 + $0x8] sm:$0xff]
        %v5164 = vld [vmem:[%s7 + $0x10] sm:$0xff]
        %v5165 = vld [vmem:[%s7 + $0x18] sm:$0xff]
        %v5166 = vld [vmem:[%s8] sm:$0x1]
        %vm5167 = vcmask 261120
        %v5169 = vsel %vm5167, %v5161, 0
        %5171 = vmatprep.subr.mxu0 0.0
        %5172 = vmatpush1.msra.mxu0 %v5162
        %5173 = vmatprep.subr.mxu0 0.0
        %5174 = vmatpush1.msra.mxu0 %v5163
        %5175 = vmatprep.subr.mxu0 0.0
        %5176 = vmatpush1.msra.mxu0 %v5164
        %5177 = vmatprep.subr.mxu0 0.0
        %5178 = vmatpush1.msra.mxu0 %v5165
        %5179 = vmatprep.subr.mxu0 0.0
        %5180 = vmatpush1.msra.mxu0 0.0
        %5181 = vmatprep.subr.mxu0 0.0
        %5182 = vmatpush1.msra.mxu0 0.0
        %5183 = vmatprep.subr.mxu0 0.0
        %5184 = vmatpush1.msra.mxu0 0.0
        %5185 = vmatprep.subr.mxu0 0.0
        %5186 = vmatpush1.msra.mxu0 0.0
        %5187 = vmatprep.subr.mxu0 0.0
        %5188 = vmatpush1.msra.mxu0 0.0
        %5189 = vmatprep.subr.mxu0 0.0
        %5190 = vmatpush1.msra.mxu0 0.0
        %5191 = vmatprep.subr.mxu0 0.0
        %5192 = vmatpush1.msra.mxu0 0.0
        %5193 = vmatprep.subr.mxu0 0.0
        %5194 = vmatpush1.msra.mxu0 0.0
        %5195 = vmatprep.subr.mxu0 0.0
        %5196 = vmatpush1.msra.mxu0 0.0
        %5197 = vmatprep.subr.mxu0 0.0
        %5198 = vmatpush1.msra.mxu0 0.0
        %5199 = vmatprep.subr.mxu0 0.0
        %5200 = vmatpush1.msra.mxu0 0.0
        %5201 = vmatprep.subr.mxu0 0.0
        %5202 = vmatpush1.msra.mxu0 0.0
        %5203 = vmatprep.subr.mxu0 0.0
        %5204 = vmatpush1.msra.mxu0 0.0
        %5205 = vmatprep.subr.mxu0 0.0
        %5206 = vmatpush1.msra.mxu0 0.0
        %5207 = vmatprep.subr.mxu0 0.0
        %5208 = vmatpush1.msra.mxu0 0.0
        %5209 = vmatprep.subr.mxu0 0.0
        %5210 = vmatpush1.msra.mxu0 0.0
        %5211 = vmatprep.subr.mxu0 0.0
        %5212 = vmatpush1.msra.mxu0 0.0
        %5213 = vmatprep.subr.mxu0 0.0
        %5214 = vmatpush1.msra.mxu0 0.0
        %5215 = vmatprep.subr.mxu0 0.0
        %5216 = vmatpush1.msra.mxu0 0.0
        %5217 = vmatprep.subr.mxu0 0.0
        %5218 = vmatpush1.msra.mxu0 0.0
        %5219 = vmatprep.subr.mxu0 0.0
        %5220 = vmatpush1.msra.mxu0 0.0
        %5221 = vmatprep.subr.mxu0 0.0
        %5222 = vmatpush1.msra.mxu0 0.0
        %5223 = vmatprep.subr.mxu0 0.0
        %5224 = vmatpush1.msra.mxu0 0.0
        %5225 = vmatprep.subr.mxu0 0.0
        %5226 = vmatpush1.msra.mxu0 0.0
        %5227 = vmatprep.subr.mxu0 0.0
        %5228 = vmatpush1.msra.mxu0 0.0
        %5229 = vmatprep.subr.mxu0 0.0
        %5230 = vmatpush1.msra.mxu0 0.0
        %5231 = vmatprep.subr.mxu0 0.0
        %5232 = vmatpush1.msra.mxu0 0.0
        %5233 = vmatprep.subr.mxu0 0.0
        %5234 = vmatpush1.msra.mxu0 0.0
        %5235 = vmatprep.mubr.f32.mxu0 0.0
        %5236 = vmatmul.mubr.f32.gmra.mrb[0].mxu0 %v5169
        %v5237 = vpop.f32.mrb[0].mxu0
        %v5238 = vadd.f32 %v5166, %v5237
        %v5239 = vpop.f32.mrb[0].mxu0
        %5240 = vdwg.mxu0
        %5242 = vrot.lane.b32.xlu0 %v5238, 64
        %v5243 = vpop.permute.xlu0 %5242
        %v5245 = vmax.f32 %v5238, %v5243
        %v5246 = vsub.f32 %v5238, %v5245
        %v5247 = vmul.f32 %v5246, 1.442695
        %v5248 = vpow.pop %v5247
        %5250 = vrot.lane.b32.xlu0 %v5245, 64
        %v5251 = vpop.permute.xlu0 %5250
        %v5253 = vsub.f32 %v5238, %v5251
        %v5254 = vmul.f32 %v5253, 1.442695
        %v5255 = vpow.pop %v5254
        %5257 = vrot.lane.b32.xlu0 %v5255, 64
        %v5258 = vpop.permute.xlu0 %5257
        %v5260 = vadd.f32 %v5248, %v5258
        %v5261 = vrcp.pop %v5260
        %v5262 = vmul.f32 1.0, %v5261
        %v5263 = vmul.f32 %v5248, %v5262
        %5265 = vrot.lane.b32.xlu0 %v5262, 64
        %v5266 = vpop.permute.xlu0 %5265
        %v5268 = vmul.f32 %v5255, %v5266
        %v5269 = vlaneseq
        %v5270 = vshrl.u32 %v5269, 7
        %v5271 = vsub.s32 0, %v5270
        %v5272 = vrot.slane %v5263, %v5271
        %v5273 = vmul.f32 %v5272, %v1445
        %v5274 = vmul.f32 %v5272, %v1446
        %v5275 = vmul.f32 %v5272, %v1447
        %v5276 = vmul.f32 %v5272, %v1448
        %v5277 = vmul.f32 %v5272, %v1449
        %v5278 = vmul.f32 %v5272, %v1450
        %v5279 = vmul.f32 %v5272, %v1451
        %v5280 = vmul.f32 %v5272, %v1452
        %v5281 = vlaneseq
        %v5282 = vshrl.u32 %v5281, 7
        %v5283 = vsub.s32 0, %v5282
        %v5284 = vrot.slane %v5268, %v5283
        %5293 = vrot.lane.b32.xlu0 %v5025, 64
        %v5294 = vpop.permute.xlu0 %5293
        %5295 = vrot.lane.b32.xlu0 %v5026, 64
        %v5296 = vpop.permute.xlu0 %5295
        %5297 = vrot.lane.b32.xlu0 %v5027, 64
        %v5298 = vpop.permute.xlu0 %5297
        %5299 = vrot.lane.b32.xlu0 %v5028, 64
        %v5300 = vpop.permute.xlu0 %5299
        %5301 = vrot.lane.b32.xlu0 %v5029, 64
        %v5302 = vpop.permute.xlu0 %5301
        %5303 = vrot.lane.b32.xlu0 %v5030, 64
        %v5304 = vpop.permute.xlu0 %5303
        %5305 = vrot.lane.b32.xlu0 %v5031, 64
        %v5306 = vpop.permute.xlu0 %5305
        %5307 = vrot.lane.b32.xlu0 %v5032, 64
        %v5308 = vpop.permute.xlu0 %5307
        %v5317 = vmul.f32 %v5284, %v5294
        %v5318 = vmul.f32 %v5284, %v5296
        %v5319 = vmul.f32 %v5284, %v5298
        %v5320 = vmul.f32 %v5284, %v5300
        %v5321 = vmul.f32 %v5284, %v5302
        %v5322 = vmul.f32 %v5284, %v5304
        %v5323 = vmul.f32 %v5284, %v5306
        %v5324 = vmul.f32 %v5284, %v5308
        %5333 = vrot.lane.b32.xlu0 %v5317, 64
        %v5334 = vpop.permute.xlu0 %5333
        %5335 = vrot.lane.b32.xlu0 %v5318, 64
        %v5336 = vpop.permute.xlu0 %5335
        %5337 = vrot.lane.b32.xlu0 %v5319, 64
        %v5338 = vpop.permute.xlu0 %5337
        %5339 = vrot.lane.b32.xlu0 %v5320, 64
        %v5340 = vpop.permute.xlu0 %5339
        %5341 = vrot.lane.b32.xlu0 %v5321, 64
        %v5342 = vpop.permute.xlu0 %5341
        %5343 = vrot.lane.b32.xlu0 %v5322, 64
        %v5344 = vpop.permute.xlu0 %5343
        %5345 = vrot.lane.b32.xlu0 %v5323, 64
        %v5346 = vpop.permute.xlu0 %5345
        %5347 = vrot.lane.b32.xlu0 %v5324, 64
        %v5348 = vpop.permute.xlu0 %5347
        %v5357 = vadd.f32 %v5273, %v5334
        %v5358 = vadd.f32 %v5274, %v5336
        %v5359 = vadd.f32 %v5275, %v5338
        %v5360 = vadd.f32 %v5276, %v5340
        %v5361 = vadd.f32 %v5277, %v5342
        %v5362 = vadd.f32 %v5278, %v5344
        %v5363 = vadd.f32 %v5279, %v5346
        %v5364 = vadd.f32 %v5280, %v5348
        %5365 = vst.msk [vmem:[%s325] sm:$0xff] %vm451, %v5357
        %5366 = vst.msk [vmem:[%s325 + $0x8] sm:$0xff] %vm451, %v5358
        %5367 = vst.msk [vmem:[%s325 + $0x10] sm:$0xff] %vm451, %v5359
        %5368 = vst.msk [vmem:[%s325 + $0x18] sm:$0xff] %vm451, %v5360
        %5369 = vst.msk [vmem:[%s325 + $0x20] sm:$0xff] %vm451, %v5361
        %5370 = vst.msk [vmem:[%s325 + $0x28] sm:$0xff] %vm451, %v5362
        %5371 = vst.msk [vmem:[%s325 + $0x30] sm:$0xff] %vm451, %v5363
        %5372 = vst.msk [vmem:[%s325 + $0x38] sm:$0xff] %vm451, %v5364
        %s5373 = sand.u32 %s225, 1
        %s5374 = scalar_lea.sflag [#allocation4], %s5373
        %s5375 = sand.u32 %s225, 1
        %s5376 = smul.addr %s5375, 64
        %s5377 = scalar_lea.vmem [#allocation3], %s5376
        // Predicated region
        $region57: #{tpu_custom_call.1} parent=55 // pred_check
          %p5378 = pneg %p235
        $region58: #{tpu_custom_call.1} parent=55 // pred_check_branch
          %5380 = sbr.rel (%p5378) target = $region60
        $region59: #{tpu_custom_call.1} parent=55 // pred_region
          %s5382 = ssub.s32 1024, 1024
          %5383 = vsyncadd %s5374, %s5382
          %s5384 = smul.addr %s23, 8
          %s5385 = smul.addr %s5384, 128
          %s5386 = scalar_lea.hbm %s9, %s5385
          %s5387 = sshll.u32 %s5377, 4
          %s5388 = int_to_ptr.vmem [resolvable:$true] %s5387
          %5393 = dma.vmem_to_hbm [thread:$0]  %s5388, 1024, %s5386, %s5374, 128, 128, 8
        $region60: #{tpu_custom_call.1} parent=55 // pred_fallthru
          _
      $region56: #{tpu_custom_call.1} parent=5 // pred_fallthru
        _
      %p5394 = scmp.le.s32.totalorder 2, %s18
      // Predicated region
      $region61: #{tpu_custom_call.1} parent=5 // pred_check
        %p5395 = pneg %p5394
      $region62: #{tpu_custom_call.1} parent=5 // pred_check_branch
        %5397 = sbr.rel (%p5395) target = $region64
      $region63: #{tpu_custom_call.1} parent=5 // pred_region
        %s5398 = ssub.s32 %s18, 2
        // Predicated region
        $region65: #{tpu_custom_call.1} parent=63 // pred_check
          %p5399 = pneg %p241
        $region66: #{tpu_custom_call.1} parent=63 // pred_check_branch
          %5401 = sbr.rel (%p5399) target = $region68
        $region67: #{tpu_custom_call.1} parent=63 // pred_region
          %s5402 = sand.u32 %s226, 1
          %s5403 = scalar_lea.sflag [#allocation4], %s5402
          %s5404 = sand.u32 %s226, 1
          %s5405 = smul.addr %s5404, 64
          %s5406 = scalar_lea.vmem [#allocation3], %s5405
          %5407 = dma.done %s5403, 1024
        $region68: #{tpu_custom_call.1} parent=63 // pred_fallthru
          _
      $region64: #{tpu_custom_call.1} parent=5 // pred_fallthru
        _
    $region6: #{tpu_custom_call.1} parent=1 // loop_footer
      %s22 = sadd.s32 1, %s18
    $region7: #{tpu_custom_call.1} parent=1 // loop_footer_branch
      %17 = sbr.rel target = $region3
    $region8: #{tpu_custom_call.1} parent=1 // loop_exit
      _
    %5408 = vsyncpa [#allocation4], 1
    %s5409 = scalar_lea.sflag [#allocation4], 1
    %5410 = vsyncpa %s5409, 1

</llo_original>
